<compile_context>
chip_gen: v6e
topology: v6e:2x2x1
jax: 0.10.0
libtpu: 0.0.40
codegen_flags: <defaults>
</compile_context>

<pallas_src>
import numpy as np
import jax
import jax.numpy as jnp
from jax.experimental import pallas as pl
from jax.experimental.pallas import tpu as pltpu

N_IN = 3
N_LAYERS = 4
SIZE_LAYERS = 128
GLOBAL_DIM = 1024
FEAT_DIM = 256

CONV_DIMS = (
    [(N_IN, 64), (64, 64), (64, 64), (64, 128), (128, SIZE_LAYERS)]
    + [(SIZE_LAYERS, SIZE_LAYERS)] * N_LAYERS
    + [(SIZE_LAYERS, GLOBAL_DIM)]
)
DENSE_DIMS = [(GLOBAL_DIM, FEAT_DIM), (FEAT_DIM, FEAT_DIM)]
N_CONV = len(CONV_DIMS)        # 10
N_MID = N_CONV - 2             # 8 middle layers packed as 128x128 tiles
N_DENSE = len(DENSE_DIMS)      # 2


# ---------------------------------------------------------------------------
# Kernel 1: point-tiled shared MLP (10 conv1x1+BN+ReLU), running max over the
# point axis in a VMEM scratch, and the fused dense head (1024->256->256)
# computed once per batch at the last point tile.
#   grid = (B, n_pts_pad // TP);  batch "parallel", point axis "arbitrary".
#   output block: (FEAT_DIM, 1) global-feature column, written at the last k.
# ---------------------------------------------------------------------------
def mlp_pool_head_kernel(x_ref, w0_ref, ball_ref, wmid_ref, w9_ref, b9_ref,
                         w1_ref, b1_ref, w2_ref, b2_ref, out_ref, acc_ref):
    k = pl.program_id(1)

    @pl.when(k == 0)
    def _():
        # ReLU output >= 0, so 0 is an exact identity for the running max.
        acc_ref[...] = jnp.zeros_like(acc_ref)

    # Layer 0: (TP,3) @ (3,128).  K=3 is a nearly-empty MXU pass — negligible
    # next to the 128/1024-wide layers.  cout is zero-padded 64 -> 128.
    x = x_ref[...].astype(jnp.bfloat16)                           # (TP, 3)
    h = jnp.dot(x, w0_ref[...], preferred_element_type=jnp.float32)
    h = jnp.maximum(h + ball_ref[0], 0.0)                         # (TP, 128) f32

    # Layers 1..8: uniform zero-padded 128x128 tiles from the packed blob.
    # Padding is exact (padded output channels are ReLU(0)=0 and multiply
    # zero weight rows in the next layer) and adds no MXU tile passes.
    for i in range(N_MID):
        y = jnp.dot(h.astype(jnp.bfloat16), wmid_ref[i],
                    preferred_element_type=jnp.float32)
        h = jnp.maximum(y + ball_ref[i + 1], 0.0)                 # (TP, 128) f32

    # Layer 9: (TP,128) @ (128,1024).
    y = jnp.dot(h.astype(jnp.bfloat16), w9_ref[...],
                preferred_element_type=jnp.float32)
    h = jnp.maximum(y + b9_ref[...], 0.0)                         # (TP, 1024) f32

    # Running max over this point tile (cross-sublane reduce; XLU has slack
    # under the ~0.5 GFLOP of MXU work per step).
    acc_ref[...] = jnp.maximum(acc_ref[...],
                               jnp.max(h, axis=0, keepdims=True))

    @pl.when(k == pl.num_programs(1) - 1)
    def _():
        # Fused dense head (eval-mode-BN folded): 1024 -> 256 -> 256, once per
        # batch.  Written as a (FEAT_DIM, 1) column so the broadcast kernel
        # needs no per-step transpose.
        pooled = acc_ref[...]                                     # (1, 1024)
        g = jnp.dot(pooled.astype(jnp.bfloat16), w1_ref[...],
                    preferred_element_type=jnp.float32)
        g = jnp.maximum(g + b1_ref[...], 0.0)
        g = jnp.dot(g.astype(jnp.bfloat16), w2_ref[...],
                    preferred_element_type=jnp.float32)
        g = jnp.maximum(g + b2_ref[...], 0.0)                     # (1, 256)
        out_ref[...] = jnp.transpose(g)                           # (256, 1)


# ---------------------------------------------------------------------------
# Kernel 2: broadcast the (B, 256, 1) global-feature column over the points in
# the PyTorch (B, 256, n_pts) layout.  Pure lane-broadcast + lane-dense store.
# ---------------------------------------------------------------------------
def broadcast_kernel(g_ref, out_ref):
    # g_ref: (FEAT_DIM, 1);  out_ref: (FEAT_DIM, TN)
    out_ref[...] = jnp.broadcast_to(g_ref[...], out_ref.shape)


def _pick_broadcast_tile(n_pts):
    """Largest lane-dense tile dividing n_pts; else a 128-multiple fallback
    used with a cdiv grid + post-slice (never a (256, n_pts) block)."""
    for cand in (2048, 1024, 512, 256, 128):
        if n_pts % cand == 0:
            return cand
    return min(512, ((n_pts + 127) // 128) * 128)


def _pack_conv_params(conv_params):
    """Pack the 10 conv stages into 5 arrays (zero-padded to 128 where needed)."""
    W0, b0 = conv_params[0]
    assert W0.shape == (N_IN, 64)
    w0p = jnp.zeros((N_IN, SIZE_LAYERS), jnp.bfloat16).at[:, :W0.shape[1]].set(W0)

    w_mid = jnp.zeros((N_MID, SIZE_LAYERS, SIZE_LAYERS), jnp.bfloat16)
    b_all = jnp.zeros((N_MID + 1, 1, SIZE_LAYERS), jnp.float32)
    b_all = b_all.at[0, :, : b0.shape[1]].set(b0)
    for i in range(1, 1 + N_MID):
        W, b = conv_params[i]
        assert W.shape[0] <= SIZE_LAYERS and W.shape[1] <= SIZE_LAYERS
        w_mid = w_mid.at[i - 1, : W.shape[0], : W.shape[1]].set(W)
        b_all = b_all.at[i, :, : b.shape[1]].set(b)

    w9, b9 = conv_params[N_CONV - 1]                 # (128, 1024), (1, 1024)
    return w0p, w_mid, b_all, w9, b9


def pointnet_glob_forward(x_ncl, conv_params, dense_params, *, tp=1024):
    """x_ncl: (B, n_in, n_pts) f32, PyTorch NCL layout.  Returns feats (B,256,n_pts).

    tp: point-tile size for the MLP kernel.  1024 is a chip-portable default;
    on v5e/v6e (128 MiB VMEM) tp=2048 with vmem_limit_bytes=64<<20 is a valid
    sweep point.  Keep tp<=1024 on v7x (64 MiB VMEM).
    """
    B, n_in, n_pts = x_ncl.shape
    assert n_in == N_IN
    x_nlc = jnp.transpose(x_ncl, (0, 2, 1))                      # (B, n_pts, n_in)

    # Point tile: multiple of 256, never larger than the (rounded-up) cloud.
    tp = max(256, (int(tp) // 256) * 256)
    tp = min(tp, ((n_pts + 255) // 256) * 256)
    kp = pl.cdiv(n_pts, tp)
    n_pts_pad = kp * tp
    if n_pts_pad != n_pts:
        # Replicating real points is exact under pointwise-MLP + max.
        x_nlc = jnp.pad(x_nlc, ((0, 0), (0, n_pts_pad - n_pts), (0, 0)),
                        mode="edge")

    w0p, w_mid, b_all, w9, b9 = _pack_conv_params(conv_params)
    (w1, b1), (w2, b2) = dense_params

    flops = int(2 * B * n_pts_pad
                * (N_IN * SIZE_LAYERS + N_MID * SIZE_LAYERS * SIZE_LAYERS
                   + SIZE_LAYERS * GLOBAL_DIM)
                + 2 * B * (GLOBAL_DIM * FEAT_DIM + FEAT_DIM * FEAT_DIM))
    bytes_accessed = int(x_nlc.size * 4
                         + 2 * (w0p.size + w_mid.size + w9.size + w1.size + w2.size)
                         + 4 * (b_all.size + b9.size + b1.size + b2.size)
                         + B * FEAT_DIM * 4)

    # ---- kernel 1: point-tiled MLP + max-pool + fused dense head ----
    in_specs = [
        pl.BlockSpec((None, tp, N_IN), lambda b, k: (b, k, 0)),        # x
        pl.BlockSpec(w0p.shape, lambda b, k: (0, 0)),                  # (3, 128)
        pl.BlockSpec(b_all.shape, lambda b, k: (0, 0, 0)),             # (9, 1, 128)
        pl.BlockSpec(w_mid.shape, lambda b, k: (0, 0, 0)),             # (8, 128, 128)
        pl.BlockSpec(w9.shape, lambda b, k: (0, 0)),                   # (128, 1024)
        pl.BlockSpec(b9.shape, lambda b, k: (0, 0)),                   # (1, 1024)
        pl.BlockSpec(w1.shape, lambda b, k: (0, 0)),                   # (1024, 256)
        pl.BlockSpec(b1.shape, lambda b, k: (0, 0)),                   # (1, 256)
        pl.BlockSpec(w2.shape, lambda b, k: (0, 0)),                   # (256, 256)
        pl.BlockSpec(b2.shape, lambda b, k: (0, 0)),                   # (1, 256)
    ]
    g_col = pl.pallas_call(
        mlp_pool_head_kernel,
        out_shape=jax.ShapeDtypeStruct((B, FEAT_DIM, 1), jnp.float32),
        grid_spec=pltpu.PrefetchScalarGridSpec(
            num_scalar_prefetch=0,
            grid=(B, kp),
            in_specs=in_specs,
            out_specs=pl.BlockSpec((None, FEAT_DIM, 1), lambda b, k: (b, 0, 0)),
            scratch_shapes=[pltpu.VMEM((1, GLOBAL_DIM), jnp.float32)],
        ),
        compiler_params=pltpu.CompilerParams(
            dimension_semantics=("parallel", "arbitrary"),
            vmem_limit_bytes=32 << 20,     # safe on v7x; raise to 64<<20 on v5e/v6e
        ),
        cost_estimate=pl.CostEstimate(flops=flops, transcendentals=0,
                                      bytes_accessed=bytes_accessed),
    )(x_nlc, w0p, b_all, w_mid, w9, b9, w1, b1, w2, b2)

    # ---- kernel 2: lane-dense broadcast over points -> (B, 256, n_pts) ----
    tn = _pick_broadcast_tile(n_pts)
    nt = pl.cdiv(n_pts, tn)
    n_bcast = nt * tn
    feats = pl.pallas_call(
        broadcast_kernel,
        out_shape=jax.ShapeDtypeStruct((B, FEAT_DIM, n_bcast), jnp.float32),
        grid_spec=pltpu.PrefetchScalarGridSpec(
            num_scalar_prefetch=0,
            grid=(B, nt),
            in_specs=[pl.BlockSpec((None, FEAT_DIM, 1), lambda b, j: (b, 0, 0))],
            out_specs=pl.BlockSpec((None, FEAT_DIM, tn), lambda b, j: (b, 0, j)),
        ),
        compiler_params=pltpu.CompilerParams(
            dimension_semantics=("parallel", "parallel"),
            vmem_limit_bytes=32 << 20,
        ),
    )(g_col)
    if n_bcast != n_pts:
        feats = feats[:, :, :n_pts]
    return feats


def init_params(key):
    """Deterministic synthetic parameters with the BN affine folded in.

    For every conv/linear stage:
      W : (C_in, C_out) bf16   conv1x1 / linear weight, column-scaled by BN
      b : (1, C_out)    f32    BN-folded bias
    so  bn(conv(x)) == x @ W + b  (eval-mode BN).
    """
    eps = 1e-5
    conv_params, dense_params = [], []
    for stage, (cin, cout) in enumerate(CONV_DIMS + DENSE_DIMS):
        key, k1, k2, k3, k4, k5, k6 = jax.random.split(key, 7)
        bound = 1.0 / np.sqrt(cin)
        W = jax.random.uniform(k1, (cin, cout), jnp.float32, -bound, bound)
        b = jax.random.uniform(k2, (1, cout), jnp.float32, -bound, bound)
        gamma = 1.0 + 0.1 * jax.random.normal(k3, (1, cout), jnp.float32)
        beta = 0.1 * jax.random.normal(k4, (1, cout), jnp.float32)
        mean = 0.1 * jax.random.normal(k5, (1, cout), jnp.float32)
        var = 0.9 + 0.1 * jnp.abs(jax.random.normal(k6, (1, cout), jnp.float32))
        s = gamma / jnp.sqrt(var + eps)
        t = beta - mean * s
        Wf = (W * s).astype(jnp.bfloat16)          # fold BN scale into weight
        bf = (b * s + t).astype(jnp.float32)       # fold BN shift into bias
        (conv_params if stage < N_CONV else dense_params).append((Wf, bf))
    return conv_params, dense_params


def reference_forward(x_ncl, conv_params, dense_params):
    """Pure-JAX reference of PointNetGlob.forward with the same bf16 operands
    (uses the original unpacked per-layer parameters)."""
    B, _, n_pts = x_ncl.shape
    h = jnp.transpose(x_ncl, (0, 2, 1))            # (B, n_pts, n_in)
    for (W, b) in conv_params:
        y = jnp.einsum("bpc,cd->bpd", h.astype(jnp.bfloat16), W,
                       preferred_element_type=jnp.float32)
        h = jnp.maximum(y + b, 0.0)
    g = jnp.max(h, axis=1)                         # (B, 1024)
    for (W, b) in dense_params:
        y = jnp.dot(g.astype(jnp.bfloat16), W,
                    preferred_element_type=jnp.float32)
        g = jnp.maximum(y + b, 0.0)
    return jnp.broadcast_to(g[:, :, None], (B, FEAT_DIM, n_pts))


if __name__ == "__main__":
    B, n_pts = 2, 512
    key = jax.random.PRNGKey(0)
    key, kx = jax.random.split(key)
    x = jax.random.normal(kx, (B, N_IN, n_pts), jnp.float32)   # PyTorch NCL input

    conv_params, dense_params = init_params(key)

    feats = pointnet_glob_forward(x, conv_params, dense_params)
    feats = jax.block_until_ready(feats)
    assert feats.shape == (B, FEAT_DIM, n_pts)

    ref = jax.block_until_ready(reference_forward(x, conv_params, dense_params))
    np.testing.assert_allclose(np.asarray(feats), np.asarray(ref),
                               rtol=1e-2, atol=1e-2)

    print("KERNEL_OK")
</pallas_src>

<mosaic_0001>
module attributes {stable_mosaic.version = 11 : i64} {
  func.func @mlp_pool_head_kernel(%arg0: i32, %arg1: i32, %arg2: memref<1x512x3xf32, #tpu.memory_space<vmem>>, %arg3: memref<3x128xbf16, #tpu.memory_space<vmem>>, %arg4: memref<9x1x128xf32, #tpu.memory_space<vmem>>, %arg5: memref<8x128x128xbf16, #tpu.memory_space<vmem>>, %arg6: memref<128x1024xbf16, #tpu.memory_space<vmem>>, %arg7: memref<1x1024xf32, #tpu.memory_space<vmem>>, %arg8: memref<1024x256xbf16, #tpu.memory_space<vmem>>, %arg9: memref<1x256xf32, #tpu.memory_space<vmem>>, %arg10: memref<256x256xbf16, #tpu.memory_space<vmem>>, %arg11: memref<1x256xf32, #tpu.memory_space<vmem>>, %arg12: memref<1x256x1xf32, #tpu.memory_space<vmem>>, %arg13: memref<1x1024xf32, #tpu.memory_space<vmem>>) attributes {dimension_semantics = [#tpu.dimension_semantics<parallel>, #tpu.dimension_semantics<arbitrary>], iteration_bounds = array<i64: 2, 1>, scalar_prefetch = 0 : i64, scratch_operands = 1 : i64, tpu.core_type = #tpu.core_type<tc>, window_params = [{transform_indices = @transform_0, window_bounds = array<i64: 1, 512, 3>}, {pipeline_mode = #tpu.pipeline_mode<synchronous>, transform_indices = @transform_1, window_bounds = array<i64: 3, 128>}, {pipeline_mode = #tpu.pipeline_mode<synchronous>, transform_indices = @transform_2, window_bounds = array<i64: 9, 1, 128>}, {pipeline_mode = #tpu.pipeline_mode<synchronous>, transform_indices = @transform_3, window_bounds = array<i64: 8, 128, 128>}, {pipeline_mode = #tpu.pipeline_mode<synchronous>, transform_indices = @transform_4, window_bounds = array<i64: 128, 1024>}, {pipeline_mode = #tpu.pipeline_mode<synchronous>, transform_indices = @transform_5, window_bounds = array<i64: 1, 1024>}, {pipeline_mode = #tpu.pipeline_mode<synchronous>, transform_indices = @transform_6, window_bounds = array<i64: 1024, 256>}, {pipeline_mode = #tpu.pipeline_mode<synchronous>, transform_indices = @transform_7, window_bounds = array<i64: 1, 256>}, {pipeline_mode = #tpu.pipeline_mode<synchronous>, transform_indices = @transform_8, window_bounds = array<i64: 256, 256>}, {pipeline_mode = #tpu.pipeline_mode<synchronous>, transform_indices = @transform_9, window_bounds = array<i64: 1, 256>}, {transform_indices = @transform_10, window_bounds = array<i64: 1, 256, 1>}]} {
    %c0_i32 = arith.constant 0 : i32
    %0 = arith.cmpi eq, %arg1, %c0_i32 : i32
    %1 = arith.extui %0 : i1 to i32
    %c0_i32_0 = arith.constant 0 : i32
    %2 = arith.cmpi ne, %1, %c0_i32_0 : i32
    scf.if %2 {
      %cst_78 = arith.constant 0.000000e+00 : f32
      %110 = vector.broadcast %cst_78 : f32 to vector<1x1024xf32>
      %c0_79 = arith.constant 0 : index
      %c0_80 = arith.constant 0 : index
      %111 = vector.load %arg13[%c0_79, %c0_80] : memref<1x1024xf32, #tpu.memory_space<vmem>>, vector<1x1024xf32>
      tpu.vector_store %arg13[%c0_79, %c0_80], %110 {strides = array<i32>} : memref<1x1024xf32, #tpu.memory_space<vmem>>, vector<1x1024xf32>,
    } else {
    }
    %c0 = arith.constant 0 : index
    %c0_1 = arith.constant 0 : index
    %c0_2 = arith.constant 0 : index
    %3 = vector.load %arg2[%c0, %c0_1, %c0_2] : memref<1x512x3xf32, #tpu.memory_space<vmem>>, vector<1x512x3xf32>
    %4 = vector.shape_cast %3 : vector<1x512x3xf32> to vector<512x3xf32>
    %5 = arith.truncf %4 : vector<512x3xf32> to vector<512x3xbf16>
    %c0_3 = arith.constant 0 : index
    %c0_4 = arith.constant 0 : index
    %6 = vector.load %arg3[%c0_3, %c0_4] : memref<3x128xbf16, #tpu.memory_space<vmem>>, vector<3x128xbf16>
    %cst = arith.constant dense<0.000000e+00> : vector<512x128xf32>
    %7 = tpu.matmul %5, %6, %cst {dimension_numbers = #tpu.dot_dimension_numbers<[1], [0], [0], [1], [0, 0, 1, 1], [], []>} : vector<512x3xbf16>, vector<3x128xbf16>, vector<512x128xf32> -> vector<512x128xf32>
    %c0_5 = arith.constant 0 : index
    %c0_6 = arith.constant 0 : index
    %c0_7 = arith.constant 0 : index
    %8 = vector.load %arg4[%c0_5, %c0_6, %c0_7] : memref<9x1x128xf32, #tpu.memory_space<vmem>>, vector<1x1x128xf32>
    %9 = vector.shape_cast %8 : vector<1x1x128xf32> to vector<1x128xf32>
    %10 = vector.broadcast %9 : vector<1x128xf32> to vector<512x128xf32>
    %11 = arith.addf %7, %10 : vector<512x128xf32>
    %cst_8 = arith.constant 0.000000e+00 : f32
    %12 = vector.broadcast %cst_8 : f32 to vector<512x128xf32>
    %13 = arith.maximumf %11, %12 : vector<512x128xf32>
    %14 = arith.truncf %13 : vector<512x128xf32> to vector<512x128xbf16>
    %c0_9 = arith.constant 0 : index
    %c0_10 = arith.constant 0 : index
    %c0_11 = arith.constant 0 : index
    %15 = vector.load %arg5[%c0_9, %c0_10, %c0_11] : memref<8x128x128xbf16, #tpu.memory_space<vmem>>, vector<1x128x128xbf16>
    %16 = vector.shape_cast %15 : vector<1x128x128xbf16> to vector<128x128xbf16>
    %cst_12 = arith.constant dense<0.000000e+00> : vector<512x128xf32>
    %17 = tpu.matmul %14, %16, %cst_12 {dimension_numbers = #tpu.dot_dimension_numbers<[1], [0], [0], [1], [0, 0, 1, 1], [], []>} : vector<512x128xbf16>, vector<128x128xbf16>, vector<512x128xf32> -> vector<512x128xf32>
    %c1 = arith.constant 1 : index
    %c0_13 = arith.constant 0 : index
    %c0_14 = arith.constant 0 : index
    %18 = vector.load %arg4[%c1, %c0_13, %c0_14] : memref<9x1x128xf32, #tpu.memory_space<vmem>>, vector<1x1x128xf32>
    %19 = vector.shape_cast %18 : vector<1x1x128xf32> to vector<1x128xf32>
    %20 = vector.broadcast %19 : vector<1x128xf32> to vector<512x128xf32>
    %21 = arith.addf %17, %20 : vector<512x128xf32>
    %cst_15 = arith.constant 0.000000e+00 : f32
    %22 = vector.broadcast %cst_15 : f32 to vector<512x128xf32>
    %23 = arith.maximumf %21, %22 : vector<512x128xf32>
    %24 = arith.truncf %23 : vector<512x128xf32> to vector<512x128xbf16>
    %c1_16 = arith.constant 1 : index
    %c0_17 = arith.constant 0 : index
    %c0_18 = arith.constant 0 : index
    %25 = vector.load %arg5[%c1_16, %c0_17, %c0_18] : memref<8x128x128xbf16, #tpu.memory_space<vmem>>, vector<1x128x128xbf16>
    %26 = vector.shape_cast %25 : vector<1x128x128xbf16> to vector<128x128xbf16>
    %cst_19 = arith.constant dense<0.000000e+00> : vector<512x128xf32>
    %27 = tpu.matmul %24, %26, %cst_19 {dimension_numbers = #tpu.dot_dimension_numbers<[1], [0], [0], [1], [0, 0, 1, 1], [], []>} : vector<512x128xbf16>, vector<128x128xbf16>, vector<512x128xf32> -> vector<512x128xf32>
    %c2 = arith.constant 2 : index
    %c0_20 = arith.constant 0 : index
    %c0_21 = arith.constant 0 : index
    %28 = vector.load %arg4[%c2, %c0_20, %c0_21] : memref<9x1x128xf32, #tpu.memory_space<vmem>>, vector<1x1x128xf32>
    %29 = vector.shape_cast %28 : vector<1x1x128xf32> to vector<1x128xf32>
    %30 = vector.broadcast %29 : vector<1x128xf32> to vector<512x128xf32>
    %31 = arith.addf %27, %30 : vector<512x128xf32>
    %cst_22 = arith.constant 0.000000e+00 : f32
    %32 = vector.broadcast %cst_22 : f32 to vector<512x128xf32>
    %33 = arith.maximumf %31, %32 : vector<512x128xf32>
    %34 = arith.truncf %33 : vector<512x128xf32> to vector<512x128xbf16>
    %c2_23 = arith.constant 2 : index
    %c0_24 = arith.constant 0 : index
    %c0_25 = arith.constant 0 : index
    %35 = vector.load %arg5[%c2_23, %c0_24, %c0_25] : memref<8x128x128xbf16, #tpu.memory_space<vmem>>, vector<1x128x128xbf16>
    %36 = vector.shape_cast %35 : vector<1x128x128xbf16> to vector<128x128xbf16>
    %cst_26 = arith.constant dense<0.000000e+00> : vector<512x128xf32>
    %37 = tpu.matmul %34, %36, %cst_26 {dimension_numbers = #tpu.dot_dimension_numbers<[1], [0], [0], [1], [0, 0, 1, 1], [], []>} : vector<512x128xbf16>, vector<128x128xbf16>, vector<512x128xf32> -> vector<512x128xf32>
    %c3 = arith.constant 3 : index
    %c0_27 = arith.constant 0 : index
    %c0_28 = arith.constant 0 : index
    %38 = vector.load %arg4[%c3, %c0_27, %c0_28] : memref<9x1x128xf32, #tpu.memory_space<vmem>>, vector<1x1x128xf32>
    %39 = vector.shape_cast %38 : vector<1x1x128xf32> to vector<1x128xf32>
    %40 = vector.broadcast %39 : vector<1x128xf32> to vector<512x128xf32>
    %41 = arith.addf %37, %40 : vector<512x128xf32>
    %cst_29 = arith.constant 0.000000e+00 : f32
    %42 = vector.broadcast %cst_29 : f32 to vector<512x128xf32>
    %43 = arith.maximumf %41, %42 : vector<512x128xf32>
    %44 = arith.truncf %43 : vector<512x128xf32> to vector<512x128xbf16>
    %c3_30 = arith.constant 3 : index
    %c0_31 = arith.constant 0 : index
    %c0_32 = arith.constant 0 : index
    %45 = vector.load %arg5[%c3_30, %c0_31, %c0_32] : memref<8x128x128xbf16, #tpu.memory_space<vmem>>, vector<1x128x128xbf16>
    %46 = vector.shape_cast %45 : vector<1x128x128xbf16> to vector<128x128xbf16>
    %cst_33 = arith.constant dense<0.000000e+00> : vector<512x128xf32>
    %47 = tpu.matmul %44, %46, %cst_33 {dimension_numbers = #tpu.dot_dimension_numbers<[1], [0], [0], [1], [0, 0, 1, 1], [], []>} : vector<512x128xbf16>, vector<128x128xbf16>, vector<512x128xf32> -> vector<512x128xf32>
    %c4 = arith.constant 4 : index
    %c0_34 = arith.constant 0 : index
    %c0_35 = arith.constant 0 : index
    %48 = vector.load %arg4[%c4, %c0_34, %c0_35] : memref<9x1x128xf32, #tpu.memory_space<vmem>>, vector<1x1x128xf32>
    %49 = vector.shape_cast %48 : vector<1x1x128xf32> to vector<1x128xf32>
    %50 = vector.broadcast %49 : vector<1x128xf32> to vector<512x128xf32>
    %51 = arith.addf %47, %50 : vector<512x128xf32>
    %cst_36 = arith.constant 0.000000e+00 : f32
    %52 = vector.broadcast %cst_36 : f32 to vector<512x128xf32>
    %53 = arith.maximumf %51, %52 : vector<512x128xf32>
    %54 = arith.truncf %53 : vector<512x128xf32> to vector<512x128xbf16>
    %c4_37 = arith.constant 4 : index
    %c0_38 = arith.constant 0 : index
    %c0_39 = arith.constant 0 : index
    %55 = vector.load %arg5[%c4_37, %c0_38, %c0_39] : memref<8x128x128xbf16, #tpu.memory_space<vmem>>, vector<1x128x128xbf16>
    %56 = vector.shape_cast %55 : vector<1x128x128xbf16> to vector<128x128xbf16>
    %cst_40 = arith.constant dense<0.000000e+00> : vector<512x128xf32>
    %57 = tpu.matmul %54, %56, %cst_40 {dimension_numbers = #tpu.dot_dimension_numbers<[1], [0], [0], [1], [0, 0, 1, 1], [], []>} : vector<512x128xbf16>, vector<128x128xbf16>, vector<512x128xf32> -> vector<512x128xf32>
    %c5 = arith.constant 5 : index
    %c0_41 = arith.constant 0 : index
    %c0_42 = arith.constant 0 : index
    %58 = vector.load %arg4[%c5, %c0_41, %c0_42] : memref<9x1x128xf32, #tpu.memory_space<vmem>>, vector<1x1x128xf32>
    %59 = vector.shape_cast %58 : vector<1x1x128xf32> to vector<1x128xf32>
    %60 = vector.broadcast %59 : vector<1x128xf32> to vector<512x128xf32>
    %61 = arith.addf %57, %60 : vector<512x128xf32>
    %cst_43 = arith.constant 0.000000e+00 : f32
    %62 = vector.broadcast %cst_43 : f32 to vector<512x128xf32>
    %63 = arith.maximumf %61, %62 : vector<512x128xf32>
    %64 = arith.truncf %63 : vector<512x128xf32> to vector<512x128xbf16>
    %c5_44 = arith.constant 5 : index
    %c0_45 = arith.constant 0 : index
    %c0_46 = arith.constant 0 : index
    %65 = vector.load %arg5[%c5_44, %c0_45, %c0_46] : memref<8x128x128xbf16, #tpu.memory_space<vmem>>, vector<1x128x128xbf16>
    %66 = vector.shape_cast %65 : vector<1x128x128xbf16> to vector<128x128xbf16>
    %cst_47 = arith.constant dense<0.000000e+00> : vector<512x128xf32>
    %67 = tpu.matmul %64, %66, %cst_47 {dimension_numbers = #tpu.dot_dimension_numbers<[1], [0], [0], [1], [0, 0, 1, 1], [], []>} : vector<512x128xbf16>, vector<128x128xbf16>, vector<512x128xf32> -> vector<512x128xf32>
    %c6 = arith.constant 6 : index
    %c0_48 = arith.constant 0 : index
    %c0_49 = arith.constant 0 : index
    %68 = vector.load %arg4[%c6, %c0_48, %c0_49] : memref<9x1x128xf32, #tpu.memory_space<vmem>>, vector<1x1x128xf32>
    %69 = vector.shape_cast %68 : vector<1x1x128xf32> to vector<1x128xf32>
    %70 = vector.broadcast %69 : vector<1x128xf32> to vector<512x128xf32>
    %71 = arith.addf %67, %70 : vector<512x128xf32>
    %cst_50 = arith.constant 0.000000e+00 : f32
    %72 = vector.broadcast %cst_50 : f32 to vector<512x128xf32>
    %73 = arith.maximumf %71, %72 : vector<512x128xf32>
    %74 = arith.truncf %73 : vector<512x128xf32> to vector<512x128xbf16>
    %c6_51 = arith.constant 6 : index
    %c0_52 = arith.constant 0 : index
    %c0_53 = arith.constant 0 : index
    %75 = vector.load %arg5[%c6_51, %c0_52, %c0_53] : memref<8x128x128xbf16, #tpu.memory_space<vmem>>, vector<1x128x128xbf16>
    %76 = vector.shape_cast %75 : vector<1x128x128xbf16> to vector<128x128xbf16>
    %cst_54 = arith.constant dense<0.000000e+00> : vector<512x128xf32>
    %77 = tpu.matmul %74, %76, %cst_54 {dimension_numbers = #tpu.dot_dimension_numbers<[1], [0], [0], [1], [0, 0, 1, 1], [], []>} : vector<512x128xbf16>, vector<128x128xbf16>, vector<512x128xf32> -> vector<512x128xf32>
    %c7 = arith.constant 7 : index
    %c0_55 = arith.constant 0 : index
    %c0_56 = arith.constant 0 : index
    %78 = vector.load %arg4[%c7, %c0_55, %c0_56] : memref<9x1x128xf32, #tpu.memory_space<vmem>>, vector<1x1x128xf32>
    %79 = vector.shape_cast %78 : vector<1x1x128xf32> to vector<1x128xf32>
    %80 = vector.broadcast %79 : vector<1x128xf32> to vector<512x128xf32>
    %81 = arith.addf %77, %80 : vector<512x128xf32>
    %cst_57 = arith.constant 0.000000e+00 : f32
    %82 = vector.broadcast %cst_57 : f32 to vector<512x128xf32>
    %83 = arith.maximumf %81, %82 : vector<512x128xf32>
    %84 = arith.truncf %83 : vector<512x128xf32> to vector<512x128xbf16>
    %c7_58 = arith.constant 7 : index
    %c0_59 = arith.constant 0 : index
    %c0_60 = arith.constant 0 : index
    %85 = vector.load %arg5[%c7_58, %c0_59, %c0_60] : memref<8x128x128xbf16, #tpu.memory_space<vmem>>, vector<1x128x128xbf16>
    %86 = vector.shape_cast %85 : vector<1x128x128xbf16> to vector<128x128xbf16>
    %cst_61 = arith.constant dense<0.000000e+00> : vector<512x128xf32>
    %87 = tpu.matmul %84, %86, %cst_61 {dimension_numbers = #tpu.dot_dimension_numbers<[1], [0], [0], [1], [0, 0, 1, 1], [], []>} : vector<512x128xbf16>, vector<128x128xbf16>, vector<512x128xf32> -> vector<512x128xf32>
    %c8 = arith.constant 8 : index
    %c0_62 = arith.constant 0 : index
    %c0_63 = arith.constant 0 : index
    %88 = vector.load %arg4[%c8, %c0_62, %c0_63] : memref<9x1x128xf32, #tpu.memory_space<vmem>>, vector<1x1x128xf32>
    %89 = vector.shape_cast %88 : vector<1x1x128xf32> to vector<1x128xf32>
    %90 = vector.broadcast %89 : vector<1x128xf32> to vector<512x128xf32>
    %91 = arith.addf %87, %90 : vector<512x128xf32>
    %cst_64 = arith.constant 0.000000e+00 : f32
    %92 = vector.broadcast %cst_64 : f32 to vector<512x128xf32>
    %93 = arith.maximumf %91, %92 : vector<512x128xf32>
    %94 = arith.truncf %93 : vector<512x128xf32> to vector<512x128xbf16>
    %c0_65 = arith.constant 0 : index
    %c0_66 = arith.constant 0 : index
    %95 = vector.load %arg6[%c0_65, %c0_66] : memref<128x1024xbf16, #tpu.memory_space<vmem>>, vector<128x1024xbf16>
    %cst_67 = arith.constant dense<0.000000e+00> : vector<512x1024xf32>
    %96 = tpu.matmul %94, %95, %cst_67 {dimension_numbers = #tpu.dot_dimension_numbers<[1], [0], [0], [1], [0, 0, 1, 1], [], []>} : vector<512x128xbf16>, vector<128x1024xbf16>, vector<512x1024xf32> -> vector<512x1024xf32>
    %c0_68 = arith.constant 0 : index
    %c0_69 = arith.constant 0 : index
    %97 = vector.load %arg7[%c0_68, %c0_69] : memref<1x1024xf32, #tpu.memory_space<vmem>>, vector<1x1024xf32>
    %98 = vector.broadcast %97 : vector<1x1024xf32> to vector<512x1024xf32>
    %99 = arith.addf %96, %98 : vector<512x1024xf32>
    %cst_70 = arith.constant 0.000000e+00 : f32
    %100 = vector.broadcast %cst_70 : f32 to vector<512x1024xf32>
    %101 = arith.maximumf %99, %100 : vector<512x1024xf32>
    %c0_71 = arith.constant 0 : index
    %c0_72 = arith.constant 0 : index
    %102 = vector.load %arg13[%c0_71, %c0_72] : memref<1x1024xf32, #tpu.memory_space<vmem>>, vector<1x1024xf32>
    %cst_73 = arith.constant dense<0xFF800000> : vector<1024xf32>
    %103 = vector.multi_reduction <maximumf>, %101, %cst_73 [0] : vector<512x1024xf32> to vector<1024xf32>
    %104 = vector.shape_cast %103 : vector<1024xf32> to vector<1x1024xf32>
    %105 = arith.maximumf %102, %104 : vector<1x1024xf32>
    %c0_74 = arith.constant 0 : index
    %c0_75 = arith.constant 0 : index
    %106 = vector.load %arg13[%c0_74, %c0_75] : memref<1x1024xf32, #tpu.memory_space<vmem>>, vector<1x1024xf32>
    tpu.vector_store %arg13[%c0_74, %c0_75], %105 {strides = array<i32>} : memref<1x1024xf32, #tpu.memory_space<vmem>>, vector<1x1024xf32>,
    %c0_i32_76 = arith.constant 0 : i32
    %107 = arith.cmpi eq, %arg1, %c0_i32_76 : i32
    %108 = arith.extui %107 : i1 to i32
    %c0_i32_77 = arith.constant 0 : i32
    %109 = arith.cmpi ne, %108, %c0_i32_77 : i32
    scf.if %109 {
      %c0_78 = arith.constant 0 : index
      %c0_79 = arith.constant 0 : index
      %110 = vector.load %arg13[%c0_78, %c0_79] : memref<1x1024xf32, #tpu.memory_space<vmem>>, vector<1x1024xf32>
      %111 = arith.truncf %110 : vector<1x1024xf32> to vector<1x1024xbf16>
      %c0_80 = arith.constant 0 : index
      %c0_81 = arith.constant 0 : index
      %112 = vector.load %arg8[%c0_80, %c0_81] : memref<1024x256xbf16, #tpu.memory_space<vmem>>, vector<1024x256xbf16>
      %cst_82 = arith.constant dense<0.000000e+00> : vector<1x256xf32>
      %113 = tpu.matmul %111, %112, %cst_82 {dimension_numbers = #tpu.dot_dimension_numbers<[1], [0], [0], [1], [0, 0, 1, 1], [], []>} : vector<1x1024xbf16>, vector<1024x256xbf16>, vector<1x256xf32> -> vector<1x256xf32>
      %c0_83 = arith.constant 0 : index
      %c0_84 = arith.constant 0 : index
      %114 = vector.load %arg9[%c0_83, %c0_84] : memref<1x256xf32, #tpu.memory_space<vmem>>, vector<1x256xf32>
      %115 = arith.addf %113, %114 : vector<1x256xf32>
      %cst_85 = arith.constant 0.000000e+00 : f32
      %116 = vector.broadcast %cst_85 : f32 to vector<1x256xf32>
      %117 = arith.maximumf %115, %116 : vector<1x256xf32>
      %118 = arith.truncf %117 : vector<1x256xf32> to vector<1x256xbf16>
      %c0_86 = arith.constant 0 : index
      %c0_87 = arith.constant 0 : index
      %119 = vector.load %arg10[%c0_86, %c0_87] : memref<256x256xbf16, #tpu.memory_space<vmem>>, vector<256x256xbf16>
      %cst_88 = arith.constant dense<0.000000e+00> : vector<1x256xf32>
      %120 = tpu.matmul %118, %119, %cst_88 {dimension_numbers = #tpu.dot_dimension_numbers<[1], [0], [0], [1], [0, 0, 1, 1], [], []>} : vector<1x256xbf16>, vector<256x256xbf16>, vector<1x256xf32> -> vector<1x256xf32>
      %c0_89 = arith.constant 0 : index
      %c0_90 = arith.constant 0 : index
      %121 = vector.load %arg11[%c0_89, %c0_90] : memref<1x256xf32, #tpu.memory_space<vmem>>, vector<1x256xf32>
      %122 = arith.addf %120, %121 : vector<1x256xf32>
      %cst_91 = arith.constant 0.000000e+00 : f32
      %123 = vector.broadcast %cst_91 : f32 to vector<1x256xf32>
      %124 = arith.maximumf %122, %123 : vector<1x256xf32>
      %125 = tpu.transpose %124, [1, 0] : vector<1x256xf32> -> vector<256x1xf32>
      %c0_92 = arith.constant 0 : index
      %c0_93 = arith.constant 0 : index
      %c0_94 = arith.constant 0 : index
      %126 = vector.load %arg12[%c0_92, %c0_93, %c0_94] : memref<1x256x1xf32, #tpu.memory_space<vmem>>, vector<1x256x1xf32>
      %127 = vector.shape_cast %126 : vector<1x256x1xf32> to vector<256x1xf32>
      %128 = vector.shape_cast %125 : vector<256x1xf32> to vector<1x256x1xf32>
      tpu.vector_store %arg12[%c0_92, %c0_93, %c0_94], %128 {strides = array<i32>} : memref<1x256x1xf32, #tpu.memory_space<vmem>>, vector<1x256x1xf32>,
    } else {
    }
    return
  }
  func.func @transform_0(%arg0: i32, %arg1: i32) -> (i32, i32, i32) {
    %c0_i32 = arith.constant 0 : i32
    %c0_i32_0 = arith.constant 0 : i32
    return %arg0, %arg1, %c0_i32 : i32, i32, i32
  }
  func.func @transform_1(%arg0: i32, %arg1: i32) -> (i32, i32) {
    %c0_i32 = arith.constant 0 : i32
    %c0_i32_0 = arith.constant 0 : i32
    %c0_i32_1 = arith.constant 0 : i32
    return %c0_i32, %c0_i32_0 : i32, i32
  }
  func.func @transform_2(%arg0: i32, %arg1: i32) -> (i32, i32, i32) {
    %c0_i32 = arith.constant 0 : i32
    %c0_i32_0 = arith.constant 0 : i32
    %c0_i32_1 = arith.constant 0 : i32
    %c0_i32_2 = arith.constant 0 : i32
    return %c0_i32, %c0_i32_0, %c0_i32_1 : i32, i32, i32
  }
  func.func @transform_3(%arg0: i32, %arg1: i32) -> (i32, i32, i32) {
    %c0_i32 = arith.constant 0 : i32
    %c0_i32_0 = arith.constant 0 : i32
    %c0_i32_1 = arith.constant 0 : i32
    %c0_i32_2 = arith.constant 0 : i32
    return %c0_i32, %c0_i32_0, %c0_i32_1 : i32, i32, i32
  }
  func.func @transform_4(%arg0: i32, %arg1: i32) -> (i32, i32) {
    %c0_i32 = arith.constant 0 : i32
    %c0_i32_0 = arith.constant 0 : i32
    %c0_i32_1 = arith.constant 0 : i32
    return %c0_i32, %c0_i32_0 : i32, i32
  }
  func.func @transform_5(%arg0: i32, %arg1: i32) -> (i32, i32) {
    %c0_i32 = arith.constant 0 : i32
    %c0_i32_0 = arith.constant 0 : i32
    %c0_i32_1 = arith.constant 0 : i32
    return %c0_i32, %c0_i32_0 : i32, i32
  }
  func.func @transform_6(%arg0: i32, %arg1: i32) -> (i32, i32) {
    %c0_i32 = arith.constant 0 : i32
    %c0_i32_0 = arith.constant 0 : i32
    %c0_i32_1 = arith.constant 0 : i32
    return %c0_i32, %c0_i32_0 : i32, i32
  }
  func.func @transform_7(%arg0: i32, %arg1: i32) -> (i32, i32) {
    %c0_i32 = arith.constant 0 : i32
    %c0_i32_0 = arith.constant 0 : i32
    %c0_i32_1 = arith.constant 0 : i32
    return %c0_i32, %c0_i32_0 : i32, i32
  }
  func.func @transform_8(%arg0: i32, %arg1: i32) -> (i32, i32) {
    %c0_i32 = arith.constant 0 : i32
    %c0_i32_0 = arith.constant 0 : i32
    %c0_i32_1 = arith.constant 0 : i32
    return %c0_i32, %c0_i32_0 : i32, i32
  }
  func.func @transform_9(%arg0: i32, %arg1: i32) -> (i32, i32) {
    %c0_i32 = arith.constant 0 : i32
    %c0_i32_0 = arith.constant 0 : i32
    %c0_i32_1 = arith.constant 0 : i32
    return %c0_i32, %c0_i32_0 : i32, i32
  }
  func.func @transform_10(%arg0: i32, %arg1: i32) -> (i32, i32, i32) {
    %c0_i32 = arith.constant 0 : i32
    %c0_i32_0 = arith.constant 0 : i32
    %c0_i32_1 = arith.constant 0 : i32
    return %arg0, %c0_i32, %c0_i32_0 : i32, i32, i32
  }
}

</mosaic_0001>

<llo_original>
// kernel: tpu_custom_call.1
$region0: #{tpu_custom_call.1}
  #allocation0 [shape = 'u32[]', space=smem, size = 0x4, offset = 0x4, fixed_abs, tag = 'smem constant byte address 0x4 - core index']
  #allocation1 [shape = 'u32[144,128]{1,0:T(1,128)}', space=vmem, size = 0x12000, scoped, tag = 'internal scratch']
  #allocation2 [shape = 'f32[1,1024]{1,0:T(1,128)}', space=vmem, size = 0x1000, scoped, tag = 'scratch operand']
  %s0 = inlined_call_operand.vmem [shape: f32[2,512,3], index: 0, kind: input, shape index: {}]
  %s1 = inlined_call_operand.vmem [shape: bf16[3,128], index: 1, kind: input, shape index: {}]
  %s2 = inlined_call_operand.vmem [shape: f32[9,1,128], index: 2, kind: input, shape index: {}]
  %s3 = inlined_call_operand.hbm [shape: bf16[8,128,128], index: 3, kind: input, shape index: {}]
  %s4 = inlined_call_operand.hbm [shape: bf16[128,1024], index: 4, kind: input, shape index: {}]
  %s5 = inlined_call_operand.vmem [shape: f32[1,1024], index: 5, kind: input, shape index: {}]
  %s6 = inlined_call_operand.vmem [shape: bf16[1024,256], index: 6, kind: input, shape index: {}]
  %s7 = inlined_call_operand.vmem [shape: f32[1,256], index: 7, kind: input, shape index: {}]
  %s8 = inlined_call_operand.hbm [shape: bf16[256,256], index: 8, kind: input, shape index: {}]
  %s9 = inlined_call_operand.vmem [shape: f32[1,256], index: 9, kind: input, shape index: {}]
  %s10 = inlined_call_operand.vmem [shape: f32[2,256,1], index: 10, kind: output, shape index: {}]
  %s11 = sld [smem:[#allocation0]]
  $region93: #{tpu_custom_call.1} parent=0
    _
  %s13 = ssub.s32 1, %s11
  %s14 = scalar_select 0, %s13, %s11
  $region1: #{tpu_custom_call.1} parent=0
    #allocation3 [shape = 'u8[262144]{0}', space=vmem, size = 0x40000, scoped, tag = 'input window, operand 3, single buffered']
    #allocation4 [shape = 's32[2]{0}', space=sflag, size = 0x8, scoped, tag = 'scoped memory for tpu_custom_call.1']
    #allocation5 [shape = 'u8[262144]{0}', space=vmem, size = 0x40000, scoped, tag = 'input window, operand 4, single buffered']
    #allocation6 [shape = 's32[1]{0}', space=sflag, size = 0x4, scoped, tag = 'scoped memory for tpu_custom_call.1']
    #allocation7 [shape = 'u8[131072]{0}', space=vmem, size = 0x20000, scoped, tag = 'input window, operand 8, single buffered']
    %15 = vsyncpa [#allocation4], 0
    %16 = vsyncpa [#allocation6], 0
    loop: start=0, step=1, limit=4
    $region2: #{tpu_custom_call.1} parent=1 // loop_pre_header
      _
    $region3: #{tpu_custom_call.1} parent=1 // loop_header
      %s18 = sphi 0, %s22
      %p19 = scmp.ge.s32.totalorder %s18, 4
      %s25 = sphi 0, %s37
      %s26 = sphi 0, %s33
      %s27 = sphi 0, %s25
      %s28 = sphi 0, %s26
      %s29 = sphi 0, %s27
      %s30 = sphi 0, %s28
      %s42 = sphi 0, %s44
      %s45 = sphi 0, %s42
      %s46 = sphi 0, %s45
      %s62 = sphi 0, %s46
      %s66 = sphi 0, %s66
      %s68 = sphi 0, %s66
      %s69 = sphi 0, %s68
      %s83 = sphi 0, %s69
      %s87 = sphi 0, %s87
      %s89 = sphi 0, %s87
      %s90 = sphi 0, %s89
      %s104 = sphi 0, %s90
      %s108 = sphi 0, %s108
      %s110 = sphi 0, %s108
      %s111 = sphi 0, %s110
      %s125 = sphi 0, %s111
      %s129 = sphi 0, %s129
      %s131 = sphi 0, %s129
      %s132 = sphi 0, %s131
      %s146 = sphi 0, %s132
      %s150 = sphi 0, %s150
      %s152 = sphi 0, %s150
      %s153 = sphi 0, %s152
      %s167 = sphi 0, %s153
      %s171 = sphi 0, %s171
      %s173 = sphi 0, %s171
      %s174 = sphi 0, %s173
      %s188 = sphi 0, %s174
      %s192 = sphi 0, %s192
      %s194 = sphi 0, %s192
      %s195 = sphi 0, %s194
      %s209 = sphi 0, %s195
      %s213 = sphi 0, %s213
      %s215 = sphi 0, %s213
      %s216 = sphi 0, %s215
      %s230 = sphi 0, %s216
      %s234 = sphi 0, %s234
      %s236 = sphi 0, %s234
      %s237 = sphi 0, %s236
      %s251 = sphi 0, %s237
      %s257 = sphi 0, %s259
      %s260 = sphi 0, %s257
      %s261 = sphi 0, %s260
      %s277 = sphi 0, %s261
    $region4: #{tpu_custom_call.1} parent=1 // loop_header_branch
      %21 = sbr.rel (%p19) target = $region8
    $region5: #{tpu_custom_call.1} parent=1 // loop_body
      %s23 = ssub.s32 %s18, 1
      %s24 = ssub.s32 %s18, 2
      %s31 = sadd.s32 1, %s26
      %p32 = scmp.ge.s32.totalorder %s31, 1
      %s33 = scalar_select %p32, 0, %s31
      %s34 = sadd.s32 1, %s25
      %s35 = scalar_select %p32, %s34, %s25
      %p36 = scmp.ge.s32.totalorder %s35, 2
      %s37 = scalar_select %p36, 0, %s35
      %s38 = ssub.s32 %s25, %s37
      %s39 = ssub.s32 %s26, %s33
      %s40 = sor.u32 %s38, %s39
      %p41 = scmp.eq.s32.totalorder %s40, 0
      %s43 = sadd.s32 %s42, 1
      %s44 = scalar_select %p41, %s42, %s43
      %p47 = pneg %p41
      %p48 = scmp.eq.s32.totalorder %s18, 1
      %p49 = por %p47, %p48
      %p50 = scmp.ne.s32.totalorder %s42, %s45
      %p51 = scmp.eq.s32.totalorder %s18, 0
      %p52 = por %p50, %p51
      %p53 = scmp.ne.s32.totalorder %s42, %s45
      %p54 = scmp.eq.s32.totalorder %s23, 1
      %p55 = por %p53, %p54
      %p56 = scmp.ne.s32.totalorder %s45, %s46
      %p57 = scmp.eq.s32.totalorder %s23, 0
      %p58 = por %p56, %p57
      %p59 = scmp.ne.s32.totalorder %s45, %s46
      %p60 = scmp.eq.s32.totalorder %s24, 1
      %p61 = por %p59, %p60
      %p63 = scmp.ne.s32.totalorder %s46, %s62
      %p64 = scmp.eq.s32.totalorder %s24, 0
      %p65 = por %p63, %p64
      %s67 = sadd.s32 %s66, 1
      %p70 = scmp.eq.s32.totalorder %s18, 1
      %p71 = scmp.ne.s32.totalorder %s66, %s68
      %p72 = scmp.eq.s32.totalorder %s18, 0
      %p73 = por %p71, %p72
      %p74 = scmp.ne.s32.totalorder %s66, %s68
      %p75 = scmp.eq.s32.totalorder %s23, 1
      %p76 = por %p74, %p75
      %p77 = scmp.ne.s32.totalorder %s68, %s69
      %p78 = scmp.eq.s32.totalorder %s23, 0
      %p79 = por %p77, %p78
      %p80 = scmp.ne.s32.totalorder %s68, %s69
      %p81 = scmp.eq.s32.totalorder %s24, 1
      %p82 = por %p80, %p81
      %p84 = scmp.ne.s32.totalorder %s69, %s83
      %p85 = scmp.eq.s32.totalorder %s24, 0
      %p86 = por %p84, %p85
      %s88 = sadd.s32 %s87, 1
      %p91 = scmp.eq.s32.totalorder %s18, 1
      %p92 = scmp.ne.s32.totalorder %s87, %s89
      %p93 = scmp.eq.s32.totalorder %s18, 0
      %p94 = por %p92, %p93
      %p95 = scmp.ne.s32.totalorder %s87, %s89
      %p96 = scmp.eq.s32.totalorder %s23, 1
      %p97 = por %p95, %p96
      %p98 = scmp.ne.s32.totalorder %s89, %s90
      %p99 = scmp.eq.s32.totalorder %s23, 0
      %p100 = por %p98, %p99
      %p101 = scmp.ne.s32.totalorder %s89, %s90
      %p102 = scmp.eq.s32.totalorder %s24, 1
      %p103 = por %p101, %p102
      %p105 = scmp.ne.s32.totalorder %s90, %s104
      %p106 = scmp.eq.s32.totalorder %s24, 0
      %p107 = por %p105, %p106
      %s109 = sadd.s32 %s108, 1
      %p112 = scmp.eq.s32.totalorder %s18, 1
      %p113 = scmp.ne.s32.totalorder %s108, %s110
      %p114 = scmp.eq.s32.totalorder %s18, 0
      %p115 = por %p113, %p114
      %p116 = scmp.ne.s32.totalorder %s108, %s110
      %p117 = scmp.eq.s32.totalorder %s23, 1
      %p118 = por %p116, %p117
      %p119 = scmp.ne.s32.totalorder %s110, %s111
      %p120 = scmp.eq.s32.totalorder %s23, 0
      %p121 = por %p119, %p120
      %p122 = scmp.ne.s32.totalorder %s110, %s111
      %p123 = scmp.eq.s32.totalorder %s24, 1
      %p124 = por %p122, %p123
      %p126 = scmp.ne.s32.totalorder %s111, %s125
      %p127 = scmp.eq.s32.totalorder %s24, 0
      %p128 = por %p126, %p127
      %s130 = sadd.s32 %s129, 1
      %p133 = scmp.eq.s32.totalorder %s18, 1
      %p134 = scmp.ne.s32.totalorder %s129, %s131
      %p135 = scmp.eq.s32.totalorder %s18, 0
      %p136 = por %p134, %p135
      %p137 = scmp.ne.s32.totalorder %s129, %s131
      %p138 = scmp.eq.s32.totalorder %s23, 1
      %p139 = por %p137, %p138
      %p140 = scmp.ne.s32.totalorder %s131, %s132
      %p141 = scmp.eq.s32.totalorder %s23, 0
      %p142 = por %p140, %p141
      %p143 = scmp.ne.s32.totalorder %s131, %s132
      %p144 = scmp.eq.s32.totalorder %s24, 1
      %p145 = por %p143, %p144
      %p147 = scmp.ne.s32.totalorder %s132, %s146
      %p148 = scmp.eq.s32.totalorder %s24, 0
      %p149 = por %p147, %p148
      %s151 = sadd.s32 %s150, 1
      %p154 = scmp.eq.s32.totalorder %s18, 1
      %p155 = scmp.ne.s32.totalorder %s150, %s152
      %p156 = scmp.eq.s32.totalorder %s18, 0
      %p157 = por %p155, %p156
      %p158 = scmp.ne.s32.totalorder %s150, %s152
      %p159 = scmp.eq.s32.totalorder %s23, 1
      %p160 = por %p158, %p159
      %p161 = scmp.ne.s32.totalorder %s152, %s153
      %p162 = scmp.eq.s32.totalorder %s23, 0
      %p163 = por %p161, %p162
      %p164 = scmp.ne.s32.totalorder %s152, %s153
      %p165 = scmp.eq.s32.totalorder %s24, 1
      %p166 = por %p164, %p165
      %p168 = scmp.ne.s32.totalorder %s153, %s167
      %p169 = scmp.eq.s32.totalorder %s24, 0
      %p170 = por %p168, %p169
      %s172 = sadd.s32 %s171, 1
      %p175 = scmp.eq.s32.totalorder %s18, 1
      %p176 = scmp.ne.s32.totalorder %s171, %s173
      %p177 = scmp.eq.s32.totalorder %s18, 0
      %p178 = por %p176, %p177
      %p179 = scmp.ne.s32.totalorder %s171, %s173
      %p180 = scmp.eq.s32.totalorder %s23, 1
      %p181 = por %p179, %p180
      %p182 = scmp.ne.s32.totalorder %s173, %s174
      %p183 = scmp.eq.s32.totalorder %s23, 0
      %p184 = por %p182, %p183
      %p185 = scmp.ne.s32.totalorder %s173, %s174
      %p186 = scmp.eq.s32.totalorder %s24, 1
      %p187 = por %p185, %p186
      %p189 = scmp.ne.s32.totalorder %s174, %s188
      %p190 = scmp.eq.s32.totalorder %s24, 0
      %p191 = por %p189, %p190
      %s193 = sadd.s32 %s192, 1
      %p196 = scmp.eq.s32.totalorder %s18, 1
      %p197 = scmp.ne.s32.totalorder %s192, %s194
      %p198 = scmp.eq.s32.totalorder %s18, 0
      %p199 = por %p197, %p198
      %p200 = scmp.ne.s32.totalorder %s192, %s194
      %p201 = scmp.eq.s32.totalorder %s23, 1
      %p202 = por %p200, %p201
      %p203 = scmp.ne.s32.totalorder %s194, %s195
      %p204 = scmp.eq.s32.totalorder %s23, 0
      %p205 = por %p203, %p204
      %p206 = scmp.ne.s32.totalorder %s194, %s195
      %p207 = scmp.eq.s32.totalorder %s24, 1
      %p208 = por %p206, %p207
      %p210 = scmp.ne.s32.totalorder %s195, %s209
      %p211 = scmp.eq.s32.totalorder %s24, 0
      %p212 = por %p210, %p211
      %s214 = sadd.s32 %s213, 1
      %p217 = scmp.eq.s32.totalorder %s18, 1
      %p218 = scmp.ne.s32.totalorder %s213, %s215
      %p219 = scmp.eq.s32.totalorder %s18, 0
      %p220 = por %p218, %p219
      %p221 = scmp.ne.s32.totalorder %s213, %s215
      %p222 = scmp.eq.s32.totalorder %s23, 1
      %p223 = por %p221, %p222
      %p224 = scmp.ne.s32.totalorder %s215, %s216
      %p225 = scmp.eq.s32.totalorder %s23, 0
      %p226 = por %p224, %p225
      %p227 = scmp.ne.s32.totalorder %s215, %s216
      %p228 = scmp.eq.s32.totalorder %s24, 1
      %p229 = por %p227, %p228
      %p231 = scmp.ne.s32.totalorder %s216, %s230
      %p232 = scmp.eq.s32.totalorder %s24, 0
      %p233 = por %p231, %p232
      %s235 = sadd.s32 %s234, 1
      %p238 = scmp.eq.s32.totalorder %s18, 1
      %p239 = scmp.ne.s32.totalorder %s234, %s236
      %p240 = scmp.eq.s32.totalorder %s18, 0
      %p241 = por %p239, %p240
      %p242 = scmp.ne.s32.totalorder %s234, %s236
      %p243 = scmp.eq.s32.totalorder %s23, 1
      %p244 = por %p242, %p243
      %p245 = scmp.ne.s32.totalorder %s236, %s237
      %p246 = scmp.eq.s32.totalorder %s23, 0
      %p247 = por %p245, %p246
      %p248 = scmp.ne.s32.totalorder %s236, %s237
      %p249 = scmp.eq.s32.totalorder %s24, 1
      %p250 = por %p248, %p249
      %p252 = scmp.ne.s32.totalorder %s237, %s251
      %p253 = scmp.eq.s32.totalorder %s24, 0
      %p254 = por %p252, %p253
      %s255 = ssub.s32 %s25, %s37
      %p256 = scmp.eq.s32.totalorder %s255, 0
      %s258 = sadd.s32 %s257, 1
      %s259 = scalar_select %p256, %s257, %s258
      %p262 = pneg %p256
      %p263 = scmp.eq.s32.totalorder %s18, 1
      %p264 = por %p262, %p263
      %p265 = scmp.ne.s32.totalorder %s257, %s260
      %p266 = scmp.eq.s32.totalorder %s18, 0
      %p267 = por %p265, %p266
      %p268 = scmp.ne.s32.totalorder %s257, %s260
      %p269 = scmp.eq.s32.totalorder %s23, 1
      %p270 = por %p268, %p269
      %p271 = scmp.ne.s32.totalorder %s260, %s261
      %p272 = scmp.eq.s32.totalorder %s23, 0
      %p273 = por %p271, %p272
      %p274 = scmp.ne.s32.totalorder %s260, %s261
      %p275 = scmp.eq.s32.totalorder %s24, 1
      %p276 = por %p274, %p275
      %p278 = scmp.ne.s32.totalorder %s261, %s277
      %p279 = scmp.eq.s32.totalorder %s24, 0
      %p280 = por %p278, %p279
      %p281 = scmp.le.s32.totalorder 1, %s18
      %p282 = scmp.lt.s32.totalorder %s18, 3
      %p283 = pnand %p281, %p282
      %p284 = pneg %p283
      // Predicated region
      $region9: #{tpu_custom_call.1} parent=5 // pred_check
        _
      $region10: #{tpu_custom_call.1} parent=5 // pred_check_branch
        %286 = sbr.rel (%p283) target = $region12
      $region11: #{tpu_custom_call.1} parent=5 // pred_region
        %s287 = ssub.s32 %s18, 1
        // Predicated region
        $region13: #{tpu_custom_call.1} parent=11 // pred_check
          %p288 = pneg %p79
        $region14: #{tpu_custom_call.1} parent=11 // pred_check_branch
          %290 = sbr.rel (%p288) target = $region16
        $region15: #{tpu_custom_call.1} parent=11 // pred_region
          _
        $region16: #{tpu_custom_call.1} parent=11 // pred_fallthru
          _
        // Predicated region
        $region17: #{tpu_custom_call.1} parent=11 // pred_check
          %p291 = pneg %p100
        $region18: #{tpu_custom_call.1} parent=11 // pred_check_branch
          %293 = sbr.rel (%p291) target = $region20
        $region19: #{tpu_custom_call.1} parent=11 // pred_region
          _
        $region20: #{tpu_custom_call.1} parent=11 // pred_fallthru
          _
        // Predicated region
        $region21: #{tpu_custom_call.1} parent=11 // pred_check
          %p294 = pneg %p121
        $region22: #{tpu_custom_call.1} parent=11 // pred_check_branch
          %296 = sbr.rel (%p294) target = $region24
        $region23: #{tpu_custom_call.1} parent=11 // pred_region
          %s298 = ssub.s32 8192, 8192
          %299 = vsyncadd [#allocation4], %s298
          %s300 = sshll.u32 [#allocation3], 4
          %s301 = int_to_ptr.vmem [resolvable:$true] %s300
          %306 = dma.hbm_to_vmem [thread:$0]  %s3, 8192, %s301, [#allocation4], 64, 64, 4
        $region24: #{tpu_custom_call.1} parent=11 // pred_fallthru
          _
        // Predicated region
        $region25: #{tpu_custom_call.1} parent=11 // pred_check
          %p307 = pneg %p142
        $region26: #{tpu_custom_call.1} parent=11 // pred_check_branch
          %309 = sbr.rel (%p307) target = $region28
        $region27: #{tpu_custom_call.1} parent=11 // pred_region
          %s311 = ssub.s32 8192, 8192
          %312 = vsyncadd [#allocation6], %s311
          %s313 = sshll.u32 [#allocation5], 4
          %s314 = int_to_ptr.vmem [resolvable:$true] %s313
          %319 = dma.hbm_to_vmem [thread:$0]  %s4, 8192, %s314, [#allocation6], 512, 512, 32
        $region28: #{tpu_custom_call.1} parent=11 // pred_fallthru
          _
        // Predicated region
        $region29: #{tpu_custom_call.1} parent=11 // pred_check
          %p320 = pneg %p163
        $region30: #{tpu_custom_call.1} parent=11 // pred_check_branch
          %322 = sbr.rel (%p320) target = $region32
        $region31: #{tpu_custom_call.1} parent=11 // pred_region
          _
        $region32: #{tpu_custom_call.1} parent=11 // pred_fallthru
          _
        // Predicated region
        $region33: #{tpu_custom_call.1} parent=11 // pred_check
          %p323 = pneg %p184
        $region34: #{tpu_custom_call.1} parent=11 // pred_check_branch
          %325 = sbr.rel (%p323) target = $region36
        $region35: #{tpu_custom_call.1} parent=11 // pred_region
          _
        $region36: #{tpu_custom_call.1} parent=11 // pred_fallthru
          _
        // Predicated region
        $region37: #{tpu_custom_call.1} parent=11 // pred_check
          %p326 = pneg %p205
        $region38: #{tpu_custom_call.1} parent=11 // pred_check_branch
          %328 = sbr.rel (%p326) target = $region40
        $region39: #{tpu_custom_call.1} parent=11 // pred_region
          _
        $region40: #{tpu_custom_call.1} parent=11 // pred_fallthru
          _
        // Predicated region
        $region41: #{tpu_custom_call.1} parent=11 // pred_check
          %p329 = pneg %p226
        $region42: #{tpu_custom_call.1} parent=11 // pred_check_branch
          %331 = sbr.rel (%p329) target = $region44
        $region43: #{tpu_custom_call.1} parent=11 // pred_region
          %s333 = ssub.s32 4096, 4096
          %334 = vsyncadd [#allocation6], %s333
          %s335 = sshll.u32 [#allocation7], 4
          %s336 = int_to_ptr.vmem [resolvable:$true] %s335
          %341 = dma.hbm_to_vmem [thread:$0]  %s8, 4096, %s336, [#allocation6], 128, 128, 8
        $region44: #{tpu_custom_call.1} parent=11 // pred_fallthru
          _
        // Predicated region
        $region45: #{tpu_custom_call.1} parent=11 // pred_check
          %p342 = pneg %p247
        $region46: #{tpu_custom_call.1} parent=11 // pred_check_branch
          %344 = sbr.rel (%p342) target = $region48
        $region47: #{tpu_custom_call.1} parent=11 // pred_region
          _
        $region48: #{tpu_custom_call.1} parent=11 // pred_fallthru
          _
      $region12: #{tpu_custom_call.1} parent=5 // pred_fallthru
        _
      %p345 = scmp.lt.s32.totalorder %s18, 2
      // Predicated region
      $region49: #{tpu_custom_call.1} parent=5 // pred_check
        %p346 = pneg %p345
      $region50: #{tpu_custom_call.1} parent=5 // pred_check_branch
        %348 = sbr.rel (%p346) target = $region52
      $region51: #{tpu_custom_call.1} parent=5 // pred_region
        // Predicated region
        $region53: #{tpu_custom_call.1} parent=51 // pred_check
          %p349 = pneg %p52
        $region54: #{tpu_custom_call.1} parent=51 // pred_check_branch
          %351 = sbr.rel (%p349) target = $region56
        $region55: #{tpu_custom_call.1} parent=51 // pred_region
          %s352 = smul.u32 64, %s26
          %p353 = scmp.lt.s32.totalorder %s25, 1
          %s354 = scalar_select %p353, %s25, 1
          %p355 = scmp.lt.s32.totalorder %s352, 63
          %s356 = scalar_select %p355, %s352, 63
          %s357 = smul.addr %s354, 64
          %s358 = sadd.s32 %s356, %s357
          %s359 = smul.addr %s358, 8
          %s360 = scalar_lea.vmem %s0, %s359
          %s361 = smul.u32 64, %s26
        $region56: #{tpu_custom_call.1} parent=51 // pred_fallthru
          _
      $region52: #{tpu_custom_call.1} parent=5 // pred_fallthru
        _
      %p362 = scmp.le.s32.totalorder 1, %s18
      %p363 = scmp.lt.s32.totalorder %s18, 3
      %p364 = pnand %p362, %p363
      %p365 = pneg %p364
      // Predicated region
      $region57: #{tpu_custom_call.1} parent=5 // pred_check
        _
      $region58: #{tpu_custom_call.1} parent=5 // pred_check_branch
        %367 = sbr.rel (%p364) target = $region60
      $region59: #{tpu_custom_call.1} parent=5 // pred_region
        %s368 = ssub.s32 %s18, 1
        // Predicated region
        $region61: #{tpu_custom_call.1} parent=59 // pred_check
          %p369 = pneg %p121
        $region62: #{tpu_custom_call.1} parent=59 // pred_check_branch
          %371 = sbr.rel (%p369) target = $region64
        $region63: #{tpu_custom_call.1} parent=59 // pred_region
          %372 = dma.done [#allocation4], 8192
        $region64: #{tpu_custom_call.1} parent=59 // pred_fallthru
          _
        // Predicated region
        $region65: #{tpu_custom_call.1} parent=59 // pred_check
          %p373 = pneg %p142
        $region66: #{tpu_custom_call.1} parent=59 // pred_check_branch
          %375 = sbr.rel (%p373) target = $region68
        $region67: #{tpu_custom_call.1} parent=59 // pred_region
          %376 = dma.done [#allocation6], 8192
        $region68: #{tpu_custom_call.1} parent=59 // pred_fallthru
          _
        // Predicated region
        $region69: #{tpu_custom_call.1} parent=59 // pred_check
          %p377 = pneg %p226
        $region70: #{tpu_custom_call.1} parent=59 // pred_check_branch
          %379 = sbr.rel (%p377) target = $region72
        $region71: #{tpu_custom_call.1} parent=59 // pred_region
          %380 = dma.done [#allocation6], 4096
        $region72: #{tpu_custom_call.1} parent=59 // pred_fallthru
          _
        %s381 = smul.u32 64, %s28
        %p382 = scmp.lt.s32.totalorder %s27, 1
        %s383 = scalar_select %p382, %s27, 1
        %p384 = scmp.lt.s32.totalorder %s381, 63
        %s385 = scalar_select %p384, %s381, 63
        %s386 = smul.addr %s383, 64
        %s387 = sadd.s32 %s385, %s386
        %s388 = smul.addr %s387, 8
        %s389 = scalar_lea.vmem %s0, %s388
        %p390 = pneg %p58
        %p391 = pneg %p55
        %p392 = pneg %p79
        %p393 = pneg %p76
        %p394 = pneg %p100
        %p395 = pneg %p97
        %p396 = pneg %p121
        %p397 = pneg %p118
        %p398 = pneg %p142
        %p399 = pneg %p139
        %p400 = pneg %p163
        %p401 = pneg %p160
        %p402 = pneg %p184
        %p403 = pneg %p181
        %p404 = pneg %p205
        %p405 = pneg %p202
        %p406 = pneg %p226
        %p407 = pneg %p223
        %p408 = pneg %p247
        %p409 = pneg %p244
        %p410 = pneg %p273
        %p411 = pneg %p270
        %p412 = scmp.lt.s32.totalorder %s27, 1
        %s413 = scalar_select %p412, %s27, 1
        %s414 = smul.addr %s413, 32
        %s415 = smul.addr %s414, 8
        %s416 = scalar_lea.vmem %s10, %s415
        %s417 = smul.u32 64, %s28
        %p418 = scmp.lt.s32.totalorder %s27, 1
        %s419 = scalar_select %p418, %s27, 1
        %p420 = scmp.lt.s32.totalorder %s417, 63
        %s421 = scalar_select %p420, %s417, 63
        %s422 = smul.addr %s419, 64
        %s423 = sadd.s32 %s421, %s422
        %s424 = smul.addr %s423, 8
        %s425 = scalar_lea.vmem %s0, %s424
        %s426 = smul.u32 64, %s28
        %p427 = scmp.lt.s32.totalorder %s27, 1
        %s428 = scalar_select %p427, %s27, 1
        %s429 = smul.addr %s428, 32
        %s430 = smul.addr %s429, 8
        %s431 = scalar_lea.vmem %s10, %s430
        %p433 = scmp.eq.s32.totalorder %s28, 0
        // Predicated region
        $region73: #{tpu_custom_call.1} parent=59 // pred_check
          %p434 = pneg %p433
        $region74: #{tpu_custom_call.1} parent=59 // pred_check_branch
          %436 = sbr.rel (%p434) target = $region76
        $region75: #{tpu_custom_call.1} parent=59 // pred_region
          %437 = vst [vmem:[#allocation2] sm:$0xff] 0.0
        $region76: #{tpu_custom_call.1} parent=59 // pred_fallthru
          _
        %v438 = vld [vmem:[%s425] sm:$0xff]
        %v439 = vld [vmem:[%s425 + $0x8] sm:$0xff]
        %v440 = vld [vmem:[%s425 + $0x10] sm:$0xff]
        %v441 = vld [vmem:[%s425 + $0x18] sm:$0xff]
        %v442 = vld [vmem:[%s425 + $0x20] sm:$0xff]
        %v443 = vld [vmem:[%s425 + $0x28] sm:$0xff]
        %v444 = vld [vmem:[%s425 + $0x30] sm:$0xff]
        %v445 = vld [vmem:[%s425 + $0x38] sm:$0xff]
        %v446 = vld [vmem:[%s425 + $0x40] sm:$0xff]
        %v447 = vld [vmem:[%s425 + $0x48] sm:$0xff]
        %v448 = vld [vmem:[%s425 + $0x50] sm:$0xff]
        %v449 = vld [vmem:[%s425 + $0x58] sm:$0xff]
        %v450 = vld [vmem:[%s425 + $0x60] sm:$0xff]
        %v451 = vld [vmem:[%s425 + $0x68] sm:$0xff]
        %v452 = vld [vmem:[%s425 + $0x70] sm:$0xff]
        %v453 = vld [vmem:[%s425 + $0x78] sm:$0xff]
        %v454 = vld [vmem:[%s425 + $0x80] sm:$0xff]
        %v455 = vld [vmem:[%s425 + $0x88] sm:$0xff]
        %v456 = vld [vmem:[%s425 + $0x90] sm:$0xff]
        %v457 = vld [vmem:[%s425 + $0x98] sm:$0xff]
        %v458 = vld [vmem:[%s425 + $0xa0] sm:$0xff]
        %v459 = vld [vmem:[%s425 + $0xa8] sm:$0xff]
        %v460 = vld [vmem:[%s425 + $0xb0] sm:$0xff]
        %v461 = vld [vmem:[%s425 + $0xb8] sm:$0xff]
        %v462 = vld [vmem:[%s425 + $0xc0] sm:$0xff]
        %v463 = vld [vmem:[%s425 + $0xc8] sm:$0xff]
        %v464 = vld [vmem:[%s425 + $0xd0] sm:$0xff]
        %v465 = vld [vmem:[%s425 + $0xd8] sm:$0xff]
        %v466 = vld [vmem:[%s425 + $0xe0] sm:$0xff]
        %v467 = vld [vmem:[%s425 + $0xe8] sm:$0xff]
        %v468 = vld [vmem:[%s425 + $0xf0] sm:$0xff]
        %v469 = vld [vmem:[%s425 + $0xf8] sm:$0xff]
        %v470 = vld [vmem:[%s425 + $0x100] sm:$0xff]
        %v471 = vld [vmem:[%s425 + $0x108] sm:$0xff]
        %v472 = vld [vmem:[%s425 + $0x110] sm:$0xff]
        %v473 = vld [vmem:[%s425 + $0x118] sm:$0xff]
        %v474 = vld [vmem:[%s425 + $0x120] sm:$0xff]
        %v475 = vld [vmem:[%s425 + $0x128] sm:$0xff]
        %v476 = vld [vmem:[%s425 + $0x130] sm:$0xff]
        %v477 = vld [vmem:[%s425 + $0x138] sm:$0xff]
        %v478 = vld [vmem:[%s425 + $0x140] sm:$0xff]
        %v479 = vld [vmem:[%s425 + $0x148] sm:$0xff]
        %v480 = vld [vmem:[%s425 + $0x150] sm:$0xff]
        %v481 = vld [vmem:[%s425 + $0x158] sm:$0xff]
        %v482 = vld [vmem:[%s425 + $0x160] sm:$0xff]
        %v483 = vld [vmem:[%s425 + $0x168] sm:$0xff]
        %v484 = vld [vmem:[%s425 + $0x170] sm:$0xff]
        %v485 = vld [vmem:[%s425 + $0x178] sm:$0xff]
        %v486 = vld [vmem:[%s425 + $0x180] sm:$0xff]
        %v487 = vld [vmem:[%s425 + $0x188] sm:$0xff]
        %v488 = vld [vmem:[%s425 + $0x190] sm:$0xff]
        %v489 = vld [vmem:[%s425 + $0x198] sm:$0xff]
        %v490 = vld [vmem:[%s425 + $0x1a0] sm:$0xff]
        %v491 = vld [vmem:[%s425 + $0x1a8] sm:$0xff]
        %v492 = vld [vmem:[%s425 + $0x1b0] sm:$0xff]
        %v493 = vld [vmem:[%s425 + $0x1b8] sm:$0xff]
        %v494 = vld [vmem:[%s425 + $0x1c0] sm:$0xff]
        %v495 = vld [vmem:[%s425 + $0x1c8] sm:$0xff]
        %v496 = vld [vmem:[%s425 + $0x1d0] sm:$0xff]
        %v497 = vld [vmem:[%s425 + $0x1d8] sm:$0xff]
        %v498 = vld [vmem:[%s425 + $0x1e0] sm:$0xff]
        %v499 = vld [vmem:[%s425 + $0x1e8] sm:$0xff]
        %v500 = vld [vmem:[%s425 + $0x1f0] sm:$0xff]
        %v501 = vld [vmem:[%s425 + $0x1f8] sm:$0xff]
        %v502 = vpack.c.bf16 %v439, %v438
        %v503 = vpack.c.bf16 %v441, %v440
        %v504 = vpack.c.bf16 %v443, %v442
        %v505 = vpack.c.bf16 %v445, %v444
        %v506 = vpack.c.bf16 %v447, %v446
        %v507 = vpack.c.bf16 %v449, %v448
        %v508 = vpack.c.bf16 %v451, %v450
        %v509 = vpack.c.bf16 %v453, %v452
        %v510 = vpack.c.bf16 %v455, %v454
        %v511 = vpack.c.bf16 %v457, %v456
        %v512 = vpack.c.bf16 %v459, %v458
        %v513 = vpack.c.bf16 %v461, %v460
        %v514 = vpack.c.bf16 %v463, %v462
        %v515 = vpack.c.bf16 %v465, %v464
        %v516 = vpack.c.bf16 %v467, %v466
        %v517 = vpack.c.bf16 %v469, %v468
        %v518 = vpack.c.bf16 %v471, %v470
        %v519 = vpack.c.bf16 %v473, %v472
        %v520 = vpack.c.bf16 %v475, %v474
        %v521 = vpack.c.bf16 %v477, %v476
        %v522 = vpack.c.bf16 %v479, %v478
        %v523 = vpack.c.bf16 %v481, %v480
        %v524 = vpack.c.bf16 %v483, %v482
        %v525 = vpack.c.bf16 %v485, %v484
        %v526 = vpack.c.bf16 %v487, %v486
        %v527 = vpack.c.bf16 %v489, %v488
        %v528 = vpack.c.bf16 %v491, %v490
        %v529 = vpack.c.bf16 %v493, %v492
        %v530 = vpack.c.bf16 %v495, %v494
        %v531 = vpack.c.bf16 %v497, %v496
        %v532 = vpack.c.bf16 %v499, %v498
        %v533 = vpack.c.bf16 %v501, %v500
        %v534 = vld [vmem:[%s1] sm:$0x3]
        %v535 = vld [vmem:[%s2] sm:$0x1]
        %v537 = vlaneseq
        %v538 = vshrl.u32 %v537, 7
        %v539 = vsub.s32 0, %v538
        %v540 = vrot.slane %v535, %v539
        %vm542 = vcmask 23552
        %v544 = vsel %vm542, %v502, 0
        %v547 = vsel %vm542, %v503, 0
        %v550 = vsel %vm542, %v504, 0
        %v553 = vsel %vm542, %v505, 0
        %v556 = vsel %vm542, %v506, 0
        %v559 = vsel %vm542, %v507, 0
        %v562 = vsel %vm542, %v508, 0
        %v565 = vsel %vm542, %v509, 0
        %v568 = vsel %vm542, %v510, 0
        %v571 = vsel %vm542, %v511, 0
        %v574 = vsel %vm542, %v512, 0
        %v577 = vsel %vm542, %v513, 0
        %v580 = vsel %vm542, %v514, 0
        %v583 = vsel %vm542, %v515, 0
        %v586 = vsel %vm542, %v516, 0
        %v589 = vsel %vm542, %v517, 0
        %v592 = vsel %vm542, %v518, 0
        %v595 = vsel %vm542, %v519, 0
        %v598 = vsel %vm542, %v520, 0
        %v601 = vsel %vm542, %v521, 0
        %v604 = vsel %vm542, %v522, 0
        %v607 = vsel %vm542, %v523, 0
        %v610 = vsel %vm542, %v524, 0
        %v613 = vsel %vm542, %v525, 0
        %v616 = vsel %vm542, %v526, 0
        %v619 = vsel %vm542, %v527, 0
        %v622 = vsel %vm542, %v528, 0
        %v625 = vsel %vm542, %v529, 0
        %v628 = vsel %vm542, %v530, 0
        %v631 = vsel %vm542, %v531, 0
        %v634 = vsel %vm542, %v532, 0
        %v637 = vsel %vm542, %v533, 0
        %vm639 = vcmask 1040384
        %vm640 = vcmask 1041408
        %v641 = vsel %vm639, 4294967295, 65535
        %v642 = vsel %vm640, %v641, 0
        %v644 = vand.u32 %v534, %v642
        %646 = vmatprep.subr.bf16.mxu0 0
        %647 = vmatpush1.bf16.msra.mxu0 0
        %648 = vmatprep.subr.bf16.mxu0 0
        %649 = vmatpush1.bf16.msra.mxu0 0
        %650 = vmatprep.subr.bf16.mxu0 0
        %651 = vmatpush1.bf16.msra.mxu0 0
        %652 = vmatprep.subr.bf16.mxu0 0
        %653 = vmatpush1.bf16.msra.mxu0 0
        %654 = vmatprep.subr.bf16.mxu0 0
        %655 = vmatpush1.bf16.msra.mxu0 0
        %656 = vmatprep.subr.bf16.mxu0 0
        %657 = vmatpush1.bf16.msra.mxu0 0
        %658 = vmatprep.subr.bf16.mxu0 0
        %659 = vmatpush1.bf16.msra.mxu0 0
        %660 = vmatprep.subr.bf16.mxu0 0
        %661 = vmatpush1.bf16.msra.mxu0 %v644
        %662 = vmatprep.subr.bf16.mxu0 0
        %663 = vmatpush2.bf16.msra.mxu0 0
        %664 = vmatprep.subr.bf16.mxu0 0
        %665 = vmatpush2.bf16.msra.mxu0 0
        %666 = vmatprep.subr.bf16.mxu0 0
        %667 = vmatpush2.bf16.msra.mxu0 0
        %668 = vmatprep.subr.bf16.mxu0 0
        %669 = vmatpush2.bf16.msra.mxu0 0
        %670 = vmatprep.subr.bf16.mxu0 0
        %671 = vmatpush2.bf16.msra.mxu0 0
        %672 = vmatprep.subr.bf16.mxu0 0
        %673 = vmatpush2.bf16.msra.mxu0 0
        %674 = vmatprep.subr.bf16.mxu0 0
        %675 = vmatpush2.bf16.msra.mxu0 0
        %676 = vmatprep.subr.bf16.mxu0 0
        %677 = vmatpush2.bf16.msra.mxu0 0
        %678 = vmatprep.mubr.bf16.mxu0 0
        %679 = vmatmul.mubr.bf16.gmra.mxu0 %v544
        %v680 = vpop.f32.mrf.mxu0
        %v681 = vadd.f32 %v540, %v680
        %v682 = vpop.f32.mrf.mxu0
        %v683 = vpop.f32.mrf.mxu0
        %v684 = vadd.f32 %v540, %v683
        %v685 = vpop.f32.mrf.mxu0
        %686 = vmatprep.mubr.bf16.mxu0 0
        %687 = vmatmul.mubr.bf16.gmra.mxu0 %v547
        %v688 = vpop.f32.mrf.mxu0
        %v689 = vadd.f32 %v540, %v688
        %v690 = vpop.f32.mrf.mxu0
        %v691 = vpop.f32.mrf.mxu0
        %v692 = vadd.f32 %v540, %v691
        %v693 = vpop.f32.mrf.mxu0
        %694 = vmatprep.mubr.bf16.mxu0 0
        %695 = vmatmul.mubr.bf16.gmra.mxu0 %v550
        %v696 = vpop.f32.mrf.mxu0
        %v697 = vadd.f32 %v540, %v696
        %v698 = vpop.f32.mrf.mxu0
        %v699 = vpop.f32.mrf.mxu0
        %v700 = vadd.f32 %v540, %v699
        %v701 = vpop.f32.mrf.mxu0
        %702 = vmatprep.mubr.bf16.mxu0 0
        %703 = vmatmul.mubr.bf16.gmra.mxu0 %v553
        %v704 = vpop.f32.mrf.mxu0
        %v705 = vadd.f32 %v540, %v704
        %v706 = vpop.f32.mrf.mxu0
        %v707 = vpop.f32.mrf.mxu0
        %v708 = vadd.f32 %v540, %v707
        %v709 = vpop.f32.mrf.mxu0
        %710 = vmatprep.mubr.bf16.mxu0 0
        %711 = vmatmul.mubr.bf16.gmra.mxu0 %v556
        %v712 = vpop.f32.mrf.mxu0
        %v713 = vadd.f32 %v540, %v712
        %v714 = vpop.f32.mrf.mxu0
        %v715 = vpop.f32.mrf.mxu0
        %v716 = vadd.f32 %v540, %v715
        %v717 = vpop.f32.mrf.mxu0
        %718 = vmatprep.mubr.bf16.mxu0 0
        %719 = vmatmul.mubr.bf16.gmra.mxu0 %v559
        %v720 = vpop.f32.mrf.mxu0
        %v721 = vadd.f32 %v540, %v720
        %v722 = vpop.f32.mrf.mxu0
        %v723 = vpop.f32.mrf.mxu0
        %v724 = vadd.f32 %v540, %v723
        %v725 = vpop.f32.mrf.mxu0
        %726 = vmatprep.mubr.bf16.mxu0 0
        %727 = vmatmul.mubr.bf16.gmra.mxu0 %v562
        %v728 = vpop.f32.mrf.mxu0
        %v729 = vadd.f32 %v540, %v728
        %v730 = vpop.f32.mrf.mxu0
        %v731 = vpop.f32.mrf.mxu0
        %v732 = vadd.f32 %v540, %v731
        %v733 = vpop.f32.mrf.mxu0
        %734 = vmatprep.mubr.bf16.mxu0 0
        %735 = vmatmul.mubr.bf16.gmra.mxu0 %v565
        %v736 = vpop.f32.mrf.mxu0
        %v737 = vadd.f32 %v540, %v736
        %v738 = vpop.f32.mrf.mxu0
        %v739 = vpop.f32.mrf.mxu0
        %v740 = vadd.f32 %v540, %v739
        %v741 = vpop.f32.mrf.mxu0
        %742 = vmatprep.mubr.bf16.mxu0 0
        %743 = vmatmul.mubr.bf16.gmra.mxu0 %v568
        %v744 = vpop.f32.mrf.mxu0
        %v745 = vadd.f32 %v540, %v744
        %v746 = vpop.f32.mrf.mxu0
        %v747 = vpop.f32.mrf.mxu0
        %v748 = vadd.f32 %v540, %v747
        %v749 = vpop.f32.mrf.mxu0
        %750 = vmatprep.mubr.bf16.mxu0 0
        %751 = vmatmul.mubr.bf16.gmra.mxu0 %v571
        %v752 = vpop.f32.mrf.mxu0
        %v753 = vadd.f32 %v540, %v752
        %v754 = vpop.f32.mrf.mxu0
        %v755 = vpop.f32.mrf.mxu0
        %v756 = vadd.f32 %v540, %v755
        %v757 = vpop.f32.mrf.mxu0
        %758 = vmatprep.mubr.bf16.mxu0 0
        %759 = vmatmul.mubr.bf16.gmra.mxu0 %v574
        %v760 = vpop.f32.mrf.mxu0
        %v761 = vadd.f32 %v540, %v760
        %v762 = vpop.f32.mrf.mxu0
        %v763 = vpop.f32.mrf.mxu0
        %v764 = vadd.f32 %v540, %v763
        %v765 = vpop.f32.mrf.mxu0
        %766 = vmatprep.mubr.bf16.mxu0 0
        %767 = vmatmul.mubr.bf16.gmra.mxu0 %v577
        %v768 = vpop.f32.mrf.mxu0
        %v769 = vadd.f32 %v540, %v768
        %v770 = vpop.f32.mrf.mxu0
        %v771 = vpop.f32.mrf.mxu0
        %v772 = vadd.f32 %v540, %v771
        %v773 = vpop.f32.mrf.mxu0
        %774 = vmatprep.mubr.bf16.mxu0 0
        %775 = vmatmul.mubr.bf16.gmra.mxu0 %v580
        %v776 = vpop.f32.mrf.mxu0
        %v777 = vadd.f32 %v540, %v776
        %v778 = vpop.f32.mrf.mxu0
        %v779 = vpop.f32.mrf.mxu0
        %v780 = vadd.f32 %v540, %v779
        %v781 = vpop.f32.mrf.mxu0
        %782 = vmatprep.mubr.bf16.mxu0 0
        %783 = vmatmul.mubr.bf16.gmra.mxu0 %v583
        %v784 = vpop.f32.mrf.mxu0
        %v785 = vadd.f32 %v540, %v784
        %v786 = vpop.f32.mrf.mxu0
        %v787 = vpop.f32.mrf.mxu0
        %v788 = vadd.f32 %v540, %v787
        %v789 = vpop.f32.mrf.mxu0
        %790 = vmatprep.mubr.bf16.mxu0 0
        %791 = vmatmul.mubr.bf16.gmra.mxu0 %v586
        %v792 = vpop.f32.mrf.mxu0
        %v793 = vadd.f32 %v540, %v792
        %v794 = vpop.f32.mrf.mxu0
        %v795 = vpop.f32.mrf.mxu0
        %v796 = vadd.f32 %v540, %v795
        %v797 = vpop.f32.mrf.mxu0
        %798 = vmatprep.mubr.bf16.mxu0 0
        %799 = vmatmul.mubr.bf16.gmra.mxu0 %v589
        %v800 = vpop.f32.mrf.mxu0
        %v801 = vadd.f32 %v540, %v800
        %v802 = vpop.f32.mrf.mxu0
        %v803 = vpop.f32.mrf.mxu0
        %v804 = vadd.f32 %v540, %v803
        %v805 = vpop.f32.mrf.mxu0
        %806 = vmatprep.mubr.bf16.mxu0 0
        %807 = vmatmul.mubr.bf16.gmra.mxu0 %v592
        %v808 = vpop.f32.mrf.mxu0
        %v809 = vadd.f32 %v540, %v808
        %v810 = vpop.f32.mrf.mxu0
        %v811 = vpop.f32.mrf.mxu0
        %v812 = vadd.f32 %v540, %v811
        %v813 = vpop.f32.mrf.mxu0
        %814 = vmatprep.mubr.bf16.mxu0 0
        %815 = vmatmul.mubr.bf16.gmra.mxu0 %v595
        %v816 = vpop.f32.mrf.mxu0
        %v817 = vadd.f32 %v540, %v816
        %v818 = vpop.f32.mrf.mxu0
        %v819 = vpop.f32.mrf.mxu0
        %v820 = vadd.f32 %v540, %v819
        %v821 = vpop.f32.mrf.mxu0
        %822 = vmatprep.mubr.bf16.mxu0 0
        %823 = vmatmul.mubr.bf16.gmra.mxu0 %v598
        %v824 = vpop.f32.mrf.mxu0
        %v825 = vadd.f32 %v540, %v824
        %v826 = vpop.f32.mrf.mxu0
        %v827 = vpop.f32.mrf.mxu0
        %v828 = vadd.f32 %v540, %v827
        %v829 = vpop.f32.mrf.mxu0
        %830 = vmatprep.mubr.bf16.mxu0 0
        %831 = vmatmul.mubr.bf16.gmra.mxu0 %v601
        %v832 = vpop.f32.mrf.mxu0
        %v833 = vadd.f32 %v540, %v832
        %v834 = vpop.f32.mrf.mxu0
        %v835 = vpop.f32.mrf.mxu0
        %v836 = vadd.f32 %v540, %v835
        %v837 = vpop.f32.mrf.mxu0
        %838 = vmatprep.mubr.bf16.mxu0 0
        %839 = vmatmul.mubr.bf16.gmra.mxu0 %v604
        %v840 = vpop.f32.mrf.mxu0
        %v841 = vadd.f32 %v540, %v840
        %v842 = vpop.f32.mrf.mxu0
        %v843 = vpop.f32.mrf.mxu0
        %v844 = vadd.f32 %v540, %v843
        %v845 = vpop.f32.mrf.mxu0
        %846 = vmatprep.mubr.bf16.mxu0 0
        %847 = vmatmul.mubr.bf16.gmra.mxu0 %v607
        %v848 = vpop.f32.mrf.mxu0
        %v849 = vadd.f32 %v540, %v848
        %v850 = vpop.f32.mrf.mxu0
        %v851 = vpop.f32.mrf.mxu0
        %v852 = vadd.f32 %v540, %v851
        %v853 = vpop.f32.mrf.mxu0
        %854 = vmatprep.mubr.bf16.mxu0 0
        %855 = vmatmul.mubr.bf16.gmra.mxu0 %v610
        %v856 = vpop.f32.mrf.mxu0
        %v857 = vadd.f32 %v540, %v856
        %v858 = vpop.f32.mrf.mxu0
        %v859 = vpop.f32.mrf.mxu0
        %v860 = vadd.f32 %v540, %v859
        %v861 = vpop.f32.mrf.mxu0
        %862 = vmatprep.mubr.bf16.mxu0 0
        %863 = vmatmul.mubr.bf16.gmra.mxu0 %v613
        %v864 = vpop.f32.mrf.mxu0
        %v865 = vadd.f32 %v540, %v864
        %v866 = vpop.f32.mrf.mxu0
        %v867 = vpop.f32.mrf.mxu0
        %v868 = vadd.f32 %v540, %v867
        %v869 = vpop.f32.mrf.mxu0
        %870 = vmatprep.mubr.bf16.mxu0 0
        %871 = vmatmul.mubr.bf16.gmra.mxu0 %v616
        %v872 = vpop.f32.mrf.mxu0
        %v873 = vadd.f32 %v540, %v872
        %v874 = vpop.f32.mrf.mxu0
        %v875 = vpop.f32.mrf.mxu0
        %v876 = vadd.f32 %v540, %v875
        %v877 = vpop.f32.mrf.mxu0
        %878 = vmatprep.mubr.bf16.mxu0 0
        %879 = vmatmul.mubr.bf16.gmra.mxu0 %v619
        %v880 = vpop.f32.mrf.mxu0
        %v881 = vadd.f32 %v540, %v880
        %v882 = vpop.f32.mrf.mxu0
        %v883 = vpop.f32.mrf.mxu0
        %v884 = vadd.f32 %v540, %v883
        %v885 = vpop.f32.mrf.mxu0
        %886 = vmatprep.mubr.bf16.mxu0 0
        %887 = vmatmul.mubr.bf16.gmra.mxu0 %v622
        %v888 = vpop.f32.mrf.mxu0
        %v889 = vadd.f32 %v540, %v888
        %v890 = vpop.f32.mrf.mxu0
        %v891 = vpop.f32.mrf.mxu0
        %v892 = vadd.f32 %v540, %v891
        %v893 = vpop.f32.mrf.mxu0
        %894 = vmatprep.mubr.bf16.mxu0 0
        %895 = vmatmul.mubr.bf16.gmra.mxu0 %v625
        %v896 = vpop.f32.mrf.mxu0
        %v897 = vadd.f32 %v540, %v896
        %v898 = vpop.f32.mrf.mxu0
        %v899 = vpop.f32.mrf.mxu0
        %v900 = vadd.f32 %v540, %v899
        %v901 = vpop.f32.mrf.mxu0
        %902 = vmatprep.mubr.bf16.mxu0 0
        %903 = vmatmul.mubr.bf16.gmra.mxu0 %v628
        %v904 = vpop.f32.mrf.mxu0
        %v905 = vadd.f32 %v540, %v904
        %v906 = vpop.f32.mrf.mxu0
        %v907 = vpop.f32.mrf.mxu0
        %v908 = vadd.f32 %v540, %v907
        %v909 = vpop.f32.mrf.mxu0
        %910 = vmatprep.mubr.bf16.mxu0 0
        %911 = vmatmul.mubr.bf16.gmra.mxu0 %v631
        %v912 = vpop.f32.mrf.mxu0
        %v913 = vadd.f32 %v540, %v912
        %v914 = vpop.f32.mrf.mxu0
        %v915 = vpop.f32.mrf.mxu0
        %v916 = vadd.f32 %v540, %v915
        %v917 = vpop.f32.mrf.mxu0
        %918 = vmatprep.mubr.bf16.mxu0 0
        %919 = vmatmul.mubr.bf16.gmra.mxu0 %v634
        %v920 = vpop.f32.mrf.mxu0
        %v921 = vadd.f32 %v540, %v920
        %v922 = vpop.f32.mrf.mxu0
        %v923 = vpop.f32.mrf.mxu0
        %v924 = vadd.f32 %v540, %v923
        %v925 = vpop.f32.mrf.mxu0
        %926 = vmatprep.mubr.bf16.mxu0 0
        %927 = vmatmul.mubr.bf16.gmra.mxu0 %v637
        %v928 = vpop.f32.mrf.mxu0
        %v929 = vadd.f32 %v540, %v928
        %v930 = vpop.f32.mrf.mxu0
        %v931 = vpop.f32.mrf.mxu0
        %v932 = vadd.f32 %v540, %v931
        %v933 = vpop.f32.mrf.mxu0
        %934 = vdwg.mxu0
        %v935 = vmax.f32 %v681, 0.0
        %v936 = vmax.f32 %v684, 0.0
        %v937 = vmax.f32 %v689, 0.0
        %v938 = vmax.f32 %v692, 0.0
        %v939 = vmax.f32 %v697, 0.0
        %v940 = vmax.f32 %v700, 0.0
        %v941 = vmax.f32 %v705, 0.0
        %v942 = vmax.f32 %v708, 0.0
        %v943 = vmax.f32 %v713, 0.0
        %v944 = vmax.f32 %v716, 0.0
        %v945 = vmax.f32 %v721, 0.0
        %v946 = vmax.f32 %v724, 0.0
        %v947 = vmax.f32 %v729, 0.0
        %v948 = vmax.f32 %v732, 0.0
        %v949 = vmax.f32 %v737, 0.0
        %v950 = vmax.f32 %v740, 0.0
        %v951 = vmax.f32 %v745, 0.0
        %v952 = vmax.f32 %v748, 0.0
        %v953 = vmax.f32 %v753, 0.0
        %v954 = vmax.f32 %v756, 0.0
        %v955 = vmax.f32 %v761, 0.0
        %v956 = vmax.f32 %v764, 0.0
        %v957 = vmax.f32 %v769, 0.0
        %v958 = vmax.f32 %v772, 0.0
        %v959 = vmax.f32 %v777, 0.0
        %v960 = vmax.f32 %v780, 0.0
        %v961 = vmax.f32 %v785, 0.0
        %v962 = vmax.f32 %v788, 0.0
        %v963 = vmax.f32 %v793, 0.0
        %v964 = vmax.f32 %v796, 0.0
        %v965 = vmax.f32 %v801, 0.0
        %v966 = vmax.f32 %v804, 0.0
        %v967 = vmax.f32 %v809, 0.0
        %v968 = vmax.f32 %v812, 0.0
        %v969 = vmax.f32 %v817, 0.0
        %v970 = vmax.f32 %v820, 0.0
        %v971 = vmax.f32 %v825, 0.0
        %v972 = vmax.f32 %v828, 0.0
        %v973 = vmax.f32 %v833, 0.0
        %v974 = vmax.f32 %v836, 0.0
        %v975 = vmax.f32 %v841, 0.0
        %v976 = vmax.f32 %v844, 0.0
        %v977 = vmax.f32 %v849, 0.0
        %v978 = vmax.f32 %v852, 0.0
        %v979 = vmax.f32 %v857, 0.0
        %v980 = vmax.f32 %v860, 0.0
        %v981 = vmax.f32 %v865, 0.0
        %v982 = vmax.f32 %v868, 0.0
        %v983 = vmax.f32 %v873, 0.0
        %v984 = vmax.f32 %v876, 0.0
        %v985 = vmax.f32 %v881, 0.0
        %v986 = vmax.f32 %v884, 0.0
        %v987 = vmax.f32 %v889, 0.0
        %v988 = vmax.f32 %v892, 0.0
        %v989 = vmax.f32 %v897, 0.0
        %v990 = vmax.f32 %v900, 0.0
        %v991 = vmax.f32 %v905, 0.0
        %v992 = vmax.f32 %v908, 0.0
        %v993 = vmax.f32 %v913, 0.0
        %v994 = vmax.f32 %v916, 0.0
        %v995 = vmax.f32 %v921, 0.0
        %v996 = vmax.f32 %v924, 0.0
        %v997 = vmax.f32 %v929, 0.0
        %v998 = vmax.f32 %v932, 0.0
        %v999 = vpack.c.bf16 %v936, %v935
        %v1000 = vpack.c.bf16 %v938, %v937
        %v1001 = vpack.c.bf16 %v940, %v939
        %v1002 = vpack.c.bf16 %v942, %v941
        %v1003 = vpack.c.bf16 %v944, %v943
        %v1004 = vpack.c.bf16 %v946, %v945
        %v1005 = vpack.c.bf16 %v948, %v947
        %v1006 = vpack.c.bf16 %v950, %v949
        %v1007 = vpack.c.bf16 %v952, %v951
        %v1008 = vpack.c.bf16 %v954, %v953
        %v1009 = vpack.c.bf16 %v956, %v955
        %v1010 = vpack.c.bf16 %v958, %v957
        %v1011 = vpack.c.bf16 %v960, %v959
        %v1012 = vpack.c.bf16 %v962, %v961
        %v1013 = vpack.c.bf16 %v964, %v963
        %v1014 = vpack.c.bf16 %v966, %v965
        %v1015 = vpack.c.bf16 %v968, %v967
        %v1016 = vpack.c.bf16 %v970, %v969
        %v1017 = vpack.c.bf16 %v972, %v971
        %v1018 = vpack.c.bf16 %v974, %v973
        %v1019 = vpack.c.bf16 %v976, %v975
        %v1020 = vpack.c.bf16 %v978, %v977
        %v1021 = vpack.c.bf16 %v980, %v979
        %v1022 = vpack.c.bf16 %v982, %v981
        %v1023 = vpack.c.bf16 %v984, %v983
        %v1024 = vpack.c.bf16 %v986, %v985
        %v1025 = vpack.c.bf16 %v988, %v987
        %v1026 = vpack.c.bf16 %v990, %v989
        %v1027 = vpack.c.bf16 %v992, %v991
        %v1028 = vpack.c.bf16 %v994, %v993
        %v1029 = vpack.c.bf16 %v996, %v995
        %v1030 = vpack.c.bf16 %v998, %v997
        %v1031 = vld [vmem:[#allocation3] sm:$0xf]
        %v1032 = vld [vmem:[#allocation3 + $0x4] sm:$0xf]
        %v1033 = vld [vmem:[#allocation3 + $0x8] sm:$0xf]
        %v1034 = vld [vmem:[#allocation3 + $0xc] sm:$0xf]
        %v1035 = vld [vmem:[#allocation3 + $0x10] sm:$0xf]
        %v1036 = vld [vmem:[#allocation3 + $0x14] sm:$0xf]
        %v1037 = vld [vmem:[#allocation3 + $0x18] sm:$0xf]
        %v1038 = vld [vmem:[#allocation3 + $0x1c] sm:$0xf]
        %v1039 = vld [vmem:[#allocation3 + $0x20] sm:$0xf]
        %v1040 = vld [vmem:[#allocation3 + $0x24] sm:$0xf]
        %v1041 = vld [vmem:[#allocation3 + $0x28] sm:$0xf]
        %v1042 = vld [vmem:[#allocation3 + $0x2c] sm:$0xf]
        %v1043 = vld [vmem:[#allocation3 + $0x30] sm:$0xf]
        %v1044 = vld [vmem:[#allocation3 + $0x34] sm:$0xf]
        %v1045 = vld [vmem:[#allocation3 + $0x38] sm:$0xf]
        %v1046 = vld [vmem:[#allocation3 + $0x3c] sm:$0xf]
        %s1047 = scalar_lea.vmem %s2, 1
        %v1048 = vld [vmem:[%s1047] sm:$0x1]
        %v1050 = vlaneseq
        %v1051 = vshrl.u32 %v1050, 7
        %v1052 = vsub.s32 0, %v1051
        %v1053 = vrot.slane %v1048, %v1052
        %v1071 = vunpack.c.l.b16 %v1031
        %v1072 = vunpack.c.l.b16 %v1032
        %v1073 = vunpack.c.l.b16 %v1033
        %v1074 = vunpack.c.l.b16 %v1034
        %v1075 = vunpack.c.l.b16 %v1035
        %v1076 = vunpack.c.l.b16 %v1036
        %v1077 = vunpack.c.l.b16 %v1037
        %v1078 = vunpack.c.l.b16 %v1038
        %v1079 = vunpack.c.l.b16 %v1039
        %v1080 = vunpack.c.l.b16 %v1040
        %v1081 = vunpack.c.l.b16 %v1041
        %v1082 = vunpack.c.l.b16 %v1042
        %v1083 = vunpack.c.l.b16 %v1043
        %v1084 = vunpack.c.l.b16 %v1044
        %v1085 = vunpack.c.l.b16 %v1045
        %v1086 = vunpack.c.l.b16 %v1046
        %v1087 = vpack.c.b16 %v1072, %v1071
        %v1088 = vpack.c.b16 %v1074, %v1073
        %v1089 = vpack.c.b16 %v1076, %v1075
        %v1090 = vpack.c.b16 %v1078, %v1077
        %v1091 = vpack.c.b16 %v1080, %v1079
        %v1092 = vpack.c.b16 %v1082, %v1081
        %v1093 = vpack.c.b16 %v1084, %v1083
        %v1094 = vpack.c.b16 %v1086, %v1085
        %1103 = vmatprep.subr.bf16.mxu0 0
        %1104 = vmatpush1.bf16.msra.mxu0 %v1094
        %1105 = vmatprep.subr.bf16.mxu0 0
        %1106 = vmatpush1.bf16.msra.mxu0 %v1093
        %1107 = vmatprep.subr.bf16.mxu0 0
        %1108 = vmatpush1.bf16.msra.mxu0 %v1092
        %1109 = vmatprep.subr.bf16.mxu0 0
        %1110 = vmatpush1.bf16.msra.mxu0 %v1091
        %1111 = vmatprep.subr.bf16.mxu0 0
        %1112 = vmatpush1.bf16.msra.mxu0 %v1090
        %1113 = vmatprep.subr.bf16.mxu0 0
        %1114 = vmatpush1.bf16.msra.mxu0 %v1089
        %1115 = vmatprep.subr.bf16.mxu0 0
        %1116 = vmatpush1.bf16.msra.mxu0 %v1088
        %1117 = vmatprep.subr.bf16.mxu0 0
        %1118 = vmatpush1.bf16.msra.mxu0 %v1087
        %1119 = vmatprep.subr.bf16.mxu0 0
        %1120 = vmatpush2.bf16.msra.mxu0 0
        %1121 = vmatprep.subr.bf16.mxu0 0
        %1122 = vmatpush2.bf16.msra.mxu0 0
        %1123 = vmatprep.subr.bf16.mxu0 0
        %1124 = vmatpush2.bf16.msra.mxu0 0
        %1125 = vmatprep.subr.bf16.mxu0 0
        %1126 = vmatpush2.bf16.msra.mxu0 0
        %1127 = vmatprep.subr.bf16.mxu0 0
        %1128 = vmatpush2.bf16.msra.mxu0 0
        %1129 = vmatprep.subr.bf16.mxu0 0
        %1130 = vmatpush2.bf16.msra.mxu0 0
        %1131 = vmatprep.subr.bf16.mxu0 0
        %1132 = vmatpush2.bf16.msra.mxu0 0
        %1133 = vmatprep.subr.bf16.mxu0 0
        %1134 = vmatpush2.bf16.msra.mxu0 0
        %1135 = vmatprep.mubr.bf16.mxu0 0
        %1136 = vmatmul.mubr.bf16.gmra.mxu0 %v999
        %v1137 = vpop.f32.mrf.mxu0
        %v1138 = vadd.f32 %v1053, %v1137
        %v1139 = vpop.f32.mrf.mxu0
        %v1140 = vpop.f32.mrf.mxu0
        %v1141 = vadd.f32 %v1053, %v1140
        %v1142 = vpop.f32.mrf.mxu0
        %1143 = vmatprep.mubr.bf16.mxu0 0
        %1144 = vmatmul.mubr.bf16.gmra.mxu0 %v1000
        %v1145 = vpop.f32.mrf.mxu0
        %v1146 = vadd.f32 %v1053, %v1145
        %v1147 = vpop.f32.mrf.mxu0
        %v1148 = vpop.f32.mrf.mxu0
        %v1149 = vadd.f32 %v1053, %v1148
        %v1150 = vpop.f32.mrf.mxu0
        %1151 = vmatprep.mubr.bf16.mxu0 0
        %1152 = vmatmul.mubr.bf16.gmra.mxu0 %v1001
        %v1153 = vpop.f32.mrf.mxu0
        %v1154 = vadd.f32 %v1053, %v1153
        %v1155 = vpop.f32.mrf.mxu0
        %v1156 = vpop.f32.mrf.mxu0
        %v1157 = vadd.f32 %v1053, %v1156
        %v1158 = vpop.f32.mrf.mxu0
        %1159 = vmatprep.mubr.bf16.mxu0 0
        %1160 = vmatmul.mubr.bf16.gmra.mxu0 %v1002
        %v1161 = vpop.f32.mrf.mxu0
        %v1162 = vadd.f32 %v1053, %v1161
        %v1163 = vpop.f32.mrf.mxu0
        %v1164 = vpop.f32.mrf.mxu0
        %v1165 = vadd.f32 %v1053, %v1164
        %v1166 = vpop.f32.mrf.mxu0
        %1167 = vmatprep.mubr.bf16.mxu0 0
        %1168 = vmatmul.mubr.bf16.gmra.mxu0 %v1003
        %v1169 = vpop.f32.mrf.mxu0
        %v1170 = vadd.f32 %v1053, %v1169
        %v1171 = vpop.f32.mrf.mxu0
        %v1172 = vpop.f32.mrf.mxu0
        %v1173 = vadd.f32 %v1053, %v1172
        %v1174 = vpop.f32.mrf.mxu0
        %1175 = vmatprep.mubr.bf16.mxu0 0
        %1176 = vmatmul.mubr.bf16.gmra.mxu0 %v1004
        %v1177 = vpop.f32.mrf.mxu0
        %v1178 = vadd.f32 %v1053, %v1177
        %v1179 = vpop.f32.mrf.mxu0
        %v1180 = vpop.f32.mrf.mxu0
        %v1181 = vadd.f32 %v1053, %v1180
        %v1182 = vpop.f32.mrf.mxu0
        %1183 = vmatprep.mubr.bf16.mxu0 0
        %1184 = vmatmul.mubr.bf16.gmra.mxu0 %v1005
        %v1185 = vpop.f32.mrf.mxu0
        %v1186 = vadd.f32 %v1053, %v1185
        %v1187 = vpop.f32.mrf.mxu0
        %v1188 = vpop.f32.mrf.mxu0
        %v1189 = vadd.f32 %v1053, %v1188
        %v1190 = vpop.f32.mrf.mxu0
        %1191 = vmatprep.mubr.bf16.mxu0 0
        %1192 = vmatmul.mubr.bf16.gmra.mxu0 %v1006
        %v1193 = vpop.f32.mrf.mxu0
        %v1194 = vadd.f32 %v1053, %v1193
        %v1195 = vpop.f32.mrf.mxu0
        %v1196 = vpop.f32.mrf.mxu0
        %v1197 = vadd.f32 %v1053, %v1196
        %v1198 = vpop.f32.mrf.mxu0
        %1199 = vmatprep.mubr.bf16.mxu0 0
        %1200 = vmatmul.mubr.bf16.gmra.mxu0 %v1007
        %v1201 = vpop.f32.mrf.mxu0
        %v1202 = vadd.f32 %v1053, %v1201
        %v1203 = vpop.f32.mrf.mxu0
        %v1204 = vpop.f32.mrf.mxu0
        %v1205 = vadd.f32 %v1053, %v1204
        %v1206 = vpop.f32.mrf.mxu0
        %1207 = vmatprep.mubr.bf16.mxu0 0
        %1208 = vmatmul.mubr.bf16.gmra.mxu0 %v1008
        %v1209 = vpop.f32.mrf.mxu0
        %v1210 = vadd.f32 %v1053, %v1209
        %v1211 = vpop.f32.mrf.mxu0
        %v1212 = vpop.f32.mrf.mxu0
        %v1213 = vadd.f32 %v1053, %v1212
        %v1214 = vpop.f32.mrf.mxu0
        %1215 = vmatprep.mubr.bf16.mxu0 0
        %1216 = vmatmul.mubr.bf16.gmra.mxu0 %v1009
        %v1217 = vpop.f32.mrf.mxu0
        %v1218 = vadd.f32 %v1053, %v1217
        %v1219 = vpop.f32.mrf.mxu0
        %v1220 = vpop.f32.mrf.mxu0
        %v1221 = vadd.f32 %v1053, %v1220
        %v1222 = vpop.f32.mrf.mxu0
        %1223 = vmatprep.mubr.bf16.mxu0 0
        %1224 = vmatmul.mubr.bf16.gmra.mxu0 %v1010
        %v1225 = vpop.f32.mrf.mxu0
        %v1226 = vadd.f32 %v1053, %v1225
        %v1227 = vpop.f32.mrf.mxu0
        %v1228 = vpop.f32.mrf.mxu0
        %v1229 = vadd.f32 %v1053, %v1228
        %v1230 = vpop.f32.mrf.mxu0
        %1231 = vmatprep.mubr.bf16.mxu0 0
        %1232 = vmatmul.mubr.bf16.gmra.mxu0 %v1011
        %v1233 = vpop.f32.mrf.mxu0
        %v1234 = vadd.f32 %v1053, %v1233
        %v1235 = vpop.f32.mrf.mxu0
        %v1236 = vpop.f32.mrf.mxu0
        %v1237 = vadd.f32 %v1053, %v1236
        %v1238 = vpop.f32.mrf.mxu0
        %1239 = vmatprep.mubr.bf16.mxu0 0
        %1240 = vmatmul.mubr.bf16.gmra.mxu0 %v1012
        %v1241 = vpop.f32.mrf.mxu0
        %v1242 = vadd.f32 %v1053, %v1241
        %v1243 = vpop.f32.mrf.mxu0
        %v1244 = vpop.f32.mrf.mxu0
        %v1245 = vadd.f32 %v1053, %v1244
        %v1246 = vpop.f32.mrf.mxu0
        %1247 = vmatprep.mubr.bf16.mxu0 0
        %1248 = vmatmul.mubr.bf16.gmra.mxu0 %v1013
        %v1249 = vpop.f32.mrf.mxu0
        %v1250 = vadd.f32 %v1053, %v1249
        %v1251 = vpop.f32.mrf.mxu0
        %v1252 = vpop.f32.mrf.mxu0
        %v1253 = vadd.f32 %v1053, %v1252
        %v1254 = vpop.f32.mrf.mxu0
        %1255 = vmatprep.mubr.bf16.mxu0 0
        %1256 = vmatmul.mubr.bf16.gmra.mxu0 %v1014
        %v1257 = vpop.f32.mrf.mxu0
        %v1258 = vadd.f32 %v1053, %v1257
        %v1259 = vpop.f32.mrf.mxu0
        %v1260 = vpop.f32.mrf.mxu0
        %v1261 = vadd.f32 %v1053, %v1260
        %v1262 = vpop.f32.mrf.mxu0
        %1263 = vmatprep.mubr.bf16.mxu0 0
        %1264 = vmatmul.mubr.bf16.gmra.mxu0 %v1015
        %v1265 = vpop.f32.mrf.mxu0
        %v1266 = vadd.f32 %v1053, %v1265
        %v1267 = vpop.f32.mrf.mxu0
        %v1268 = vpop.f32.mrf.mxu0
        %v1269 = vadd.f32 %v1053, %v1268
        %v1270 = vpop.f32.mrf.mxu0
        %1271 = vmatprep.mubr.bf16.mxu0 0
        %1272 = vmatmul.mubr.bf16.gmra.mxu0 %v1016
        %v1273 = vpop.f32.mrf.mxu0
        %v1274 = vadd.f32 %v1053, %v1273
        %v1275 = vpop.f32.mrf.mxu0
        %v1276 = vpop.f32.mrf.mxu0
        %v1277 = vadd.f32 %v1053, %v1276
        %v1278 = vpop.f32.mrf.mxu0
        %1279 = vmatprep.mubr.bf16.mxu0 0
        %1280 = vmatmul.mubr.bf16.gmra.mxu0 %v1017
        %v1281 = vpop.f32.mrf.mxu0
        %v1282 = vadd.f32 %v1053, %v1281
        %v1283 = vpop.f32.mrf.mxu0
        %v1284 = vpop.f32.mrf.mxu0
        %v1285 = vadd.f32 %v1053, %v1284
        %v1286 = vpop.f32.mrf.mxu0
        %1287 = vmatprep.mubr.bf16.mxu0 0
        %1288 = vmatmul.mubr.bf16.gmra.mxu0 %v1018
        %v1289 = vpop.f32.mrf.mxu0
        %v1290 = vadd.f32 %v1053, %v1289
        %v1291 = vpop.f32.mrf.mxu0
        %v1292 = vpop.f32.mrf.mxu0
        %v1293 = vadd.f32 %v1053, %v1292
        %v1294 = vpop.f32.mrf.mxu0
        %1295 = vmatprep.mubr.bf16.mxu0 0
        %1296 = vmatmul.mubr.bf16.gmra.mxu0 %v1019
        %v1297 = vpop.f32.mrf.mxu0
        %v1298 = vadd.f32 %v1053, %v1297
        %v1299 = vpop.f32.mrf.mxu0
        %v1300 = vpop.f32.mrf.mxu0
        %v1301 = vadd.f32 %v1053, %v1300
        %v1302 = vpop.f32.mrf.mxu0
        %1303 = vmatprep.mubr.bf16.mxu0 0
        %1304 = vmatmul.mubr.bf16.gmra.mxu0 %v1020
        %v1305 = vpop.f32.mrf.mxu0
        %v1306 = vadd.f32 %v1053, %v1305
        %v1307 = vpop.f32.mrf.mxu0
        %v1308 = vpop.f32.mrf.mxu0
        %v1309 = vadd.f32 %v1053, %v1308
        %v1310 = vpop.f32.mrf.mxu0
        %1311 = vmatprep.mubr.bf16.mxu0 0
        %1312 = vmatmul.mubr.bf16.gmra.mxu0 %v1021
        %v1313 = vpop.f32.mrf.mxu0
        %v1314 = vadd.f32 %v1053, %v1313
        %v1315 = vpop.f32.mrf.mxu0
        %v1316 = vpop.f32.mrf.mxu0
        %v1317 = vadd.f32 %v1053, %v1316
        %v1318 = vpop.f32.mrf.mxu0
        %1319 = vmatprep.mubr.bf16.mxu0 0
        %1320 = vmatmul.mubr.bf16.gmra.mxu0 %v1022
        %v1321 = vpop.f32.mrf.mxu0
        %v1322 = vadd.f32 %v1053, %v1321
        %v1323 = vpop.f32.mrf.mxu0
        %v1324 = vpop.f32.mrf.mxu0
        %v1325 = vadd.f32 %v1053, %v1324
        %v1326 = vpop.f32.mrf.mxu0
        %1327 = vmatprep.mubr.bf16.mxu0 0
        %1328 = vmatmul.mubr.bf16.gmra.mxu0 %v1023
        %v1329 = vpop.f32.mrf.mxu0
        %v1330 = vadd.f32 %v1053, %v1329
        %v1331 = vpop.f32.mrf.mxu0
        %v1332 = vpop.f32.mrf.mxu0
        %v1333 = vadd.f32 %v1053, %v1332
        %v1334 = vpop.f32.mrf.mxu0
        %1335 = vmatprep.mubr.bf16.mxu0 0
        %1336 = vmatmul.mubr.bf16.gmra.mxu0 %v1024
        %v1337 = vpop.f32.mrf.mxu0
        %v1338 = vadd.f32 %v1053, %v1337
        %v1339 = vpop.f32.mrf.mxu0
        %v1340 = vpop.f32.mrf.mxu0
        %v1341 = vadd.f32 %v1053, %v1340
        %v1342 = vpop.f32.mrf.mxu0
        %1343 = vmatprep.mubr.bf16.mxu0 0
        %1344 = vmatmul.mubr.bf16.gmra.mxu0 %v1025
        %v1345 = vpop.f32.mrf.mxu0
        %v1346 = vadd.f32 %v1053, %v1345
        %v1347 = vpop.f32.mrf.mxu0
        %v1348 = vpop.f32.mrf.mxu0
        %v1349 = vadd.f32 %v1053, %v1348
        %v1350 = vpop.f32.mrf.mxu0
        %1351 = vmatprep.mubr.bf16.mxu0 0
        %1352 = vmatmul.mubr.bf16.gmra.mxu0 %v1026
        %v1353 = vpop.f32.mrf.mxu0
        %v1354 = vadd.f32 %v1053, %v1353
        %v1355 = vpop.f32.mrf.mxu0
        %v1356 = vpop.f32.mrf.mxu0
        %v1357 = vadd.f32 %v1053, %v1356
        %v1358 = vpop.f32.mrf.mxu0
        %1359 = vmatprep.mubr.bf16.mxu0 0
        %1360 = vmatmul.mubr.bf16.gmra.mxu0 %v1027
        %v1361 = vpop.f32.mrf.mxu0
        %v1362 = vadd.f32 %v1053, %v1361
        %v1363 = vpop.f32.mrf.mxu0
        %v1364 = vpop.f32.mrf.mxu0
        %v1365 = vadd.f32 %v1053, %v1364
        %v1366 = vpop.f32.mrf.mxu0
        %1367 = vmatprep.mubr.bf16.mxu0 0
        %1368 = vmatmul.mubr.bf16.gmra.mxu0 %v1028
        %v1369 = vpop.f32.mrf.mxu0
        %v1370 = vadd.f32 %v1053, %v1369
        %v1371 = vpop.f32.mrf.mxu0
        %v1372 = vpop.f32.mrf.mxu0
        %v1373 = vadd.f32 %v1053, %v1372
        %v1374 = vpop.f32.mrf.mxu0
        %1375 = vmatprep.mubr.bf16.mxu0 0
        %1376 = vmatmul.mubr.bf16.gmra.mxu0 %v1029
        %v1377 = vpop.f32.mrf.mxu0
        %v1378 = vadd.f32 %v1053, %v1377
        %v1379 = vpop.f32.mrf.mxu0
        %v1380 = vpop.f32.mrf.mxu0
        %v1381 = vadd.f32 %v1053, %v1380
        %v1382 = vpop.f32.mrf.mxu0
        %1383 = vmatprep.mubr.bf16.mxu0 0
        %1384 = vmatmul.mubr.bf16.gmra.mxu0 %v1030
        %v1385 = vpop.f32.mrf.mxu0
        %v1386 = vadd.f32 %v1053, %v1385
        %v1387 = vpop.f32.mrf.mxu0
        %v1388 = vpop.f32.mrf.mxu0
        %v1389 = vadd.f32 %v1053, %v1388
        %v1390 = vpop.f32.mrf.mxu0
        %1391 = vdwg.mxu0
        %v1392 = vmax.f32 %v1138, 0.0
        %v1393 = vmax.f32 %v1141, 0.0
        %v1394 = vmax.f32 %v1146, 0.0
        %v1395 = vmax.f32 %v1149, 0.0
        %v1396 = vmax.f32 %v1154, 0.0
        %v1397 = vmax.f32 %v1157, 0.0
        %v1398 = vmax.f32 %v1162, 0.0
        %v1399 = vmax.f32 %v1165, 0.0
        %v1400 = vmax.f32 %v1170, 0.0
        %v1401 = vmax.f32 %v1173, 0.0
        %v1402 = vmax.f32 %v1178, 0.0
        %v1403 = vmax.f32 %v1181, 0.0
        %v1404 = vmax.f32 %v1186, 0.0
        %v1405 = vmax.f32 %v1189, 0.0
        %v1406 = vmax.f32 %v1194, 0.0
        %v1407 = vmax.f32 %v1197, 0.0
        %v1408 = vmax.f32 %v1202, 0.0
        %v1409 = vmax.f32 %v1205, 0.0
        %v1410 = vmax.f32 %v1210, 0.0
        %v1411 = vmax.f32 %v1213, 0.0
        %v1412 = vmax.f32 %v1218, 0.0
        %v1413 = vmax.f32 %v1221, 0.0
        %v1414 = vmax.f32 %v1226, 0.0
        %v1415 = vmax.f32 %v1229, 0.0
        %v1416 = vmax.f32 %v1234, 0.0
        %v1417 = vmax.f32 %v1237, 0.0
        %v1418 = vmax.f32 %v1242, 0.0
        %v1419 = vmax.f32 %v1245, 0.0
        %v1420 = vmax.f32 %v1250, 0.0
        %v1421 = vmax.f32 %v1253, 0.0
        %v1422 = vmax.f32 %v1258, 0.0
        %v1423 = vmax.f32 %v1261, 0.0
        %v1424 = vmax.f32 %v1266, 0.0
        %v1425 = vmax.f32 %v1269, 0.0
        %v1426 = vmax.f32 %v1274, 0.0
        %v1427 = vmax.f32 %v1277, 0.0
        %v1428 = vmax.f32 %v1282, 0.0
        %v1429 = vmax.f32 %v1285, 0.0
        %v1430 = vmax.f32 %v1290, 0.0
        %v1431 = vmax.f32 %v1293, 0.0
        %v1432 = vmax.f32 %v1298, 0.0
        %v1433 = vmax.f32 %v1301, 0.0
        %v1434 = vmax.f32 %v1306, 0.0
        %v1435 = vmax.f32 %v1309, 0.0
        %v1436 = vmax.f32 %v1314, 0.0
        %v1437 = vmax.f32 %v1317, 0.0
        %v1438 = vmax.f32 %v1322, 0.0
        %v1439 = vmax.f32 %v1325, 0.0
        %v1440 = vmax.f32 %v1330, 0.0
        %v1441 = vmax.f32 %v1333, 0.0
        %v1442 = vmax.f32 %v1338, 0.0
        %v1443 = vmax.f32 %v1341, 0.0
        %v1444 = vmax.f32 %v1346, 0.0
        %v1445 = vmax.f32 %v1349, 0.0
        %v1446 = vmax.f32 %v1354, 0.0
        %v1447 = vmax.f32 %v1357, 0.0
        %v1448 = vmax.f32 %v1362, 0.0
        %v1449 = vmax.f32 %v1365, 0.0
        %v1450 = vmax.f32 %v1370, 0.0
        %v1451 = vmax.f32 %v1373, 0.0
        %v1452 = vmax.f32 %v1378, 0.0
        %v1453 = vmax.f32 %v1381, 0.0
        %v1454 = vmax.f32 %v1386, 0.0
        %v1455 = vmax.f32 %v1389, 0.0
        %v1456 = vpack.c.bf16 %v1393, %v1392
        %v1457 = vpack.c.bf16 %v1395, %v1394
        %v1458 = vpack.c.bf16 %v1397, %v1396
        %v1459 = vpack.c.bf16 %v1399, %v1398
        %v1460 = vpack.c.bf16 %v1401, %v1400
        %v1461 = vpack.c.bf16 %v1403, %v1402
        %v1462 = vpack.c.bf16 %v1405, %v1404
        %v1463 = vpack.c.bf16 %v1407, %v1406
        %v1464 = vpack.c.bf16 %v1409, %v1408
        %v1465 = vpack.c.bf16 %v1411, %v1410
        %v1466 = vpack.c.bf16 %v1413, %v1412
        %v1467 = vpack.c.bf16 %v1415, %v1414
        %v1468 = vpack.c.bf16 %v1417, %v1416
        %v1469 = vpack.c.bf16 %v1419, %v1418
        %v1470 = vpack.c.bf16 %v1421, %v1420
        %v1471 = vpack.c.bf16 %v1423, %v1422
        %v1472 = vpack.c.bf16 %v1425, %v1424
        %v1473 = vpack.c.bf16 %v1427, %v1426
        %v1474 = vpack.c.bf16 %v1429, %v1428
        %v1475 = vpack.c.bf16 %v1431, %v1430
        %v1476 = vpack.c.bf16 %v1433, %v1432
        %v1477 = vpack.c.bf16 %v1435, %v1434
        %v1478 = vpack.c.bf16 %v1437, %v1436
        %v1479 = vpack.c.bf16 %v1439, %v1438
        %v1480 = vpack.c.bf16 %v1441, %v1440
        %v1481 = vpack.c.bf16 %v1443, %v1442
        %v1482 = vpack.c.bf16 %v1445, %v1444
        %v1483 = vpack.c.bf16 %v1447, %v1446
        %v1484 = vpack.c.bf16 %v1449, %v1448
        %v1485 = vpack.c.bf16 %v1451, %v1450
        %v1486 = vpack.c.bf16 %v1453, %v1452
        %v1487 = vpack.c.bf16 %v1455, %v1454
        %s1488 = scalar_lea.vmem [#allocation3], 64
        %v1489 = vld [vmem:[%s1488] sm:$0xf]
        %v1490 = vld [vmem:[%s1488 + $0x4] sm:$0xf]
        %v1491 = vld [vmem:[%s1488 + $0x8] sm:$0xf]
        %v1492 = vld [vmem:[%s1488 + $0xc] sm:$0xf]
        %v1493 = vld [vmem:[%s1488 + $0x10] sm:$0xf]
        %v1494 = vld [vmem:[%s1488 + $0x14] sm:$0xf]
        %v1495 = vld [vmem:[%s1488 + $0x18] sm:$0xf]
        %v1496 = vld [vmem:[%s1488 + $0x1c] sm:$0xf]
        %v1497 = vld [vmem:[%s1488 + $0x20] sm:$0xf]
        %v1498 = vld [vmem:[%s1488 + $0x24] sm:$0xf]
        %v1499 = vld [vmem:[%s1488 + $0x28] sm:$0xf]
        %v1500 = vld [vmem:[%s1488 + $0x2c] sm:$0xf]
        %v1501 = vld [vmem:[%s1488 + $0x30] sm:$0xf]
        %v1502 = vld [vmem:[%s1488 + $0x34] sm:$0xf]
        %v1503 = vld [vmem:[%s1488 + $0x38] sm:$0xf]
        %v1504 = vld [vmem:[%s1488 + $0x3c] sm:$0xf]
        %s1505 = scalar_lea.vmem %s2, 2
        %v1506 = vld [vmem:[%s1505] sm:$0x1]
        %v1508 = vlaneseq
        %v1509 = vshrl.u32 %v1508, 7
        %v1510 = vsub.s32 0, %v1509
        %v1511 = vrot.slane %v1506, %v1510
        %v1529 = vunpack.c.l.b16 %v1489
        %v1530 = vunpack.c.l.b16 %v1490
        %v1531 = vunpack.c.l.b16 %v1491
        %v1532 = vunpack.c.l.b16 %v1492
        %v1533 = vunpack.c.l.b16 %v1493
        %v1534 = vunpack.c.l.b16 %v1494
        %v1535 = vunpack.c.l.b16 %v1495
        %v1536 = vunpack.c.l.b16 %v1496
        %v1537 = vunpack.c.l.b16 %v1497
        %v1538 = vunpack.c.l.b16 %v1498
        %v1539 = vunpack.c.l.b16 %v1499
        %v1540 = vunpack.c.l.b16 %v1500
        %v1541 = vunpack.c.l.b16 %v1501
        %v1542 = vunpack.c.l.b16 %v1502
        %v1543 = vunpack.c.l.b16 %v1503
        %v1544 = vunpack.c.l.b16 %v1504
        %v1545 = vpack.c.b16 %v1530, %v1529
        %v1546 = vpack.c.b16 %v1532, %v1531
        %v1547 = vpack.c.b16 %v1534, %v1533
        %v1548 = vpack.c.b16 %v1536, %v1535
        %v1549 = vpack.c.b16 %v1538, %v1537
        %v1550 = vpack.c.b16 %v1540, %v1539
        %v1551 = vpack.c.b16 %v1542, %v1541
        %v1552 = vpack.c.b16 %v1544, %v1543
        %1561 = vmatprep.subr.bf16.mxu0 0
        %1562 = vmatpush1.bf16.msra.mxu0 %v1552
        %1563 = vmatprep.subr.bf16.mxu0 0
        %1564 = vmatpush1.bf16.msra.mxu0 %v1551
        %1565 = vmatprep.subr.bf16.mxu0 0
        %1566 = vmatpush1.bf16.msra.mxu0 %v1550
        %1567 = vmatprep.subr.bf16.mxu0 0
        %1568 = vmatpush1.bf16.msra.mxu0 %v1549
        %1569 = vmatprep.subr.bf16.mxu0 0
        %1570 = vmatpush1.bf16.msra.mxu0 %v1548
        %1571 = vmatprep.subr.bf16.mxu0 0
        %1572 = vmatpush1.bf16.msra.mxu0 %v1547
        %1573 = vmatprep.subr.bf16.mxu0 0
        %1574 = vmatpush1.bf16.msra.mxu0 %v1546
        %1575 = vmatprep.subr.bf16.mxu0 0
        %1576 = vmatpush1.bf16.msra.mxu0 %v1545
        %1577 = vmatprep.subr.bf16.mxu0 0
        %1578 = vmatpush2.bf16.msra.mxu0 0
        %1579 = vmatprep.subr.bf16.mxu0 0
        %1580 = vmatpush2.bf16.msra.mxu0 0
        %1581 = vmatprep.subr.bf16.mxu0 0
        %1582 = vmatpush2.bf16.msra.mxu0 0
        %1583 = vmatprep.subr.bf16.mxu0 0
        %1584 = vmatpush2.bf16.msra.mxu0 0
        %1585 = vmatprep.subr.bf16.mxu0 0
        %1586 = vmatpush2.bf16.msra.mxu0 0
        %1587 = vmatprep.subr.bf16.mxu0 0
        %1588 = vmatpush2.bf16.msra.mxu0 0
        %1589 = vmatprep.subr.bf16.mxu0 0
        %1590 = vmatpush2.bf16.msra.mxu0 0
        %1591 = vmatprep.subr.bf16.mxu0 0
        %1592 = vmatpush2.bf16.msra.mxu0 0
        %1593 = vmatprep.mubr.bf16.mxu0 0
        %1594 = vmatmul.mubr.bf16.gmra.mxu0 %v1456
        %v1595 = vpop.f32.mrf.mxu0
        %v1596 = vadd.f32 %v1511, %v1595
        %v1597 = vpop.f32.mrf.mxu0
        %v1598 = vpop.f32.mrf.mxu0
        %v1599 = vadd.f32 %v1511, %v1598
        %v1600 = vpop.f32.mrf.mxu0
        %1601 = vmatprep.mubr.bf16.mxu0 0
        %1602 = vmatmul.mubr.bf16.gmra.mxu0 %v1457
        %v1603 = vpop.f32.mrf.mxu0
        %v1604 = vadd.f32 %v1511, %v1603
        %v1605 = vpop.f32.mrf.mxu0
        %v1606 = vpop.f32.mrf.mxu0
        %v1607 = vadd.f32 %v1511, %v1606
        %v1608 = vpop.f32.mrf.mxu0
        %1609 = vmatprep.mubr.bf16.mxu0 0
        %1610 = vmatmul.mubr.bf16.gmra.mxu0 %v1458
        %v1611 = vpop.f32.mrf.mxu0
        %v1612 = vadd.f32 %v1511, %v1611
        %v1613 = vpop.f32.mrf.mxu0
        %v1614 = vpop.f32.mrf.mxu0
        %v1615 = vadd.f32 %v1511, %v1614
        %v1616 = vpop.f32.mrf.mxu0
        %1617 = vmatprep.mubr.bf16.mxu0 0
        %1618 = vmatmul.mubr.bf16.gmra.mxu0 %v1459
        %v1619 = vpop.f32.mrf.mxu0
        %v1620 = vadd.f32 %v1511, %v1619
        %v1621 = vpop.f32.mrf.mxu0
        %v1622 = vpop.f32.mrf.mxu0
        %v1623 = vadd.f32 %v1511, %v1622
        %v1624 = vpop.f32.mrf.mxu0
        %1625 = vmatprep.mubr.bf16.mxu0 0
        %1626 = vmatmul.mubr.bf16.gmra.mxu0 %v1460
        %v1627 = vpop.f32.mrf.mxu0
        %v1628 = vadd.f32 %v1511, %v1627
        %v1629 = vpop.f32.mrf.mxu0
        %v1630 = vpop.f32.mrf.mxu0
        %v1631 = vadd.f32 %v1511, %v1630
        %v1632 = vpop.f32.mrf.mxu0
        %1633 = vmatprep.mubr.bf16.mxu0 0
        %1634 = vmatmul.mubr.bf16.gmra.mxu0 %v1461
        %v1635 = vpop.f32.mrf.mxu0
        %v1636 = vadd.f32 %v1511, %v1635
        %v1637 = vpop.f32.mrf.mxu0
        %v1638 = vpop.f32.mrf.mxu0
        %v1639 = vadd.f32 %v1511, %v1638
        %v1640 = vpop.f32.mrf.mxu0
        %1641 = vmatprep.mubr.bf16.mxu0 0
        %1642 = vmatmul.mubr.bf16.gmra.mxu0 %v1462
        %v1643 = vpop.f32.mrf.mxu0
        %v1644 = vadd.f32 %v1511, %v1643
        %v1645 = vpop.f32.mrf.mxu0
        %v1646 = vpop.f32.mrf.mxu0
        %v1647 = vadd.f32 %v1511, %v1646
        %v1648 = vpop.f32.mrf.mxu0
        %1649 = vmatprep.mubr.bf16.mxu0 0
        %1650 = vmatmul.mubr.bf16.gmra.mxu0 %v1463
        %v1651 = vpop.f32.mrf.mxu0
        %v1652 = vadd.f32 %v1511, %v1651
        %v1653 = vpop.f32.mrf.mxu0
        %v1654 = vpop.f32.mrf.mxu0
        %v1655 = vadd.f32 %v1511, %v1654
        %v1656 = vpop.f32.mrf.mxu0
        %1657 = vmatprep.mubr.bf16.mxu0 0
        %1658 = vmatmul.mubr.bf16.gmra.mxu0 %v1464
        %v1659 = vpop.f32.mrf.mxu0
        %v1660 = vadd.f32 %v1511, %v1659
        %v1661 = vpop.f32.mrf.mxu0
        %v1662 = vpop.f32.mrf.mxu0
        %v1663 = vadd.f32 %v1511, %v1662
        %v1664 = vpop.f32.mrf.mxu0
        %1665 = vmatprep.mubr.bf16.mxu0 0
        %1666 = vmatmul.mubr.bf16.gmra.mxu0 %v1465
        %v1667 = vpop.f32.mrf.mxu0
        %v1668 = vadd.f32 %v1511, %v1667
        %v1669 = vpop.f32.mrf.mxu0
        %v1670 = vpop.f32.mrf.mxu0
        %v1671 = vadd.f32 %v1511, %v1670
        %v1672 = vpop.f32.mrf.mxu0
        %1673 = vmatprep.mubr.bf16.mxu0 0
        %1674 = vmatmul.mubr.bf16.gmra.mxu0 %v1466
        %v1675 = vpop.f32.mrf.mxu0
        %v1676 = vadd.f32 %v1511, %v1675
        %v1677 = vpop.f32.mrf.mxu0
        %v1678 = vpop.f32.mrf.mxu0
        %v1679 = vadd.f32 %v1511, %v1678
        %v1680 = vpop.f32.mrf.mxu0
        %1681 = vmatprep.mubr.bf16.mxu0 0
        %1682 = vmatmul.mubr.bf16.gmra.mxu0 %v1467
        %v1683 = vpop.f32.mrf.mxu0
        %v1684 = vadd.f32 %v1511, %v1683
        %v1685 = vpop.f32.mrf.mxu0
        %v1686 = vpop.f32.mrf.mxu0
        %v1687 = vadd.f32 %v1511, %v1686
        %v1688 = vpop.f32.mrf.mxu0
        %1689 = vmatprep.mubr.bf16.mxu0 0
        %1690 = vmatmul.mubr.bf16.gmra.mxu0 %v1468
        %v1691 = vpop.f32.mrf.mxu0
        %v1692 = vadd.f32 %v1511, %v1691
        %v1693 = vpop.f32.mrf.mxu0
        %v1694 = vpop.f32.mrf.mxu0
        %v1695 = vadd.f32 %v1511, %v1694
        %v1696 = vpop.f32.mrf.mxu0
        %1697 = vmatprep.mubr.bf16.mxu0 0
        %1698 = vmatmul.mubr.bf16.gmra.mxu0 %v1469
        %v1699 = vpop.f32.mrf.mxu0
        %v1700 = vadd.f32 %v1511, %v1699
        %v1701 = vpop.f32.mrf.mxu0
        %v1702 = vpop.f32.mrf.mxu0
        %v1703 = vadd.f32 %v1511, %v1702
        %v1704 = vpop.f32.mrf.mxu0
        %1705 = vmatprep.mubr.bf16.mxu0 0
        %1706 = vmatmul.mubr.bf16.gmra.mxu0 %v1470
        %v1707 = vpop.f32.mrf.mxu0
        %v1708 = vadd.f32 %v1511, %v1707
        %v1709 = vpop.f32.mrf.mxu0
        %v1710 = vpop.f32.mrf.mxu0
        %v1711 = vadd.f32 %v1511, %v1710
        %v1712 = vpop.f32.mrf.mxu0
        %1713 = vmatprep.mubr.bf16.mxu0 0
        %1714 = vmatmul.mubr.bf16.gmra.mxu0 %v1471
        %v1715 = vpop.f32.mrf.mxu0
        %v1716 = vadd.f32 %v1511, %v1715
        %v1717 = vpop.f32.mrf.mxu0
        %v1718 = vpop.f32.mrf.mxu0
        %v1719 = vadd.f32 %v1511, %v1718
        %v1720 = vpop.f32.mrf.mxu0
        %1721 = vmatprep.mubr.bf16.mxu0 0
        %1722 = vmatmul.mubr.bf16.gmra.mxu0 %v1472
        %v1723 = vpop.f32.mrf.mxu0
        %v1724 = vadd.f32 %v1511, %v1723
        %v1725 = vpop.f32.mrf.mxu0
        %v1726 = vpop.f32.mrf.mxu0
        %v1727 = vadd.f32 %v1511, %v1726
        %v1728 = vpop.f32.mrf.mxu0
        %1729 = vmatprep.mubr.bf16.mxu0 0
        %1730 = vmatmul.mubr.bf16.gmra.mxu0 %v1473
        %v1731 = vpop.f32.mrf.mxu0
        %v1732 = vadd.f32 %v1511, %v1731
        %v1733 = vpop.f32.mrf.mxu0
        %v1734 = vpop.f32.mrf.mxu0
        %v1735 = vadd.f32 %v1511, %v1734
        %v1736 = vpop.f32.mrf.mxu0
        %1737 = vmatprep.mubr.bf16.mxu0 0
        %1738 = vmatmul.mubr.bf16.gmra.mxu0 %v1474
        %v1739 = vpop.f32.mrf.mxu0
        %v1740 = vadd.f32 %v1511, %v1739
        %v1741 = vpop.f32.mrf.mxu0
        %v1742 = vpop.f32.mrf.mxu0
        %v1743 = vadd.f32 %v1511, %v1742
        %v1744 = vpop.f32.mrf.mxu0
        %1745 = vmatprep.mubr.bf16.mxu0 0
        %1746 = vmatmul.mubr.bf16.gmra.mxu0 %v1475
        %v1747 = vpop.f32.mrf.mxu0
        %v1748 = vadd.f32 %v1511, %v1747
        %v1749 = vpop.f32.mrf.mxu0
        %v1750 = vpop.f32.mrf.mxu0
        %v1751 = vadd.f32 %v1511, %v1750
        %v1752 = vpop.f32.mrf.mxu0
        %1753 = vmatprep.mubr.bf16.mxu0 0
        %1754 = vmatmul.mubr.bf16.gmra.mxu0 %v1476
        %v1755 = vpop.f32.mrf.mxu0
        %v1756 = vadd.f32 %v1511, %v1755
        %v1757 = vpop.f32.mrf.mxu0
        %v1758 = vpop.f32.mrf.mxu0
        %v1759 = vadd.f32 %v1511, %v1758
        %v1760 = vpop.f32.mrf.mxu0
        %1761 = vmatprep.mubr.bf16.mxu0 0
        %1762 = vmatmul.mubr.bf16.gmra.mxu0 %v1477
        %v1763 = vpop.f32.mrf.mxu0
        %v1764 = vadd.f32 %v1511, %v1763
        %v1765 = vpop.f32.mrf.mxu0
        %v1766 = vpop.f32.mrf.mxu0
        %v1767 = vadd.f32 %v1511, %v1766
        %v1768 = vpop.f32.mrf.mxu0
        %1769 = vmatprep.mubr.bf16.mxu0 0
        %1770 = vmatmul.mubr.bf16.gmra.mxu0 %v1478
        %v1771 = vpop.f32.mrf.mxu0
        %v1772 = vadd.f32 %v1511, %v1771
        %v1773 = vpop.f32.mrf.mxu0
        %v1774 = vpop.f32.mrf.mxu0
        %v1775 = vadd.f32 %v1511, %v1774
        %v1776 = vpop.f32.mrf.mxu0
        %1777 = vmatprep.mubr.bf16.mxu0 0
        %1778 = vmatmul.mubr.bf16.gmra.mxu0 %v1479
        %v1779 = vpop.f32.mrf.mxu0
        %v1780 = vadd.f32 %v1511, %v1779
        %v1781 = vpop.f32.mrf.mxu0
        %v1782 = vpop.f32.mrf.mxu0
        %v1783 = vadd.f32 %v1511, %v1782
        %v1784 = vpop.f32.mrf.mxu0
        %1785 = vmatprep.mubr.bf16.mxu0 0
        %1786 = vmatmul.mubr.bf16.gmra.mxu0 %v1480
        %v1787 = vpop.f32.mrf.mxu0
        %v1788 = vadd.f32 %v1511, %v1787
        %v1789 = vpop.f32.mrf.mxu0
        %v1790 = vpop.f32.mrf.mxu0
        %v1791 = vadd.f32 %v1511, %v1790
        %v1792 = vpop.f32.mrf.mxu0
        %1793 = vmatprep.mubr.bf16.mxu0 0
        %1794 = vmatmul.mubr.bf16.gmra.mxu0 %v1481
        %v1795 = vpop.f32.mrf.mxu0
        %v1796 = vadd.f32 %v1511, %v1795
        %v1797 = vpop.f32.mrf.mxu0
        %v1798 = vpop.f32.mrf.mxu0
        %v1799 = vadd.f32 %v1511, %v1798
        %v1800 = vpop.f32.mrf.mxu0
        %1801 = vmatprep.mubr.bf16.mxu0 0
        %1802 = vmatmul.mubr.bf16.gmra.mxu0 %v1482
        %v1803 = vpop.f32.mrf.mxu0
        %v1804 = vadd.f32 %v1511, %v1803
        %v1805 = vpop.f32.mrf.mxu0
        %v1806 = vpop.f32.mrf.mxu0
        %v1807 = vadd.f32 %v1511, %v1806
        %v1808 = vpop.f32.mrf.mxu0
        %1809 = vmatprep.mubr.bf16.mxu0 0
        %1810 = vmatmul.mubr.bf16.gmra.mxu0 %v1483
        %v1811 = vpop.f32.mrf.mxu0
        %v1812 = vadd.f32 %v1511, %v1811
        %v1813 = vpop.f32.mrf.mxu0
        %v1814 = vpop.f32.mrf.mxu0
        %v1815 = vadd.f32 %v1511, %v1814
        %v1816 = vpop.f32.mrf.mxu0
        %1817 = vmatprep.mubr.bf16.mxu0 0
        %1818 = vmatmul.mubr.bf16.gmra.mxu0 %v1484
        %v1819 = vpop.f32.mrf.mxu0
        %v1820 = vadd.f32 %v1511, %v1819
        %v1821 = vpop.f32.mrf.mxu0
        %v1822 = vpop.f32.mrf.mxu0
        %v1823 = vadd.f32 %v1511, %v1822
        %v1824 = vpop.f32.mrf.mxu0
        %1825 = vmatprep.mubr.bf16.mxu0 0
        %1826 = vmatmul.mubr.bf16.gmra.mxu0 %v1485
        %v1827 = vpop.f32.mrf.mxu0
        %v1828 = vadd.f32 %v1511, %v1827
        %v1829 = vpop.f32.mrf.mxu0
        %v1830 = vpop.f32.mrf.mxu0
        %v1831 = vadd.f32 %v1511, %v1830
        %v1832 = vpop.f32.mrf.mxu0
        %1833 = vmatprep.mubr.bf16.mxu0 0
        %1834 = vmatmul.mubr.bf16.gmra.mxu0 %v1486
        %v1835 = vpop.f32.mrf.mxu0
        %v1836 = vadd.f32 %v1511, %v1835
        %v1837 = vpop.f32.mrf.mxu0
        %v1838 = vpop.f32.mrf.mxu0
        %v1839 = vadd.f32 %v1511, %v1838
        %v1840 = vpop.f32.mrf.mxu0
        %1841 = vmatprep.mubr.bf16.mxu0 0
        %1842 = vmatmul.mubr.bf16.gmra.mxu0 %v1487
        %v1843 = vpop.f32.mrf.mxu0
        %v1844 = vadd.f32 %v1511, %v1843
        %v1845 = vpop.f32.mrf.mxu0
        %v1846 = vpop.f32.mrf.mxu0
        %v1847 = vadd.f32 %v1511, %v1846
        %v1848 = vpop.f32.mrf.mxu0
        %1849 = vdwg.mxu0
        %v1850 = vmax.f32 %v1596, 0.0
        %v1851 = vmax.f32 %v1599, 0.0
        %v1852 = vmax.f32 %v1604, 0.0
        %v1853 = vmax.f32 %v1607, 0.0
        %v1854 = vmax.f32 %v1612, 0.0
        %v1855 = vmax.f32 %v1615, 0.0
        %v1856 = vmax.f32 %v1620, 0.0
        %v1857 = vmax.f32 %v1623, 0.0
        %v1858 = vmax.f32 %v1628, 0.0
        %v1859 = vmax.f32 %v1631, 0.0
        %v1860 = vmax.f32 %v1636, 0.0
        %v1861 = vmax.f32 %v1639, 0.0
        %v1862 = vmax.f32 %v1644, 0.0
        %v1863 = vmax.f32 %v1647, 0.0
        %v1864 = vmax.f32 %v1652, 0.0
        %v1865 = vmax.f32 %v1655, 0.0
        %v1866 = vmax.f32 %v1660, 0.0
        %v1867 = vmax.f32 %v1663, 0.0
        %v1868 = vmax.f32 %v1668, 0.0
        %v1869 = vmax.f32 %v1671, 0.0
        %v1870 = vmax.f32 %v1676, 0.0
        %v1871 = vmax.f32 %v1679, 0.0
        %v1872 = vmax.f32 %v1684, 0.0
        %v1873 = vmax.f32 %v1687, 0.0
        %v1874 = vmax.f32 %v1692, 0.0
        %v1875 = vmax.f32 %v1695, 0.0
        %v1876 = vmax.f32 %v1700, 0.0
        %v1877 = vmax.f32 %v1703, 0.0
        %v1878 = vmax.f32 %v1708, 0.0
        %v1879 = vmax.f32 %v1711, 0.0
        %v1880 = vmax.f32 %v1716, 0.0
        %v1881 = vmax.f32 %v1719, 0.0
        %v1882 = vmax.f32 %v1724, 0.0
        %v1883 = vmax.f32 %v1727, 0.0
        %v1884 = vmax.f32 %v1732, 0.0
        %v1885 = vmax.f32 %v1735, 0.0
        %v1886 = vmax.f32 %v1740, 0.0
        %v1887 = vmax.f32 %v1743, 0.0
        %v1888 = vmax.f32 %v1748, 0.0
        %v1889 = vmax.f32 %v1751, 0.0
        %v1890 = vmax.f32 %v1756, 0.0
        %v1891 = vmax.f32 %v1759, 0.0
        %v1892 = vmax.f32 %v1764, 0.0
        %v1893 = vmax.f32 %v1767, 0.0
        %v1894 = vmax.f32 %v1772, 0.0
        %v1895 = vmax.f32 %v1775, 0.0
        %v1896 = vmax.f32 %v1780, 0.0
        %v1897 = vmax.f32 %v1783, 0.0
        %v1898 = vmax.f32 %v1788, 0.0
        %v1899 = vmax.f32 %v1791, 0.0
        %v1900 = vmax.f32 %v1796, 0.0
        %v1901 = vmax.f32 %v1799, 0.0
        %v1902 = vmax.f32 %v1804, 0.0
        %v1903 = vmax.f32 %v1807, 0.0
        %v1904 = vmax.f32 %v1812, 0.0
        %v1905 = vmax.f32 %v1815, 0.0
        %v1906 = vmax.f32 %v1820, 0.0
        %v1907 = vmax.f32 %v1823, 0.0
        %v1908 = vmax.f32 %v1828, 0.0
        %v1909 = vmax.f32 %v1831, 0.0
        %v1910 = vmax.f32 %v1836, 0.0
        %v1911 = vmax.f32 %v1839, 0.0
        %v1912 = vmax.f32 %v1844, 0.0
        %v1913 = vmax.f32 %v1847, 0.0
        %v1914 = vpack.c.bf16 %v1851, %v1850
        %v1915 = vpack.c.bf16 %v1853, %v1852
        %v1916 = vpack.c.bf16 %v1855, %v1854
        %v1917 = vpack.c.bf16 %v1857, %v1856
        %v1918 = vpack.c.bf16 %v1859, %v1858
        %v1919 = vpack.c.bf16 %v1861, %v1860
        %v1920 = vpack.c.bf16 %v1863, %v1862
        %v1921 = vpack.c.bf16 %v1865, %v1864
        %v1922 = vpack.c.bf16 %v1867, %v1866
        %v1923 = vpack.c.bf16 %v1869, %v1868
        %v1924 = vpack.c.bf16 %v1871, %v1870
        %v1925 = vpack.c.bf16 %v1873, %v1872
        %v1926 = vpack.c.bf16 %v1875, %v1874
        %v1927 = vpack.c.bf16 %v1877, %v1876
        %v1928 = vpack.c.bf16 %v1879, %v1878
        %v1929 = vpack.c.bf16 %v1881, %v1880
        %v1930 = vpack.c.bf16 %v1883, %v1882
        %v1931 = vpack.c.bf16 %v1885, %v1884
        %v1932 = vpack.c.bf16 %v1887, %v1886
        %v1933 = vpack.c.bf16 %v1889, %v1888
        %v1934 = vpack.c.bf16 %v1891, %v1890
        %v1935 = vpack.c.bf16 %v1893, %v1892
        %v1936 = vpack.c.bf16 %v1895, %v1894
        %v1937 = vpack.c.bf16 %v1897, %v1896
        %v1938 = vpack.c.bf16 %v1899, %v1898
        %v1939 = vpack.c.bf16 %v1901, %v1900
        %v1940 = vpack.c.bf16 %v1903, %v1902
        %v1941 = vpack.c.bf16 %v1905, %v1904
        %v1942 = vpack.c.bf16 %v1907, %v1906
        %v1943 = vpack.c.bf16 %v1909, %v1908
        %v1944 = vpack.c.bf16 %v1911, %v1910
        %v1945 = vpack.c.bf16 %v1913, %v1912
        %s1946 = scalar_lea.vmem [#allocation3], 128
        %v1947 = vld [vmem:[%s1946] sm:$0xf]
        %v1948 = vld [vmem:[%s1946 + $0x4] sm:$0xf]
        %v1949 = vld [vmem:[%s1946 + $0x8] sm:$0xf]
        %v1950 = vld [vmem:[%s1946 + $0xc] sm:$0xf]
        %v1951 = vld [vmem:[%s1946 + $0x10] sm:$0xf]
        %v1952 = vld [vmem:[%s1946 + $0x14] sm:$0xf]
        %v1953 = vld [vmem:[%s1946 + $0x18] sm:$0xf]
        %v1954 = vld [vmem:[%s1946 + $0x1c] sm:$0xf]
        %v1955 = vld [vmem:[%s1946 + $0x20] sm:$0xf]
        %v1956 = vld [vmem:[%s1946 + $0x24] sm:$0xf]
        %v1957 = vld [vmem:[%s1946 + $0x28] sm:$0xf]
        %v1958 = vld [vmem:[%s1946 + $0x2c] sm:$0xf]
        %v1959 = vld [vmem:[%s1946 + $0x30] sm:$0xf]
        %v1960 = vld [vmem:[%s1946 + $0x34] sm:$0xf]
        %v1961 = vld [vmem:[%s1946 + $0x38] sm:$0xf]
        %v1962 = vld [vmem:[%s1946 + $0x3c] sm:$0xf]
        %s1963 = scalar_lea.vmem %s2, 3
        %v1964 = vld [vmem:[%s1963] sm:$0x1]
        %v1966 = vlaneseq
        %v1967 = vshrl.u32 %v1966, 7
        %v1968 = vsub.s32 0, %v1967
        %v1969 = vrot.slane %v1964, %v1968
        %v1987 = vunpack.c.l.b16 %v1947
        %v1988 = vunpack.c.l.b16 %v1948
        %v1989 = vunpack.c.l.b16 %v1949
        %v1990 = vunpack.c.l.b16 %v1950
        %v1991 = vunpack.c.l.b16 %v1951
        %v1992 = vunpack.c.l.b16 %v1952
        %v1993 = vunpack.c.l.b16 %v1953
        %v1994 = vunpack.c.l.b16 %v1954
        %v1995 = vunpack.c.l.b16 %v1955
        %v1996 = vunpack.c.l.b16 %v1956
        %v1997 = vunpack.c.l.b16 %v1957
        %v1998 = vunpack.c.l.b16 %v1958
        %v1999 = vunpack.c.l.b16 %v1959
        %v2000 = vunpack.c.l.b16 %v1960
        %v2001 = vunpack.c.l.b16 %v1961
        %v2002 = vunpack.c.l.b16 %v1962
        %v2003 = vpack.c.b16 %v1988, %v1987
        %v2004 = vpack.c.b16 %v1990, %v1989
        %v2005 = vpack.c.b16 %v1992, %v1991
        %v2006 = vpack.c.b16 %v1994, %v1993
        %v2007 = vpack.c.b16 %v1996, %v1995
        %v2008 = vpack.c.b16 %v1998, %v1997
        %v2009 = vpack.c.b16 %v2000, %v1999
        %v2010 = vpack.c.b16 %v2002, %v2001
        %2019 = vmatprep.subr.bf16.mxu0 0
        %2020 = vmatpush1.bf16.msra.mxu0 %v2010
        %2021 = vmatprep.subr.bf16.mxu0 0
        %2022 = vmatpush1.bf16.msra.mxu0 %v2009
        %2023 = vmatprep.subr.bf16.mxu0 0
        %2024 = vmatpush1.bf16.msra.mxu0 %v2008
        %2025 = vmatprep.subr.bf16.mxu0 0
        %2026 = vmatpush1.bf16.msra.mxu0 %v2007
        %2027 = vmatprep.subr.bf16.mxu0 0
        %2028 = vmatpush1.bf16.msra.mxu0 %v2006
        %2029 = vmatprep.subr.bf16.mxu0 0
        %2030 = vmatpush1.bf16.msra.mxu0 %v2005
        %2031 = vmatprep.subr.bf16.mxu0 0
        %2032 = vmatpush1.bf16.msra.mxu0 %v2004
        %2033 = vmatprep.subr.bf16.mxu0 0
        %2034 = vmatpush1.bf16.msra.mxu0 %v2003
        %2035 = vmatprep.subr.bf16.mxu0 0
        %2036 = vmatpush2.bf16.msra.mxu0 0
        %2037 = vmatprep.subr.bf16.mxu0 0
        %2038 = vmatpush2.bf16.msra.mxu0 0
        %2039 = vmatprep.subr.bf16.mxu0 0
        %2040 = vmatpush2.bf16.msra.mxu0 0
        %2041 = vmatprep.subr.bf16.mxu0 0
        %2042 = vmatpush2.bf16.msra.mxu0 0
        %2043 = vmatprep.subr.bf16.mxu0 0
        %2044 = vmatpush2.bf16.msra.mxu0 0
        %2045 = vmatprep.subr.bf16.mxu0 0
        %2046 = vmatpush2.bf16.msra.mxu0 0
        %2047 = vmatprep.subr.bf16.mxu0 0
        %2048 = vmatpush2.bf16.msra.mxu0 0
        %2049 = vmatprep.subr.bf16.mxu0 0
        %2050 = vmatpush2.bf16.msra.mxu0 0
        %2051 = vmatprep.mubr.bf16.mxu0 0
        %2052 = vmatmul.mubr.bf16.gmra.mxu0 %v1914
        %v2053 = vpop.f32.mrf.mxu0
        %v2054 = vadd.f32 %v1969, %v2053
        %v2055 = vpop.f32.mrf.mxu0
        %v2056 = vpop.f32.mrf.mxu0
        %v2057 = vadd.f32 %v1969, %v2056
        %v2058 = vpop.f32.mrf.mxu0
        %2059 = vmatprep.mubr.bf16.mxu0 0
        %2060 = vmatmul.mubr.bf16.gmra.mxu0 %v1915
        %v2061 = vpop.f32.mrf.mxu0
        %v2062 = vadd.f32 %v1969, %v2061
        %v2063 = vpop.f32.mrf.mxu0
        %v2064 = vpop.f32.mrf.mxu0
        %v2065 = vadd.f32 %v1969, %v2064
        %v2066 = vpop.f32.mrf.mxu0
        %2067 = vmatprep.mubr.bf16.mxu0 0
        %2068 = vmatmul.mubr.bf16.gmra.mxu0 %v1916
        %v2069 = vpop.f32.mrf.mxu0
        %v2070 = vadd.f32 %v1969, %v2069
        %v2071 = vpop.f32.mrf.mxu0
        %v2072 = vpop.f32.mrf.mxu0
        %v2073 = vadd.f32 %v1969, %v2072
        %v2074 = vpop.f32.mrf.mxu0
        %2075 = vmatprep.mubr.bf16.mxu0 0
        %2076 = vmatmul.mubr.bf16.gmra.mxu0 %v1917
        %v2077 = vpop.f32.mrf.mxu0
        %v2078 = vadd.f32 %v1969, %v2077
        %v2079 = vpop.f32.mrf.mxu0
        %v2080 = vpop.f32.mrf.mxu0
        %v2081 = vadd.f32 %v1969, %v2080
        %v2082 = vpop.f32.mrf.mxu0
        %2083 = vmatprep.mubr.bf16.mxu0 0
        %2084 = vmatmul.mubr.bf16.gmra.mxu0 %v1918
        %v2085 = vpop.f32.mrf.mxu0
        %v2086 = vadd.f32 %v1969, %v2085
        %v2087 = vpop.f32.mrf.mxu0
        %v2088 = vpop.f32.mrf.mxu0
        %v2089 = vadd.f32 %v1969, %v2088
        %v2090 = vpop.f32.mrf.mxu0
        %2091 = vmatprep.mubr.bf16.mxu0 0
        %2092 = vmatmul.mubr.bf16.gmra.mxu0 %v1919
        %v2093 = vpop.f32.mrf.mxu0
        %v2094 = vadd.f32 %v1969, %v2093
        %v2095 = vpop.f32.mrf.mxu0
        %v2096 = vpop.f32.mrf.mxu0
        %v2097 = vadd.f32 %v1969, %v2096
        %v2098 = vpop.f32.mrf.mxu0
        %2099 = vmatprep.mubr.bf16.mxu0 0
        %2100 = vmatmul.mubr.bf16.gmra.mxu0 %v1920
        %v2101 = vpop.f32.mrf.mxu0
        %v2102 = vadd.f32 %v1969, %v2101
        %v2103 = vpop.f32.mrf.mxu0
        %v2104 = vpop.f32.mrf.mxu0
        %v2105 = vadd.f32 %v1969, %v2104
        %v2106 = vpop.f32.mrf.mxu0
        %2107 = vmatprep.mubr.bf16.mxu0 0
        %2108 = vmatmul.mubr.bf16.gmra.mxu0 %v1921
        %v2109 = vpop.f32.mrf.mxu0
        %v2110 = vadd.f32 %v1969, %v2109
        %v2111 = vpop.f32.mrf.mxu0
        %v2112 = vpop.f32.mrf.mxu0
        %v2113 = vadd.f32 %v1969, %v2112
        %v2114 = vpop.f32.mrf.mxu0
        %2115 = vmatprep.mubr.bf16.mxu0 0
        %2116 = vmatmul.mubr.bf16.gmra.mxu0 %v1922
        %v2117 = vpop.f32.mrf.mxu0
        %v2118 = vadd.f32 %v1969, %v2117
        %v2119 = vpop.f32.mrf.mxu0
        %v2120 = vpop.f32.mrf.mxu0
        %v2121 = vadd.f32 %v1969, %v2120
        %v2122 = vpop.f32.mrf.mxu0
        %2123 = vmatprep.mubr.bf16.mxu0 0
        %2124 = vmatmul.mubr.bf16.gmra.mxu0 %v1923
        %v2125 = vpop.f32.mrf.mxu0
        %v2126 = vadd.f32 %v1969, %v2125
        %v2127 = vpop.f32.mrf.mxu0
        %v2128 = vpop.f32.mrf.mxu0
        %v2129 = vadd.f32 %v1969, %v2128
        %v2130 = vpop.f32.mrf.mxu0
        %2131 = vmatprep.mubr.bf16.mxu0 0
        %2132 = vmatmul.mubr.bf16.gmra.mxu0 %v1924
        %v2133 = vpop.f32.mrf.mxu0
        %v2134 = vadd.f32 %v1969, %v2133
        %v2135 = vpop.f32.mrf.mxu0
        %v2136 = vpop.f32.mrf.mxu0
        %v2137 = vadd.f32 %v1969, %v2136
        %v2138 = vpop.f32.mrf.mxu0
        %2139 = vmatprep.mubr.bf16.mxu0 0
        %2140 = vmatmul.mubr.bf16.gmra.mxu0 %v1925
        %v2141 = vpop.f32.mrf.mxu0
        %v2142 = vadd.f32 %v1969, %v2141
        %v2143 = vpop.f32.mrf.mxu0
        %v2144 = vpop.f32.mrf.mxu0
        %v2145 = vadd.f32 %v1969, %v2144
        %v2146 = vpop.f32.mrf.mxu0
        %2147 = vmatprep.mubr.bf16.mxu0 0
        %2148 = vmatmul.mubr.bf16.gmra.mxu0 %v1926
        %v2149 = vpop.f32.mrf.mxu0
        %v2150 = vadd.f32 %v1969, %v2149
        %v2151 = vpop.f32.mrf.mxu0
        %v2152 = vpop.f32.mrf.mxu0
        %v2153 = vadd.f32 %v1969, %v2152
        %v2154 = vpop.f32.mrf.mxu0
        %2155 = vmatprep.mubr.bf16.mxu0 0
        %2156 = vmatmul.mubr.bf16.gmra.mxu0 %v1927
        %v2157 = vpop.f32.mrf.mxu0
        %v2158 = vadd.f32 %v1969, %v2157
        %v2159 = vpop.f32.mrf.mxu0
        %v2160 = vpop.f32.mrf.mxu0
        %v2161 = vadd.f32 %v1969, %v2160
        %v2162 = vpop.f32.mrf.mxu0
        %2163 = vmatprep.mubr.bf16.mxu0 0
        %2164 = vmatmul.mubr.bf16.gmra.mxu0 %v1928
        %v2165 = vpop.f32.mrf.mxu0
        %v2166 = vadd.f32 %v1969, %v2165
        %v2167 = vpop.f32.mrf.mxu0
        %v2168 = vpop.f32.mrf.mxu0
        %v2169 = vadd.f32 %v1969, %v2168
        %v2170 = vpop.f32.mrf.mxu0
        %2171 = vmatprep.mubr.bf16.mxu0 0
        %2172 = vmatmul.mubr.bf16.gmra.mxu0 %v1929
        %v2173 = vpop.f32.mrf.mxu0
        %v2174 = vadd.f32 %v1969, %v2173
        %v2175 = vpop.f32.mrf.mxu0
        %v2176 = vpop.f32.mrf.mxu0
        %v2177 = vadd.f32 %v1969, %v2176
        %v2178 = vpop.f32.mrf.mxu0
        %2179 = vmatprep.mubr.bf16.mxu0 0
        %2180 = vmatmul.mubr.bf16.gmra.mxu0 %v1930
        %v2181 = vpop.f32.mrf.mxu0
        %v2182 = vadd.f32 %v1969, %v2181
        %v2183 = vpop.f32.mrf.mxu0
        %v2184 = vpop.f32.mrf.mxu0
        %v2185 = vadd.f32 %v1969, %v2184
        %v2186 = vpop.f32.mrf.mxu0
        %2187 = vmatprep.mubr.bf16.mxu0 0
        %2188 = vmatmul.mubr.bf16.gmra.mxu0 %v1931
        %v2189 = vpop.f32.mrf.mxu0
        %v2190 = vadd.f32 %v1969, %v2189
        %v2191 = vpop.f32.mrf.mxu0
        %v2192 = vpop.f32.mrf.mxu0
        %v2193 = vadd.f32 %v1969, %v2192
        %v2194 = vpop.f32.mrf.mxu0
        %2195 = vmatprep.mubr.bf16.mxu0 0
        %2196 = vmatmul.mubr.bf16.gmra.mxu0 %v1932
        %v2197 = vpop.f32.mrf.mxu0
        %v2198 = vadd.f32 %v1969, %v2197
        %v2199 = vpop.f32.mrf.mxu0
        %v2200 = vpop.f32.mrf.mxu0
        %v2201 = vadd.f32 %v1969, %v2200
        %v2202 = vpop.f32.mrf.mxu0
        %2203 = vmatprep.mubr.bf16.mxu0 0
        %2204 = vmatmul.mubr.bf16.gmra.mxu0 %v1933
        %v2205 = vpop.f32.mrf.mxu0
        %v2206 = vadd.f32 %v1969, %v2205
        %v2207 = vpop.f32.mrf.mxu0
        %v2208 = vpop.f32.mrf.mxu0
        %v2209 = vadd.f32 %v1969, %v2208
        %v2210 = vpop.f32.mrf.mxu0
        %2211 = vmatprep.mubr.bf16.mxu0 0
        %2212 = vmatmul.mubr.bf16.gmra.mxu0 %v1934
        %v2213 = vpop.f32.mrf.mxu0
        %v2214 = vadd.f32 %v1969, %v2213
        %v2215 = vpop.f32.mrf.mxu0
        %v2216 = vpop.f32.mrf.mxu0
        %v2217 = vadd.f32 %v1969, %v2216
        %v2218 = vpop.f32.mrf.mxu0
        %2219 = vmatprep.mubr.bf16.mxu0 0
        %2220 = vmatmul.mubr.bf16.gmra.mxu0 %v1935
        %v2221 = vpop.f32.mrf.mxu0
        %v2222 = vadd.f32 %v1969, %v2221
        %v2223 = vpop.f32.mrf.mxu0
        %v2224 = vpop.f32.mrf.mxu0
        %v2225 = vadd.f32 %v1969, %v2224
        %v2226 = vpop.f32.mrf.mxu0
        %2227 = vmatprep.mubr.bf16.mxu0 0
        %2228 = vmatmul.mubr.bf16.gmra.mxu0 %v1936
        %v2229 = vpop.f32.mrf.mxu0
        %v2230 = vadd.f32 %v1969, %v2229
        %v2231 = vpop.f32.mrf.mxu0
        %v2232 = vpop.f32.mrf.mxu0
        %v2233 = vadd.f32 %v1969, %v2232
        %v2234 = vpop.f32.mrf.mxu0
        %2235 = vmatprep.mubr.bf16.mxu0 0
        %2236 = vmatmul.mubr.bf16.gmra.mxu0 %v1937
        %v2237 = vpop.f32.mrf.mxu0
        %v2238 = vadd.f32 %v1969, %v2237
        %v2239 = vpop.f32.mrf.mxu0
        %v2240 = vpop.f32.mrf.mxu0
        %v2241 = vadd.f32 %v1969, %v2240
        %v2242 = vpop.f32.mrf.mxu0
        %2243 = vmatprep.mubr.bf16.mxu0 0
        %2244 = vmatmul.mubr.bf16.gmra.mxu0 %v1938
        %v2245 = vpop.f32.mrf.mxu0
        %v2246 = vadd.f32 %v1969, %v2245
        %v2247 = vpop.f32.mrf.mxu0
        %v2248 = vpop.f32.mrf.mxu0
        %v2249 = vadd.f32 %v1969, %v2248
        %v2250 = vpop.f32.mrf.mxu0
        %2251 = vmatprep.mubr.bf16.mxu0 0
        %2252 = vmatmul.mubr.bf16.gmra.mxu0 %v1939
        %v2253 = vpop.f32.mrf.mxu0
        %v2254 = vadd.f32 %v1969, %v2253
        %v2255 = vpop.f32.mrf.mxu0
        %v2256 = vpop.f32.mrf.mxu0
        %v2257 = vadd.f32 %v1969, %v2256
        %v2258 = vpop.f32.mrf.mxu0
        %2259 = vmatprep.mubr.bf16.mxu0 0
        %2260 = vmatmul.mubr.bf16.gmra.mxu0 %v1940
        %v2261 = vpop.f32.mrf.mxu0
        %v2262 = vadd.f32 %v1969, %v2261
        %v2263 = vpop.f32.mrf.mxu0
        %v2264 = vpop.f32.mrf.mxu0
        %v2265 = vadd.f32 %v1969, %v2264
        %v2266 = vpop.f32.mrf.mxu0
        %2267 = vmatprep.mubr.bf16.mxu0 0
        %2268 = vmatmul.mubr.bf16.gmra.mxu0 %v1941
        %v2269 = vpop.f32.mrf.mxu0
        %v2270 = vadd.f32 %v1969, %v2269
        %v2271 = vpop.f32.mrf.mxu0
        %v2272 = vpop.f32.mrf.mxu0
        %v2273 = vadd.f32 %v1969, %v2272
        %v2274 = vpop.f32.mrf.mxu0
        %2275 = vmatprep.mubr.bf16.mxu0 0
        %2276 = vmatmul.mubr.bf16.gmra.mxu0 %v1942
        %v2277 = vpop.f32.mrf.mxu0
        %v2278 = vadd.f32 %v1969, %v2277
        %v2279 = vpop.f32.mrf.mxu0
        %v2280 = vpop.f32.mrf.mxu0
        %v2281 = vadd.f32 %v1969, %v2280
        %v2282 = vpop.f32.mrf.mxu0
        %2283 = vmatprep.mubr.bf16.mxu0 0
        %2284 = vmatmul.mubr.bf16.gmra.mxu0 %v1943
        %v2285 = vpop.f32.mrf.mxu0
        %v2286 = vadd.f32 %v1969, %v2285
        %v2287 = vpop.f32.mrf.mxu0
        %v2288 = vpop.f32.mrf.mxu0
        %v2289 = vadd.f32 %v1969, %v2288
        %v2290 = vpop.f32.mrf.mxu0
        %2291 = vmatprep.mubr.bf16.mxu0 0
        %2292 = vmatmul.mubr.bf16.gmra.mxu0 %v1944
        %v2293 = vpop.f32.mrf.mxu0
        %v2294 = vadd.f32 %v1969, %v2293
        %v2295 = vpop.f32.mrf.mxu0
        %v2296 = vpop.f32.mrf.mxu0
        %v2297 = vadd.f32 %v1969, %v2296
        %v2298 = vpop.f32.mrf.mxu0
        %2299 = vmatprep.mubr.bf16.mxu0 0
        %2300 = vmatmul.mubr.bf16.gmra.mxu0 %v1945
        %v2301 = vpop.f32.mrf.mxu0
        %v2302 = vadd.f32 %v1969, %v2301
        %v2303 = vpop.f32.mrf.mxu0
        %v2304 = vpop.f32.mrf.mxu0
        %v2305 = vadd.f32 %v1969, %v2304
        %v2306 = vpop.f32.mrf.mxu0
        %2307 = vdwg.mxu0
        %v2308 = vmax.f32 %v2054, 0.0
        %v2309 = vmax.f32 %v2057, 0.0
        %v2310 = vmax.f32 %v2062, 0.0
        %v2311 = vmax.f32 %v2065, 0.0
        %v2312 = vmax.f32 %v2070, 0.0
        %v2313 = vmax.f32 %v2073, 0.0
        %v2314 = vmax.f32 %v2078, 0.0
        %v2315 = vmax.f32 %v2081, 0.0
        %v2316 = vmax.f32 %v2086, 0.0
        %v2317 = vmax.f32 %v2089, 0.0
        %v2318 = vmax.f32 %v2094, 0.0
        %v2319 = vmax.f32 %v2097, 0.0
        %v2320 = vmax.f32 %v2102, 0.0
        %v2321 = vmax.f32 %v2105, 0.0
        %v2322 = vmax.f32 %v2110, 0.0
        %v2323 = vmax.f32 %v2113, 0.0
        %v2324 = vmax.f32 %v2118, 0.0
        %v2325 = vmax.f32 %v2121, 0.0
        %v2326 = vmax.f32 %v2126, 0.0
        %v2327 = vmax.f32 %v2129, 0.0
        %v2328 = vmax.f32 %v2134, 0.0
        %v2329 = vmax.f32 %v2137, 0.0
        %v2330 = vmax.f32 %v2142, 0.0
        %v2331 = vmax.f32 %v2145, 0.0
        %v2332 = vmax.f32 %v2150, 0.0
        %v2333 = vmax.f32 %v2153, 0.0
        %v2334 = vmax.f32 %v2158, 0.0
        %v2335 = vmax.f32 %v2161, 0.0
        %v2336 = vmax.f32 %v2166, 0.0
        %v2337 = vmax.f32 %v2169, 0.0
        %v2338 = vmax.f32 %v2174, 0.0
        %v2339 = vmax.f32 %v2177, 0.0
        %v2340 = vmax.f32 %v2182, 0.0
        %v2341 = vmax.f32 %v2185, 0.0
        %v2342 = vmax.f32 %v2190, 0.0
        %v2343 = vmax.f32 %v2193, 0.0
        %v2344 = vmax.f32 %v2198, 0.0
        %v2345 = vmax.f32 %v2201, 0.0
        %v2346 = vmax.f32 %v2206, 0.0
        %v2347 = vmax.f32 %v2209, 0.0
        %v2348 = vmax.f32 %v2214, 0.0
        %v2349 = vmax.f32 %v2217, 0.0
        %v2350 = vmax.f32 %v2222, 0.0
        %v2351 = vmax.f32 %v2225, 0.0
        %v2352 = vmax.f32 %v2230, 0.0
        %v2353 = vmax.f32 %v2233, 0.0
        %v2354 = vmax.f32 %v2238, 0.0
        %v2355 = vmax.f32 %v2241, 0.0
        %v2356 = vmax.f32 %v2246, 0.0
        %v2357 = vmax.f32 %v2249, 0.0
        %v2358 = vmax.f32 %v2254, 0.0
        %v2359 = vmax.f32 %v2257, 0.0
        %v2360 = vmax.f32 %v2262, 0.0
        %v2361 = vmax.f32 %v2265, 0.0
        %v2362 = vmax.f32 %v2270, 0.0
        %v2363 = vmax.f32 %v2273, 0.0
        %v2364 = vmax.f32 %v2278, 0.0
        %v2365 = vmax.f32 %v2281, 0.0
        %v2366 = vmax.f32 %v2286, 0.0
        %v2367 = vmax.f32 %v2289, 0.0
        %v2368 = vmax.f32 %v2294, 0.0
        %v2369 = vmax.f32 %v2297, 0.0
        %v2370 = vmax.f32 %v2302, 0.0
        %v2371 = vmax.f32 %v2305, 0.0
        %v2372 = vpack.c.bf16 %v2309, %v2308
        %v2373 = vpack.c.bf16 %v2311, %v2310
        %v2374 = vpack.c.bf16 %v2313, %v2312
        %v2375 = vpack.c.bf16 %v2315, %v2314
        %v2376 = vpack.c.bf16 %v2317, %v2316
        %v2377 = vpack.c.bf16 %v2319, %v2318
        %v2378 = vpack.c.bf16 %v2321, %v2320
        %v2379 = vpack.c.bf16 %v2323, %v2322
        %v2380 = vpack.c.bf16 %v2325, %v2324
        %v2381 = vpack.c.bf16 %v2327, %v2326
        %v2382 = vpack.c.bf16 %v2329, %v2328
        %v2383 = vpack.c.bf16 %v2331, %v2330
        %v2384 = vpack.c.bf16 %v2333, %v2332
        %v2385 = vpack.c.bf16 %v2335, %v2334
        %v2386 = vpack.c.bf16 %v2337, %v2336
        %v2387 = vpack.c.bf16 %v2339, %v2338
        %v2388 = vpack.c.bf16 %v2341, %v2340
        %v2389 = vpack.c.bf16 %v2343, %v2342
        %v2390 = vpack.c.bf16 %v2345, %v2344
        %v2391 = vpack.c.bf16 %v2347, %v2346
        %v2392 = vpack.c.bf16 %v2349, %v2348
        %v2393 = vpack.c.bf16 %v2351, %v2350
        %v2394 = vpack.c.bf16 %v2353, %v2352
        %v2395 = vpack.c.bf16 %v2355, %v2354
        %v2396 = vpack.c.bf16 %v2357, %v2356
        %v2397 = vpack.c.bf16 %v2359, %v2358
        %v2398 = vpack.c.bf16 %v2361, %v2360
        %v2399 = vpack.c.bf16 %v2363, %v2362
        %v2400 = vpack.c.bf16 %v2365, %v2364
        %v2401 = vpack.c.bf16 %v2367, %v2366
        %v2402 = vpack.c.bf16 %v2369, %v2368
        %v2403 = vpack.c.bf16 %v2371, %v2370
        %s2404 = scalar_lea.vmem [#allocation3], 192
        %v2405 = vld [vmem:[%s2404] sm:$0xf]
        %v2406 = vld [vmem:[%s2404 + $0x4] sm:$0xf]
        %v2407 = vld [vmem:[%s2404 + $0x8] sm:$0xf]
        %v2408 = vld [vmem:[%s2404 + $0xc] sm:$0xf]
        %v2409 = vld [vmem:[%s2404 + $0x10] sm:$0xf]
        %v2410 = vld [vmem:[%s2404 + $0x14] sm:$0xf]
        %v2411 = vld [vmem:[%s2404 + $0x18] sm:$0xf]
        %v2412 = vld [vmem:[%s2404 + $0x1c] sm:$0xf]
        %v2413 = vld [vmem:[%s2404 + $0x20] sm:$0xf]
        %v2414 = vld [vmem:[%s2404 + $0x24] sm:$0xf]
        %v2415 = vld [vmem:[%s2404 + $0x28] sm:$0xf]
        %v2416 = vld [vmem:[%s2404 + $0x2c] sm:$0xf]
        %v2417 = vld [vmem:[%s2404 + $0x30] sm:$0xf]
        %v2418 = vld [vmem:[%s2404 + $0x34] sm:$0xf]
        %v2419 = vld [vmem:[%s2404 + $0x38] sm:$0xf]
        %v2420 = vld [vmem:[%s2404 + $0x3c] sm:$0xf]
        %s2421 = scalar_lea.vmem %s2, 4
        %v2422 = vld [vmem:[%s2421] sm:$0x1]
        %v2424 = vlaneseq
        %v2425 = vshrl.u32 %v2424, 7
        %v2426 = vsub.s32 0, %v2425
        %v2427 = vrot.slane %v2422, %v2426
        %v2445 = vunpack.c.l.b16 %v2405
        %v2446 = vunpack.c.l.b16 %v2406
        %v2447 = vunpack.c.l.b16 %v2407
        %v2448 = vunpack.c.l.b16 %v2408
        %v2449 = vunpack.c.l.b16 %v2409
        %v2450 = vunpack.c.l.b16 %v2410
        %v2451 = vunpack.c.l.b16 %v2411
        %v2452 = vunpack.c.l.b16 %v2412
        %v2453 = vunpack.c.l.b16 %v2413
        %v2454 = vunpack.c.l.b16 %v2414
        %v2455 = vunpack.c.l.b16 %v2415
        %v2456 = vunpack.c.l.b16 %v2416
        %v2457 = vunpack.c.l.b16 %v2417
        %v2458 = vunpack.c.l.b16 %v2418
        %v2459 = vunpack.c.l.b16 %v2419
        %v2460 = vunpack.c.l.b16 %v2420
        %v2461 = vpack.c.b16 %v2446, %v2445
        %v2462 = vpack.c.b16 %v2448, %v2447
        %v2463 = vpack.c.b16 %v2450, %v2449
        %v2464 = vpack.c.b16 %v2452, %v2451
        %v2465 = vpack.c.b16 %v2454, %v2453
        %v2466 = vpack.c.b16 %v2456, %v2455
        %v2467 = vpack.c.b16 %v2458, %v2457
        %v2468 = vpack.c.b16 %v2460, %v2459
        %2477 = vmatprep.subr.bf16.mxu0 0
        %2478 = vmatpush1.bf16.msra.mxu0 %v2468
        %2479 = vmatprep.subr.bf16.mxu0 0
        %2480 = vmatpush1.bf16.msra.mxu0 %v2467
        %2481 = vmatprep.subr.bf16.mxu0 0
        %2482 = vmatpush1.bf16.msra.mxu0 %v2466
        %2483 = vmatprep.subr.bf16.mxu0 0
        %2484 = vmatpush1.bf16.msra.mxu0 %v2465
        %2485 = vmatprep.subr.bf16.mxu0 0
        %2486 = vmatpush1.bf16.msra.mxu0 %v2464
        %2487 = vmatprep.subr.bf16.mxu0 0
        %2488 = vmatpush1.bf16.msra.mxu0 %v2463
        %2489 = vmatprep.subr.bf16.mxu0 0
        %2490 = vmatpush1.bf16.msra.mxu0 %v2462
        %2491 = vmatprep.subr.bf16.mxu0 0
        %2492 = vmatpush1.bf16.msra.mxu0 %v2461
        %2493 = vmatprep.subr.bf16.mxu0 0
        %2494 = vmatpush2.bf16.msra.mxu0 0
        %2495 = vmatprep.subr.bf16.mxu0 0
        %2496 = vmatpush2.bf16.msra.mxu0 0
        %2497 = vmatprep.subr.bf16.mxu0 0
        %2498 = vmatpush2.bf16.msra.mxu0 0
        %2499 = vmatprep.subr.bf16.mxu0 0
        %2500 = vmatpush2.bf16.msra.mxu0 0
        %2501 = vmatprep.subr.bf16.mxu0 0
        %2502 = vmatpush2.bf16.msra.mxu0 0
        %2503 = vmatprep.subr.bf16.mxu0 0
        %2504 = vmatpush2.bf16.msra.mxu0 0
        %2505 = vmatprep.subr.bf16.mxu0 0
        %2506 = vmatpush2.bf16.msra.mxu0 0
        %2507 = vmatprep.subr.bf16.mxu0 0
        %2508 = vmatpush2.bf16.msra.mxu0 0
        %2509 = vmatprep.mubr.bf16.mxu0 0
        %2510 = vmatmul.mubr.bf16.gmra.mxu0 %v2372
        %v2511 = vpop.f32.mrf.mxu0
        %v2512 = vadd.f32 %v2427, %v2511
        %v2513 = vpop.f32.mrf.mxu0
        %v2514 = vpop.f32.mrf.mxu0
        %v2515 = vadd.f32 %v2427, %v2514
        %v2516 = vpop.f32.mrf.mxu0
        %2517 = vmatprep.mubr.bf16.mxu0 0
        %2518 = vmatmul.mubr.bf16.gmra.mxu0 %v2373
        %v2519 = vpop.f32.mrf.mxu0
        %v2520 = vadd.f32 %v2427, %v2519
        %v2521 = vpop.f32.mrf.mxu0
        %v2522 = vpop.f32.mrf.mxu0
        %v2523 = vadd.f32 %v2427, %v2522
        %v2524 = vpop.f32.mrf.mxu0
        %2525 = vmatprep.mubr.bf16.mxu0 0
        %2526 = vmatmul.mubr.bf16.gmra.mxu0 %v2374
        %v2527 = vpop.f32.mrf.mxu0
        %v2528 = vadd.f32 %v2427, %v2527
        %v2529 = vpop.f32.mrf.mxu0
        %v2530 = vpop.f32.mrf.mxu0
        %v2531 = vadd.f32 %v2427, %v2530
        %v2532 = vpop.f32.mrf.mxu0
        %2533 = vmatprep.mubr.bf16.mxu0 0
        %2534 = vmatmul.mubr.bf16.gmra.mxu0 %v2375
        %v2535 = vpop.f32.mrf.mxu0
        %v2536 = vadd.f32 %v2427, %v2535
        %v2537 = vpop.f32.mrf.mxu0
        %v2538 = vpop.f32.mrf.mxu0
        %v2539 = vadd.f32 %v2427, %v2538
        %v2540 = vpop.f32.mrf.mxu0
        %2541 = vmatprep.mubr.bf16.mxu0 0
        %2542 = vmatmul.mubr.bf16.gmra.mxu0 %v2376
        %v2543 = vpop.f32.mrf.mxu0
        %v2544 = vadd.f32 %v2427, %v2543
        %v2545 = vpop.f32.mrf.mxu0
        %v2546 = vpop.f32.mrf.mxu0
        %v2547 = vadd.f32 %v2427, %v2546
        %v2548 = vpop.f32.mrf.mxu0
        %2549 = vmatprep.mubr.bf16.mxu0 0
        %2550 = vmatmul.mubr.bf16.gmra.mxu0 %v2377
        %v2551 = vpop.f32.mrf.mxu0
        %v2552 = vadd.f32 %v2427, %v2551
        %v2553 = vpop.f32.mrf.mxu0
        %v2554 = vpop.f32.mrf.mxu0
        %v2555 = vadd.f32 %v2427, %v2554
        %v2556 = vpop.f32.mrf.mxu0
        %2557 = vmatprep.mubr.bf16.mxu0 0
        %2558 = vmatmul.mubr.bf16.gmra.mxu0 %v2378
        %v2559 = vpop.f32.mrf.mxu0
        %v2560 = vadd.f32 %v2427, %v2559
        %v2561 = vpop.f32.mrf.mxu0
        %v2562 = vpop.f32.mrf.mxu0
        %v2563 = vadd.f32 %v2427, %v2562
        %v2564 = vpop.f32.mrf.mxu0
        %2565 = vmatprep.mubr.bf16.mxu0 0
        %2566 = vmatmul.mubr.bf16.gmra.mxu0 %v2379
        %v2567 = vpop.f32.mrf.mxu0
        %v2568 = vadd.f32 %v2427, %v2567
        %v2569 = vpop.f32.mrf.mxu0
        %v2570 = vpop.f32.mrf.mxu0
        %v2571 = vadd.f32 %v2427, %v2570
        %v2572 = vpop.f32.mrf.mxu0
        %2573 = vmatprep.mubr.bf16.mxu0 0
        %2574 = vmatmul.mubr.bf16.gmra.mxu0 %v2380
        %v2575 = vpop.f32.mrf.mxu0
        %v2576 = vadd.f32 %v2427, %v2575
        %v2577 = vpop.f32.mrf.mxu0
        %v2578 = vpop.f32.mrf.mxu0
        %v2579 = vadd.f32 %v2427, %v2578
        %v2580 = vpop.f32.mrf.mxu0
        %2581 = vmatprep.mubr.bf16.mxu0 0
        %2582 = vmatmul.mubr.bf16.gmra.mxu0 %v2381
        %v2583 = vpop.f32.mrf.mxu0
        %v2584 = vadd.f32 %v2427, %v2583
        %v2585 = vpop.f32.mrf.mxu0
        %v2586 = vpop.f32.mrf.mxu0
        %v2587 = vadd.f32 %v2427, %v2586
        %v2588 = vpop.f32.mrf.mxu0
        %2589 = vmatprep.mubr.bf16.mxu0 0
        %2590 = vmatmul.mubr.bf16.gmra.mxu0 %v2382
        %v2591 = vpop.f32.mrf.mxu0
        %v2592 = vadd.f32 %v2427, %v2591
        %v2593 = vpop.f32.mrf.mxu0
        %v2594 = vpop.f32.mrf.mxu0
        %v2595 = vadd.f32 %v2427, %v2594
        %v2596 = vpop.f32.mrf.mxu0
        %2597 = vmatprep.mubr.bf16.mxu0 0
        %2598 = vmatmul.mubr.bf16.gmra.mxu0 %v2383
        %v2599 = vpop.f32.mrf.mxu0
        %v2600 = vadd.f32 %v2427, %v2599
        %v2601 = vpop.f32.mrf.mxu0
        %v2602 = vpop.f32.mrf.mxu0
        %v2603 = vadd.f32 %v2427, %v2602
        %v2604 = vpop.f32.mrf.mxu0
        %2605 = vmatprep.mubr.bf16.mxu0 0
        %2606 = vmatmul.mubr.bf16.gmra.mxu0 %v2384
        %v2607 = vpop.f32.mrf.mxu0
        %v2608 = vadd.f32 %v2427, %v2607
        %v2609 = vpop.f32.mrf.mxu0
        %v2610 = vpop.f32.mrf.mxu0
        %v2611 = vadd.f32 %v2427, %v2610
        %v2612 = vpop.f32.mrf.mxu0
        %2613 = vmatprep.mubr.bf16.mxu0 0
        %2614 = vmatmul.mubr.bf16.gmra.mxu0 %v2385
        %v2615 = vpop.f32.mrf.mxu0
        %v2616 = vadd.f32 %v2427, %v2615
        %v2617 = vpop.f32.mrf.mxu0
        %v2618 = vpop.f32.mrf.mxu0
        %v2619 = vadd.f32 %v2427, %v2618
        %v2620 = vpop.f32.mrf.mxu0
        %2621 = vmatprep.mubr.bf16.mxu0 0
        %2622 = vmatmul.mubr.bf16.gmra.mxu0 %v2386
        %v2623 = vpop.f32.mrf.mxu0
        %v2624 = vadd.f32 %v2427, %v2623
        %v2625 = vpop.f32.mrf.mxu0
        %v2626 = vpop.f32.mrf.mxu0
        %v2627 = vadd.f32 %v2427, %v2626
        %v2628 = vpop.f32.mrf.mxu0
        %2629 = vmatprep.mubr.bf16.mxu0 0
        %2630 = vmatmul.mubr.bf16.gmra.mxu0 %v2387
        %v2631 = vpop.f32.mrf.mxu0
        %v2632 = vadd.f32 %v2427, %v2631
        %v2633 = vpop.f32.mrf.mxu0
        %v2634 = vpop.f32.mrf.mxu0
        %v2635 = vadd.f32 %v2427, %v2634
        %v2636 = vpop.f32.mrf.mxu0
        %2637 = vmatprep.mubr.bf16.mxu0 0
        %2638 = vmatmul.mubr.bf16.gmra.mxu0 %v2388
        %v2639 = vpop.f32.mrf.mxu0
        %v2640 = vadd.f32 %v2427, %v2639
        %v2641 = vpop.f32.mrf.mxu0
        %v2642 = vpop.f32.mrf.mxu0
        %v2643 = vadd.f32 %v2427, %v2642
        %v2644 = vpop.f32.mrf.mxu0
        %2645 = vmatprep.mubr.bf16.mxu0 0
        %2646 = vmatmul.mubr.bf16.gmra.mxu0 %v2389
        %v2647 = vpop.f32.mrf.mxu0
        %v2648 = vadd.f32 %v2427, %v2647
        %v2649 = vpop.f32.mrf.mxu0
        %v2650 = vpop.f32.mrf.mxu0
        %v2651 = vadd.f32 %v2427, %v2650
        %v2652 = vpop.f32.mrf.mxu0
        %2653 = vmatprep.mubr.bf16.mxu0 0
        %2654 = vmatmul.mubr.bf16.gmra.mxu0 %v2390
        %v2655 = vpop.f32.mrf.mxu0
        %v2656 = vadd.f32 %v2427, %v2655
        %v2657 = vpop.f32.mrf.mxu0
        %v2658 = vpop.f32.mrf.mxu0
        %v2659 = vadd.f32 %v2427, %v2658
        %v2660 = vpop.f32.mrf.mxu0
        %2661 = vmatprep.mubr.bf16.mxu0 0
        %2662 = vmatmul.mubr.bf16.gmra.mxu0 %v2391
        %v2663 = vpop.f32.mrf.mxu0
        %v2664 = vadd.f32 %v2427, %v2663
        %v2665 = vpop.f32.mrf.mxu0
        %v2666 = vpop.f32.mrf.mxu0
        %v2667 = vadd.f32 %v2427, %v2666
        %v2668 = vpop.f32.mrf.mxu0
        %2669 = vmatprep.mubr.bf16.mxu0 0
        %2670 = vmatmul.mubr.bf16.gmra.mxu0 %v2392
        %v2671 = vpop.f32.mrf.mxu0
        %v2672 = vadd.f32 %v2427, %v2671
        %v2673 = vpop.f32.mrf.mxu0
        %v2674 = vpop.f32.mrf.mxu0
        %v2675 = vadd.f32 %v2427, %v2674
        %v2676 = vpop.f32.mrf.mxu0
        %2677 = vmatprep.mubr.bf16.mxu0 0
        %2678 = vmatmul.mubr.bf16.gmra.mxu0 %v2393
        %v2679 = vpop.f32.mrf.mxu0
        %v2680 = vadd.f32 %v2427, %v2679
        %v2681 = vpop.f32.mrf.mxu0
        %v2682 = vpop.f32.mrf.mxu0
        %v2683 = vadd.f32 %v2427, %v2682
        %v2684 = vpop.f32.mrf.mxu0
        %2685 = vmatprep.mubr.bf16.mxu0 0
        %2686 = vmatmul.mubr.bf16.gmra.mxu0 %v2394
        %v2687 = vpop.f32.mrf.mxu0
        %v2688 = vadd.f32 %v2427, %v2687
        %v2689 = vpop.f32.mrf.mxu0
        %v2690 = vpop.f32.mrf.mxu0
        %v2691 = vadd.f32 %v2427, %v2690
        %v2692 = vpop.f32.mrf.mxu0
        %2693 = vmatprep.mubr.bf16.mxu0 0
        %2694 = vmatmul.mubr.bf16.gmra.mxu0 %v2395
        %v2695 = vpop.f32.mrf.mxu0
        %v2696 = vadd.f32 %v2427, %v2695
        %v2697 = vpop.f32.mrf.mxu0
        %v2698 = vpop.f32.mrf.mxu0
        %v2699 = vadd.f32 %v2427, %v2698
        %v2700 = vpop.f32.mrf.mxu0
        %2701 = vmatprep.mubr.bf16.mxu0 0
        %2702 = vmatmul.mubr.bf16.gmra.mxu0 %v2396
        %v2703 = vpop.f32.mrf.mxu0
        %v2704 = vadd.f32 %v2427, %v2703
        %v2705 = vpop.f32.mrf.mxu0
        %v2706 = vpop.f32.mrf.mxu0
        %v2707 = vadd.f32 %v2427, %v2706
        %v2708 = vpop.f32.mrf.mxu0
        %2709 = vmatprep.mubr.bf16.mxu0 0
        %2710 = vmatmul.mubr.bf16.gmra.mxu0 %v2397
        %v2711 = vpop.f32.mrf.mxu0
        %v2712 = vadd.f32 %v2427, %v2711
        %v2713 = vpop.f32.mrf.mxu0
        %v2714 = vpop.f32.mrf.mxu0
        %v2715 = vadd.f32 %v2427, %v2714
        %v2716 = vpop.f32.mrf.mxu0
        %2717 = vmatprep.mubr.bf16.mxu0 0
        %2718 = vmatmul.mubr.bf16.gmra.mxu0 %v2398
        %v2719 = vpop.f32.mrf.mxu0
        %v2720 = vadd.f32 %v2427, %v2719
        %v2721 = vpop.f32.mrf.mxu0
        %v2722 = vpop.f32.mrf.mxu0
        %v2723 = vadd.f32 %v2427, %v2722
        %v2724 = vpop.f32.mrf.mxu0
        %2725 = vmatprep.mubr.bf16.mxu0 0
        %2726 = vmatmul.mubr.bf16.gmra.mxu0 %v2399
        %v2727 = vpop.f32.mrf.mxu0
        %v2728 = vadd.f32 %v2427, %v2727
        %v2729 = vpop.f32.mrf.mxu0
        %v2730 = vpop.f32.mrf.mxu0
        %v2731 = vadd.f32 %v2427, %v2730
        %v2732 = vpop.f32.mrf.mxu0
        %2733 = vmatprep.mubr.bf16.mxu0 0
        %2734 = vmatmul.mubr.bf16.gmra.mxu0 %v2400
        %v2735 = vpop.f32.mrf.mxu0
        %v2736 = vadd.f32 %v2427, %v2735
        %v2737 = vpop.f32.mrf.mxu0
        %v2738 = vpop.f32.mrf.mxu0
        %v2739 = vadd.f32 %v2427, %v2738
        %v2740 = vpop.f32.mrf.mxu0
        %2741 = vmatprep.mubr.bf16.mxu0 0
        %2742 = vmatmul.mubr.bf16.gmra.mxu0 %v2401
        %v2743 = vpop.f32.mrf.mxu0
        %v2744 = vadd.f32 %v2427, %v2743
        %v2745 = vpop.f32.mrf.mxu0
        %v2746 = vpop.f32.mrf.mxu0
        %v2747 = vadd.f32 %v2427, %v2746
        %v2748 = vpop.f32.mrf.mxu0
        %2749 = vmatprep.mubr.bf16.mxu0 0
        %2750 = vmatmul.mubr.bf16.gmra.mxu0 %v2402
        %v2751 = vpop.f32.mrf.mxu0
        %v2752 = vadd.f32 %v2427, %v2751
        %v2753 = vpop.f32.mrf.mxu0
        %v2754 = vpop.f32.mrf.mxu0
        %v2755 = vadd.f32 %v2427, %v2754
        %v2756 = vpop.f32.mrf.mxu0
        %2757 = vmatprep.mubr.bf16.mxu0 0
        %2758 = vmatmul.mubr.bf16.gmra.mxu0 %v2403
        %v2759 = vpop.f32.mrf.mxu0
        %v2760 = vadd.f32 %v2427, %v2759
        %v2761 = vpop.f32.mrf.mxu0
        %v2762 = vpop.f32.mrf.mxu0
        %v2763 = vadd.f32 %v2427, %v2762
        %v2764 = vpop.f32.mrf.mxu0
        %2765 = vdwg.mxu0
        %v2766 = vmax.f32 %v2512, 0.0
        %v2767 = vmax.f32 %v2515, 0.0
        %v2768 = vmax.f32 %v2520, 0.0
        %v2769 = vmax.f32 %v2523, 0.0
        %v2770 = vmax.f32 %v2528, 0.0
        %v2771 = vmax.f32 %v2531, 0.0
        %v2772 = vmax.f32 %v2536, 0.0
        %v2773 = vmax.f32 %v2539, 0.0
        %v2774 = vmax.f32 %v2544, 0.0
        %v2775 = vmax.f32 %v2547, 0.0
        %v2776 = vmax.f32 %v2552, 0.0
        %v2777 = vmax.f32 %v2555, 0.0
        %v2778 = vmax.f32 %v2560, 0.0
        %v2779 = vmax.f32 %v2563, 0.0
        %v2780 = vmax.f32 %v2568, 0.0
        %v2781 = vmax.f32 %v2571, 0.0
        %v2782 = vmax.f32 %v2576, 0.0
        %v2783 = vmax.f32 %v2579, 0.0
        %v2784 = vmax.f32 %v2584, 0.0
        %v2785 = vmax.f32 %v2587, 0.0
        %v2786 = vmax.f32 %v2592, 0.0
        %v2787 = vmax.f32 %v2595, 0.0
        %v2788 = vmax.f32 %v2600, 0.0
        %v2789 = vmax.f32 %v2603, 0.0
        %v2790 = vmax.f32 %v2608, 0.0
        %v2791 = vmax.f32 %v2611, 0.0
        %v2792 = vmax.f32 %v2616, 0.0
        %v2793 = vmax.f32 %v2619, 0.0
        %v2794 = vmax.f32 %v2624, 0.0
        %v2795 = vmax.f32 %v2627, 0.0
        %v2796 = vmax.f32 %v2632, 0.0
        %v2797 = vmax.f32 %v2635, 0.0
        %v2798 = vmax.f32 %v2640, 0.0
        %v2799 = vmax.f32 %v2643, 0.0
        %v2800 = vmax.f32 %v2648, 0.0
        %v2801 = vmax.f32 %v2651, 0.0
        %v2802 = vmax.f32 %v2656, 0.0
        %v2803 = vmax.f32 %v2659, 0.0
        %v2804 = vmax.f32 %v2664, 0.0
        %v2805 = vmax.f32 %v2667, 0.0
        %v2806 = vmax.f32 %v2672, 0.0
        %v2807 = vmax.f32 %v2675, 0.0
        %v2808 = vmax.f32 %v2680, 0.0
        %v2809 = vmax.f32 %v2683, 0.0
        %v2810 = vmax.f32 %v2688, 0.0
        %v2811 = vmax.f32 %v2691, 0.0
        %v2812 = vmax.f32 %v2696, 0.0
        %v2813 = vmax.f32 %v2699, 0.0
        %v2814 = vmax.f32 %v2704, 0.0
        %v2815 = vmax.f32 %v2707, 0.0
        %v2816 = vmax.f32 %v2712, 0.0
        %v2817 = vmax.f32 %v2715, 0.0
        %v2818 = vmax.f32 %v2720, 0.0
        %v2819 = vmax.f32 %v2723, 0.0
        %v2820 = vmax.f32 %v2728, 0.0
        %v2821 = vmax.f32 %v2731, 0.0
        %v2822 = vmax.f32 %v2736, 0.0
        %v2823 = vmax.f32 %v2739, 0.0
        %v2824 = vmax.f32 %v2744, 0.0
        %v2825 = vmax.f32 %v2747, 0.0
        %v2826 = vmax.f32 %v2752, 0.0
        %v2827 = vmax.f32 %v2755, 0.0
        %v2828 = vmax.f32 %v2760, 0.0
        %v2829 = vmax.f32 %v2763, 0.0
        %v2830 = vpack.c.bf16 %v2767, %v2766
        %v2831 = vpack.c.bf16 %v2769, %v2768
        %v2832 = vpack.c.bf16 %v2771, %v2770
        %v2833 = vpack.c.bf16 %v2773, %v2772
        %v2834 = vpack.c.bf16 %v2775, %v2774
        %v2835 = vpack.c.bf16 %v2777, %v2776
        %v2836 = vpack.c.bf16 %v2779, %v2778
        %v2837 = vpack.c.bf16 %v2781, %v2780
        %v2838 = vpack.c.bf16 %v2783, %v2782
        %v2839 = vpack.c.bf16 %v2785, %v2784
        %v2840 = vpack.c.bf16 %v2787, %v2786
        %v2841 = vpack.c.bf16 %v2789, %v2788
        %v2842 = vpack.c.bf16 %v2791, %v2790
        %v2843 = vpack.c.bf16 %v2793, %v2792
        %v2844 = vpack.c.bf16 %v2795, %v2794
        %v2845 = vpack.c.bf16 %v2797, %v2796
        %v2846 = vpack.c.bf16 %v2799, %v2798
        %v2847 = vpack.c.bf16 %v2801, %v2800
        %v2848 = vpack.c.bf16 %v2803, %v2802
        %v2849 = vpack.c.bf16 %v2805, %v2804
        %v2850 = vpack.c.bf16 %v2807, %v2806
        %v2851 = vpack.c.bf16 %v2809, %v2808
        %v2852 = vpack.c.bf16 %v2811, %v2810
        %v2853 = vpack.c.bf16 %v2813, %v2812
        %v2854 = vpack.c.bf16 %v2815, %v2814
        %v2855 = vpack.c.bf16 %v2817, %v2816
        %v2856 = vpack.c.bf16 %v2819, %v2818
        %v2857 = vpack.c.bf16 %v2821, %v2820
        %v2858 = vpack.c.bf16 %v2823, %v2822
        %v2859 = vpack.c.bf16 %v2825, %v2824
        %v2860 = vpack.c.bf16 %v2827, %v2826
        %v2861 = vpack.c.bf16 %v2829, %v2828
        %s2862 = scalar_lea.vmem [#allocation3], 256
        %v2863 = vld [vmem:[%s2862] sm:$0xf]
        %v2864 = vld [vmem:[%s2862 + $0x4] sm:$0xf]
        %v2865 = vld [vmem:[%s2862 + $0x8] sm:$0xf]
        %v2866 = vld [vmem:[%s2862 + $0xc] sm:$0xf]
        %v2867 = vld [vmem:[%s2862 + $0x10] sm:$0xf]
        %v2868 = vld [vmem:[%s2862 + $0x14] sm:$0xf]
        %v2869 = vld [vmem:[%s2862 + $0x18] sm:$0xf]
        %v2870 = vld [vmem:[%s2862 + $0x1c] sm:$0xf]
        %v2871 = vld [vmem:[%s2862 + $0x20] sm:$0xf]
        %v2872 = vld [vmem:[%s2862 + $0x24] sm:$0xf]
        %v2873 = vld [vmem:[%s2862 + $0x28] sm:$0xf]
        %v2874 = vld [vmem:[%s2862 + $0x2c] sm:$0xf]
        %v2875 = vld [vmem:[%s2862 + $0x30] sm:$0xf]
        %v2876 = vld [vmem:[%s2862 + $0x34] sm:$0xf]
        %v2877 = vld [vmem:[%s2862 + $0x38] sm:$0xf]
        %v2878 = vld [vmem:[%s2862 + $0x3c] sm:$0xf]
        %s2879 = scalar_lea.vmem %s2, 5
        %v2880 = vld [vmem:[%s2879] sm:$0x1]
        %v2882 = vlaneseq
        %v2883 = vshrl.u32 %v2882, 7
        %v2884 = vsub.s32 0, %v2883
        %v2885 = vrot.slane %v2880, %v2884
        %v2903 = vunpack.c.l.b16 %v2863
        %v2904 = vunpack.c.l.b16 %v2864
        %v2905 = vunpack.c.l.b16 %v2865
        %v2906 = vunpack.c.l.b16 %v2866
        %v2907 = vunpack.c.l.b16 %v2867
        %v2908 = vunpack.c.l.b16 %v2868
        %v2909 = vunpack.c.l.b16 %v2869
        %v2910 = vunpack.c.l.b16 %v2870
        %v2911 = vunpack.c.l.b16 %v2871
        %v2912 = vunpack.c.l.b16 %v2872
        %v2913 = vunpack.c.l.b16 %v2873
        %v2914 = vunpack.c.l.b16 %v2874
        %v2915 = vunpack.c.l.b16 %v2875
        %v2916 = vunpack.c.l.b16 %v2876
        %v2917 = vunpack.c.l.b16 %v2877
        %v2918 = vunpack.c.l.b16 %v2878
        %v2919 = vpack.c.b16 %v2904, %v2903
        %v2920 = vpack.c.b16 %v2906, %v2905
        %v2921 = vpack.c.b16 %v2908, %v2907
        %v2922 = vpack.c.b16 %v2910, %v2909
        %v2923 = vpack.c.b16 %v2912, %v2911
        %v2924 = vpack.c.b16 %v2914, %v2913
        %v2925 = vpack.c.b16 %v2916, %v2915
        %v2926 = vpack.c.b16 %v2918, %v2917
        %2935 = vmatprep.subr.bf16.mxu0 0
        %2936 = vmatpush1.bf16.msra.mxu0 %v2926
        %2937 = vmatprep.subr.bf16.mxu0 0
        %2938 = vmatpush1.bf16.msra.mxu0 %v2925
        %2939 = vmatprep.subr.bf16.mxu0 0
        %2940 = vmatpush1.bf16.msra.mxu0 %v2924
        %2941 = vmatprep.subr.bf16.mxu0 0
        %2942 = vmatpush1.bf16.msra.mxu0 %v2923
        %2943 = vmatprep.subr.bf16.mxu0 0
        %2944 = vmatpush1.bf16.msra.mxu0 %v2922
        %2945 = vmatprep.subr.bf16.mxu0 0
        %2946 = vmatpush1.bf16.msra.mxu0 %v2921
        %2947 = vmatprep.subr.bf16.mxu0 0
        %2948 = vmatpush1.bf16.msra.mxu0 %v2920
        %2949 = vmatprep.subr.bf16.mxu0 0
        %2950 = vmatpush1.bf16.msra.mxu0 %v2919
        %2951 = vmatprep.subr.bf16.mxu0 0
        %2952 = vmatpush2.bf16.msra.mxu0 0
        %2953 = vmatprep.subr.bf16.mxu0 0
        %2954 = vmatpush2.bf16.msra.mxu0 0
        %2955 = vmatprep.subr.bf16.mxu0 0
        %2956 = vmatpush2.bf16.msra.mxu0 0
        %2957 = vmatprep.subr.bf16.mxu0 0
        %2958 = vmatpush2.bf16.msra.mxu0 0
        %2959 = vmatprep.subr.bf16.mxu0 0
        %2960 = vmatpush2.bf16.msra.mxu0 0
        %2961 = vmatprep.subr.bf16.mxu0 0
        %2962 = vmatpush2.bf16.msra.mxu0 0
        %2963 = vmatprep.subr.bf16.mxu0 0
        %2964 = vmatpush2.bf16.msra.mxu0 0
        %2965 = vmatprep.subr.bf16.mxu0 0
        %2966 = vmatpush2.bf16.msra.mxu0 0
        %2967 = vmatprep.mubr.bf16.mxu0 0
        %2968 = vmatmul.mubr.bf16.gmra.mxu0 %v2830
        %v2969 = vpop.f32.mrf.mxu0
        %v2970 = vadd.f32 %v2885, %v2969
        %v2971 = vpop.f32.mrf.mxu0
        %v2972 = vpop.f32.mrf.mxu0
        %v2973 = vadd.f32 %v2885, %v2972
        %v2974 = vpop.f32.mrf.mxu0
        %2975 = vmatprep.mubr.bf16.mxu0 0
        %2976 = vmatmul.mubr.bf16.gmra.mxu0 %v2831
        %v2977 = vpop.f32.mrf.mxu0
        %v2978 = vadd.f32 %v2885, %v2977
        %v2979 = vpop.f32.mrf.mxu0
        %v2980 = vpop.f32.mrf.mxu0
        %v2981 = vadd.f32 %v2885, %v2980
        %v2982 = vpop.f32.mrf.mxu0
        %2983 = vmatprep.mubr.bf16.mxu0 0
        %2984 = vmatmul.mubr.bf16.gmra.mxu0 %v2832
        %v2985 = vpop.f32.mrf.mxu0
        %v2986 = vadd.f32 %v2885, %v2985
        %v2987 = vpop.f32.mrf.mxu0
        %v2988 = vpop.f32.mrf.mxu0
        %v2989 = vadd.f32 %v2885, %v2988
        %v2990 = vpop.f32.mrf.mxu0
        %2991 = vmatprep.mubr.bf16.mxu0 0
        %2992 = vmatmul.mubr.bf16.gmra.mxu0 %v2833
        %v2993 = vpop.f32.mrf.mxu0
        %v2994 = vadd.f32 %v2885, %v2993
        %v2995 = vpop.f32.mrf.mxu0
        %v2996 = vpop.f32.mrf.mxu0
        %v2997 = vadd.f32 %v2885, %v2996
        %v2998 = vpop.f32.mrf.mxu0
        %2999 = vmatprep.mubr.bf16.mxu0 0
        %3000 = vmatmul.mubr.bf16.gmra.mxu0 %v2834
        %v3001 = vpop.f32.mrf.mxu0
        %v3002 = vadd.f32 %v2885, %v3001
        %v3003 = vpop.f32.mrf.mxu0
        %v3004 = vpop.f32.mrf.mxu0
        %v3005 = vadd.f32 %v2885, %v3004
        %v3006 = vpop.f32.mrf.mxu0
        %3007 = vmatprep.mubr.bf16.mxu0 0
        %3008 = vmatmul.mubr.bf16.gmra.mxu0 %v2835
        %v3009 = vpop.f32.mrf.mxu0
        %v3010 = vadd.f32 %v2885, %v3009
        %v3011 = vpop.f32.mrf.mxu0
        %v3012 = vpop.f32.mrf.mxu0
        %v3013 = vadd.f32 %v2885, %v3012
        %v3014 = vpop.f32.mrf.mxu0
        %3015 = vmatprep.mubr.bf16.mxu0 0
        %3016 = vmatmul.mubr.bf16.gmra.mxu0 %v2836
        %v3017 = vpop.f32.mrf.mxu0
        %v3018 = vadd.f32 %v2885, %v3017
        %v3019 = vpop.f32.mrf.mxu0
        %v3020 = vpop.f32.mrf.mxu0
        %v3021 = vadd.f32 %v2885, %v3020
        %v3022 = vpop.f32.mrf.mxu0
        %3023 = vmatprep.mubr.bf16.mxu0 0
        %3024 = vmatmul.mubr.bf16.gmra.mxu0 %v2837
        %v3025 = vpop.f32.mrf.mxu0
        %v3026 = vadd.f32 %v2885, %v3025
        %v3027 = vpop.f32.mrf.mxu0
        %v3028 = vpop.f32.mrf.mxu0
        %v3029 = vadd.f32 %v2885, %v3028
        %v3030 = vpop.f32.mrf.mxu0
        %3031 = vmatprep.mubr.bf16.mxu0 0
        %3032 = vmatmul.mubr.bf16.gmra.mxu0 %v2838
        %v3033 = vpop.f32.mrf.mxu0
        %v3034 = vadd.f32 %v2885, %v3033
        %v3035 = vpop.f32.mrf.mxu0
        %v3036 = vpop.f32.mrf.mxu0
        %v3037 = vadd.f32 %v2885, %v3036
        %v3038 = vpop.f32.mrf.mxu0
        %3039 = vmatprep.mubr.bf16.mxu0 0
        %3040 = vmatmul.mubr.bf16.gmra.mxu0 %v2839
        %v3041 = vpop.f32.mrf.mxu0
        %v3042 = vadd.f32 %v2885, %v3041
        %v3043 = vpop.f32.mrf.mxu0
        %v3044 = vpop.f32.mrf.mxu0
        %v3045 = vadd.f32 %v2885, %v3044
        %v3046 = vpop.f32.mrf.mxu0
        %3047 = vmatprep.mubr.bf16.mxu0 0
        %3048 = vmatmul.mubr.bf16.gmra.mxu0 %v2840
        %v3049 = vpop.f32.mrf.mxu0
        %v3050 = vadd.f32 %v2885, %v3049
        %v3051 = vpop.f32.mrf.mxu0
        %v3052 = vpop.f32.mrf.mxu0
        %v3053 = vadd.f32 %v2885, %v3052
        %v3054 = vpop.f32.mrf.mxu0
        %3055 = vmatprep.mubr.bf16.mxu0 0
        %3056 = vmatmul.mubr.bf16.gmra.mxu0 %v2841
        %v3057 = vpop.f32.mrf.mxu0
        %v3058 = vadd.f32 %v2885, %v3057
        %v3059 = vpop.f32.mrf.mxu0
        %v3060 = vpop.f32.mrf.mxu0
        %v3061 = vadd.f32 %v2885, %v3060
        %v3062 = vpop.f32.mrf.mxu0
        %3063 = vmatprep.mubr.bf16.mxu0 0
        %3064 = vmatmul.mubr.bf16.gmra.mxu0 %v2842
        %v3065 = vpop.f32.mrf.mxu0
        %v3066 = vadd.f32 %v2885, %v3065
        %v3067 = vpop.f32.mrf.mxu0
        %v3068 = vpop.f32.mrf.mxu0
        %v3069 = vadd.f32 %v2885, %v3068
        %v3070 = vpop.f32.mrf.mxu0
        %3071 = vmatprep.mubr.bf16.mxu0 0
        %3072 = vmatmul.mubr.bf16.gmra.mxu0 %v2843
        %v3073 = vpop.f32.mrf.mxu0
        %v3074 = vadd.f32 %v2885, %v3073
        %v3075 = vpop.f32.mrf.mxu0
        %v3076 = vpop.f32.mrf.mxu0
        %v3077 = vadd.f32 %v2885, %v3076
        %v3078 = vpop.f32.mrf.mxu0
        %3079 = vmatprep.mubr.bf16.mxu0 0
        %3080 = vmatmul.mubr.bf16.gmra.mxu0 %v2844
        %v3081 = vpop.f32.mrf.mxu0
        %v3082 = vadd.f32 %v2885, %v3081
        %v3083 = vpop.f32.mrf.mxu0
        %v3084 = vpop.f32.mrf.mxu0
        %v3085 = vadd.f32 %v2885, %v3084
        %v3086 = vpop.f32.mrf.mxu0
        %3087 = vmatprep.mubr.bf16.mxu0 0
        %3088 = vmatmul.mubr.bf16.gmra.mxu0 %v2845
        %v3089 = vpop.f32.mrf.mxu0
        %v3090 = vadd.f32 %v2885, %v3089
        %v3091 = vpop.f32.mrf.mxu0
        %v3092 = vpop.f32.mrf.mxu0
        %v3093 = vadd.f32 %v2885, %v3092
        %v3094 = vpop.f32.mrf.mxu0
        %3095 = vmatprep.mubr.bf16.mxu0 0
        %3096 = vmatmul.mubr.bf16.gmra.mxu0 %v2846
        %v3097 = vpop.f32.mrf.mxu0
        %v3098 = vadd.f32 %v2885, %v3097
        %v3099 = vpop.f32.mrf.mxu0
        %v3100 = vpop.f32.mrf.mxu0
        %v3101 = vadd.f32 %v2885, %v3100
        %v3102 = vpop.f32.mrf.mxu0
        %3103 = vmatprep.mubr.bf16.mxu0 0
        %3104 = vmatmul.mubr.bf16.gmra.mxu0 %v2847
        %v3105 = vpop.f32.mrf.mxu0
        %v3106 = vadd.f32 %v2885, %v3105
        %v3107 = vpop.f32.mrf.mxu0
        %v3108 = vpop.f32.mrf.mxu0
        %v3109 = vadd.f32 %v2885, %v3108
        %v3110 = vpop.f32.mrf.mxu0
        %3111 = vmatprep.mubr.bf16.mxu0 0
        %3112 = vmatmul.mubr.bf16.gmra.mxu0 %v2848
        %v3113 = vpop.f32.mrf.mxu0
        %v3114 = vadd.f32 %v2885, %v3113
        %v3115 = vpop.f32.mrf.mxu0
        %v3116 = vpop.f32.mrf.mxu0
        %v3117 = vadd.f32 %v2885, %v3116
        %v3118 = vpop.f32.mrf.mxu0
        %3119 = vmatprep.mubr.bf16.mxu0 0
        %3120 = vmatmul.mubr.bf16.gmra.mxu0 %v2849
        %v3121 = vpop.f32.mrf.mxu0
        %v3122 = vadd.f32 %v2885, %v3121
        %v3123 = vpop.f32.mrf.mxu0
        %v3124 = vpop.f32.mrf.mxu0
        %v3125 = vadd.f32 %v2885, %v3124
        %v3126 = vpop.f32.mrf.mxu0
        %3127 = vmatprep.mubr.bf16.mxu0 0
        %3128 = vmatmul.mubr.bf16.gmra.mxu0 %v2850
        %v3129 = vpop.f32.mrf.mxu0
        %v3130 = vadd.f32 %v2885, %v3129
        %v3131 = vpop.f32.mrf.mxu0
        %v3132 = vpop.f32.mrf.mxu0
        %v3133 = vadd.f32 %v2885, %v3132
        %v3134 = vpop.f32.mrf.mxu0
        %3135 = vmatprep.mubr.bf16.mxu0 0
        %3136 = vmatmul.mubr.bf16.gmra.mxu0 %v2851
        %v3137 = vpop.f32.mrf.mxu0
        %v3138 = vadd.f32 %v2885, %v3137
        %v3139 = vpop.f32.mrf.mxu0
        %v3140 = vpop.f32.mrf.mxu0
        %v3141 = vadd.f32 %v2885, %v3140
        %v3142 = vpop.f32.mrf.mxu0
        %3143 = vmatprep.mubr.bf16.mxu0 0
        %3144 = vmatmul.mubr.bf16.gmra.mxu0 %v2852
        %v3145 = vpop.f32.mrf.mxu0
        %v3146 = vadd.f32 %v2885, %v3145
        %v3147 = vpop.f32.mrf.mxu0
        %v3148 = vpop.f32.mrf.mxu0
        %v3149 = vadd.f32 %v2885, %v3148
        %v3150 = vpop.f32.mrf.mxu0
        %3151 = vmatprep.mubr.bf16.mxu0 0
        %3152 = vmatmul.mubr.bf16.gmra.mxu0 %v2853
        %v3153 = vpop.f32.mrf.mxu0
        %v3154 = vadd.f32 %v2885, %v3153
        %v3155 = vpop.f32.mrf.mxu0
        %v3156 = vpop.f32.mrf.mxu0
        %v3157 = vadd.f32 %v2885, %v3156
        %v3158 = vpop.f32.mrf.mxu0
        %3159 = vmatprep.mubr.bf16.mxu0 0
        %3160 = vmatmul.mubr.bf16.gmra.mxu0 %v2854
        %v3161 = vpop.f32.mrf.mxu0
        %v3162 = vadd.f32 %v2885, %v3161
        %v3163 = vpop.f32.mrf.mxu0
        %v3164 = vpop.f32.mrf.mxu0
        %v3165 = vadd.f32 %v2885, %v3164
        %v3166 = vpop.f32.mrf.mxu0
        %3167 = vmatprep.mubr.bf16.mxu0 0
        %3168 = vmatmul.mubr.bf16.gmra.mxu0 %v2855
        %v3169 = vpop.f32.mrf.mxu0
        %v3170 = vadd.f32 %v2885, %v3169
        %v3171 = vpop.f32.mrf.mxu0
        %v3172 = vpop.f32.mrf.mxu0
        %v3173 = vadd.f32 %v2885, %v3172
        %v3174 = vpop.f32.mrf.mxu0
        %3175 = vmatprep.mubr.bf16.mxu0 0
        %3176 = vmatmul.mubr.bf16.gmra.mxu0 %v2856
        %v3177 = vpop.f32.mrf.mxu0
        %v3178 = vadd.f32 %v2885, %v3177
        %v3179 = vpop.f32.mrf.mxu0
        %v3180 = vpop.f32.mrf.mxu0
        %v3181 = vadd.f32 %v2885, %v3180
        %v3182 = vpop.f32.mrf.mxu0
        %3183 = vmatprep.mubr.bf16.mxu0 0
        %3184 = vmatmul.mubr.bf16.gmra.mxu0 %v2857
        %v3185 = vpop.f32.mrf.mxu0
        %v3186 = vadd.f32 %v2885, %v3185
        %v3187 = vpop.f32.mrf.mxu0
        %v3188 = vpop.f32.mrf.mxu0
        %v3189 = vadd.f32 %v2885, %v3188
        %v3190 = vpop.f32.mrf.mxu0
        %3191 = vmatprep.mubr.bf16.mxu0 0
        %3192 = vmatmul.mubr.bf16.gmra.mxu0 %v2858
        %v3193 = vpop.f32.mrf.mxu0
        %v3194 = vadd.f32 %v2885, %v3193
        %v3195 = vpop.f32.mrf.mxu0
        %v3196 = vpop.f32.mrf.mxu0
        %v3197 = vadd.f32 %v2885, %v3196
        %v3198 = vpop.f32.mrf.mxu0
        %3199 = vmatprep.mubr.bf16.mxu0 0
        %3200 = vmatmul.mubr.bf16.gmra.mxu0 %v2859
        %v3201 = vpop.f32.mrf.mxu0
        %v3202 = vadd.f32 %v2885, %v3201
        %v3203 = vpop.f32.mrf.mxu0
        %v3204 = vpop.f32.mrf.mxu0
        %v3205 = vadd.f32 %v2885, %v3204
        %v3206 = vpop.f32.mrf.mxu0
        %3207 = vmatprep.mubr.bf16.mxu0 0
        %3208 = vmatmul.mubr.bf16.gmra.mxu0 %v2860
        %v3209 = vpop.f32.mrf.mxu0
        %v3210 = vadd.f32 %v2885, %v3209
        %v3211 = vpop.f32.mrf.mxu0
        %v3212 = vpop.f32.mrf.mxu0
        %v3213 = vadd.f32 %v2885, %v3212
        %v3214 = vpop.f32.mrf.mxu0
        %3215 = vmatprep.mubr.bf16.mxu0 0
        %3216 = vmatmul.mubr.bf16.gmra.mxu0 %v2861
        %v3217 = vpop.f32.mrf.mxu0
        %v3218 = vadd.f32 %v2885, %v3217
        %v3219 = vpop.f32.mrf.mxu0
        %v3220 = vpop.f32.mrf.mxu0
        %v3221 = vadd.f32 %v2885, %v3220
        %v3222 = vpop.f32.mrf.mxu0
        %3223 = vdwg.mxu0
        %v3224 = vmax.f32 %v2970, 0.0
        %v3225 = vmax.f32 %v2973, 0.0
        %v3226 = vmax.f32 %v2978, 0.0
        %v3227 = vmax.f32 %v2981, 0.0
        %v3228 = vmax.f32 %v2986, 0.0
        %v3229 = vmax.f32 %v2989, 0.0
        %v3230 = vmax.f32 %v2994, 0.0
        %v3231 = vmax.f32 %v2997, 0.0
        %v3232 = vmax.f32 %v3002, 0.0
        %v3233 = vmax.f32 %v3005, 0.0
        %v3234 = vmax.f32 %v3010, 0.0
        %v3235 = vmax.f32 %v3013, 0.0
        %v3236 = vmax.f32 %v3018, 0.0
        %v3237 = vmax.f32 %v3021, 0.0
        %v3238 = vmax.f32 %v3026, 0.0
        %v3239 = vmax.f32 %v3029, 0.0
        %v3240 = vmax.f32 %v3034, 0.0
        %v3241 = vmax.f32 %v3037, 0.0
        %v3242 = vmax.f32 %v3042, 0.0
        %v3243 = vmax.f32 %v3045, 0.0
        %v3244 = vmax.f32 %v3050, 0.0
        %v3245 = vmax.f32 %v3053, 0.0
        %v3246 = vmax.f32 %v3058, 0.0
        %v3247 = vmax.f32 %v3061, 0.0
        %v3248 = vmax.f32 %v3066, 0.0
        %v3249 = vmax.f32 %v3069, 0.0
        %v3250 = vmax.f32 %v3074, 0.0
        %v3251 = vmax.f32 %v3077, 0.0
        %v3252 = vmax.f32 %v3082, 0.0
        %v3253 = vmax.f32 %v3085, 0.0
        %v3254 = vmax.f32 %v3090, 0.0
        %v3255 = vmax.f32 %v3093, 0.0
        %v3256 = vmax.f32 %v3098, 0.0
        %v3257 = vmax.f32 %v3101, 0.0
        %v3258 = vmax.f32 %v3106, 0.0
        %v3259 = vmax.f32 %v3109, 0.0
        %v3260 = vmax.f32 %v3114, 0.0
        %v3261 = vmax.f32 %v3117, 0.0
        %v3262 = vmax.f32 %v3122, 0.0
        %v3263 = vmax.f32 %v3125, 0.0
        %v3264 = vmax.f32 %v3130, 0.0
        %v3265 = vmax.f32 %v3133, 0.0
        %v3266 = vmax.f32 %v3138, 0.0
        %v3267 = vmax.f32 %v3141, 0.0
        %v3268 = vmax.f32 %v3146, 0.0
        %v3269 = vmax.f32 %v3149, 0.0
        %v3270 = vmax.f32 %v3154, 0.0
        %v3271 = vmax.f32 %v3157, 0.0
        %v3272 = vmax.f32 %v3162, 0.0
        %v3273 = vmax.f32 %v3165, 0.0
        %v3274 = vmax.f32 %v3170, 0.0
        %v3275 = vmax.f32 %v3173, 0.0
        %v3276 = vmax.f32 %v3178, 0.0
        %v3277 = vmax.f32 %v3181, 0.0
        %v3278 = vmax.f32 %v3186, 0.0
        %v3279 = vmax.f32 %v3189, 0.0
        %v3280 = vmax.f32 %v3194, 0.0
        %v3281 = vmax.f32 %v3197, 0.0
        %v3282 = vmax.f32 %v3202, 0.0
        %v3283 = vmax.f32 %v3205, 0.0
        %v3284 = vmax.f32 %v3210, 0.0
        %v3285 = vmax.f32 %v3213, 0.0
        %v3286 = vmax.f32 %v3218, 0.0
        %v3287 = vmax.f32 %v3221, 0.0
        %v3288 = vpack.c.bf16 %v3225, %v3224
        %v3289 = vpack.c.bf16 %v3227, %v3226
        %v3290 = vpack.c.bf16 %v3229, %v3228
        %v3291 = vpack.c.bf16 %v3231, %v3230
        %v3292 = vpack.c.bf16 %v3233, %v3232
        %v3293 = vpack.c.bf16 %v3235, %v3234
        %v3294 = vpack.c.bf16 %v3237, %v3236
        %v3295 = vpack.c.bf16 %v3239, %v3238
        %v3296 = vpack.c.bf16 %v3241, %v3240
        %v3297 = vpack.c.bf16 %v3243, %v3242
        %v3298 = vpack.c.bf16 %v3245, %v3244
        %v3299 = vpack.c.bf16 %v3247, %v3246
        %v3300 = vpack.c.bf16 %v3249, %v3248
        %v3301 = vpack.c.bf16 %v3251, %v3250
        %v3302 = vpack.c.bf16 %v3253, %v3252
        %v3303 = vpack.c.bf16 %v3255, %v3254
        %v3304 = vpack.c.bf16 %v3257, %v3256
        %v3305 = vpack.c.bf16 %v3259, %v3258
        %v3306 = vpack.c.bf16 %v3261, %v3260
        %v3307 = vpack.c.bf16 %v3263, %v3262
        %v3308 = vpack.c.bf16 %v3265, %v3264
        %v3309 = vpack.c.bf16 %v3267, %v3266
        %v3310 = vpack.c.bf16 %v3269, %v3268
        %v3311 = vpack.c.bf16 %v3271, %v3270
        %v3312 = vpack.c.bf16 %v3273, %v3272
        %v3313 = vpack.c.bf16 %v3275, %v3274
        %v3314 = vpack.c.bf16 %v3277, %v3276
        %v3315 = vpack.c.bf16 %v3279, %v3278
        %v3316 = vpack.c.bf16 %v3281, %v3280
        %v3317 = vpack.c.bf16 %v3283, %v3282
        %v3318 = vpack.c.bf16 %v3285, %v3284
        %v3319 = vpack.c.bf16 %v3287, %v3286
        %s3320 = scalar_lea.vmem [#allocation3], 320
        %v3321 = vld [vmem:[%s3320] sm:$0xf]
        %v3322 = vld [vmem:[%s3320 + $0x4] sm:$0xf]
        %v3323 = vld [vmem:[%s3320 + $0x8] sm:$0xf]
        %v3324 = vld [vmem:[%s3320 + $0xc] sm:$0xf]
        %v3325 = vld [vmem:[%s3320 + $0x10] sm:$0xf]
        %v3326 = vld [vmem:[%s3320 + $0x14] sm:$0xf]
        %v3327 = vld [vmem:[%s3320 + $0x18] sm:$0xf]
        %v3328 = vld [vmem:[%s3320 + $0x1c] sm:$0xf]
        %v3329 = vld [vmem:[%s3320 + $0x20] sm:$0xf]
        %v3330 = vld [vmem:[%s3320 + $0x24] sm:$0xf]
        %v3331 = vld [vmem:[%s3320 + $0x28] sm:$0xf]
        %v3332 = vld [vmem:[%s3320 + $0x2c] sm:$0xf]
        %v3333 = vld [vmem:[%s3320 + $0x30] sm:$0xf]
        %v3334 = vld [vmem:[%s3320 + $0x34] sm:$0xf]
        %v3335 = vld [vmem:[%s3320 + $0x38] sm:$0xf]
        %v3336 = vld [vmem:[%s3320 + $0x3c] sm:$0xf]
        %s3337 = scalar_lea.vmem %s2, 6
        %v3338 = vld [vmem:[%s3337] sm:$0x1]
        %v3340 = vlaneseq
        %v3341 = vshrl.u32 %v3340, 7
        %v3342 = vsub.s32 0, %v3341
        %v3343 = vrot.slane %v3338, %v3342
        %v3361 = vunpack.c.l.b16 %v3321
        %v3362 = vunpack.c.l.b16 %v3322
        %v3363 = vunpack.c.l.b16 %v3323
        %v3364 = vunpack.c.l.b16 %v3324
        %v3365 = vunpack.c.l.b16 %v3325
        %v3366 = vunpack.c.l.b16 %v3326
        %v3367 = vunpack.c.l.b16 %v3327
        %v3368 = vunpack.c.l.b16 %v3328
        %v3369 = vunpack.c.l.b16 %v3329
        %v3370 = vunpack.c.l.b16 %v3330
        %v3371 = vunpack.c.l.b16 %v3331
        %v3372 = vunpack.c.l.b16 %v3332
        %v3373 = vunpack.c.l.b16 %v3333
        %v3374 = vunpack.c.l.b16 %v3334
        %v3375 = vunpack.c.l.b16 %v3335
        %v3376 = vunpack.c.l.b16 %v3336
        %v3377 = vpack.c.b16 %v3362, %v3361
        %v3378 = vpack.c.b16 %v3364, %v3363
        %v3379 = vpack.c.b16 %v3366, %v3365
        %v3380 = vpack.c.b16 %v3368, %v3367
        %v3381 = vpack.c.b16 %v3370, %v3369
        %v3382 = vpack.c.b16 %v3372, %v3371
        %v3383 = vpack.c.b16 %v3374, %v3373
        %v3384 = vpack.c.b16 %v3376, %v3375
        %3393 = vmatprep.subr.bf16.mxu0 0
        %3394 = vmatpush1.bf16.msra.mxu0 %v3384
        %3395 = vmatprep.subr.bf16.mxu0 0
        %3396 = vmatpush1.bf16.msra.mxu0 %v3383
        %3397 = vmatprep.subr.bf16.mxu0 0
        %3398 = vmatpush1.bf16.msra.mxu0 %v3382
        %3399 = vmatprep.subr.bf16.mxu0 0
        %3400 = vmatpush1.bf16.msra.mxu0 %v3381
        %3401 = vmatprep.subr.bf16.mxu0 0
        %3402 = vmatpush1.bf16.msra.mxu0 %v3380
        %3403 = vmatprep.subr.bf16.mxu0 0
        %3404 = vmatpush1.bf16.msra.mxu0 %v3379
        %3405 = vmatprep.subr.bf16.mxu0 0
        %3406 = vmatpush1.bf16.msra.mxu0 %v3378
        %3407 = vmatprep.subr.bf16.mxu0 0
        %3408 = vmatpush1.bf16.msra.mxu0 %v3377
        %3409 = vmatprep.subr.bf16.mxu0 0
        %3410 = vmatpush2.bf16.msra.mxu0 0
        %3411 = vmatprep.subr.bf16.mxu0 0
        %3412 = vmatpush2.bf16.msra.mxu0 0
        %3413 = vmatprep.subr.bf16.mxu0 0
        %3414 = vmatpush2.bf16.msra.mxu0 0
        %3415 = vmatprep.subr.bf16.mxu0 0
        %3416 = vmatpush2.bf16.msra.mxu0 0
        %3417 = vmatprep.subr.bf16.mxu0 0
        %3418 = vmatpush2.bf16.msra.mxu0 0
        %3419 = vmatprep.subr.bf16.mxu0 0
        %3420 = vmatpush2.bf16.msra.mxu0 0
        %3421 = vmatprep.subr.bf16.mxu0 0
        %3422 = vmatpush2.bf16.msra.mxu0 0
        %3423 = vmatprep.subr.bf16.mxu0 0
        %3424 = vmatpush2.bf16.msra.mxu0 0
        %3425 = vmatprep.mubr.bf16.mxu0 0
        %3426 = vmatmul.mubr.bf16.gmra.mxu0 %v3288
        %v3427 = vpop.f32.mrf.mxu0
        %v3428 = vadd.f32 %v3343, %v3427
        %v3429 = vpop.f32.mrf.mxu0
        %v3430 = vpop.f32.mrf.mxu0
        %v3431 = vadd.f32 %v3343, %v3430
        %v3432 = vpop.f32.mrf.mxu0
        %3433 = vmatprep.mubr.bf16.mxu0 0
        %3434 = vmatmul.mubr.bf16.gmra.mxu0 %v3289
        %v3435 = vpop.f32.mrf.mxu0
        %v3436 = vadd.f32 %v3343, %v3435
        %v3437 = vpop.f32.mrf.mxu0
        %v3438 = vpop.f32.mrf.mxu0
        %v3439 = vadd.f32 %v3343, %v3438
        %v3440 = vpop.f32.mrf.mxu0
        %3441 = vmatprep.mubr.bf16.mxu0 0
        %3442 = vmatmul.mubr.bf16.gmra.mxu0 %v3290
        %v3443 = vpop.f32.mrf.mxu0
        %v3444 = vadd.f32 %v3343, %v3443
        %v3445 = vpop.f32.mrf.mxu0
        %v3446 = vpop.f32.mrf.mxu0
        %v3447 = vadd.f32 %v3343, %v3446
        %v3448 = vpop.f32.mrf.mxu0
        %3449 = vmatprep.mubr.bf16.mxu0 0
        %3450 = vmatmul.mubr.bf16.gmra.mxu0 %v3291
        %v3451 = vpop.f32.mrf.mxu0
        %v3452 = vadd.f32 %v3343, %v3451
        %v3453 = vpop.f32.mrf.mxu0
        %v3454 = vpop.f32.mrf.mxu0
        %v3455 = vadd.f32 %v3343, %v3454
        %v3456 = vpop.f32.mrf.mxu0
        %3457 = vmatprep.mubr.bf16.mxu0 0
        %3458 = vmatmul.mubr.bf16.gmra.mxu0 %v3292
        %v3459 = vpop.f32.mrf.mxu0
        %v3460 = vadd.f32 %v3343, %v3459
        %v3461 = vpop.f32.mrf.mxu0
        %v3462 = vpop.f32.mrf.mxu0
        %v3463 = vadd.f32 %v3343, %v3462
        %v3464 = vpop.f32.mrf.mxu0
        %3465 = vmatprep.mubr.bf16.mxu0 0
        %3466 = vmatmul.mubr.bf16.gmra.mxu0 %v3293
        %v3467 = vpop.f32.mrf.mxu0
        %v3468 = vadd.f32 %v3343, %v3467
        %v3469 = vpop.f32.mrf.mxu0
        %v3470 = vpop.f32.mrf.mxu0
        %v3471 = vadd.f32 %v3343, %v3470
        %v3472 = vpop.f32.mrf.mxu0
        %3473 = vmatprep.mubr.bf16.mxu0 0
        %3474 = vmatmul.mubr.bf16.gmra.mxu0 %v3294
        %v3475 = vpop.f32.mrf.mxu0
        %v3476 = vadd.f32 %v3343, %v3475
        %v3477 = vpop.f32.mrf.mxu0
        %v3478 = vpop.f32.mrf.mxu0
        %v3479 = vadd.f32 %v3343, %v3478
        %v3480 = vpop.f32.mrf.mxu0
        %3481 = vmatprep.mubr.bf16.mxu0 0
        %3482 = vmatmul.mubr.bf16.gmra.mxu0 %v3295
        %v3483 = vpop.f32.mrf.mxu0
        %v3484 = vadd.f32 %v3343, %v3483
        %v3485 = vpop.f32.mrf.mxu0
        %v3486 = vpop.f32.mrf.mxu0
        %v3487 = vadd.f32 %v3343, %v3486
        %v3488 = vpop.f32.mrf.mxu0
        %3489 = vmatprep.mubr.bf16.mxu0 0
        %3490 = vmatmul.mubr.bf16.gmra.mxu0 %v3296
        %v3491 = vpop.f32.mrf.mxu0
        %v3492 = vadd.f32 %v3343, %v3491
        %v3493 = vpop.f32.mrf.mxu0
        %v3494 = vpop.f32.mrf.mxu0
        %v3495 = vadd.f32 %v3343, %v3494
        %v3496 = vpop.f32.mrf.mxu0
        %3497 = vmatprep.mubr.bf16.mxu0 0
        %3498 = vmatmul.mubr.bf16.gmra.mxu0 %v3297
        %v3499 = vpop.f32.mrf.mxu0
        %v3500 = vadd.f32 %v3343, %v3499
        %v3501 = vpop.f32.mrf.mxu0
        %v3502 = vpop.f32.mrf.mxu0
        %v3503 = vadd.f32 %v3343, %v3502
        %v3504 = vpop.f32.mrf.mxu0
        %3505 = vmatprep.mubr.bf16.mxu0 0
        %3506 = vmatmul.mubr.bf16.gmra.mxu0 %v3298
        %v3507 = vpop.f32.mrf.mxu0
        %v3508 = vadd.f32 %v3343, %v3507
        %v3509 = vpop.f32.mrf.mxu0
        %v3510 = vpop.f32.mrf.mxu0
        %v3511 = vadd.f32 %v3343, %v3510
        %v3512 = vpop.f32.mrf.mxu0
        %3513 = vmatprep.mubr.bf16.mxu0 0
        %3514 = vmatmul.mubr.bf16.gmra.mxu0 %v3299
        %v3515 = vpop.f32.mrf.mxu0
        %v3516 = vadd.f32 %v3343, %v3515
        %v3517 = vpop.f32.mrf.mxu0
        %v3518 = vpop.f32.mrf.mxu0
        %v3519 = vadd.f32 %v3343, %v3518
        %v3520 = vpop.f32.mrf.mxu0
        %3521 = vmatprep.mubr.bf16.mxu0 0
        %3522 = vmatmul.mubr.bf16.gmra.mxu0 %v3300
        %v3523 = vpop.f32.mrf.mxu0
        %v3524 = vadd.f32 %v3343, %v3523
        %v3525 = vpop.f32.mrf.mxu0
        %v3526 = vpop.f32.mrf.mxu0
        %v3527 = vadd.f32 %v3343, %v3526
        %v3528 = vpop.f32.mrf.mxu0
        %3529 = vmatprep.mubr.bf16.mxu0 0
        %3530 = vmatmul.mubr.bf16.gmra.mxu0 %v3301
        %v3531 = vpop.f32.mrf.mxu0
        %v3532 = vadd.f32 %v3343, %v3531
        %v3533 = vpop.f32.mrf.mxu0
        %v3534 = vpop.f32.mrf.mxu0
        %v3535 = vadd.f32 %v3343, %v3534
        %v3536 = vpop.f32.mrf.mxu0
        %3537 = vmatprep.mubr.bf16.mxu0 0
        %3538 = vmatmul.mubr.bf16.gmra.mxu0 %v3302
        %v3539 = vpop.f32.mrf.mxu0
        %v3540 = vadd.f32 %v3343, %v3539
        %v3541 = vpop.f32.mrf.mxu0
        %v3542 = vpop.f32.mrf.mxu0
        %v3543 = vadd.f32 %v3343, %v3542
        %v3544 = vpop.f32.mrf.mxu0
        %3545 = vmatprep.mubr.bf16.mxu0 0
        %3546 = vmatmul.mubr.bf16.gmra.mxu0 %v3303
        %v3547 = vpop.f32.mrf.mxu0
        %v3548 = vadd.f32 %v3343, %v3547
        %v3549 = vpop.f32.mrf.mxu0
        %v3550 = vpop.f32.mrf.mxu0
        %v3551 = vadd.f32 %v3343, %v3550
        %v3552 = vpop.f32.mrf.mxu0
        %3553 = vmatprep.mubr.bf16.mxu0 0
        %3554 = vmatmul.mubr.bf16.gmra.mxu0 %v3304
        %v3555 = vpop.f32.mrf.mxu0
        %v3556 = vadd.f32 %v3343, %v3555
        %v3557 = vpop.f32.mrf.mxu0
        %v3558 = vpop.f32.mrf.mxu0
        %v3559 = vadd.f32 %v3343, %v3558
        %v3560 = vpop.f32.mrf.mxu0
        %3561 = vmatprep.mubr.bf16.mxu0 0
        %3562 = vmatmul.mubr.bf16.gmra.mxu0 %v3305
        %v3563 = vpop.f32.mrf.mxu0
        %v3564 = vadd.f32 %v3343, %v3563
        %v3565 = vpop.f32.mrf.mxu0
        %v3566 = vpop.f32.mrf.mxu0
        %v3567 = vadd.f32 %v3343, %v3566
        %v3568 = vpop.f32.mrf.mxu0
        %3569 = vmatprep.mubr.bf16.mxu0 0
        %3570 = vmatmul.mubr.bf16.gmra.mxu0 %v3306
        %v3571 = vpop.f32.mrf.mxu0
        %v3572 = vadd.f32 %v3343, %v3571
        %v3573 = vpop.f32.mrf.mxu0
        %v3574 = vpop.f32.mrf.mxu0
        %v3575 = vadd.f32 %v3343, %v3574
        %v3576 = vpop.f32.mrf.mxu0
        %3577 = vmatprep.mubr.bf16.mxu0 0
        %3578 = vmatmul.mubr.bf16.gmra.mxu0 %v3307
        %v3579 = vpop.f32.mrf.mxu0
        %v3580 = vadd.f32 %v3343, %v3579
        %v3581 = vpop.f32.mrf.mxu0
        %v3582 = vpop.f32.mrf.mxu0
        %v3583 = vadd.f32 %v3343, %v3582
        %v3584 = vpop.f32.mrf.mxu0
        %3585 = vmatprep.mubr.bf16.mxu0 0
        %3586 = vmatmul.mubr.bf16.gmra.mxu0 %v3308
        %v3587 = vpop.f32.mrf.mxu0
        %v3588 = vadd.f32 %v3343, %v3587
        %v3589 = vpop.f32.mrf.mxu0
        %v3590 = vpop.f32.mrf.mxu0
        %v3591 = vadd.f32 %v3343, %v3590
        %v3592 = vpop.f32.mrf.mxu0
        %3593 = vmatprep.mubr.bf16.mxu0 0
        %3594 = vmatmul.mubr.bf16.gmra.mxu0 %v3309
        %v3595 = vpop.f32.mrf.mxu0
        %v3596 = vadd.f32 %v3343, %v3595
        %v3597 = vpop.f32.mrf.mxu0
        %v3598 = vpop.f32.mrf.mxu0
        %v3599 = vadd.f32 %v3343, %v3598
        %v3600 = vpop.f32.mrf.mxu0
        %3601 = vmatprep.mubr.bf16.mxu0 0
        %3602 = vmatmul.mubr.bf16.gmra.mxu0 %v3310
        %v3603 = vpop.f32.mrf.mxu0
        %v3604 = vadd.f32 %v3343, %v3603
        %v3605 = vpop.f32.mrf.mxu0
        %v3606 = vpop.f32.mrf.mxu0
        %v3607 = vadd.f32 %v3343, %v3606
        %v3608 = vpop.f32.mrf.mxu0
        %3609 = vmatprep.mubr.bf16.mxu0 0
        %3610 = vmatmul.mubr.bf16.gmra.mxu0 %v3311
        %v3611 = vpop.f32.mrf.mxu0
        %v3612 = vadd.f32 %v3343, %v3611
        %v3613 = vpop.f32.mrf.mxu0
        %v3614 = vpop.f32.mrf.mxu0
        %v3615 = vadd.f32 %v3343, %v3614
        %v3616 = vpop.f32.mrf.mxu0
        %3617 = vmatprep.mubr.bf16.mxu0 0
        %3618 = vmatmul.mubr.bf16.gmra.mxu0 %v3312
        %v3619 = vpop.f32.mrf.mxu0
        %v3620 = vadd.f32 %v3343, %v3619
        %v3621 = vpop.f32.mrf.mxu0
        %v3622 = vpop.f32.mrf.mxu0
        %v3623 = vadd.f32 %v3343, %v3622
        %v3624 = vpop.f32.mrf.mxu0
        %3625 = vmatprep.mubr.bf16.mxu0 0
        %3626 = vmatmul.mubr.bf16.gmra.mxu0 %v3313
        %v3627 = vpop.f32.mrf.mxu0
        %v3628 = vadd.f32 %v3343, %v3627
        %v3629 = vpop.f32.mrf.mxu0
        %v3630 = vpop.f32.mrf.mxu0
        %v3631 = vadd.f32 %v3343, %v3630
        %v3632 = vpop.f32.mrf.mxu0
        %3633 = vmatprep.mubr.bf16.mxu0 0
        %3634 = vmatmul.mubr.bf16.gmra.mxu0 %v3314
        %v3635 = vpop.f32.mrf.mxu0
        %v3636 = vadd.f32 %v3343, %v3635
        %v3637 = vpop.f32.mrf.mxu0
        %v3638 = vpop.f32.mrf.mxu0
        %v3639 = vadd.f32 %v3343, %v3638
        %v3640 = vpop.f32.mrf.mxu0
        %3641 = vmatprep.mubr.bf16.mxu0 0
        %3642 = vmatmul.mubr.bf16.gmra.mxu0 %v3315
        %v3643 = vpop.f32.mrf.mxu0
        %v3644 = vadd.f32 %v3343, %v3643
        %v3645 = vpop.f32.mrf.mxu0
        %v3646 = vpop.f32.mrf.mxu0
        %v3647 = vadd.f32 %v3343, %v3646
        %v3648 = vpop.f32.mrf.mxu0
        %3649 = vmatprep.mubr.bf16.mxu0 0
        %3650 = vmatmul.mubr.bf16.gmra.mxu0 %v3316
        %v3651 = vpop.f32.mrf.mxu0
        %v3652 = vadd.f32 %v3343, %v3651
        %v3653 = vpop.f32.mrf.mxu0
        %v3654 = vpop.f32.mrf.mxu0
        %v3655 = vadd.f32 %v3343, %v3654
        %v3656 = vpop.f32.mrf.mxu0
        %3657 = vmatprep.mubr.bf16.mxu0 0
        %3658 = vmatmul.mubr.bf16.gmra.mxu0 %v3317
        %v3659 = vpop.f32.mrf.mxu0
        %v3660 = vadd.f32 %v3343, %v3659
        %v3661 = vpop.f32.mrf.mxu0
        %v3662 = vpop.f32.mrf.mxu0
        %v3663 = vadd.f32 %v3343, %v3662
        %v3664 = vpop.f32.mrf.mxu0
        %3665 = vmatprep.mubr.bf16.mxu0 0
        %3666 = vmatmul.mubr.bf16.gmra.mxu0 %v3318
        %v3667 = vpop.f32.mrf.mxu0
        %v3668 = vadd.f32 %v3343, %v3667
        %v3669 = vpop.f32.mrf.mxu0
        %v3670 = vpop.f32.mrf.mxu0
        %v3671 = vadd.f32 %v3343, %v3670
        %v3672 = vpop.f32.mrf.mxu0
        %3673 = vmatprep.mubr.bf16.mxu0 0
        %3674 = vmatmul.mubr.bf16.gmra.mxu0 %v3319
        %v3675 = vpop.f32.mrf.mxu0
        %v3676 = vadd.f32 %v3343, %v3675
        %v3677 = vpop.f32.mrf.mxu0
        %v3678 = vpop.f32.mrf.mxu0
        %v3679 = vadd.f32 %v3343, %v3678
        %v3680 = vpop.f32.mrf.mxu0
        %3681 = vdwg.mxu0
        %v3682 = vmax.f32 %v3428, 0.0
        %v3683 = vmax.f32 %v3431, 0.0
        %v3684 = vmax.f32 %v3436, 0.0
        %v3685 = vmax.f32 %v3439, 0.0
        %v3686 = vmax.f32 %v3444, 0.0
        %v3687 = vmax.f32 %v3447, 0.0
        %v3688 = vmax.f32 %v3452, 0.0
        %v3689 = vmax.f32 %v3455, 0.0
        %v3690 = vmax.f32 %v3460, 0.0
        %v3691 = vmax.f32 %v3463, 0.0
        %v3692 = vmax.f32 %v3468, 0.0
        %v3693 = vmax.f32 %v3471, 0.0
        %v3694 = vmax.f32 %v3476, 0.0
        %v3695 = vmax.f32 %v3479, 0.0
        %v3696 = vmax.f32 %v3484, 0.0
        %v3697 = vmax.f32 %v3487, 0.0
        %v3698 = vmax.f32 %v3492, 0.0
        %v3699 = vmax.f32 %v3495, 0.0
        %v3700 = vmax.f32 %v3500, 0.0
        %v3701 = vmax.f32 %v3503, 0.0
        %v3702 = vmax.f32 %v3508, 0.0
        %v3703 = vmax.f32 %v3511, 0.0
        %v3704 = vmax.f32 %v3516, 0.0
        %v3705 = vmax.f32 %v3519, 0.0
        %v3706 = vmax.f32 %v3524, 0.0
        %v3707 = vmax.f32 %v3527, 0.0
        %v3708 = vmax.f32 %v3532, 0.0
        %v3709 = vmax.f32 %v3535, 0.0
        %v3710 = vmax.f32 %v3540, 0.0
        %v3711 = vmax.f32 %v3543, 0.0
        %v3712 = vmax.f32 %v3548, 0.0
        %v3713 = vmax.f32 %v3551, 0.0
        %v3714 = vmax.f32 %v3556, 0.0
        %v3715 = vmax.f32 %v3559, 0.0
        %v3716 = vmax.f32 %v3564, 0.0
        %v3717 = vmax.f32 %v3567, 0.0
        %v3718 = vmax.f32 %v3572, 0.0
        %v3719 = vmax.f32 %v3575, 0.0
        %v3720 = vmax.f32 %v3580, 0.0
        %v3721 = vmax.f32 %v3583, 0.0
        %v3722 = vmax.f32 %v3588, 0.0
        %v3723 = vmax.f32 %v3591, 0.0
        %v3724 = vmax.f32 %v3596, 0.0
        %v3725 = vmax.f32 %v3599, 0.0
        %v3726 = vmax.f32 %v3604, 0.0
        %v3727 = vmax.f32 %v3607, 0.0
        %v3728 = vmax.f32 %v3612, 0.0
        %v3729 = vmax.f32 %v3615, 0.0
        %v3730 = vmax.f32 %v3620, 0.0
        %v3731 = vmax.f32 %v3623, 0.0
        %v3732 = vmax.f32 %v3628, 0.0
        %v3733 = vmax.f32 %v3631, 0.0
        %v3734 = vmax.f32 %v3636, 0.0
        %v3735 = vmax.f32 %v3639, 0.0
        %v3736 = vmax.f32 %v3644, 0.0
        %v3737 = vmax.f32 %v3647, 0.0
        %v3738 = vmax.f32 %v3652, 0.0
        %v3739 = vmax.f32 %v3655, 0.0
        %v3740 = vmax.f32 %v3660, 0.0
        %v3741 = vmax.f32 %v3663, 0.0
        %v3742 = vmax.f32 %v3668, 0.0
        %v3743 = vmax.f32 %v3671, 0.0
        %v3744 = vmax.f32 %v3676, 0.0
        %v3745 = vmax.f32 %v3679, 0.0
        %v3746 = vpack.c.bf16 %v3683, %v3682
        %v3747 = vpack.c.bf16 %v3685, %v3684
        %v3748 = vpack.c.bf16 %v3687, %v3686
        %v3749 = vpack.c.bf16 %v3689, %v3688
        %v3750 = vpack.c.bf16 %v3691, %v3690
        %v3751 = vpack.c.bf16 %v3693, %v3692
        %v3752 = vpack.c.bf16 %v3695, %v3694
        %v3753 = vpack.c.bf16 %v3697, %v3696
        %v3754 = vpack.c.bf16 %v3699, %v3698
        %v3755 = vpack.c.bf16 %v3701, %v3700
        %v3756 = vpack.c.bf16 %v3703, %v3702
        %v3757 = vpack.c.bf16 %v3705, %v3704
        %v3758 = vpack.c.bf16 %v3707, %v3706
        %v3759 = vpack.c.bf16 %v3709, %v3708
        %v3760 = vpack.c.bf16 %v3711, %v3710
        %v3761 = vpack.c.bf16 %v3713, %v3712
        %v3762 = vpack.c.bf16 %v3715, %v3714
        %v3763 = vpack.c.bf16 %v3717, %v3716
        %v3764 = vpack.c.bf16 %v3719, %v3718
        %v3765 = vpack.c.bf16 %v3721, %v3720
        %v3766 = vpack.c.bf16 %v3723, %v3722
        %v3767 = vpack.c.bf16 %v3725, %v3724
        %v3768 = vpack.c.bf16 %v3727, %v3726
        %v3769 = vpack.c.bf16 %v3729, %v3728
        %v3770 = vpack.c.bf16 %v3731, %v3730
        %v3771 = vpack.c.bf16 %v3733, %v3732
        %v3772 = vpack.c.bf16 %v3735, %v3734
        %v3773 = vpack.c.bf16 %v3737, %v3736
        %v3774 = vpack.c.bf16 %v3739, %v3738
        %v3775 = vpack.c.bf16 %v3741, %v3740
        %v3776 = vpack.c.bf16 %v3743, %v3742
        %v3777 = vpack.c.bf16 %v3745, %v3744
        %s3778 = scalar_lea.vmem [#allocation3], 384
        %v3779 = vld [vmem:[%s3778] sm:$0xf]
        %v3780 = vld [vmem:[%s3778 + $0x4] sm:$0xf]
        %v3781 = vld [vmem:[%s3778 + $0x8] sm:$0xf]
        %v3782 = vld [vmem:[%s3778 + $0xc] sm:$0xf]
        %v3783 = vld [vmem:[%s3778 + $0x10] sm:$0xf]
        %v3784 = vld [vmem:[%s3778 + $0x14] sm:$0xf]
        %v3785 = vld [vmem:[%s3778 + $0x18] sm:$0xf]
        %v3786 = vld [vmem:[%s3778 + $0x1c] sm:$0xf]
        %v3787 = vld [vmem:[%s3778 + $0x20] sm:$0xf]
        %v3788 = vld [vmem:[%s3778 + $0x24] sm:$0xf]
        %v3789 = vld [vmem:[%s3778 + $0x28] sm:$0xf]
        %v3790 = vld [vmem:[%s3778 + $0x2c] sm:$0xf]
        %v3791 = vld [vmem:[%s3778 + $0x30] sm:$0xf]
        %v3792 = vld [vmem:[%s3778 + $0x34] sm:$0xf]
        %v3793 = vld [vmem:[%s3778 + $0x38] sm:$0xf]
        %v3794 = vld [vmem:[%s3778 + $0x3c] sm:$0xf]
        %s3795 = scalar_lea.vmem %s2, 7
        %v3796 = vld [vmem:[%s3795] sm:$0x1]
        %v3798 = vlaneseq
        %v3799 = vshrl.u32 %v3798, 7
        %v3800 = vsub.s32 0, %v3799
        %v3801 = vrot.slane %v3796, %v3800
        %v3819 = vunpack.c.l.b16 %v3779
        %v3820 = vunpack.c.l.b16 %v3780
        %v3821 = vunpack.c.l.b16 %v3781
        %v3822 = vunpack.c.l.b16 %v3782
        %v3823 = vunpack.c.l.b16 %v3783
        %v3824 = vunpack.c.l.b16 %v3784
        %v3825 = vunpack.c.l.b16 %v3785
        %v3826 = vunpack.c.l.b16 %v3786
        %v3827 = vunpack.c.l.b16 %v3787
        %v3828 = vunpack.c.l.b16 %v3788
        %v3829 = vunpack.c.l.b16 %v3789
        %v3830 = vunpack.c.l.b16 %v3790
        %v3831 = vunpack.c.l.b16 %v3791
        %v3832 = vunpack.c.l.b16 %v3792
        %v3833 = vunpack.c.l.b16 %v3793
        %v3834 = vunpack.c.l.b16 %v3794
        %v3835 = vpack.c.b16 %v3820, %v3819
        %v3836 = vpack.c.b16 %v3822, %v3821
        %v3837 = vpack.c.b16 %v3824, %v3823
        %v3838 = vpack.c.b16 %v3826, %v3825
        %v3839 = vpack.c.b16 %v3828, %v3827
        %v3840 = vpack.c.b16 %v3830, %v3829
        %v3841 = vpack.c.b16 %v3832, %v3831
        %v3842 = vpack.c.b16 %v3834, %v3833
        %3851 = vmatprep.subr.bf16.mxu0 0
        %3852 = vmatpush1.bf16.msra.mxu0 %v3842
        %3853 = vmatprep.subr.bf16.mxu0 0
        %3854 = vmatpush1.bf16.msra.mxu0 %v3841
        %3855 = vmatprep.subr.bf16.mxu0 0
        %3856 = vmatpush1.bf16.msra.mxu0 %v3840
        %3857 = vmatprep.subr.bf16.mxu0 0
        %3858 = vmatpush1.bf16.msra.mxu0 %v3839
        %3859 = vmatprep.subr.bf16.mxu0 0
        %3860 = vmatpush1.bf16.msra.mxu0 %v3838
        %3861 = vmatprep.subr.bf16.mxu0 0
        %3862 = vmatpush1.bf16.msra.mxu0 %v3837
        %3863 = vmatprep.subr.bf16.mxu0 0
        %3864 = vmatpush1.bf16.msra.mxu0 %v3836
        %3865 = vmatprep.subr.bf16.mxu0 0
        %3866 = vmatpush1.bf16.msra.mxu0 %v3835
        %3867 = vmatprep.subr.bf16.mxu0 0
        %3868 = vmatpush2.bf16.msra.mxu0 0
        %3869 = vmatprep.subr.bf16.mxu0 0
        %3870 = vmatpush2.bf16.msra.mxu0 0
        %3871 = vmatprep.subr.bf16.mxu0 0
        %3872 = vmatpush2.bf16.msra.mxu0 0
        %3873 = vmatprep.subr.bf16.mxu0 0
        %3874 = vmatpush2.bf16.msra.mxu0 0
        %3875 = vmatprep.subr.bf16.mxu0 0
        %3876 = vmatpush2.bf16.msra.mxu0 0
        %3877 = vmatprep.subr.bf16.mxu0 0
        %3878 = vmatpush2.bf16.msra.mxu0 0
        %3879 = vmatprep.subr.bf16.mxu0 0
        %3880 = vmatpush2.bf16.msra.mxu0 0
        %3881 = vmatprep.subr.bf16.mxu0 0
        %3882 = vmatpush2.bf16.msra.mxu0 0
        %3883 = vmatprep.mubr.bf16.mxu0 0
        %3884 = vmatmul.mubr.bf16.gmra.mxu0 %v3746
        %v3885 = vpop.f32.mrf.mxu0
        %v3886 = vadd.f32 %v3801, %v3885
        %v3887 = vpop.f32.mrf.mxu0
        %v3888 = vpop.f32.mrf.mxu0
        %v3889 = vadd.f32 %v3801, %v3888
        %v3890 = vpop.f32.mrf.mxu0
        %3891 = vmatprep.mubr.bf16.mxu0 0
        %3892 = vmatmul.mubr.bf16.gmra.mxu0 %v3747
        %v3893 = vpop.f32.mrf.mxu0
        %v3894 = vadd.f32 %v3801, %v3893
        %v3895 = vpop.f32.mrf.mxu0
        %v3896 = vpop.f32.mrf.mxu0
        %v3897 = vadd.f32 %v3801, %v3896
        %v3898 = vpop.f32.mrf.mxu0
        %3899 = vmatprep.mubr.bf16.mxu0 0
        %3900 = vmatmul.mubr.bf16.gmra.mxu0 %v3748
        %v3901 = vpop.f32.mrf.mxu0
        %v3902 = vadd.f32 %v3801, %v3901
        %v3903 = vpop.f32.mrf.mxu0
        %v3904 = vpop.f32.mrf.mxu0
        %v3905 = vadd.f32 %v3801, %v3904
        %v3906 = vpop.f32.mrf.mxu0
        %3907 = vmatprep.mubr.bf16.mxu0 0
        %3908 = vmatmul.mubr.bf16.gmra.mxu0 %v3749
        %v3909 = vpop.f32.mrf.mxu0
        %v3910 = vadd.f32 %v3801, %v3909
        %v3911 = vpop.f32.mrf.mxu0
        %v3912 = vpop.f32.mrf.mxu0
        %v3913 = vadd.f32 %v3801, %v3912
        %v3914 = vpop.f32.mrf.mxu0
        %3915 = vmatprep.mubr.bf16.mxu0 0
        %3916 = vmatmul.mubr.bf16.gmra.mxu0 %v3750
        %v3917 = vpop.f32.mrf.mxu0
        %v3918 = vadd.f32 %v3801, %v3917
        %v3919 = vpop.f32.mrf.mxu0
        %v3920 = vpop.f32.mrf.mxu0
        %v3921 = vadd.f32 %v3801, %v3920
        %v3922 = vpop.f32.mrf.mxu0
        %3923 = vmatprep.mubr.bf16.mxu0 0
        %3924 = vmatmul.mubr.bf16.gmra.mxu0 %v3751
        %v3925 = vpop.f32.mrf.mxu0
        %v3926 = vadd.f32 %v3801, %v3925
        %v3927 = vpop.f32.mrf.mxu0
        %v3928 = vpop.f32.mrf.mxu0
        %v3929 = vadd.f32 %v3801, %v3928
        %v3930 = vpop.f32.mrf.mxu0
        %3931 = vmatprep.mubr.bf16.mxu0 0
        %3932 = vmatmul.mubr.bf16.gmra.mxu0 %v3752
        %v3933 = vpop.f32.mrf.mxu0
        %v3934 = vadd.f32 %v3801, %v3933
        %v3935 = vpop.f32.mrf.mxu0
        %v3936 = vpop.f32.mrf.mxu0
        %v3937 = vadd.f32 %v3801, %v3936
        %v3938 = vpop.f32.mrf.mxu0
        %3939 = vmatprep.mubr.bf16.mxu0 0
        %3940 = vmatmul.mubr.bf16.gmra.mxu0 %v3753
        %v3941 = vpop.f32.mrf.mxu0
        %v3942 = vadd.f32 %v3801, %v3941
        %v3943 = vpop.f32.mrf.mxu0
        %v3944 = vpop.f32.mrf.mxu0
        %v3945 = vadd.f32 %v3801, %v3944
        %v3946 = vpop.f32.mrf.mxu0
        %3947 = vmatprep.mubr.bf16.mxu0 0
        %3948 = vmatmul.mubr.bf16.gmra.mxu0 %v3754
        %v3949 = vpop.f32.mrf.mxu0
        %v3950 = vadd.f32 %v3801, %v3949
        %v3951 = vpop.f32.mrf.mxu0
        %v3952 = vpop.f32.mrf.mxu0
        %v3953 = vadd.f32 %v3801, %v3952
        %v3954 = vpop.f32.mrf.mxu0
        %3955 = vmatprep.mubr.bf16.mxu0 0
        %3956 = vmatmul.mubr.bf16.gmra.mxu0 %v3755
        %v3957 = vpop.f32.mrf.mxu0
        %v3958 = vadd.f32 %v3801, %v3957
        %v3959 = vpop.f32.mrf.mxu0
        %v3960 = vpop.f32.mrf.mxu0
        %v3961 = vadd.f32 %v3801, %v3960
        %v3962 = vpop.f32.mrf.mxu0
        %3963 = vmatprep.mubr.bf16.mxu0 0
        %3964 = vmatmul.mubr.bf16.gmra.mxu0 %v3756
        %v3965 = vpop.f32.mrf.mxu0
        %v3966 = vadd.f32 %v3801, %v3965
        %v3967 = vpop.f32.mrf.mxu0
        %v3968 = vpop.f32.mrf.mxu0
        %v3969 = vadd.f32 %v3801, %v3968
        %v3970 = vpop.f32.mrf.mxu0
        %3971 = vmatprep.mubr.bf16.mxu0 0
        %3972 = vmatmul.mubr.bf16.gmra.mxu0 %v3757
        %v3973 = vpop.f32.mrf.mxu0
        %v3974 = vadd.f32 %v3801, %v3973
        %v3975 = vpop.f32.mrf.mxu0
        %v3976 = vpop.f32.mrf.mxu0
        %v3977 = vadd.f32 %v3801, %v3976
        %v3978 = vpop.f32.mrf.mxu0
        %3979 = vmatprep.mubr.bf16.mxu0 0
        %3980 = vmatmul.mubr.bf16.gmra.mxu0 %v3758
        %v3981 = vpop.f32.mrf.mxu0
        %v3982 = vadd.f32 %v3801, %v3981
        %v3983 = vpop.f32.mrf.mxu0
        %v3984 = vpop.f32.mrf.mxu0
        %v3985 = vadd.f32 %v3801, %v3984
        %v3986 = vpop.f32.mrf.mxu0
        %3987 = vmatprep.mubr.bf16.mxu0 0
        %3988 = vmatmul.mubr.bf16.gmra.mxu0 %v3759
        %v3989 = vpop.f32.mrf.mxu0
        %v3990 = vadd.f32 %v3801, %v3989
        %v3991 = vpop.f32.mrf.mxu0
        %v3992 = vpop.f32.mrf.mxu0
        %v3993 = vadd.f32 %v3801, %v3992
        %v3994 = vpop.f32.mrf.mxu0
        %3995 = vmatprep.mubr.bf16.mxu0 0
        %3996 = vmatmul.mubr.bf16.gmra.mxu0 %v3760
        %v3997 = vpop.f32.mrf.mxu0
        %v3998 = vadd.f32 %v3801, %v3997
        %v3999 = vpop.f32.mrf.mxu0
        %v4000 = vpop.f32.mrf.mxu0
        %v4001 = vadd.f32 %v3801, %v4000
        %v4002 = vpop.f32.mrf.mxu0
        %4003 = vmatprep.mubr.bf16.mxu0 0
        %4004 = vmatmul.mubr.bf16.gmra.mxu0 %v3761
        %v4005 = vpop.f32.mrf.mxu0
        %v4006 = vadd.f32 %v3801, %v4005
        %v4007 = vpop.f32.mrf.mxu0
        %v4008 = vpop.f32.mrf.mxu0
        %v4009 = vadd.f32 %v3801, %v4008
        %v4010 = vpop.f32.mrf.mxu0
        %4011 = vmatprep.mubr.bf16.mxu0 0
        %4012 = vmatmul.mubr.bf16.gmra.mxu0 %v3762
        %v4013 = vpop.f32.mrf.mxu0
        %v4014 = vadd.f32 %v3801, %v4013
        %v4015 = vpop.f32.mrf.mxu0
        %v4016 = vpop.f32.mrf.mxu0
        %v4017 = vadd.f32 %v3801, %v4016
        %v4018 = vpop.f32.mrf.mxu0
        %4019 = vmatprep.mubr.bf16.mxu0 0
        %4020 = vmatmul.mubr.bf16.gmra.mxu0 %v3763
        %v4021 = vpop.f32.mrf.mxu0
        %v4022 = vadd.f32 %v3801, %v4021
        %v4023 = vpop.f32.mrf.mxu0
        %v4024 = vpop.f32.mrf.mxu0
        %v4025 = vadd.f32 %v3801, %v4024
        %v4026 = vpop.f32.mrf.mxu0
        %4027 = vmatprep.mubr.bf16.mxu0 0
        %4028 = vmatmul.mubr.bf16.gmra.mxu0 %v3764
        %v4029 = vpop.f32.mrf.mxu0
        %v4030 = vadd.f32 %v3801, %v4029
        %v4031 = vpop.f32.mrf.mxu0
        %v4032 = vpop.f32.mrf.mxu0
        %v4033 = vadd.f32 %v3801, %v4032
        %v4034 = vpop.f32.mrf.mxu0
        %4035 = vmatprep.mubr.bf16.mxu0 0
        %4036 = vmatmul.mubr.bf16.gmra.mxu0 %v3765
        %v4037 = vpop.f32.mrf.mxu0
        %v4038 = vadd.f32 %v3801, %v4037
        %v4039 = vpop.f32.mrf.mxu0
        %v4040 = vpop.f32.mrf.mxu0
        %v4041 = vadd.f32 %v3801, %v4040
        %v4042 = vpop.f32.mrf.mxu0
        %4043 = vmatprep.mubr.bf16.mxu0 0
        %4044 = vmatmul.mubr.bf16.gmra.mxu0 %v3766
        %v4045 = vpop.f32.mrf.mxu0
        %v4046 = vadd.f32 %v3801, %v4045
        %v4047 = vpop.f32.mrf.mxu0
        %v4048 = vpop.f32.mrf.mxu0
        %v4049 = vadd.f32 %v3801, %v4048
        %v4050 = vpop.f32.mrf.mxu0
        %4051 = vmatprep.mubr.bf16.mxu0 0
        %4052 = vmatmul.mubr.bf16.gmra.mxu0 %v3767
        %v4053 = vpop.f32.mrf.mxu0
        %v4054 = vadd.f32 %v3801, %v4053
        %v4055 = vpop.f32.mrf.mxu0
        %v4056 = vpop.f32.mrf.mxu0
        %v4057 = vadd.f32 %v3801, %v4056
        %v4058 = vpop.f32.mrf.mxu0
        %4059 = vmatprep.mubr.bf16.mxu0 0
        %4060 = vmatmul.mubr.bf16.gmra.mxu0 %v3768
        %v4061 = vpop.f32.mrf.mxu0
        %v4062 = vadd.f32 %v3801, %v4061
        %v4063 = vpop.f32.mrf.mxu0
        %v4064 = vpop.f32.mrf.mxu0
        %v4065 = vadd.f32 %v3801, %v4064
        %v4066 = vpop.f32.mrf.mxu0
        %4067 = vmatprep.mubr.bf16.mxu0 0
        %4068 = vmatmul.mubr.bf16.gmra.mxu0 %v3769
        %v4069 = vpop.f32.mrf.mxu0
        %v4070 = vadd.f32 %v3801, %v4069
        %v4071 = vpop.f32.mrf.mxu0
        %v4072 = vpop.f32.mrf.mxu0
        %v4073 = vadd.f32 %v3801, %v4072
        %v4074 = vpop.f32.mrf.mxu0
        %4075 = vmatprep.mubr.bf16.mxu0 0
        %4076 = vmatmul.mubr.bf16.gmra.mxu0 %v3770
        %v4077 = vpop.f32.mrf.mxu0
        %v4078 = vadd.f32 %v3801, %v4077
        %v4079 = vpop.f32.mrf.mxu0
        %v4080 = vpop.f32.mrf.mxu0
        %v4081 = vadd.f32 %v3801, %v4080
        %v4082 = vpop.f32.mrf.mxu0
        %4083 = vmatprep.mubr.bf16.mxu0 0
        %4084 = vmatmul.mubr.bf16.gmra.mxu0 %v3771
        %v4085 = vpop.f32.mrf.mxu0
        %v4086 = vadd.f32 %v3801, %v4085
        %v4087 = vpop.f32.mrf.mxu0
        %v4088 = vpop.f32.mrf.mxu0
        %v4089 = vadd.f32 %v3801, %v4088
        %v4090 = vpop.f32.mrf.mxu0
        %4091 = vmatprep.mubr.bf16.mxu0 0
        %4092 = vmatmul.mubr.bf16.gmra.mxu0 %v3772
        %v4093 = vpop.f32.mrf.mxu0
        %v4094 = vadd.f32 %v3801, %v4093
        %v4095 = vpop.f32.mrf.mxu0
        %v4096 = vpop.f32.mrf.mxu0
        %v4097 = vadd.f32 %v3801, %v4096
        %v4098 = vpop.f32.mrf.mxu0
        %4099 = vmatprep.mubr.bf16.mxu0 0
        %4100 = vmatmul.mubr.bf16.gmra.mxu0 %v3773
        %v4101 = vpop.f32.mrf.mxu0
        %v4102 = vadd.f32 %v3801, %v4101
        %v4103 = vpop.f32.mrf.mxu0
        %v4104 = vpop.f32.mrf.mxu0
        %v4105 = vadd.f32 %v3801, %v4104
        %v4106 = vpop.f32.mrf.mxu0
        %4107 = vmatprep.mubr.bf16.mxu0 0
        %4108 = vmatmul.mubr.bf16.gmra.mxu0 %v3774
        %v4109 = vpop.f32.mrf.mxu0
        %v4110 = vadd.f32 %v3801, %v4109
        %v4111 = vpop.f32.mrf.mxu0
        %v4112 = vpop.f32.mrf.mxu0
        %v4113 = vadd.f32 %v3801, %v4112
        %v4114 = vpop.f32.mrf.mxu0
        %4115 = vmatprep.mubr.bf16.mxu0 0
        %4116 = vmatmul.mubr.bf16.gmra.mxu0 %v3775
        %v4117 = vpop.f32.mrf.mxu0
        %v4118 = vadd.f32 %v3801, %v4117
        %v4119 = vpop.f32.mrf.mxu0
        %v4120 = vpop.f32.mrf.mxu0
        %v4121 = vadd.f32 %v3801, %v4120
        %v4122 = vpop.f32.mrf.mxu0
        %4123 = vmatprep.mubr.bf16.mxu0 0
        %4124 = vmatmul.mubr.bf16.gmra.mxu0 %v3776
        %v4125 = vpop.f32.mrf.mxu0
        %v4126 = vadd.f32 %v3801, %v4125
        %v4127 = vpop.f32.mrf.mxu0
        %v4128 = vpop.f32.mrf.mxu0
        %v4129 = vadd.f32 %v3801, %v4128
        %v4130 = vpop.f32.mrf.mxu0
        %4131 = vmatprep.mubr.bf16.mxu0 0
        %4132 = vmatmul.mubr.bf16.gmra.mxu0 %v3777
        %v4133 = vpop.f32.mrf.mxu0
        %v4134 = vadd.f32 %v3801, %v4133
        %v4135 = vpop.f32.mrf.mxu0
        %v4136 = vpop.f32.mrf.mxu0
        %v4137 = vadd.f32 %v3801, %v4136
        %v4138 = vpop.f32.mrf.mxu0
        %4139 = vdwg.mxu0
        %v4140 = vmax.f32 %v3886, 0.0
        %v4141 = vmax.f32 %v3889, 0.0
        %v4142 = vmax.f32 %v3894, 0.0
        %v4143 = vmax.f32 %v3897, 0.0
        %v4144 = vmax.f32 %v3902, 0.0
        %v4145 = vmax.f32 %v3905, 0.0
        %v4146 = vmax.f32 %v3910, 0.0
        %v4147 = vmax.f32 %v3913, 0.0
        %v4148 = vmax.f32 %v3918, 0.0
        %v4149 = vmax.f32 %v3921, 0.0
        %v4150 = vmax.f32 %v3926, 0.0
        %v4151 = vmax.f32 %v3929, 0.0
        %v4152 = vmax.f32 %v3934, 0.0
        %v4153 = vmax.f32 %v3937, 0.0
        %v4154 = vmax.f32 %v3942, 0.0
        %v4155 = vmax.f32 %v3945, 0.0
        %v4156 = vmax.f32 %v3950, 0.0
        %v4157 = vmax.f32 %v3953, 0.0
        %v4158 = vmax.f32 %v3958, 0.0
        %v4159 = vmax.f32 %v3961, 0.0
        %v4160 = vmax.f32 %v3966, 0.0
        %v4161 = vmax.f32 %v3969, 0.0
        %v4162 = vmax.f32 %v3974, 0.0
        %v4163 = vmax.f32 %v3977, 0.0
        %v4164 = vmax.f32 %v3982, 0.0
        %v4165 = vmax.f32 %v3985, 0.0
        %v4166 = vmax.f32 %v3990, 0.0
        %v4167 = vmax.f32 %v3993, 0.0
        %v4168 = vmax.f32 %v3998, 0.0
        %v4169 = vmax.f32 %v4001, 0.0
        %v4170 = vmax.f32 %v4006, 0.0
        %v4171 = vmax.f32 %v4009, 0.0
        %v4172 = vmax.f32 %v4014, 0.0
        %v4173 = vmax.f32 %v4017, 0.0
        %v4174 = vmax.f32 %v4022, 0.0
        %v4175 = vmax.f32 %v4025, 0.0
        %v4176 = vmax.f32 %v4030, 0.0
        %v4177 = vmax.f32 %v4033, 0.0
        %v4178 = vmax.f32 %v4038, 0.0
        %v4179 = vmax.f32 %v4041, 0.0
        %v4180 = vmax.f32 %v4046, 0.0
        %v4181 = vmax.f32 %v4049, 0.0
        %v4182 = vmax.f32 %v4054, 0.0
        %v4183 = vmax.f32 %v4057, 0.0
        %v4184 = vmax.f32 %v4062, 0.0
        %v4185 = vmax.f32 %v4065, 0.0
        %v4186 = vmax.f32 %v4070, 0.0
        %v4187 = vmax.f32 %v4073, 0.0
        %v4188 = vmax.f32 %v4078, 0.0
        %v4189 = vmax.f32 %v4081, 0.0
        %v4190 = vmax.f32 %v4086, 0.0
        %v4191 = vmax.f32 %v4089, 0.0
        %v4192 = vmax.f32 %v4094, 0.0
        %v4193 = vmax.f32 %v4097, 0.0
        %v4194 = vmax.f32 %v4102, 0.0
        %v4195 = vmax.f32 %v4105, 0.0
        %v4196 = vmax.f32 %v4110, 0.0
        %v4197 = vmax.f32 %v4113, 0.0
        %v4198 = vmax.f32 %v4118, 0.0
        %v4199 = vmax.f32 %v4121, 0.0
        %v4200 = vmax.f32 %v4126, 0.0
        %v4201 = vmax.f32 %v4129, 0.0
        %v4202 = vmax.f32 %v4134, 0.0
        %v4203 = vmax.f32 %v4137, 0.0
        %v4204 = vpack.c.bf16 %v4141, %v4140
        %v4205 = vpack.c.bf16 %v4143, %v4142
        %v4206 = vpack.c.bf16 %v4145, %v4144
        %v4207 = vpack.c.bf16 %v4147, %v4146
        %v4208 = vpack.c.bf16 %v4149, %v4148
        %v4209 = vpack.c.bf16 %v4151, %v4150
        %v4210 = vpack.c.bf16 %v4153, %v4152
        %v4211 = vpack.c.bf16 %v4155, %v4154
        %v4212 = vpack.c.bf16 %v4157, %v4156
        %v4213 = vpack.c.bf16 %v4159, %v4158
        %v4214 = vpack.c.bf16 %v4161, %v4160
        %v4215 = vpack.c.bf16 %v4163, %v4162
        %v4216 = vpack.c.bf16 %v4165, %v4164
        %v4217 = vpack.c.bf16 %v4167, %v4166
        %v4218 = vpack.c.bf16 %v4169, %v4168
        %v4219 = vpack.c.bf16 %v4171, %v4170
        %v4220 = vpack.c.bf16 %v4173, %v4172
        %v4221 = vpack.c.bf16 %v4175, %v4174
        %v4222 = vpack.c.bf16 %v4177, %v4176
        %v4223 = vpack.c.bf16 %v4179, %v4178
        %v4224 = vpack.c.bf16 %v4181, %v4180
        %v4225 = vpack.c.bf16 %v4183, %v4182
        %v4226 = vpack.c.bf16 %v4185, %v4184
        %v4227 = vpack.c.bf16 %v4187, %v4186
        %v4228 = vpack.c.bf16 %v4189, %v4188
        %v4229 = vpack.c.bf16 %v4191, %v4190
        %v4230 = vpack.c.bf16 %v4193, %v4192
        %v4231 = vpack.c.bf16 %v4195, %v4194
        %v4232 = vpack.c.bf16 %v4197, %v4196
        %v4233 = vpack.c.bf16 %v4199, %v4198
        %v4234 = vpack.c.bf16 %v4201, %v4200
        %v4235 = vpack.c.bf16 %v4203, %v4202
        %s4236 = scalar_lea.vmem [#allocation3], 448
        %v4237 = vld [vmem:[%s4236] sm:$0xf]
        %v4238 = vld [vmem:[%s4236 + $0x4] sm:$0xf]
        %v4239 = vld [vmem:[%s4236 + $0x8] sm:$0xf]
        %v4240 = vld [vmem:[%s4236 + $0xc] sm:$0xf]
        %v4241 = vld [vmem:[%s4236 + $0x10] sm:$0xf]
        %v4242 = vld [vmem:[%s4236 + $0x14] sm:$0xf]
        %v4243 = vld [vmem:[%s4236 + $0x18] sm:$0xf]
        %v4244 = vld [vmem:[%s4236 + $0x1c] sm:$0xf]
        %v4245 = vld [vmem:[%s4236 + $0x20] sm:$0xf]
        %v4246 = vld [vmem:[%s4236 + $0x24] sm:$0xf]
        %v4247 = vld [vmem:[%s4236 + $0x28] sm:$0xf]
        %v4248 = vld [vmem:[%s4236 + $0x2c] sm:$0xf]
        %v4249 = vld [vmem:[%s4236 + $0x30] sm:$0xf]
        %v4250 = vld [vmem:[%s4236 + $0x34] sm:$0xf]
        %v4251 = vld [vmem:[%s4236 + $0x38] sm:$0xf]
        %v4252 = vld [vmem:[%s4236 + $0x3c] sm:$0xf]
        %s4253 = scalar_lea.vmem %s2, 8
        %v4254 = vld [vmem:[%s4253] sm:$0x1]
        %v4256 = vlaneseq
        %v4257 = vshrl.u32 %v4256, 7
        %v4258 = vsub.s32 0, %v4257
        %v4259 = vrot.slane %v4254, %v4258
        %v4277 = vunpack.c.l.b16 %v4237
        %v4278 = vunpack.c.l.b16 %v4238
        %v4279 = vunpack.c.l.b16 %v4239
        %v4280 = vunpack.c.l.b16 %v4240
        %v4281 = vunpack.c.l.b16 %v4241
        %v4282 = vunpack.c.l.b16 %v4242
        %v4283 = vunpack.c.l.b16 %v4243
        %v4284 = vunpack.c.l.b16 %v4244
        %v4285 = vunpack.c.l.b16 %v4245
        %v4286 = vunpack.c.l.b16 %v4246
        %v4287 = vunpack.c.l.b16 %v4247
        %v4288 = vunpack.c.l.b16 %v4248
        %v4289 = vunpack.c.l.b16 %v4249
        %v4290 = vunpack.c.l.b16 %v4250
        %v4291 = vunpack.c.l.b16 %v4251
        %v4292 = vunpack.c.l.b16 %v4252
        %v4293 = vpack.c.b16 %v4278, %v4277
        %v4294 = vpack.c.b16 %v4280, %v4279
        %v4295 = vpack.c.b16 %v4282, %v4281
        %v4296 = vpack.c.b16 %v4284, %v4283
        %v4297 = vpack.c.b16 %v4286, %v4285
        %v4298 = vpack.c.b16 %v4288, %v4287
        %v4299 = vpack.c.b16 %v4290, %v4289
        %v4300 = vpack.c.b16 %v4292, %v4291
        %4309 = vmatprep.subr.bf16.mxu0 0
        %4310 = vmatpush1.bf16.msra.mxu0 %v4300
        %4311 = vmatprep.subr.bf16.mxu0 0
        %4312 = vmatpush1.bf16.msra.mxu0 %v4299
        %4313 = vmatprep.subr.bf16.mxu0 0
        %4314 = vmatpush1.bf16.msra.mxu0 %v4298
        %4315 = vmatprep.subr.bf16.mxu0 0
        %4316 = vmatpush1.bf16.msra.mxu0 %v4297
        %4317 = vmatprep.subr.bf16.mxu0 0
        %4318 = vmatpush1.bf16.msra.mxu0 %v4296
        %4319 = vmatprep.subr.bf16.mxu0 0
        %4320 = vmatpush1.bf16.msra.mxu0 %v4295
        %4321 = vmatprep.subr.bf16.mxu0 0
        %4322 = vmatpush1.bf16.msra.mxu0 %v4294
        %4323 = vmatprep.subr.bf16.mxu0 0
        %4324 = vmatpush1.bf16.msra.mxu0 %v4293
        %4325 = vmatprep.subr.bf16.mxu0 0
        %4326 = vmatpush2.bf16.msra.mxu0 0
        %4327 = vmatprep.subr.bf16.mxu0 0
        %4328 = vmatpush2.bf16.msra.mxu0 0
        %4329 = vmatprep.subr.bf16.mxu0 0
        %4330 = vmatpush2.bf16.msra.mxu0 0
        %4331 = vmatprep.subr.bf16.mxu0 0
        %4332 = vmatpush2.bf16.msra.mxu0 0
        %4333 = vmatprep.subr.bf16.mxu0 0
        %4334 = vmatpush2.bf16.msra.mxu0 0
        %4335 = vmatprep.subr.bf16.mxu0 0
        %4336 = vmatpush2.bf16.msra.mxu0 0
        %4337 = vmatprep.subr.bf16.mxu0 0
        %4338 = vmatpush2.bf16.msra.mxu0 0
        %4339 = vmatprep.subr.bf16.mxu0 0
        %4340 = vmatpush2.bf16.msra.mxu0 0
        %4341 = vmatprep.mubr.bf16.mxu0 0
        %4342 = vmatmul.mubr.bf16.gmra.mxu0 %v4204
        %v4343 = vpop.f32.mrf.mxu0
        %v4344 = vadd.f32 %v4259, %v4343
        %v4345 = vpop.f32.mrf.mxu0
        %v4346 = vpop.f32.mrf.mxu0
        %v4347 = vadd.f32 %v4259, %v4346
        %v4348 = vpop.f32.mrf.mxu0
        %4349 = vmatprep.mubr.bf16.mxu0 0
        %4350 = vmatmul.mubr.bf16.gmra.mxu0 %v4205
        %v4351 = vpop.f32.mrf.mxu0
        %v4352 = vadd.f32 %v4259, %v4351
        %v4353 = vpop.f32.mrf.mxu0
        %v4354 = vpop.f32.mrf.mxu0
        %v4355 = vadd.f32 %v4259, %v4354
        %v4356 = vpop.f32.mrf.mxu0
        %4357 = vmatprep.mubr.bf16.mxu0 0
        %4358 = vmatmul.mubr.bf16.gmra.mxu0 %v4206
        %v4359 = vpop.f32.mrf.mxu0
        %v4360 = vadd.f32 %v4259, %v4359
        %v4361 = vpop.f32.mrf.mxu0
        %v4362 = vpop.f32.mrf.mxu0
        %v4363 = vadd.f32 %v4259, %v4362
        %v4364 = vpop.f32.mrf.mxu0
        %4365 = vmatprep.mubr.bf16.mxu0 0
        %4366 = vmatmul.mubr.bf16.gmra.mxu0 %v4207
        %v4367 = vpop.f32.mrf.mxu0
        %v4368 = vadd.f32 %v4259, %v4367
        %v4369 = vpop.f32.mrf.mxu0
        %v4370 = vpop.f32.mrf.mxu0
        %v4371 = vadd.f32 %v4259, %v4370
        %v4372 = vpop.f32.mrf.mxu0
        %4373 = vmatprep.mubr.bf16.mxu0 0
        %4374 = vmatmul.mubr.bf16.gmra.mxu0 %v4208
        %v4375 = vpop.f32.mrf.mxu0
        %v4376 = vadd.f32 %v4259, %v4375
        %v4377 = vpop.f32.mrf.mxu0
        %v4378 = vpop.f32.mrf.mxu0
        %v4379 = vadd.f32 %v4259, %v4378
        %v4380 = vpop.f32.mrf.mxu0
        %4381 = vmatprep.mubr.bf16.mxu0 0
        %4382 = vmatmul.mubr.bf16.gmra.mxu0 %v4209
        %v4383 = vpop.f32.mrf.mxu0
        %v4384 = vadd.f32 %v4259, %v4383
        %v4385 = vpop.f32.mrf.mxu0
        %v4386 = vpop.f32.mrf.mxu0
        %v4387 = vadd.f32 %v4259, %v4386
        %v4388 = vpop.f32.mrf.mxu0
        %4389 = vmatprep.mubr.bf16.mxu0 0
        %4390 = vmatmul.mubr.bf16.gmra.mxu0 %v4210
        %v4391 = vpop.f32.mrf.mxu0
        %v4392 = vadd.f32 %v4259, %v4391
        %v4393 = vpop.f32.mrf.mxu0
        %v4394 = vpop.f32.mrf.mxu0
        %v4395 = vadd.f32 %v4259, %v4394
        %v4396 = vpop.f32.mrf.mxu0
        %4397 = vmatprep.mubr.bf16.mxu0 0
        %4398 = vmatmul.mubr.bf16.gmra.mxu0 %v4211
        %v4399 = vpop.f32.mrf.mxu0
        %v4400 = vadd.f32 %v4259, %v4399
        %v4401 = vpop.f32.mrf.mxu0
        %v4402 = vpop.f32.mrf.mxu0
        %v4403 = vadd.f32 %v4259, %v4402
        %v4404 = vpop.f32.mrf.mxu0
        %4405 = vmatprep.mubr.bf16.mxu0 0
        %4406 = vmatmul.mubr.bf16.gmra.mxu0 %v4212
        %v4407 = vpop.f32.mrf.mxu0
        %v4408 = vadd.f32 %v4259, %v4407
        %v4409 = vpop.f32.mrf.mxu0
        %v4410 = vpop.f32.mrf.mxu0
        %v4411 = vadd.f32 %v4259, %v4410
        %v4412 = vpop.f32.mrf.mxu0
        %4413 = vmatprep.mubr.bf16.mxu0 0
        %4414 = vmatmul.mubr.bf16.gmra.mxu0 %v4213
        %v4415 = vpop.f32.mrf.mxu0
        %v4416 = vadd.f32 %v4259, %v4415
        %v4417 = vpop.f32.mrf.mxu0
        %v4418 = vpop.f32.mrf.mxu0
        %v4419 = vadd.f32 %v4259, %v4418
        %v4420 = vpop.f32.mrf.mxu0
        %4421 = vmatprep.mubr.bf16.mxu0 0
        %4422 = vmatmul.mubr.bf16.gmra.mxu0 %v4214
        %v4423 = vpop.f32.mrf.mxu0
        %v4424 = vadd.f32 %v4259, %v4423
        %v4425 = vpop.f32.mrf.mxu0
        %v4426 = vpop.f32.mrf.mxu0
        %v4427 = vadd.f32 %v4259, %v4426
        %v4428 = vpop.f32.mrf.mxu0
        %4429 = vmatprep.mubr.bf16.mxu0 0
        %4430 = vmatmul.mubr.bf16.gmra.mxu0 %v4215
        %v4431 = vpop.f32.mrf.mxu0
        %v4432 = vadd.f32 %v4259, %v4431
        %v4433 = vpop.f32.mrf.mxu0
        %v4434 = vpop.f32.mrf.mxu0
        %v4435 = vadd.f32 %v4259, %v4434
        %v4436 = vpop.f32.mrf.mxu0
        %4437 = vmatprep.mubr.bf16.mxu0 0
        %4438 = vmatmul.mubr.bf16.gmra.mxu0 %v4216
        %v4439 = vpop.f32.mrf.mxu0
        %v4440 = vadd.f32 %v4259, %v4439
        %v4441 = vpop.f32.mrf.mxu0
        %v4442 = vpop.f32.mrf.mxu0
        %v4443 = vadd.f32 %v4259, %v4442
        %v4444 = vpop.f32.mrf.mxu0
        %4445 = vmatprep.mubr.bf16.mxu0 0
        %4446 = vmatmul.mubr.bf16.gmra.mxu0 %v4217
        %v4447 = vpop.f32.mrf.mxu0
        %v4448 = vadd.f32 %v4259, %v4447
        %v4449 = vpop.f32.mrf.mxu0
        %v4450 = vpop.f32.mrf.mxu0
        %v4451 = vadd.f32 %v4259, %v4450
        %v4452 = vpop.f32.mrf.mxu0
        %4453 = vmatprep.mubr.bf16.mxu0 0
        %4454 = vmatmul.mubr.bf16.gmra.mxu0 %v4218
        %v4455 = vpop.f32.mrf.mxu0
        %v4456 = vadd.f32 %v4259, %v4455
        %v4457 = vpop.f32.mrf.mxu0
        %v4458 = vpop.f32.mrf.mxu0
        %v4459 = vadd.f32 %v4259, %v4458
        %v4460 = vpop.f32.mrf.mxu0
        %4461 = vmatprep.mubr.bf16.mxu0 0
        %4462 = vmatmul.mubr.bf16.gmra.mxu0 %v4219
        %v4463 = vpop.f32.mrf.mxu0
        %v4464 = vadd.f32 %v4259, %v4463
        %v4465 = vpop.f32.mrf.mxu0
        %v4466 = vpop.f32.mrf.mxu0
        %v4467 = vadd.f32 %v4259, %v4466
        %v4468 = vpop.f32.mrf.mxu0
        %4469 = vmatprep.mubr.bf16.mxu0 0
        %4470 = vmatmul.mubr.bf16.gmra.mxu0 %v4220
        %v4471 = vpop.f32.mrf.mxu0
        %v4472 = vadd.f32 %v4259, %v4471
        %v4473 = vpop.f32.mrf.mxu0
        %v4474 = vpop.f32.mrf.mxu0
        %v4475 = vadd.f32 %v4259, %v4474
        %v4476 = vpop.f32.mrf.mxu0
        %4477 = vmatprep.mubr.bf16.mxu0 0
        %4478 = vmatmul.mubr.bf16.gmra.mxu0 %v4221
        %v4479 = vpop.f32.mrf.mxu0
        %v4480 = vadd.f32 %v4259, %v4479
        %v4481 = vpop.f32.mrf.mxu0
        %v4482 = vpop.f32.mrf.mxu0
        %v4483 = vadd.f32 %v4259, %v4482
        %v4484 = vpop.f32.mrf.mxu0
        %4485 = vmatprep.mubr.bf16.mxu0 0
        %4486 = vmatmul.mubr.bf16.gmra.mxu0 %v4222
        %v4487 = vpop.f32.mrf.mxu0
        %v4488 = vadd.f32 %v4259, %v4487
        %v4489 = vpop.f32.mrf.mxu0
        %v4490 = vpop.f32.mrf.mxu0
        %v4491 = vadd.f32 %v4259, %v4490
        %v4492 = vpop.f32.mrf.mxu0
        %4493 = vmatprep.mubr.bf16.mxu0 0
        %4494 = vmatmul.mubr.bf16.gmra.mxu0 %v4223
        %v4495 = vpop.f32.mrf.mxu0
        %v4496 = vadd.f32 %v4259, %v4495
        %v4497 = vpop.f32.mrf.mxu0
        %v4498 = vpop.f32.mrf.mxu0
        %v4499 = vadd.f32 %v4259, %v4498
        %v4500 = vpop.f32.mrf.mxu0
        %4501 = vmatprep.mubr.bf16.mxu0 0
        %4502 = vmatmul.mubr.bf16.gmra.mxu0 %v4224
        %v4503 = vpop.f32.mrf.mxu0
        %v4504 = vadd.f32 %v4259, %v4503
        %v4505 = vpop.f32.mrf.mxu0
        %v4506 = vpop.f32.mrf.mxu0
        %v4507 = vadd.f32 %v4259, %v4506
        %v4508 = vpop.f32.mrf.mxu0
        %4509 = vmatprep.mubr.bf16.mxu0 0
        %4510 = vmatmul.mubr.bf16.gmra.mxu0 %v4225
        %v4511 = vpop.f32.mrf.mxu0
        %v4512 = vadd.f32 %v4259, %v4511
        %v4513 = vpop.f32.mrf.mxu0
        %v4514 = vpop.f32.mrf.mxu0
        %v4515 = vadd.f32 %v4259, %v4514
        %v4516 = vpop.f32.mrf.mxu0
        %4517 = vmatprep.mubr.bf16.mxu0 0
        %4518 = vmatmul.mubr.bf16.gmra.mxu0 %v4226
        %v4519 = vpop.f32.mrf.mxu0
        %v4520 = vadd.f32 %v4259, %v4519
        %v4521 = vpop.f32.mrf.mxu0
        %v4522 = vpop.f32.mrf.mxu0
        %v4523 = vadd.f32 %v4259, %v4522
        %v4524 = vpop.f32.mrf.mxu0
        %4525 = vmatprep.mubr.bf16.mxu0 0
        %4526 = vmatmul.mubr.bf16.gmra.mxu0 %v4227
        %v4527 = vpop.f32.mrf.mxu0
        %v4528 = vadd.f32 %v4259, %v4527
        %v4529 = vpop.f32.mrf.mxu0
        %v4530 = vpop.f32.mrf.mxu0
        %v4531 = vadd.f32 %v4259, %v4530
        %v4532 = vpop.f32.mrf.mxu0
        %4533 = vmatprep.mubr.bf16.mxu0 0
        %4534 = vmatmul.mubr.bf16.gmra.mxu0 %v4228
        %v4535 = vpop.f32.mrf.mxu0
        %v4536 = vadd.f32 %v4259, %v4535
        %v4537 = vpop.f32.mrf.mxu0
        %v4538 = vpop.f32.mrf.mxu0
        %v4539 = vadd.f32 %v4259, %v4538
        %v4540 = vpop.f32.mrf.mxu0
        %4541 = vmatprep.mubr.bf16.mxu0 0
        %4542 = vmatmul.mubr.bf16.gmra.mxu0 %v4229
        %v4543 = vpop.f32.mrf.mxu0
        %v4544 = vadd.f32 %v4259, %v4543
        %v4545 = vpop.f32.mrf.mxu0
        %v4546 = vpop.f32.mrf.mxu0
        %v4547 = vadd.f32 %v4259, %v4546
        %v4548 = vpop.f32.mrf.mxu0
        %4549 = vmatprep.mubr.bf16.mxu0 0
        %4550 = vmatmul.mubr.bf16.gmra.mxu0 %v4230
        %v4551 = vpop.f32.mrf.mxu0
        %v4552 = vadd.f32 %v4259, %v4551
        %v4553 = vpop.f32.mrf.mxu0
        %v4554 = vpop.f32.mrf.mxu0
        %v4555 = vadd.f32 %v4259, %v4554
        %v4556 = vpop.f32.mrf.mxu0
        %4557 = vmatprep.mubr.bf16.mxu0 0
        %4558 = vmatmul.mubr.bf16.gmra.mxu0 %v4231
        %v4559 = vpop.f32.mrf.mxu0
        %v4560 = vadd.f32 %v4259, %v4559
        %v4561 = vpop.f32.mrf.mxu0
        %v4562 = vpop.f32.mrf.mxu0
        %v4563 = vadd.f32 %v4259, %v4562
        %v4564 = vpop.f32.mrf.mxu0
        %4565 = vmatprep.mubr.bf16.mxu0 0
        %4566 = vmatmul.mubr.bf16.gmra.mxu0 %v4232
        %v4567 = vpop.f32.mrf.mxu0
        %v4568 = vadd.f32 %v4259, %v4567
        %v4569 = vpop.f32.mrf.mxu0
        %v4570 = vpop.f32.mrf.mxu0
        %v4571 = vadd.f32 %v4259, %v4570
        %v4572 = vpop.f32.mrf.mxu0
        %4573 = vmatprep.mubr.bf16.mxu0 0
        %4574 = vmatmul.mubr.bf16.gmra.mxu0 %v4233
        %v4575 = vpop.f32.mrf.mxu0
        %v4576 = vadd.f32 %v4259, %v4575
        %v4577 = vpop.f32.mrf.mxu0
        %v4578 = vpop.f32.mrf.mxu0
        %v4579 = vadd.f32 %v4259, %v4578
        %v4580 = vpop.f32.mrf.mxu0
        %4581 = vmatprep.mubr.bf16.mxu0 0
        %4582 = vmatmul.mubr.bf16.gmra.mxu0 %v4234
        %v4583 = vpop.f32.mrf.mxu0
        %v4584 = vadd.f32 %v4259, %v4583
        %v4585 = vpop.f32.mrf.mxu0
        %v4586 = vpop.f32.mrf.mxu0
        %v4587 = vadd.f32 %v4259, %v4586
        %v4588 = vpop.f32.mrf.mxu0
        %4589 = vmatprep.mubr.bf16.mxu0 0
        %4590 = vmatmul.mubr.bf16.gmra.mxu0 %v4235
        %v4591 = vpop.f32.mrf.mxu0
        %v4592 = vadd.f32 %v4259, %v4591
        %v4593 = vpop.f32.mrf.mxu0
        %v4594 = vpop.f32.mrf.mxu0
        %v4595 = vadd.f32 %v4259, %v4594
        %v4596 = vpop.f32.mrf.mxu0
        %4597 = vdwg.mxu0
        %v4598 = vmax.f32 %v4344, 0.0
        %v4599 = vmax.f32 %v4347, 0.0
        %v4600 = vmax.f32 %v4352, 0.0
        %v4601 = vmax.f32 %v4355, 0.0
        %v4602 = vmax.f32 %v4360, 0.0
        %v4603 = vmax.f32 %v4363, 0.0
        %v4604 = vmax.f32 %v4368, 0.0
        %v4605 = vmax.f32 %v4371, 0.0
        %v4606 = vmax.f32 %v4376, 0.0
        %v4607 = vmax.f32 %v4379, 0.0
        %v4608 = vmax.f32 %v4384, 0.0
        %v4609 = vmax.f32 %v4387, 0.0
        %v4610 = vmax.f32 %v4392, 0.0
        %v4611 = vmax.f32 %v4395, 0.0
        %v4612 = vmax.f32 %v4400, 0.0
        %v4613 = vmax.f32 %v4403, 0.0
        %v4614 = vmax.f32 %v4408, 0.0
        %v4615 = vmax.f32 %v4411, 0.0
        %v4616 = vmax.f32 %v4416, 0.0
        %v4617 = vmax.f32 %v4419, 0.0
        %v4618 = vmax.f32 %v4424, 0.0
        %v4619 = vmax.f32 %v4427, 0.0
        %v4620 = vmax.f32 %v4432, 0.0
        %v4621 = vmax.f32 %v4435, 0.0
        %v4622 = vmax.f32 %v4440, 0.0
        %v4623 = vmax.f32 %v4443, 0.0
        %v4624 = vmax.f32 %v4448, 0.0
        %v4625 = vmax.f32 %v4451, 0.0
        %v4626 = vmax.f32 %v4456, 0.0
        %v4627 = vmax.f32 %v4459, 0.0
        %v4628 = vmax.f32 %v4464, 0.0
        %v4629 = vmax.f32 %v4467, 0.0
        %v4630 = vmax.f32 %v4472, 0.0
        %v4631 = vmax.f32 %v4475, 0.0
        %v4632 = vmax.f32 %v4480, 0.0
        %v4633 = vmax.f32 %v4483, 0.0
        %v4634 = vmax.f32 %v4488, 0.0
        %v4635 = vmax.f32 %v4491, 0.0
        %v4636 = vmax.f32 %v4496, 0.0
        %v4637 = vmax.f32 %v4499, 0.0
        %v4638 = vmax.f32 %v4504, 0.0
        %v4639 = vmax.f32 %v4507, 0.0
        %v4640 = vmax.f32 %v4512, 0.0
        %v4641 = vmax.f32 %v4515, 0.0
        %v4642 = vmax.f32 %v4520, 0.0
        %v4643 = vmax.f32 %v4523, 0.0
        %v4644 = vmax.f32 %v4528, 0.0
        %v4645 = vmax.f32 %v4531, 0.0
        %v4646 = vmax.f32 %v4536, 0.0
        %v4647 = vmax.f32 %v4539, 0.0
        %v4648 = vmax.f32 %v4544, 0.0
        %v4649 = vmax.f32 %v4547, 0.0
        %v4650 = vmax.f32 %v4552, 0.0
        %v4651 = vmax.f32 %v4555, 0.0
        %v4652 = vmax.f32 %v4560, 0.0
        %v4653 = vmax.f32 %v4563, 0.0
        %v4654 = vmax.f32 %v4568, 0.0
        %v4655 = vmax.f32 %v4571, 0.0
        %v4656 = vmax.f32 %v4576, 0.0
        %v4657 = vmax.f32 %v4579, 0.0
        %v4658 = vmax.f32 %v4584, 0.0
        %v4659 = vmax.f32 %v4587, 0.0
        %v4660 = vmax.f32 %v4592, 0.0
        %v4661 = vmax.f32 %v4595, 0.0
        %v4662 = vpack.c.bf16 %v4599, %v4598
        %v4663 = vpack.c.bf16 %v4601, %v4600
        %v4664 = vpack.c.bf16 %v4603, %v4602
        %v4665 = vpack.c.bf16 %v4605, %v4604
        %v4666 = vpack.c.bf16 %v4607, %v4606
        %v4667 = vpack.c.bf16 %v4609, %v4608
        %v4668 = vpack.c.bf16 %v4611, %v4610
        %v4669 = vpack.c.bf16 %v4613, %v4612
        %v4670 = vpack.c.bf16 %v4615, %v4614
        %v4671 = vpack.c.bf16 %v4617, %v4616
        %v4672 = vpack.c.bf16 %v4619, %v4618
        %v4673 = vpack.c.bf16 %v4621, %v4620
        %v4674 = vpack.c.bf16 %v4623, %v4622
        %v4675 = vpack.c.bf16 %v4625, %v4624
        %v4676 = vpack.c.bf16 %v4627, %v4626
        %v4677 = vpack.c.bf16 %v4629, %v4628
        %v4678 = vpack.c.bf16 %v4631, %v4630
        %v4679 = vpack.c.bf16 %v4633, %v4632
        %v4680 = vpack.c.bf16 %v4635, %v4634
        %v4681 = vpack.c.bf16 %v4637, %v4636
        %v4682 = vpack.c.bf16 %v4639, %v4638
        %v4683 = vpack.c.bf16 %v4641, %v4640
        %v4684 = vpack.c.bf16 %v4643, %v4642
        %v4685 = vpack.c.bf16 %v4645, %v4644
        %v4686 = vpack.c.bf16 %v4647, %v4646
        %v4687 = vpack.c.bf16 %v4649, %v4648
        %v4688 = vpack.c.bf16 %v4651, %v4650
        %v4689 = vpack.c.bf16 %v4653, %v4652
        %v4690 = vpack.c.bf16 %v4655, %v4654
        %v4691 = vpack.c.bf16 %v4657, %v4656
        %v4692 = vpack.c.bf16 %v4659, %v4658
        %v4693 = vpack.c.bf16 %v4661, %v4660
        %v4694 = vld [vmem:[#allocation5] sm:$0xff]
        %v4695 = vld [vmem:[#allocation5 + $0x8] sm:$0xff]
        %v4696 = vld [vmem:[#allocation5 + $0x10] sm:$0xff]
        %v4697 = vld [vmem:[#allocation5 + $0x18] sm:$0xff]
        %v4698 = vld [vmem:[#allocation5 + $0x20] sm:$0xff]
        %v4699 = vld [vmem:[#allocation5 + $0x28] sm:$0xff]
        %v4700 = vld [vmem:[#allocation5 + $0x30] sm:$0xff]
        %v4701 = vld [vmem:[#allocation5 + $0x38] sm:$0xff]
        %v4702 = vld [vmem:[#allocation5 + $0x40] sm:$0xff]
        %v4703 = vld [vmem:[#allocation5 + $0x48] sm:$0xff]
        %v4704 = vld [vmem:[#allocation5 + $0x50] sm:$0xff]
        %v4705 = vld [vmem:[#allocation5 + $0x58] sm:$0xff]
        %v4706 = vld [vmem:[#allocation5 + $0x60] sm:$0xff]
        %v4707 = vld [vmem:[#allocation5 + $0x68] sm:$0xff]
        %v4708 = vld [vmem:[#allocation5 + $0x70] sm:$0xff]
        %v4709 = vld [vmem:[#allocation5 + $0x78] sm:$0xff]
        %v4710 = vld [vmem:[#allocation5 + $0x80] sm:$0xff]
        %v4711 = vld [vmem:[#allocation5 + $0x88] sm:$0xff]
        %v4712 = vld [vmem:[#allocation5 + $0x90] sm:$0xff]
        %v4713 = vld [vmem:[#allocation5 + $0x98] sm:$0xff]
        %v4714 = vld [vmem:[#allocation5 + $0xa0] sm:$0xff]
        %v4715 = vld [vmem:[#allocation5 + $0xa8] sm:$0xff]
        %v4716 = vld [vmem:[#allocation5 + $0xb0] sm:$0xff]
        %v4717 = vld [vmem:[#allocation5 + $0xb8] sm:$0xff]
        %v4718 = vld [vmem:[#allocation5 + $0xc0] sm:$0xff]
        %v4719 = vld [vmem:[#allocation5 + $0xc8] sm:$0xff]
        %v4720 = vld [vmem:[#allocation5 + $0xd0] sm:$0xff]
        %v4721 = vld [vmem:[#allocation5 + $0xd8] sm:$0xff]
        %v4722 = vld [vmem:[#allocation5 + $0xe0] sm:$0xff]
        %v4723 = vld [vmem:[#allocation5 + $0xe8] sm:$0xff]
        %v4724 = vld [vmem:[#allocation5 + $0xf0] sm:$0xff]
        %v4725 = vld [vmem:[#allocation5 + $0xf8] sm:$0xff]
        %v4726 = vld [vmem:[#allocation5 + $0x100] sm:$0xff]
        %v4727 = vld [vmem:[#allocation5 + $0x108] sm:$0xff]
        %v4728 = vld [vmem:[#allocation5 + $0x110] sm:$0xff]
        %v4729 = vld [vmem:[#allocation5 + $0x118] sm:$0xff]
        %v4730 = vld [vmem:[#allocation5 + $0x120] sm:$0xff]
        %v4731 = vld [vmem:[#allocation5 + $0x128] sm:$0xff]
        %v4732 = vld [vmem:[#allocation5 + $0x130] sm:$0xff]
        %v4733 = vld [vmem:[#allocation5 + $0x138] sm:$0xff]
        %v4734 = vld [vmem:[#allocation5 + $0x140] sm:$0xff]
        %v4735 = vld [vmem:[#allocation5 + $0x148] sm:$0xff]
        %v4736 = vld [vmem:[#allocation5 + $0x150] sm:$0xff]
        %v4737 = vld [vmem:[#allocation5 + $0x158] sm:$0xff]
        %v4738 = vld [vmem:[#allocation5 + $0x160] sm:$0xff]
        %v4739 = vld [vmem:[#allocation5 + $0x168] sm:$0xff]
        %v4740 = vld [vmem:[#allocation5 + $0x170] sm:$0xff]
        %v4741 = vld [vmem:[#allocation5 + $0x178] sm:$0xff]
        %v4742 = vld [vmem:[#allocation5 + $0x180] sm:$0xff]
        %v4743 = vld [vmem:[#allocation5 + $0x188] sm:$0xff]
        %v4744 = vld [vmem:[#allocation5 + $0x190] sm:$0xff]
        %v4745 = vld [vmem:[#allocation5 + $0x198] sm:$0xff]
        %v4746 = vld [vmem:[#allocation5 + $0x1a0] sm:$0xff]
        %v4747 = vld [vmem:[#allocation5 + $0x1a8] sm:$0xff]
        %v4748 = vld [vmem:[#allocation5 + $0x1b0] sm:$0xff]
        %v4749 = vld [vmem:[#allocation5 + $0x1b8] sm:$0xff]
        %v4750 = vld [vmem:[#allocation5 + $0x1c0] sm:$0xff]
        %v4751 = vld [vmem:[#allocation5 + $0x1c8] sm:$0xff]
        %v4752 = vld [vmem:[#allocation5 + $0x1d0] sm:$0xff]
        %v4753 = vld [vmem:[#allocation5 + $0x1d8] sm:$0xff]
        %v4754 = vld [vmem:[#allocation5 + $0x1e0] sm:$0xff]
        %v4755 = vld [vmem:[#allocation5 + $0x1e8] sm:$0xff]
        %v4756 = vld [vmem:[#allocation5 + $0x1f0] sm:$0xff]
        %v4757 = vld [vmem:[#allocation5 + $0x1f8] sm:$0xff]
        %v4758 = vld [vmem:[%s5] sm:$0xff]
        %v4760 = vlaneseq
        %v4761 = vshrl.u32 %v4760, 7
        %v4762 = vsub.s32 0, %v4761
        %v4763 = vrot.slane %v4758, %v4762
        %v4764 = vlaneseq
        %v4765 = vshrl.u32 %v4764, 7
        %v4766 = vsub.s32 1, %v4765
        %v4767 = vrot.slane %v4758, %v4766
        %v4768 = vlaneseq
        %v4769 = vshrl.u32 %v4768, 7
        %v4770 = vsub.s32 2, %v4769
        %v4771 = vrot.slane %v4758, %v4770
        %v4772 = vlaneseq
        %v4773 = vshrl.u32 %v4772, 7
        %v4774 = vsub.s32 3, %v4773
        %v4775 = vrot.slane %v4758, %v4774
        %v4776 = vlaneseq
        %v4777 = vshrl.u32 %v4776, 7
        %v4778 = vsub.s32 4, %v4777
        %v4779 = vrot.slane %v4758, %v4778
        %v4780 = vlaneseq
        %v4781 = vshrl.u32 %v4780, 7
        %v4782 = vsub.s32 5, %v4781
        %v4783 = vrot.slane %v4758, %v4782
        %v4784 = vlaneseq
        %v4785 = vshrl.u32 %v4784, 7
        %v4786 = vsub.s32 6, %v4785
        %v4787 = vrot.slane %v4758, %v4786
        %v4788 = vlaneseq
        %v4789 = vshrl.u32 %v4788, 7
        %v4790 = vsub.s32 7, %v4789
        %v4791 = vrot.slane %v4758, %v4790
        %v4864 = vunpack.c.l.b16 %v4694
        %v4865 = vunpack.c.h.b16 %v4694
        %v4866 = vunpack.c.l.b16 %v4695
        %v4867 = vunpack.c.h.b16 %v4695
        %v4868 = vunpack.c.l.b16 %v4696
        %v4869 = vunpack.c.h.b16 %v4696
        %v4870 = vunpack.c.l.b16 %v4697
        %v4871 = vunpack.c.h.b16 %v4697
        %v4872 = vunpack.c.l.b16 %v4698
        %v4873 = vunpack.c.h.b16 %v4698
        %v4874 = vunpack.c.l.b16 %v4699
        %v4875 = vunpack.c.h.b16 %v4699
        %v4876 = vunpack.c.l.b16 %v4700
        %v4877 = vunpack.c.h.b16 %v4700
        %v4878 = vunpack.c.l.b16 %v4701
        %v4879 = vunpack.c.h.b16 %v4701
        %v4880 = vunpack.c.l.b16 %v4702
        %v4881 = vunpack.c.h.b16 %v4702
        %v4882 = vunpack.c.l.b16 %v4703
        %v4883 = vunpack.c.h.b16 %v4703
        %v4884 = vunpack.c.l.b16 %v4704
        %v4885 = vunpack.c.h.b16 %v4704
        %v4886 = vunpack.c.l.b16 %v4705
        %v4887 = vunpack.c.h.b16 %v4705
        %v4888 = vunpack.c.l.b16 %v4706
        %v4889 = vunpack.c.h.b16 %v4706
        %v4890 = vunpack.c.l.b16 %v4707
        %v4891 = vunpack.c.h.b16 %v4707
        %v4892 = vunpack.c.l.b16 %v4708
        %v4893 = vunpack.c.h.b16 %v4708
        %v4894 = vunpack.c.l.b16 %v4709
        %v4895 = vunpack.c.h.b16 %v4709
        %v4896 = vunpack.c.l.b16 %v4710
        %v4897 = vunpack.c.h.b16 %v4710
        %v4898 = vunpack.c.l.b16 %v4711
        %v4899 = vunpack.c.h.b16 %v4711
        %v4900 = vunpack.c.l.b16 %v4712
        %v4901 = vunpack.c.h.b16 %v4712
        %v4902 = vunpack.c.l.b16 %v4713
        %v4903 = vunpack.c.h.b16 %v4713
        %v4904 = vunpack.c.l.b16 %v4714
        %v4905 = vunpack.c.h.b16 %v4714
        %v4906 = vunpack.c.l.b16 %v4715
        %v4907 = vunpack.c.h.b16 %v4715
        %v4908 = vunpack.c.l.b16 %v4716
        %v4909 = vunpack.c.h.b16 %v4716
        %v4910 = vunpack.c.l.b16 %v4717
        %v4911 = vunpack.c.h.b16 %v4717
        %v4912 = vunpack.c.l.b16 %v4718
        %v4913 = vunpack.c.h.b16 %v4718
        %v4914 = vunpack.c.l.b16 %v4719
        %v4915 = vunpack.c.h.b16 %v4719
        %v4916 = vunpack.c.l.b16 %v4720
        %v4917 = vunpack.c.h.b16 %v4720
        %v4918 = vunpack.c.l.b16 %v4721
        %v4919 = vunpack.c.h.b16 %v4721
        %v4920 = vunpack.c.l.b16 %v4722
        %v4921 = vunpack.c.h.b16 %v4722
        %v4922 = vunpack.c.l.b16 %v4723
        %v4923 = vunpack.c.h.b16 %v4723
        %v4924 = vunpack.c.l.b16 %v4724
        %v4925 = vunpack.c.h.b16 %v4724
        %v4926 = vunpack.c.l.b16 %v4725
        %v4927 = vunpack.c.h.b16 %v4725
        %v4928 = vunpack.c.l.b16 %v4726
        %v4929 = vunpack.c.h.b16 %v4726
        %v4930 = vunpack.c.l.b16 %v4727
        %v4931 = vunpack.c.h.b16 %v4727
        %v4932 = vunpack.c.l.b16 %v4728
        %v4933 = vunpack.c.h.b16 %v4728
        %v4934 = vunpack.c.l.b16 %v4729
        %v4935 = vunpack.c.h.b16 %v4729
        %v4936 = vunpack.c.l.b16 %v4730
        %v4937 = vunpack.c.h.b16 %v4730
        %v4938 = vunpack.c.l.b16 %v4731
        %v4939 = vunpack.c.h.b16 %v4731
        %v4940 = vunpack.c.l.b16 %v4732
        %v4941 = vunpack.c.h.b16 %v4732
        %v4942 = vunpack.c.l.b16 %v4733
        %v4943 = vunpack.c.h.b16 %v4733
        %v4944 = vunpack.c.l.b16 %v4734
        %v4945 = vunpack.c.h.b16 %v4734
        %v4946 = vunpack.c.l.b16 %v4735
        %v4947 = vunpack.c.h.b16 %v4735
        %v4948 = vunpack.c.l.b16 %v4736
        %v4949 = vunpack.c.h.b16 %v4736
        %v4950 = vunpack.c.l.b16 %v4737
        %v4951 = vunpack.c.h.b16 %v4737
        %v4952 = vunpack.c.l.b16 %v4738
        %v4953 = vunpack.c.h.b16 %v4738
        %v4954 = vunpack.c.l.b16 %v4739
        %v4955 = vunpack.c.h.b16 %v4739
        %v4956 = vunpack.c.l.b16 %v4740
        %v4957 = vunpack.c.h.b16 %v4740
        %v4958 = vunpack.c.l.b16 %v4741
        %v4959 = vunpack.c.h.b16 %v4741
        %v4960 = vunpack.c.l.b16 %v4742
        %v4961 = vunpack.c.h.b16 %v4742
        %v4962 = vunpack.c.l.b16 %v4743
        %v4963 = vunpack.c.h.b16 %v4743
        %v4964 = vunpack.c.l.b16 %v4744
        %v4965 = vunpack.c.h.b16 %v4744
        %v4966 = vunpack.c.l.b16 %v4745
        %v4967 = vunpack.c.h.b16 %v4745
        %v4968 = vunpack.c.l.b16 %v4746
        %v4969 = vunpack.c.h.b16 %v4746
        %v4970 = vunpack.c.l.b16 %v4747
        %v4971 = vunpack.c.h.b16 %v4747
        %v4972 = vunpack.c.l.b16 %v4748
        %v4973 = vunpack.c.h.b16 %v4748
        %v4974 = vunpack.c.l.b16 %v4749
        %v4975 = vunpack.c.h.b16 %v4749
        %v4976 = vunpack.c.l.b16 %v4750
        %v4977 = vunpack.c.h.b16 %v4750
        %v4978 = vunpack.c.l.b16 %v4751
        %v4979 = vunpack.c.h.b16 %v4751
        %v4980 = vunpack.c.l.b16 %v4752
        %v4981 = vunpack.c.h.b16 %v4752
        %v4982 = vunpack.c.l.b16 %v4753
        %v4983 = vunpack.c.h.b16 %v4753
        %v4984 = vunpack.c.l.b16 %v4754
        %v4985 = vunpack.c.h.b16 %v4754
        %v4986 = vunpack.c.l.b16 %v4755
        %v4987 = vunpack.c.h.b16 %v4755
        %v4988 = vunpack.c.l.b16 %v4756
        %v4989 = vunpack.c.h.b16 %v4756
        %v4990 = vunpack.c.l.b16 %v4757
        %v4991 = vunpack.c.h.b16 %v4757
        %v4992 = vpack.c.b16 %v4872, %v4864
        %v4993 = vpack.c.b16 %v4873, %v4865
        %v4994 = vpack.c.b16 %v4874, %v4866
        %v4995 = vpack.c.b16 %v4875, %v4867
        %v4996 = vpack.c.b16 %v4876, %v4868
        %v4997 = vpack.c.b16 %v4877, %v4869
        %v4998 = vpack.c.b16 %v4878, %v4870
        %v4999 = vpack.c.b16 %v4879, %v4871
        %v5000 = vpack.c.b16 %v4888, %v4880
        %v5001 = vpack.c.b16 %v4889, %v4881
        %v5002 = vpack.c.b16 %v4890, %v4882
        %v5003 = vpack.c.b16 %v4891, %v4883
        %v5004 = vpack.c.b16 %v4892, %v4884
        %v5005 = vpack.c.b16 %v4893, %v4885
        %v5006 = vpack.c.b16 %v4894, %v4886
        %v5007 = vpack.c.b16 %v4895, %v4887
        %v5008 = vpack.c.b16 %v4904, %v4896
        %v5009 = vpack.c.b16 %v4905, %v4897
        %v5010 = vpack.c.b16 %v4906, %v4898
        %v5011 = vpack.c.b16 %v4907, %v4899
        %v5012 = vpack.c.b16 %v4908, %v4900
        %v5013 = vpack.c.b16 %v4909, %v4901
        %v5014 = vpack.c.b16 %v4910, %v4902
        %v5015 = vpack.c.b16 %v4911, %v4903
        %v5016 = vpack.c.b16 %v4920, %v4912
        %v5017 = vpack.c.b16 %v4921, %v4913
        %v5018 = vpack.c.b16 %v4922, %v4914
        %v5019 = vpack.c.b16 %v4923, %v4915
        %v5020 = vpack.c.b16 %v4924, %v4916
        %v5021 = vpack.c.b16 %v4925, %v4917
        %v5022 = vpack.c.b16 %v4926, %v4918
        %v5023 = vpack.c.b16 %v4927, %v4919
        %v5024 = vpack.c.b16 %v4936, %v4928
        %v5025 = vpack.c.b16 %v4937, %v4929
        %v5026 = vpack.c.b16 %v4938, %v4930
        %v5027 = vpack.c.b16 %v4939, %v4931
        %v5028 = vpack.c.b16 %v4940, %v4932
        %v5029 = vpack.c.b16 %v4941, %v4933
        %v5030 = vpack.c.b16 %v4942, %v4934
        %v5031 = vpack.c.b16 %v4943, %v4935
        %v5032 = vpack.c.b16 %v4952, %v4944
        %v5033 = vpack.c.b16 %v4953, %v4945
        %v5034 = vpack.c.b16 %v4954, %v4946
        %v5035 = vpack.c.b16 %v4955, %v4947
        %v5036 = vpack.c.b16 %v4956, %v4948
        %v5037 = vpack.c.b16 %v4957, %v4949
        %v5038 = vpack.c.b16 %v4958, %v4950
        %v5039 = vpack.c.b16 %v4959, %v4951
        %v5040 = vpack.c.b16 %v4968, %v4960
        %v5041 = vpack.c.b16 %v4969, %v4961
        %v5042 = vpack.c.b16 %v4970, %v4962
        %v5043 = vpack.c.b16 %v4971, %v4963
        %v5044 = vpack.c.b16 %v4972, %v4964
        %v5045 = vpack.c.b16 %v4973, %v4965
        %v5046 = vpack.c.b16 %v4974, %v4966
        %v5047 = vpack.c.b16 %v4975, %v4967
        %v5048 = vpack.c.b16 %v4984, %v4976
        %v5049 = vpack.c.b16 %v4985, %v4977
        %v5050 = vpack.c.b16 %v4986, %v4978
        %v5051 = vpack.c.b16 %v4987, %v4979
        %v5052 = vpack.c.b16 %v4988, %v4980
        %v5053 = vpack.c.b16 %v4989, %v4981
        %v5054 = vpack.c.b16 %v4990, %v4982
        %v5055 = vpack.c.b16 %v4991, %v4983
        %5120 = vmatprep.subr.bf16.mxu0 %v5049
        %5121 = vmatpush1.bf16.msra.mxu0 %v5048
        %5122 = vmatprep.subr.bf16.mxu0 %v5041
        %5123 = vmatpush1.bf16.msra.mxu0 %v5040
        %5124 = vmatprep.subr.bf16.mxu0 %v5033
        %5125 = vmatpush1.bf16.msra.mxu0 %v5032
        %5126 = vmatprep.subr.bf16.mxu0 %v5025
        %5127 = vmatpush1.bf16.msra.mxu0 %v5024
        %5128 = vmatprep.subr.bf16.mxu0 %v5017
        %5129 = vmatpush1.bf16.msra.mxu0 %v5016
        %5130 = vmatprep.subr.bf16.mxu0 %v5009
        %5131 = vmatpush1.bf16.msra.mxu0 %v5008
        %5132 = vmatprep.subr.bf16.mxu0 %v5001
        %5133 = vmatpush1.bf16.msra.mxu0 %v5000
        %5134 = vmatprep.subr.bf16.mxu0 %v4993
        %5135 = vmatpush1.bf16.msra.mxu0 %v4992
        %5136 = vmatprep.subr.bf16.mxu0 0
        %5137 = vmatpush2.bf16.msra.mxu0 0
        %5138 = vmatprep.subr.bf16.mxu0 0
        %5139 = vmatpush2.bf16.msra.mxu0 0
        %5140 = vmatprep.subr.bf16.mxu0 0
        %5141 = vmatpush2.bf16.msra.mxu0 0
        %5142 = vmatprep.subr.bf16.mxu0 0
        %5143 = vmatpush2.bf16.msra.mxu0 0
        %5144 = vmatprep.subr.bf16.mxu0 0
        %5145 = vmatpush2.bf16.msra.mxu0 0
        %5146 = vmatprep.subr.bf16.mxu0 0
        %5147 = vmatpush2.bf16.msra.mxu0 0
        %5148 = vmatprep.subr.bf16.mxu0 0
        %5149 = vmatpush2.bf16.msra.mxu0 0
        %5150 = vmatprep.subr.bf16.mxu0 0
        %5151 = vmatpush2.bf16.msra.mxu0 0
        %5152 = vmatprep.mubr.bf16.mxu0 0
        %5153 = vmatmul.mubr.bf16.gmra.mxu0 %v4662
        %v5154 = vpop.f32.mrf.mxu0
        %v5155 = vadd.f32 %v4763, %v5154
        %v5156 = vpop.f32.mrf.mxu0
        %v5157 = vadd.f32 %v4767, %v5156
        %v5158 = vpop.f32.mrf.mxu0
        %v5159 = vadd.f32 %v4763, %v5158
        %v5160 = vpop.f32.mrf.mxu0
        %v5161 = vadd.f32 %v4767, %v5160
        %5162 = vmatprep.mubr.bf16.mxu0 0
        %5163 = vmatmul.mubr.bf16.gmra.mxu0 %v4663
        %v5164 = vpop.f32.mrf.mxu0
        %v5165 = vadd.f32 %v4763, %v5164
        %v5166 = vpop.f32.mrf.mxu0
        %v5167 = vadd.f32 %v4767, %v5166
        %v5168 = vpop.f32.mrf.mxu0
        %v5169 = vadd.f32 %v4763, %v5168
        %v5170 = vpop.f32.mrf.mxu0
        %v5171 = vadd.f32 %v4767, %v5170
        %5172 = vmatprep.mubr.bf16.mxu0 0
        %5173 = vmatmul.mubr.bf16.gmra.mxu0 %v4664
        %v5174 = vpop.f32.mrf.mxu0
        %v5175 = vadd.f32 %v4763, %v5174
        %v5176 = vpop.f32.mrf.mxu0
        %v5177 = vadd.f32 %v4767, %v5176
        %v5178 = vpop.f32.mrf.mxu0
        %v5179 = vadd.f32 %v4763, %v5178
        %v5180 = vpop.f32.mrf.mxu0
        %v5181 = vadd.f32 %v4767, %v5180
        %5182 = vmatprep.mubr.bf16.mxu0 0
        %5183 = vmatmul.mubr.bf16.gmra.mxu0 %v4665
        %v5184 = vpop.f32.mrf.mxu0
        %v5185 = vadd.f32 %v4763, %v5184
        %v5186 = vpop.f32.mrf.mxu0
        %v5187 = vadd.f32 %v4767, %v5186
        %v5188 = vpop.f32.mrf.mxu0
        %v5189 = vadd.f32 %v4763, %v5188
        %v5190 = vpop.f32.mrf.mxu0
        %v5191 = vadd.f32 %v4767, %v5190
        %5192 = vmatprep.mubr.bf16.mxu0 0
        %5193 = vmatmul.mubr.bf16.gmra.mxu0 %v4666
        %v5194 = vpop.f32.mrf.mxu0
        %v5195 = vadd.f32 %v4763, %v5194
        %v5196 = vpop.f32.mrf.mxu0
        %v5197 = vadd.f32 %v4767, %v5196
        %v5198 = vpop.f32.mrf.mxu0
        %v5199 = vadd.f32 %v4763, %v5198
        %v5200 = vpop.f32.mrf.mxu0
        %v5201 = vadd.f32 %v4767, %v5200
        %5202 = vmatprep.mubr.bf16.mxu0 0
        %5203 = vmatmul.mubr.bf16.gmra.mxu0 %v4667
        %v5204 = vpop.f32.mrf.mxu0
        %v5205 = vadd.f32 %v4763, %v5204
        %v5206 = vpop.f32.mrf.mxu0
        %v5207 = vadd.f32 %v4767, %v5206
        %v5208 = vpop.f32.mrf.mxu0
        %v5209 = vadd.f32 %v4763, %v5208
        %v5210 = vpop.f32.mrf.mxu0
        %v5211 = vadd.f32 %v4767, %v5210
        %5212 = vmatprep.mubr.bf16.mxu0 0
        %5213 = vmatmul.mubr.bf16.gmra.mxu0 %v4668
        %v5214 = vpop.f32.mrf.mxu0
        %v5215 = vadd.f32 %v4763, %v5214
        %v5216 = vpop.f32.mrf.mxu0
        %v5217 = vadd.f32 %v4767, %v5216
        %v5218 = vpop.f32.mrf.mxu0
        %v5219 = vadd.f32 %v4763, %v5218
        %v5220 = vpop.f32.mrf.mxu0
        %v5221 = vadd.f32 %v4767, %v5220
        %5222 = vmatprep.mubr.bf16.mxu0 0
        %5223 = vmatmul.mubr.bf16.gmra.mxu0 %v4669
        %v5224 = vpop.f32.mrf.mxu0
        %v5225 = vadd.f32 %v4763, %v5224
        %v5226 = vpop.f32.mrf.mxu0
        %v5227 = vadd.f32 %v4767, %v5226
        %v5228 = vpop.f32.mrf.mxu0
        %v5229 = vadd.f32 %v4763, %v5228
        %v5230 = vpop.f32.mrf.mxu0
        %v5231 = vadd.f32 %v4767, %v5230
        %5232 = vmatprep.mubr.bf16.mxu0 0
        %5233 = vmatmul.mubr.bf16.gmra.mxu0 %v4670
        %v5234 = vpop.f32.mrf.mxu0
        %v5235 = vadd.f32 %v4763, %v5234
        %v5236 = vpop.f32.mrf.mxu0
        %v5237 = vadd.f32 %v4767, %v5236
        %v5238 = vpop.f32.mrf.mxu0
        %v5239 = vadd.f32 %v4763, %v5238
        %v5240 = vpop.f32.mrf.mxu0
        %v5241 = vadd.f32 %v4767, %v5240
        %5242 = vmatprep.mubr.bf16.mxu0 0
        %5243 = vmatmul.mubr.bf16.gmra.mxu0 %v4671
        %v5244 = vpop.f32.mrf.mxu0
        %v5245 = vadd.f32 %v4763, %v5244
        %v5246 = vpop.f32.mrf.mxu0
        %v5247 = vadd.f32 %v4767, %v5246
        %v5248 = vpop.f32.mrf.mxu0
        %v5249 = vadd.f32 %v4763, %v5248
        %v5250 = vpop.f32.mrf.mxu0
        %v5251 = vadd.f32 %v4767, %v5250
        %5252 = vmatprep.mubr.bf16.mxu0 0
        %5253 = vmatmul.mubr.bf16.gmra.mxu0 %v4672
        %v5254 = vpop.f32.mrf.mxu0
        %v5255 = vadd.f32 %v4763, %v5254
        %v5256 = vpop.f32.mrf.mxu0
        %v5257 = vadd.f32 %v4767, %v5256
        %v5258 = vpop.f32.mrf.mxu0
        %v5259 = vadd.f32 %v4763, %v5258
        %v5260 = vpop.f32.mrf.mxu0
        %v5261 = vadd.f32 %v4767, %v5260
        %5262 = vmatprep.mubr.bf16.mxu0 0
        %5263 = vmatmul.mubr.bf16.gmra.mxu0 %v4673
        %v5264 = vpop.f32.mrf.mxu0
        %v5265 = vadd.f32 %v4763, %v5264
        %v5266 = vpop.f32.mrf.mxu0
        %v5267 = vadd.f32 %v4767, %v5266
        %v5268 = vpop.f32.mrf.mxu0
        %v5269 = vadd.f32 %v4763, %v5268
        %v5270 = vpop.f32.mrf.mxu0
        %v5271 = vadd.f32 %v4767, %v5270
        %5272 = vmatprep.mubr.bf16.mxu0 0
        %5273 = vmatmul.mubr.bf16.gmra.mxu0 %v4674
        %v5274 = vpop.f32.mrf.mxu0
        %v5275 = vadd.f32 %v4763, %v5274
        %v5276 = vpop.f32.mrf.mxu0
        %v5277 = vadd.f32 %v4767, %v5276
        %v5278 = vpop.f32.mrf.mxu0
        %v5279 = vadd.f32 %v4763, %v5278
        %v5280 = vpop.f32.mrf.mxu0
        %v5281 = vadd.f32 %v4767, %v5280
        %5282 = vmatprep.mubr.bf16.mxu0 0
        %5283 = vmatmul.mubr.bf16.gmra.mxu0 %v4675
        %v5284 = vpop.f32.mrf.mxu0
        %v5285 = vadd.f32 %v4763, %v5284
        %v5286 = vpop.f32.mrf.mxu0
        %v5287 = vadd.f32 %v4767, %v5286
        %v5288 = vpop.f32.mrf.mxu0
        %v5289 = vadd.f32 %v4763, %v5288
        %v5290 = vpop.f32.mrf.mxu0
        %v5291 = vadd.f32 %v4767, %v5290
        %5292 = vmatprep.mubr.bf16.mxu0 0
        %5293 = vmatmul.mubr.bf16.gmra.mxu0 %v4676
        %v5294 = vpop.f32.mrf.mxu0
        %v5295 = vadd.f32 %v4763, %v5294
        %v5296 = vpop.f32.mrf.mxu0
        %v5297 = vadd.f32 %v4767, %v5296
        %v5298 = vpop.f32.mrf.mxu0
        %v5299 = vadd.f32 %v4763, %v5298
        %v5300 = vpop.f32.mrf.mxu0
        %v5301 = vadd.f32 %v4767, %v5300
        %5302 = vmatprep.mubr.bf16.mxu0 0
        %5303 = vmatmul.mubr.bf16.gmra.mxu0 %v4677
        %v5304 = vpop.f32.mrf.mxu0
        %v5305 = vadd.f32 %v4763, %v5304
        %v5306 = vpop.f32.mrf.mxu0
        %v5307 = vadd.f32 %v4767, %v5306
        %v5308 = vpop.f32.mrf.mxu0
        %v5309 = vadd.f32 %v4763, %v5308
        %v5310 = vpop.f32.mrf.mxu0
        %v5311 = vadd.f32 %v4767, %v5310
        %5312 = vmatprep.mubr.bf16.mxu0 0
        %5313 = vmatmul.mubr.bf16.gmra.mxu0 %v4678
        %v5314 = vpop.f32.mrf.mxu0
        %v5315 = vadd.f32 %v4763, %v5314
        %v5316 = vpop.f32.mrf.mxu0
        %v5317 = vadd.f32 %v4767, %v5316
        %v5318 = vpop.f32.mrf.mxu0
        %v5319 = vadd.f32 %v4763, %v5318
        %v5320 = vpop.f32.mrf.mxu0
        %v5321 = vadd.f32 %v4767, %v5320
        %5322 = vmatprep.mubr.bf16.mxu0 0
        %5323 = vmatmul.mubr.bf16.gmra.mxu0 %v4679
        %v5324 = vpop.f32.mrf.mxu0
        %v5325 = vadd.f32 %v4763, %v5324
        %v5326 = vpop.f32.mrf.mxu0
        %v5327 = vadd.f32 %v4767, %v5326
        %v5328 = vpop.f32.mrf.mxu0
        %v5329 = vadd.f32 %v4763, %v5328
        %v5330 = vpop.f32.mrf.mxu0
        %v5331 = vadd.f32 %v4767, %v5330
        %5332 = vmatprep.mubr.bf16.mxu0 0
        %5333 = vmatmul.mubr.bf16.gmra.mxu0 %v4680
        %v5334 = vpop.f32.mrf.mxu0
        %v5335 = vadd.f32 %v4763, %v5334
        %v5336 = vpop.f32.mrf.mxu0
        %v5337 = vadd.f32 %v4767, %v5336
        %v5338 = vpop.f32.mrf.mxu0
        %v5339 = vadd.f32 %v4763, %v5338
        %v5340 = vpop.f32.mrf.mxu0
        %v5341 = vadd.f32 %v4767, %v5340
        %5342 = vmatprep.mubr.bf16.mxu0 0
        %5343 = vmatmul.mubr.bf16.gmra.mxu0 %v4681
        %v5344 = vpop.f32.mrf.mxu0
        %v5345 = vadd.f32 %v4763, %v5344
        %v5346 = vpop.f32.mrf.mxu0
        %v5347 = vadd.f32 %v4767, %v5346
        %v5348 = vpop.f32.mrf.mxu0
        %v5349 = vadd.f32 %v4763, %v5348
        %v5350 = vpop.f32.mrf.mxu0
        %v5351 = vadd.f32 %v4767, %v5350
        %5352 = vmatprep.mubr.bf16.mxu0 0
        %5353 = vmatmul.mubr.bf16.gmra.mxu0 %v4682
        %v5354 = vpop.f32.mrf.mxu0
        %v5355 = vadd.f32 %v4763, %v5354
        %v5356 = vpop.f32.mrf.mxu0
        %v5357 = vadd.f32 %v4767, %v5356
        %v5358 = vpop.f32.mrf.mxu0
        %v5359 = vadd.f32 %v4763, %v5358
        %v5360 = vpop.f32.mrf.mxu0
        %v5361 = vadd.f32 %v4767, %v5360
        %5362 = vmatprep.mubr.bf16.mxu0 0
        %5363 = vmatmul.mubr.bf16.gmra.mxu0 %v4683
        %v5364 = vpop.f32.mrf.mxu0
        %v5365 = vadd.f32 %v4763, %v5364
        %v5366 = vpop.f32.mrf.mxu0
        %v5367 = vadd.f32 %v4767, %v5366
        %v5368 = vpop.f32.mrf.mxu0
        %v5369 = vadd.f32 %v4763, %v5368
        %v5370 = vpop.f32.mrf.mxu0
        %v5371 = vadd.f32 %v4767, %v5370
        %5372 = vmatprep.mubr.bf16.mxu0 0
        %5373 = vmatmul.mubr.bf16.gmra.mxu0 %v4684
        %v5374 = vpop.f32.mrf.mxu0
        %v5375 = vadd.f32 %v4763, %v5374
        %v5376 = vpop.f32.mrf.mxu0
        %v5377 = vadd.f32 %v4767, %v5376
        %v5378 = vpop.f32.mrf.mxu0
        %v5379 = vadd.f32 %v4763, %v5378
        %v5380 = vpop.f32.mrf.mxu0
        %v5381 = vadd.f32 %v4767, %v5380
        %5382 = vmatprep.mubr.bf16.mxu0 0
        %5383 = vmatmul.mubr.bf16.gmra.mxu0 %v4685
        %v5384 = vpop.f32.mrf.mxu0
        %v5385 = vadd.f32 %v4763, %v5384
        %v5386 = vpop.f32.mrf.mxu0
        %v5387 = vadd.f32 %v4767, %v5386
        %v5388 = vpop.f32.mrf.mxu0
        %v5389 = vadd.f32 %v4763, %v5388
        %v5390 = vpop.f32.mrf.mxu0
        %v5391 = vadd.f32 %v4767, %v5390
        %5392 = vmatprep.mubr.bf16.mxu0 0
        %5393 = vmatmul.mubr.bf16.gmra.mxu0 %v4686
        %v5394 = vpop.f32.mrf.mxu0
        %v5395 = vadd.f32 %v4763, %v5394
        %v5396 = vpop.f32.mrf.mxu0
        %v5397 = vadd.f32 %v4767, %v5396
        %v5398 = vpop.f32.mrf.mxu0
        %v5399 = vadd.f32 %v4763, %v5398
        %v5400 = vpop.f32.mrf.mxu0
        %v5401 = vadd.f32 %v4767, %v5400
        %5402 = vmatprep.mubr.bf16.mxu0 0
        %5403 = vmatmul.mubr.bf16.gmra.mxu0 %v4687
        %v5404 = vpop.f32.mrf.mxu0
        %v5405 = vadd.f32 %v4763, %v5404
        %v5406 = vpop.f32.mrf.mxu0
        %v5407 = vadd.f32 %v4767, %v5406
        %v5408 = vpop.f32.mrf.mxu0
        %v5409 = vadd.f32 %v4763, %v5408
        %v5410 = vpop.f32.mrf.mxu0
        %v5411 = vadd.f32 %v4767, %v5410
        %5412 = vmatprep.mubr.bf16.mxu0 0
        %5413 = vmatmul.mubr.bf16.gmra.mxu0 %v4688
        %v5414 = vpop.f32.mrf.mxu0
        %v5415 = vadd.f32 %v4763, %v5414
        %v5416 = vpop.f32.mrf.mxu0
        %v5417 = vadd.f32 %v4767, %v5416
        %v5418 = vpop.f32.mrf.mxu0
        %v5419 = vadd.f32 %v4763, %v5418
        %v5420 = vpop.f32.mrf.mxu0
        %v5421 = vadd.f32 %v4767, %v5420
        %5422 = vmatprep.mubr.bf16.mxu0 0
        %5423 = vmatmul.mubr.bf16.gmra.mxu0 %v4689
        %v5424 = vpop.f32.mrf.mxu0
        %v5425 = vadd.f32 %v4763, %v5424
        %v5426 = vpop.f32.mrf.mxu0
        %v5427 = vadd.f32 %v4767, %v5426
        %v5428 = vpop.f32.mrf.mxu0
        %v5429 = vadd.f32 %v4763, %v5428
        %v5430 = vpop.f32.mrf.mxu0
        %v5431 = vadd.f32 %v4767, %v5430
        %5432 = vmatprep.mubr.bf16.mxu0 0
        %5433 = vmatmul.mubr.bf16.gmra.mxu0 %v4690
        %v5434 = vpop.f32.mrf.mxu0
        %v5435 = vadd.f32 %v4763, %v5434
        %v5436 = vpop.f32.mrf.mxu0
        %v5437 = vadd.f32 %v4767, %v5436
        %v5438 = vpop.f32.mrf.mxu0
        %v5439 = vadd.f32 %v4763, %v5438
        %v5440 = vpop.f32.mrf.mxu0
        %v5441 = vadd.f32 %v4767, %v5440
        %5442 = vmatprep.mubr.bf16.mxu0 0
        %5443 = vmatmul.mubr.bf16.gmra.mxu0 %v4691
        %v5444 = vpop.f32.mrf.mxu0
        %v5445 = vadd.f32 %v4763, %v5444
        %v5446 = vpop.f32.mrf.mxu0
        %v5447 = vadd.f32 %v4767, %v5446
        %v5448 = vpop.f32.mrf.mxu0
        %v5449 = vadd.f32 %v4763, %v5448
        %v5450 = vpop.f32.mrf.mxu0
        %v5451 = vadd.f32 %v4767, %v5450
        %5452 = vmatprep.mubr.bf16.mxu0 0
        %5453 = vmatmul.mubr.bf16.gmra.mxu0 %v4692
        %v5454 = vpop.f32.mrf.mxu0
        %v5455 = vadd.f32 %v4763, %v5454
        %v5456 = vpop.f32.mrf.mxu0
        %v5457 = vadd.f32 %v4767, %v5456
        %v5458 = vpop.f32.mrf.mxu0
        %v5459 = vadd.f32 %v4763, %v5458
        %v5460 = vpop.f32.mrf.mxu0
        %v5461 = vadd.f32 %v4767, %v5460
        %5462 = vmatprep.mubr.bf16.mxu0 0
        %5463 = vmatmul.mubr.bf16.gmra.mxu0 %v4693
        %v5464 = vpop.f32.mrf.mxu0
        %v5465 = vadd.f32 %v4763, %v5464
        %v5466 = vpop.f32.mrf.mxu0
        %v5467 = vadd.f32 %v4767, %v5466
        %v5468 = vpop.f32.mrf.mxu0
        %v5469 = vadd.f32 %v4763, %v5468
        %v5470 = vpop.f32.mrf.mxu0
        %v5471 = vadd.f32 %v4767, %v5470
        %5472 = vdwg.mxu0
        %5473 = vmatprep.subr.bf16.mxu0 %v5051
        %5474 = vmatpush1.bf16.msra.mxu0 %v5050
        %5475 = vmatprep.subr.bf16.mxu0 %v5043
        %5476 = vmatpush1.bf16.msra.mxu0 %v5042
        %5477 = vmatprep.subr.bf16.mxu0 %v5035
        %5478 = vmatpush1.bf16.msra.mxu0 %v5034
        %5479 = vmatprep.subr.bf16.mxu0 %v5027
        %5480 = vmatpush1.bf16.msra.mxu0 %v5026
        %5481 = vmatprep.subr.bf16.mxu0 %v5019
        %5482 = vmatpush1.bf16.msra.mxu0 %v5018
        %5483 = vmatprep.subr.bf16.mxu0 %v5011
        %5484 = vmatpush1.bf16.msra.mxu0 %v5010
        %5485 = vmatprep.subr.bf16.mxu0 %v5003
        %5486 = vmatpush1.bf16.msra.mxu0 %v5002
        %5487 = vmatprep.subr.bf16.mxu0 %v4995
        %5488 = vmatpush1.bf16.msra.mxu0 %v4994
        %5489 = vmatprep.subr.bf16.mxu0 0
        %5490 = vmatpush2.bf16.msra.mxu0 0
        %5491 = vmatprep.subr.bf16.mxu0 0
        %5492 = vmatpush2.bf16.msra.mxu0 0
        %5493 = vmatprep.subr.bf16.mxu0 0
        %5494 = vmatpush2.bf16.msra.mxu0 0
        %5495 = vmatprep.subr.bf16.mxu0 0
        %5496 = vmatpush2.bf16.msra.mxu0 0
        %5497 = vmatprep.subr.bf16.mxu0 0
        %5498 = vmatpush2.bf16.msra.mxu0 0
        %5499 = vmatprep.subr.bf16.mxu0 0
        %5500 = vmatpush2.bf16.msra.mxu0 0
        %5501 = vmatprep.subr.bf16.mxu0 0
        %5502 = vmatpush2.bf16.msra.mxu0 0
        %5503 = vmatprep.subr.bf16.mxu0 0
        %5504 = vmatpush2.bf16.msra.mxu0 0
        %5505 = vmatprep.mubr.bf16.mxu0 0
        %5506 = vmatmul.mubr.bf16.gmra.mxu0 %v4662
        %v5507 = vpop.f32.mrf.mxu0
        %v5508 = vadd.f32 %v4771, %v5507
        %v5509 = vpop.f32.mrf.mxu0
        %v5510 = vadd.f32 %v4775, %v5509
        %v5511 = vpop.f32.mrf.mxu0
        %v5512 = vadd.f32 %v4771, %v5511
        %v5513 = vpop.f32.mrf.mxu0
        %v5514 = vadd.f32 %v4775, %v5513
        %5515 = vmatprep.mubr.bf16.mxu0 0
        %5516 = vmatmul.mubr.bf16.gmra.mxu0 %v4663
        %v5517 = vpop.f32.mrf.mxu0
        %v5518 = vadd.f32 %v4771, %v5517
        %v5519 = vpop.f32.mrf.mxu0
        %v5520 = vadd.f32 %v4775, %v5519
        %v5521 = vpop.f32.mrf.mxu0
        %v5522 = vadd.f32 %v4771, %v5521
        %v5523 = vpop.f32.mrf.mxu0
        %v5524 = vadd.f32 %v4775, %v5523
        %5525 = vmatprep.mubr.bf16.mxu0 0
        %5526 = vmatmul.mubr.bf16.gmra.mxu0 %v4664
        %v5527 = vpop.f32.mrf.mxu0
        %v5528 = vadd.f32 %v4771, %v5527
        %v5529 = vpop.f32.mrf.mxu0
        %v5530 = vadd.f32 %v4775, %v5529
        %v5531 = vpop.f32.mrf.mxu0
        %v5532 = vadd.f32 %v4771, %v5531
        %v5533 = vpop.f32.mrf.mxu0
        %v5534 = vadd.f32 %v4775, %v5533
        %5535 = vmatprep.mubr.bf16.mxu0 0
        %5536 = vmatmul.mubr.bf16.gmra.mxu0 %v4665
        %v5537 = vpop.f32.mrf.mxu0
        %v5538 = vadd.f32 %v4771, %v5537
        %v5539 = vpop.f32.mrf.mxu0
        %v5540 = vadd.f32 %v4775, %v5539
        %v5541 = vpop.f32.mrf.mxu0
        %v5542 = vadd.f32 %v4771, %v5541
        %v5543 = vpop.f32.mrf.mxu0
        %v5544 = vadd.f32 %v4775, %v5543
        %5545 = vmatprep.mubr.bf16.mxu0 0
        %5546 = vmatmul.mubr.bf16.gmra.mxu0 %v4666
        %v5547 = vpop.f32.mrf.mxu0
        %v5548 = vadd.f32 %v4771, %v5547
        %v5549 = vpop.f32.mrf.mxu0
        %v5550 = vadd.f32 %v4775, %v5549
        %v5551 = vpop.f32.mrf.mxu0
        %v5552 = vadd.f32 %v4771, %v5551
        %v5553 = vpop.f32.mrf.mxu0
        %v5554 = vadd.f32 %v4775, %v5553
        %5555 = vmatprep.mubr.bf16.mxu0 0
        %5556 = vmatmul.mubr.bf16.gmra.mxu0 %v4667
        %v5557 = vpop.f32.mrf.mxu0
        %v5558 = vadd.f32 %v4771, %v5557
        %v5559 = vpop.f32.mrf.mxu0
        %v5560 = vadd.f32 %v4775, %v5559
        %v5561 = vpop.f32.mrf.mxu0
        %v5562 = vadd.f32 %v4771, %v5561
        %v5563 = vpop.f32.mrf.mxu0
        %v5564 = vadd.f32 %v4775, %v5563
        %5565 = vmatprep.mubr.bf16.mxu0 0
        %5566 = vmatmul.mubr.bf16.gmra.mxu0 %v4668
        %v5567 = vpop.f32.mrf.mxu0
        %v5568 = vadd.f32 %v4771, %v5567
        %v5569 = vpop.f32.mrf.mxu0
        %v5570 = vadd.f32 %v4775, %v5569
        %v5571 = vpop.f32.mrf.mxu0
        %v5572 = vadd.f32 %v4771, %v5571
        %v5573 = vpop.f32.mrf.mxu0
        %v5574 = vadd.f32 %v4775, %v5573
        %5575 = vmatprep.mubr.bf16.mxu0 0
        %5576 = vmatmul.mubr.bf16.gmra.mxu0 %v4669
        %v5577 = vpop.f32.mrf.mxu0
        %v5578 = vadd.f32 %v4771, %v5577
        %v5579 = vpop.f32.mrf.mxu0
        %v5580 = vadd.f32 %v4775, %v5579
        %v5581 = vpop.f32.mrf.mxu0
        %v5582 = vadd.f32 %v4771, %v5581
        %v5583 = vpop.f32.mrf.mxu0
        %v5584 = vadd.f32 %v4775, %v5583
        %5585 = vmatprep.mubr.bf16.mxu0 0
        %5586 = vmatmul.mubr.bf16.gmra.mxu0 %v4670
        %v5587 = vpop.f32.mrf.mxu0
        %v5588 = vadd.f32 %v4771, %v5587
        %v5589 = vpop.f32.mrf.mxu0
        %v5590 = vadd.f32 %v4775, %v5589
        %v5591 = vpop.f32.mrf.mxu0
        %v5592 = vadd.f32 %v4771, %v5591
        %v5593 = vpop.f32.mrf.mxu0
        %v5594 = vadd.f32 %v4775, %v5593
        %5595 = vmatprep.mubr.bf16.mxu0 0
        %5596 = vmatmul.mubr.bf16.gmra.mxu0 %v4671
        %v5597 = vpop.f32.mrf.mxu0
        %v5598 = vadd.f32 %v4771, %v5597
        %v5599 = vpop.f32.mrf.mxu0
        %v5600 = vadd.f32 %v4775, %v5599
        %v5601 = vpop.f32.mrf.mxu0
        %v5602 = vadd.f32 %v4771, %v5601
        %v5603 = vpop.f32.mrf.mxu0
        %v5604 = vadd.f32 %v4775, %v5603
        %5605 = vmatprep.mubr.bf16.mxu0 0
        %5606 = vmatmul.mubr.bf16.gmra.mxu0 %v4672
        %v5607 = vpop.f32.mrf.mxu0
        %v5608 = vadd.f32 %v4771, %v5607
        %v5609 = vpop.f32.mrf.mxu0
        %v5610 = vadd.f32 %v4775, %v5609
        %v5611 = vpop.f32.mrf.mxu0
        %v5612 = vadd.f32 %v4771, %v5611
        %v5613 = vpop.f32.mrf.mxu0
        %v5614 = vadd.f32 %v4775, %v5613
        %5615 = vmatprep.mubr.bf16.mxu0 0
        %5616 = vmatmul.mubr.bf16.gmra.mxu0 %v4673
        %v5617 = vpop.f32.mrf.mxu0
        %v5618 = vadd.f32 %v4771, %v5617
        %v5619 = vpop.f32.mrf.mxu0
        %v5620 = vadd.f32 %v4775, %v5619
        %v5621 = vpop.f32.mrf.mxu0
        %v5622 = vadd.f32 %v4771, %v5621
        %v5623 = vpop.f32.mrf.mxu0
        %v5624 = vadd.f32 %v4775, %v5623
        %5625 = vmatprep.mubr.bf16.mxu0 0
        %5626 = vmatmul.mubr.bf16.gmra.mxu0 %v4674
        %v5627 = vpop.f32.mrf.mxu0
        %v5628 = vadd.f32 %v4771, %v5627
        %v5629 = vpop.f32.mrf.mxu0
        %v5630 = vadd.f32 %v4775, %v5629
        %v5631 = vpop.f32.mrf.mxu0
        %v5632 = vadd.f32 %v4771, %v5631
        %v5633 = vpop.f32.mrf.mxu0
        %v5634 = vadd.f32 %v4775, %v5633
        %5635 = vmatprep.mubr.bf16.mxu0 0
        %5636 = vmatmul.mubr.bf16.gmra.mxu0 %v4675
        %v5637 = vpop.f32.mrf.mxu0
        %v5638 = vadd.f32 %v4771, %v5637
        %v5639 = vpop.f32.mrf.mxu0
        %v5640 = vadd.f32 %v4775, %v5639
        %v5641 = vpop.f32.mrf.mxu0
        %v5642 = vadd.f32 %v4771, %v5641
        %v5643 = vpop.f32.mrf.mxu0
        %v5644 = vadd.f32 %v4775, %v5643
        %5645 = vmatprep.mubr.bf16.mxu0 0
        %5646 = vmatmul.mubr.bf16.gmra.mxu0 %v4676
        %v5647 = vpop.f32.mrf.mxu0
        %v5648 = vadd.f32 %v4771, %v5647
        %v5649 = vpop.f32.mrf.mxu0
        %v5650 = vadd.f32 %v4775, %v5649
        %v5651 = vpop.f32.mrf.mxu0
        %v5652 = vadd.f32 %v4771, %v5651
        %v5653 = vpop.f32.mrf.mxu0
        %v5654 = vadd.f32 %v4775, %v5653
        %5655 = vmatprep.mubr.bf16.mxu0 0
        %5656 = vmatmul.mubr.bf16.gmra.mxu0 %v4677
        %v5657 = vpop.f32.mrf.mxu0
        %v5658 = vadd.f32 %v4771, %v5657
        %v5659 = vpop.f32.mrf.mxu0
        %v5660 = vadd.f32 %v4775, %v5659
        %v5661 = vpop.f32.mrf.mxu0
        %v5662 = vadd.f32 %v4771, %v5661
        %v5663 = vpop.f32.mrf.mxu0
        %v5664 = vadd.f32 %v4775, %v5663
        %5665 = vmatprep.mubr.bf16.mxu0 0
        %5666 = vmatmul.mubr.bf16.gmra.mxu0 %v4678
        %v5667 = vpop.f32.mrf.mxu0
        %v5668 = vadd.f32 %v4771, %v5667
        %v5669 = vpop.f32.mrf.mxu0
        %v5670 = vadd.f32 %v4775, %v5669
        %v5671 = vpop.f32.mrf.mxu0
        %v5672 = vadd.f32 %v4771, %v5671
        %v5673 = vpop.f32.mrf.mxu0
        %v5674 = vadd.f32 %v4775, %v5673
        %5675 = vmatprep.mubr.bf16.mxu0 0
        %5676 = vmatmul.mubr.bf16.gmra.mxu0 %v4679
        %v5677 = vpop.f32.mrf.mxu0
        %v5678 = vadd.f32 %v4771, %v5677
        %v5679 = vpop.f32.mrf.mxu0
        %v5680 = vadd.f32 %v4775, %v5679
        %v5681 = vpop.f32.mrf.mxu0
        %v5682 = vadd.f32 %v4771, %v5681
        %v5683 = vpop.f32.mrf.mxu0
        %v5684 = vadd.f32 %v4775, %v5683
        %5685 = vmatprep.mubr.bf16.mxu0 0
        %5686 = vmatmul.mubr.bf16.gmra.mxu0 %v4680
        %v5687 = vpop.f32.mrf.mxu0
        %v5688 = vadd.f32 %v4771, %v5687
        %v5689 = vpop.f32.mrf.mxu0
        %v5690 = vadd.f32 %v4775, %v5689
        %v5691 = vpop.f32.mrf.mxu0
        %v5692 = vadd.f32 %v4771, %v5691
        %v5693 = vpop.f32.mrf.mxu0
        %v5694 = vadd.f32 %v4775, %v5693
        %5695 = vmatprep.mubr.bf16.mxu0 0
        %5696 = vmatmul.mubr.bf16.gmra.mxu0 %v4681
        %v5697 = vpop.f32.mrf.mxu0
        %v5698 = vadd.f32 %v4771, %v5697
        %v5699 = vpop.f32.mrf.mxu0
        %v5700 = vadd.f32 %v4775, %v5699
        %v5701 = vpop.f32.mrf.mxu0
        %v5702 = vadd.f32 %v4771, %v5701
        %v5703 = vpop.f32.mrf.mxu0
        %v5704 = vadd.f32 %v4775, %v5703
        %5705 = vmatprep.mubr.bf16.mxu0 0
        %5706 = vmatmul.mubr.bf16.gmra.mxu0 %v4682
        %v5707 = vpop.f32.mrf.mxu0
        %v5708 = vadd.f32 %v4771, %v5707
        %v5709 = vpop.f32.mrf.mxu0
        %v5710 = vadd.f32 %v4775, %v5709
        %v5711 = vpop.f32.mrf.mxu0
        %v5712 = vadd.f32 %v4771, %v5711
        %v5713 = vpop.f32.mrf.mxu0
        %v5714 = vadd.f32 %v4775, %v5713
        %5715 = vmatprep.mubr.bf16.mxu0 0
        %5716 = vmatmul.mubr.bf16.gmra.mxu0 %v4683
        %v5717 = vpop.f32.mrf.mxu0
        %v5718 = vadd.f32 %v4771, %v5717
        %v5719 = vpop.f32.mrf.mxu0
        %v5720 = vadd.f32 %v4775, %v5719
        %v5721 = vpop.f32.mrf.mxu0
        %v5722 = vadd.f32 %v4771, %v5721
        %v5723 = vpop.f32.mrf.mxu0
        %v5724 = vadd.f32 %v4775, %v5723
        %5725 = vmatprep.mubr.bf16.mxu0 0
        %5726 = vmatmul.mubr.bf16.gmra.mxu0 %v4684
        %v5727 = vpop.f32.mrf.mxu0
        %v5728 = vadd.f32 %v4771, %v5727
        %v5729 = vpop.f32.mrf.mxu0
        %v5730 = vadd.f32 %v4775, %v5729
        %v5731 = vpop.f32.mrf.mxu0
        %v5732 = vadd.f32 %v4771, %v5731
        %v5733 = vpop.f32.mrf.mxu0
        %v5734 = vadd.f32 %v4775, %v5733
        %5735 = vmatprep.mubr.bf16.mxu0 0
        %5736 = vmatmul.mubr.bf16.gmra.mxu0 %v4685
        %v5737 = vpop.f32.mrf.mxu0
        %v5738 = vadd.f32 %v4771, %v5737
        %v5739 = vpop.f32.mrf.mxu0
        %v5740 = vadd.f32 %v4775, %v5739
        %v5741 = vpop.f32.mrf.mxu0
        %v5742 = vadd.f32 %v4771, %v5741
        %v5743 = vpop.f32.mrf.mxu0
        %v5744 = vadd.f32 %v4775, %v5743
        %5745 = vmatprep.mubr.bf16.mxu0 0
        %5746 = vmatmul.mubr.bf16.gmra.mxu0 %v4686
        %v5747 = vpop.f32.mrf.mxu0
        %v5748 = vadd.f32 %v4771, %v5747
        %v5749 = vpop.f32.mrf.mxu0
        %v5750 = vadd.f32 %v4775, %v5749
        %v5751 = vpop.f32.mrf.mxu0
        %v5752 = vadd.f32 %v4771, %v5751
        %v5753 = vpop.f32.mrf.mxu0
        %v5754 = vadd.f32 %v4775, %v5753
        %5755 = vmatprep.mubr.bf16.mxu0 0
        %5756 = vmatmul.mubr.bf16.gmra.mxu0 %v4687
        %v5757 = vpop.f32.mrf.mxu0
        %v5758 = vadd.f32 %v4771, %v5757
        %v5759 = vpop.f32.mrf.mxu0
        %v5760 = vadd.f32 %v4775, %v5759
        %v5761 = vpop.f32.mrf.mxu0
        %v5762 = vadd.f32 %v4771, %v5761
        %v5763 = vpop.f32.mrf.mxu0
        %v5764 = vadd.f32 %v4775, %v5763
        %5765 = vmatprep.mubr.bf16.mxu0 0
        %5766 = vmatmul.mubr.bf16.gmra.mxu0 %v4688
        %v5767 = vpop.f32.mrf.mxu0
        %v5768 = vadd.f32 %v4771, %v5767
        %v5769 = vpop.f32.mrf.mxu0
        %v5770 = vadd.f32 %v4775, %v5769
        %v5771 = vpop.f32.mrf.mxu0
        %v5772 = vadd.f32 %v4771, %v5771
        %v5773 = vpop.f32.mrf.mxu0
        %v5774 = vadd.f32 %v4775, %v5773
        %5775 = vmatprep.mubr.bf16.mxu0 0
        %5776 = vmatmul.mubr.bf16.gmra.mxu0 %v4689
        %v5777 = vpop.f32.mrf.mxu0
        %v5778 = vadd.f32 %v4771, %v5777
        %v5779 = vpop.f32.mrf.mxu0
        %v5780 = vadd.f32 %v4775, %v5779
        %v5781 = vpop.f32.mrf.mxu0
        %v5782 = vadd.f32 %v4771, %v5781
        %v5783 = vpop.f32.mrf.mxu0
        %v5784 = vadd.f32 %v4775, %v5783
        %5785 = vmatprep.mubr.bf16.mxu0 0
        %5786 = vmatmul.mubr.bf16.gmra.mxu0 %v4690
        %v5787 = vpop.f32.mrf.mxu0
        %v5788 = vadd.f32 %v4771, %v5787
        %v5789 = vpop.f32.mrf.mxu0
        %v5790 = vadd.f32 %v4775, %v5789
        %v5791 = vpop.f32.mrf.mxu0
        %v5792 = vadd.f32 %v4771, %v5791
        %v5793 = vpop.f32.mrf.mxu0
        %v5794 = vadd.f32 %v4775, %v5793
        %5795 = vmatprep.mubr.bf16.mxu0 0
        %5796 = vmatmul.mubr.bf16.gmra.mxu0 %v4691
        %v5797 = vpop.f32.mrf.mxu0
        %v5798 = vadd.f32 %v4771, %v5797
        %v5799 = vpop.f32.mrf.mxu0
        %v5800 = vadd.f32 %v4775, %v5799
        %v5801 = vpop.f32.mrf.mxu0
        %v5802 = vadd.f32 %v4771, %v5801
        %v5803 = vpop.f32.mrf.mxu0
        %v5804 = vadd.f32 %v4775, %v5803
        %5805 = vmatprep.mubr.bf16.mxu0 0
        %5806 = vmatmul.mubr.bf16.gmra.mxu0 %v4692
        %v5807 = vpop.f32.mrf.mxu0
        %v5808 = vadd.f32 %v4771, %v5807
        %v5809 = vpop.f32.mrf.mxu0
        %v5810 = vadd.f32 %v4775, %v5809
        %v5811 = vpop.f32.mrf.mxu0
        %v5812 = vadd.f32 %v4771, %v5811
        %v5813 = vpop.f32.mrf.mxu0
        %v5814 = vadd.f32 %v4775, %v5813
        %5815 = vmatprep.mubr.bf16.mxu0 0
        %5816 = vmatmul.mubr.bf16.gmra.mxu0 %v4693
        %v5817 = vpop.f32.mrf.mxu0
        %v5818 = vadd.f32 %v4771, %v5817
        %v5819 = vpop.f32.mrf.mxu0
        %v5820 = vadd.f32 %v4775, %v5819
        %v5821 = vpop.f32.mrf.mxu0
        %v5822 = vadd.f32 %v4771, %v5821
        %v5823 = vpop.f32.mrf.mxu0
        %v5824 = vadd.f32 %v4775, %v5823
        %5825 = vdwg.mxu0
        %5826 = vmatprep.subr.bf16.mxu0 %v5053
        %5827 = vmatpush1.bf16.msra.mxu0 %v5052
        %5828 = vmatprep.subr.bf16.mxu0 %v5045
        %5829 = vmatpush1.bf16.msra.mxu0 %v5044
        %5830 = vmatprep.subr.bf16.mxu0 %v5037
        %5831 = vmatpush1.bf16.msra.mxu0 %v5036
        %5832 = vmatprep.subr.bf16.mxu0 %v5029
        %5833 = vmatpush1.bf16.msra.mxu0 %v5028
        %5834 = vmatprep.subr.bf16.mxu0 %v5021
        %5835 = vmatpush1.bf16.msra.mxu0 %v5020
        %5836 = vmatprep.subr.bf16.mxu0 %v5013
        %5837 = vmatpush1.bf16.msra.mxu0 %v5012
        %5838 = vmatprep.subr.bf16.mxu0 %v5005
        %5839 = vmatpush1.bf16.msra.mxu0 %v5004
        %5840 = vmatprep.subr.bf16.mxu0 %v4997
        %5841 = vmatpush1.bf16.msra.mxu0 %v4996
        %5842 = vmatprep.subr.bf16.mxu0 0
        %5843 = vmatpush2.bf16.msra.mxu0 0
        %5844 = vmatprep.subr.bf16.mxu0 0
        %5845 = vmatpush2.bf16.msra.mxu0 0
        %5846 = vmatprep.subr.bf16.mxu0 0
        %5847 = vmatpush2.bf16.msra.mxu0 0
        %5848 = vmatprep.subr.bf16.mxu0 0
        %5849 = vmatpush2.bf16.msra.mxu0 0
        %5850 = vmatprep.subr.bf16.mxu0 0
        %5851 = vmatpush2.bf16.msra.mxu0 0
        %5852 = vmatprep.subr.bf16.mxu0 0
        %5853 = vmatpush2.bf16.msra.mxu0 0
        %5854 = vmatprep.subr.bf16.mxu0 0
        %5855 = vmatpush2.bf16.msra.mxu0 0
        %5856 = vmatprep.subr.bf16.mxu0 0
        %5857 = vmatpush2.bf16.msra.mxu0 0
        %5858 = vmatprep.mubr.bf16.mxu0 0
        %5859 = vmatmul.mubr.bf16.gmra.mxu0 %v4662
        %v5860 = vpop.f32.mrf.mxu0
        %v5861 = vadd.f32 %v4779, %v5860
        %v5862 = vpop.f32.mrf.mxu0
        %v5863 = vadd.f32 %v4783, %v5862
        %v5864 = vpop.f32.mrf.mxu0
        %v5865 = vadd.f32 %v4779, %v5864
        %v5866 = vpop.f32.mrf.mxu0
        %v5867 = vadd.f32 %v4783, %v5866
        %5868 = vmatprep.mubr.bf16.mxu0 0
        %5869 = vmatmul.mubr.bf16.gmra.mxu0 %v4663
        %v5870 = vpop.f32.mrf.mxu0
        %v5871 = vadd.f32 %v4779, %v5870
        %v5872 = vpop.f32.mrf.mxu0
        %v5873 = vadd.f32 %v4783, %v5872
        %v5874 = vpop.f32.mrf.mxu0
        %v5875 = vadd.f32 %v4779, %v5874
        %v5876 = vpop.f32.mrf.mxu0
        %v5877 = vadd.f32 %v4783, %v5876
        %5878 = vmatprep.mubr.bf16.mxu0 0
        %5879 = vmatmul.mubr.bf16.gmra.mxu0 %v4664
        %v5880 = vpop.f32.mrf.mxu0
        %v5881 = vadd.f32 %v4779, %v5880
        %v5882 = vpop.f32.mrf.mxu0
        %v5883 = vadd.f32 %v4783, %v5882
        %v5884 = vpop.f32.mrf.mxu0
        %v5885 = vadd.f32 %v4779, %v5884
        %v5886 = vpop.f32.mrf.mxu0
        %v5887 = vadd.f32 %v4783, %v5886
        %5888 = vmatprep.mubr.bf16.mxu0 0
        %5889 = vmatmul.mubr.bf16.gmra.mxu0 %v4665
        %v5890 = vpop.f32.mrf.mxu0
        %v5891 = vadd.f32 %v4779, %v5890
        %v5892 = vpop.f32.mrf.mxu0
        %v5893 = vadd.f32 %v4783, %v5892
        %v5894 = vpop.f32.mrf.mxu0
        %v5895 = vadd.f32 %v4779, %v5894
        %v5896 = vpop.f32.mrf.mxu0
        %v5897 = vadd.f32 %v4783, %v5896
        %5898 = vmatprep.mubr.bf16.mxu0 0
        %5899 = vmatmul.mubr.bf16.gmra.mxu0 %v4666
        %v5900 = vpop.f32.mrf.mxu0
        %v5901 = vadd.f32 %v4779, %v5900
        %v5902 = vpop.f32.mrf.mxu0
        %v5903 = vadd.f32 %v4783, %v5902
        %v5904 = vpop.f32.mrf.mxu0
        %v5905 = vadd.f32 %v4779, %v5904
        %v5906 = vpop.f32.mrf.mxu0
        %v5907 = vadd.f32 %v4783, %v5906
        %5908 = vmatprep.mubr.bf16.mxu0 0
        %5909 = vmatmul.mubr.bf16.gmra.mxu0 %v4667
        %v5910 = vpop.f32.mrf.mxu0
        %v5911 = vadd.f32 %v4779, %v5910
        %v5912 = vpop.f32.mrf.mxu0
        %v5913 = vadd.f32 %v4783, %v5912
        %v5914 = vpop.f32.mrf.mxu0
        %v5915 = vadd.f32 %v4779, %v5914
        %v5916 = vpop.f32.mrf.mxu0
        %v5917 = vadd.f32 %v4783, %v5916
        %5918 = vmatprep.mubr.bf16.mxu0 0
        %5919 = vmatmul.mubr.bf16.gmra.mxu0 %v4668
        %v5920 = vpop.f32.mrf.mxu0
        %v5921 = vadd.f32 %v4779, %v5920
        %v5922 = vpop.f32.mrf.mxu0
        %v5923 = vadd.f32 %v4783, %v5922
        %v5924 = vpop.f32.mrf.mxu0
        %v5925 = vadd.f32 %v4779, %v5924
        %v5926 = vpop.f32.mrf.mxu0
        %v5927 = vadd.f32 %v4783, %v5926
        %5928 = vmatprep.mubr.bf16.mxu0 0
        %5929 = vmatmul.mubr.bf16.gmra.mxu0 %v4669
        %v5930 = vpop.f32.mrf.mxu0
        %v5931 = vadd.f32 %v4779, %v5930
        %v5932 = vpop.f32.mrf.mxu0
        %v5933 = vadd.f32 %v4783, %v5932
        %v5934 = vpop.f32.mrf.mxu0
        %v5935 = vadd.f32 %v4779, %v5934
        %v5936 = vpop.f32.mrf.mxu0
        %v5937 = vadd.f32 %v4783, %v5936
        %5938 = vmatprep.mubr.bf16.mxu0 0
        %5939 = vmatmul.mubr.bf16.gmra.mxu0 %v4670
        %v5940 = vpop.f32.mrf.mxu0
        %v5941 = vadd.f32 %v4779, %v5940
        %v5942 = vpop.f32.mrf.mxu0
        %v5943 = vadd.f32 %v4783, %v5942
        %v5944 = vpop.f32.mrf.mxu0
        %v5945 = vadd.f32 %v4779, %v5944
        %v5946 = vpop.f32.mrf.mxu0
        %v5947 = vadd.f32 %v4783, %v5946
        %5948 = vmatprep.mubr.bf16.mxu0 0
        %5949 = vmatmul.mubr.bf16.gmra.mxu0 %v4671
        %v5950 = vpop.f32.mrf.mxu0
        %v5951 = vadd.f32 %v4779, %v5950
        %v5952 = vpop.f32.mrf.mxu0
        %v5953 = vadd.f32 %v4783, %v5952
        %v5954 = vpop.f32.mrf.mxu0
        %v5955 = vadd.f32 %v4779, %v5954
        %v5956 = vpop.f32.mrf.mxu0
        %v5957 = vadd.f32 %v4783, %v5956
        %5958 = vmatprep.mubr.bf16.mxu0 0
        %5959 = vmatmul.mubr.bf16.gmra.mxu0 %v4672
        %v5960 = vpop.f32.mrf.mxu0
        %v5961 = vadd.f32 %v4779, %v5960
        %v5962 = vpop.f32.mrf.mxu0
        %v5963 = vadd.f32 %v4783, %v5962
        %v5964 = vpop.f32.mrf.mxu0
        %v5965 = vadd.f32 %v4779, %v5964
        %v5966 = vpop.f32.mrf.mxu0
        %v5967 = vadd.f32 %v4783, %v5966
        %5968 = vmatprep.mubr.bf16.mxu0 0
        %5969 = vmatmul.mubr.bf16.gmra.mxu0 %v4673
        %v5970 = vpop.f32.mrf.mxu0
        %v5971 = vadd.f32 %v4779, %v5970
        %v5972 = vpop.f32.mrf.mxu0
        %v5973 = vadd.f32 %v4783, %v5972
        %v5974 = vpop.f32.mrf.mxu0
        %v5975 = vadd.f32 %v4779, %v5974
        %v5976 = vpop.f32.mrf.mxu0
        %v5977 = vadd.f32 %v4783, %v5976
        %5978 = vmatprep.mubr.bf16.mxu0 0
        %5979 = vmatmul.mubr.bf16.gmra.mxu0 %v4674
        %v5980 = vpop.f32.mrf.mxu0
        %v5981 = vadd.f32 %v4779, %v5980
        %v5982 = vpop.f32.mrf.mxu0
        %v5983 = vadd.f32 %v4783, %v5982
        %v5984 = vpop.f32.mrf.mxu0
        %v5985 = vadd.f32 %v4779, %v5984
        %v5986 = vpop.f32.mrf.mxu0
        %v5987 = vadd.f32 %v4783, %v5986
        %5988 = vmatprep.mubr.bf16.mxu0 0
        %5989 = vmatmul.mubr.bf16.gmra.mxu0 %v4675
        %v5990 = vpop.f32.mrf.mxu0
        %v5991 = vadd.f32 %v4779, %v5990
        %v5992 = vpop.f32.mrf.mxu0
        %v5993 = vadd.f32 %v4783, %v5992
        %v5994 = vpop.f32.mrf.mxu0
        %v5995 = vadd.f32 %v4779, %v5994
        %v5996 = vpop.f32.mrf.mxu0
        %v5997 = vadd.f32 %v4783, %v5996
        %5998 = vmatprep.mubr.bf16.mxu0 0
        %5999 = vmatmul.mubr.bf16.gmra.mxu0 %v4676
        %v6000 = vpop.f32.mrf.mxu0
        %v6001 = vadd.f32 %v4779, %v6000
        %v6002 = vpop.f32.mrf.mxu0
        %v6003 = vadd.f32 %v4783, %v6002
        %v6004 = vpop.f32.mrf.mxu0
        %v6005 = vadd.f32 %v4779, %v6004
        %v6006 = vpop.f32.mrf.mxu0
        %v6007 = vadd.f32 %v4783, %v6006
        %6008 = vmatprep.mubr.bf16.mxu0 0
        %6009 = vmatmul.mubr.bf16.gmra.mxu0 %v4677
        %v6010 = vpop.f32.mrf.mxu0
        %v6011 = vadd.f32 %v4779, %v6010
        %v6012 = vpop.f32.mrf.mxu0
        %v6013 = vadd.f32 %v4783, %v6012
        %v6014 = vpop.f32.mrf.mxu0
        %v6015 = vadd.f32 %v4779, %v6014
        %v6016 = vpop.f32.mrf.mxu0
        %v6017 = vadd.f32 %v4783, %v6016
        %6018 = vmatprep.mubr.bf16.mxu0 0
        %6019 = vmatmul.mubr.bf16.gmra.mxu0 %v4678
        %v6020 = vpop.f32.mrf.mxu0
        %v6021 = vadd.f32 %v4779, %v6020
        %v6022 = vpop.f32.mrf.mxu0
        %v6023 = vadd.f32 %v4783, %v6022
        %v6024 = vpop.f32.mrf.mxu0
        %v6025 = vadd.f32 %v4779, %v6024
        %v6026 = vpop.f32.mrf.mxu0
        %v6027 = vadd.f32 %v4783, %v6026
        %6028 = vmatprep.mubr.bf16.mxu0 0
        %6029 = vmatmul.mubr.bf16.gmra.mxu0 %v4679
        %v6030 = vpop.f32.mrf.mxu0
        %v6031 = vadd.f32 %v4779, %v6030
        %v6032 = vpop.f32.mrf.mxu0
        %v6033 = vadd.f32 %v4783, %v6032
        %v6034 = vpop.f32.mrf.mxu0
        %v6035 = vadd.f32 %v4779, %v6034
        %v6036 = vpop.f32.mrf.mxu0
        %v6037 = vadd.f32 %v4783, %v6036
        %6038 = vmatprep.mubr.bf16.mxu0 0
        %6039 = vmatmul.mubr.bf16.gmra.mxu0 %v4680
        %v6040 = vpop.f32.mrf.mxu0
        %v6041 = vadd.f32 %v4779, %v6040
        %v6042 = vpop.f32.mrf.mxu0
        %v6043 = vadd.f32 %v4783, %v6042
        %v6044 = vpop.f32.mrf.mxu0
        %v6045 = vadd.f32 %v4779, %v6044
        %v6046 = vpop.f32.mrf.mxu0
        %v6047 = vadd.f32 %v4783, %v6046
        %6048 = vmatprep.mubr.bf16.mxu0 0
        %6049 = vmatmul.mubr.bf16.gmra.mxu0 %v4681
        %v6050 = vpop.f32.mrf.mxu0
        %v6051 = vadd.f32 %v4779, %v6050
        %v6052 = vpop.f32.mrf.mxu0
        %v6053 = vadd.f32 %v4783, %v6052
        %v6054 = vpop.f32.mrf.mxu0
        %v6055 = vadd.f32 %v4779, %v6054
        %v6056 = vpop.f32.mrf.mxu0
        %v6057 = vadd.f32 %v4783, %v6056
        %6058 = vmatprep.mubr.bf16.mxu0 0
        %6059 = vmatmul.mubr.bf16.gmra.mxu0 %v4682
        %v6060 = vpop.f32.mrf.mxu0
        %v6061 = vadd.f32 %v4779, %v6060
        %v6062 = vpop.f32.mrf.mxu0
        %v6063 = vadd.f32 %v4783, %v6062
        %v6064 = vpop.f32.mrf.mxu0
        %v6065 = vadd.f32 %v4779, %v6064
        %v6066 = vpop.f32.mrf.mxu0
        %v6067 = vadd.f32 %v4783, %v6066
        %6068 = vmatprep.mubr.bf16.mxu0 0
        %6069 = vmatmul.mubr.bf16.gmra.mxu0 %v4683
        %v6070 = vpop.f32.mrf.mxu0
        %v6071 = vadd.f32 %v4779, %v6070
        %v6072 = vpop.f32.mrf.mxu0
        %v6073 = vadd.f32 %v4783, %v6072
        %v6074 = vpop.f32.mrf.mxu0
        %v6075 = vadd.f32 %v4779, %v6074
        %v6076 = vpop.f32.mrf.mxu0
        %v6077 = vadd.f32 %v4783, %v6076
        %6078 = vmatprep.mubr.bf16.mxu0 0
        %6079 = vmatmul.mubr.bf16.gmra.mxu0 %v4684
        %v6080 = vpop.f32.mrf.mxu0
        %v6081 = vadd.f32 %v4779, %v6080
        %v6082 = vpop.f32.mrf.mxu0
        %v6083 = vadd.f32 %v4783, %v6082
        %v6084 = vpop.f32.mrf.mxu0
        %v6085 = vadd.f32 %v4779, %v6084
        %v6086 = vpop.f32.mrf.mxu0
        %v6087 = vadd.f32 %v4783, %v6086
        %6088 = vmatprep.mubr.bf16.mxu0 0
        %6089 = vmatmul.mubr.bf16.gmra.mxu0 %v4685
        %v6090 = vpop.f32.mrf.mxu0
        %v6091 = vadd.f32 %v4779, %v6090
        %v6092 = vpop.f32.mrf.mxu0
        %v6093 = vadd.f32 %v4783, %v6092
        %v6094 = vpop.f32.mrf.mxu0
        %v6095 = vadd.f32 %v4779, %v6094
        %v6096 = vpop.f32.mrf.mxu0
        %v6097 = vadd.f32 %v4783, %v6096
        %6098 = vmatprep.mubr.bf16.mxu0 0
        %6099 = vmatmul.mubr.bf16.gmra.mxu0 %v4686
        %v6100 = vpop.f32.mrf.mxu0
        %v6101 = vadd.f32 %v4779, %v6100
        %v6102 = vpop.f32.mrf.mxu0
        %v6103 = vadd.f32 %v4783, %v6102
        %v6104 = vpop.f32.mrf.mxu0
        %v6105 = vadd.f32 %v4779, %v6104
        %v6106 = vpop.f32.mrf.mxu0
        %v6107 = vadd.f32 %v4783, %v6106
        %6108 = vmatprep.mubr.bf16.mxu0 0
        %6109 = vmatmul.mubr.bf16.gmra.mxu0 %v4687
        %v6110 = vpop.f32.mrf.mxu0
        %v6111 = vadd.f32 %v4779, %v6110
        %v6112 = vpop.f32.mrf.mxu0
        %v6113 = vadd.f32 %v4783, %v6112
        %v6114 = vpop.f32.mrf.mxu0
        %v6115 = vadd.f32 %v4779, %v6114
        %v6116 = vpop.f32.mrf.mxu0
        %v6117 = vadd.f32 %v4783, %v6116
        %6118 = vmatprep.mubr.bf16.mxu0 0
        %6119 = vmatmul.mubr.bf16.gmra.mxu0 %v4688
        %v6120 = vpop.f32.mrf.mxu0
        %v6121 = vadd.f32 %v4779, %v6120
        %v6122 = vpop.f32.mrf.mxu0
        %v6123 = vadd.f32 %v4783, %v6122
        %v6124 = vpop.f32.mrf.mxu0
        %v6125 = vadd.f32 %v4779, %v6124
        %v6126 = vpop.f32.mrf.mxu0
        %v6127 = vadd.f32 %v4783, %v6126
        %6128 = vmatprep.mubr.bf16.mxu0 0
        %6129 = vmatmul.mubr.bf16.gmra.mxu0 %v4689
        %v6130 = vpop.f32.mrf.mxu0
        %v6131 = vadd.f32 %v4779, %v6130
        %v6132 = vpop.f32.mrf.mxu0
        %v6133 = vadd.f32 %v4783, %v6132
        %v6134 = vpop.f32.mrf.mxu0
        %v6135 = vadd.f32 %v4779, %v6134
        %v6136 = vpop.f32.mrf.mxu0
        %v6137 = vadd.f32 %v4783, %v6136
        %6138 = vmatprep.mubr.bf16.mxu0 0
        %6139 = vmatmul.mubr.bf16.gmra.mxu0 %v4690
        %v6140 = vpop.f32.mrf.mxu0
        %v6141 = vadd.f32 %v4779, %v6140
        %v6142 = vpop.f32.mrf.mxu0
        %v6143 = vadd.f32 %v4783, %v6142
        %v6144 = vpop.f32.mrf.mxu0
        %v6145 = vadd.f32 %v4779, %v6144
        %v6146 = vpop.f32.mrf.mxu0
        %v6147 = vadd.f32 %v4783, %v6146
        %6148 = vmatprep.mubr.bf16.mxu0 0
        %6149 = vmatmul.mubr.bf16.gmra.mxu0 %v4691
        %v6150 = vpop.f32.mrf.mxu0
        %v6151 = vadd.f32 %v4779, %v6150
        %v6152 = vpop.f32.mrf.mxu0
        %v6153 = vadd.f32 %v4783, %v6152
        %v6154 = vpop.f32.mrf.mxu0
        %v6155 = vadd.f32 %v4779, %v6154
        %v6156 = vpop.f32.mrf.mxu0
        %v6157 = vadd.f32 %v4783, %v6156
        %6158 = vmatprep.mubr.bf16.mxu0 0
        %6159 = vmatmul.mubr.bf16.gmra.mxu0 %v4692
        %v6160 = vpop.f32.mrf.mxu0
        %v6161 = vadd.f32 %v4779, %v6160
        %v6162 = vpop.f32.mrf.mxu0
        %v6163 = vadd.f32 %v4783, %v6162
        %v6164 = vpop.f32.mrf.mxu0
        %v6165 = vadd.f32 %v4779, %v6164
        %v6166 = vpop.f32.mrf.mxu0
        %v6167 = vadd.f32 %v4783, %v6166
        %6168 = vmatprep.mubr.bf16.mxu0 0
        %6169 = vmatmul.mubr.bf16.gmra.mxu0 %v4693
        %v6170 = vpop.f32.mrf.mxu0
        %v6171 = vadd.f32 %v4779, %v6170
        %v6172 = vpop.f32.mrf.mxu0
        %v6173 = vadd.f32 %v4783, %v6172
        %v6174 = vpop.f32.mrf.mxu0
        %v6175 = vadd.f32 %v4779, %v6174
        %v6176 = vpop.f32.mrf.mxu0
        %v6177 = vadd.f32 %v4783, %v6176
        %6178 = vdwg.mxu0
        %6179 = vmatprep.subr.bf16.mxu0 %v5055
        %6180 = vmatpush1.bf16.msra.mxu0 %v5054
        %6181 = vmatprep.subr.bf16.mxu0 %v5047
        %6182 = vmatpush1.bf16.msra.mxu0 %v5046
        %6183 = vmatprep.subr.bf16.mxu0 %v5039
        %6184 = vmatpush1.bf16.msra.mxu0 %v5038
        %6185 = vmatprep.subr.bf16.mxu0 %v5031
        %6186 = vmatpush1.bf16.msra.mxu0 %v5030
        %6187 = vmatprep.subr.bf16.mxu0 %v5023
        %6188 = vmatpush1.bf16.msra.mxu0 %v5022
        %6189 = vmatprep.subr.bf16.mxu0 %v5015
        %6190 = vmatpush1.bf16.msra.mxu0 %v5014
        %6191 = vmatprep.subr.bf16.mxu0 %v5007
        %6192 = vmatpush1.bf16.msra.mxu0 %v5006
        %6193 = vmatprep.subr.bf16.mxu0 %v4999
        %6194 = vmatpush1.bf16.msra.mxu0 %v4998
        %6195 = vmatprep.subr.bf16.mxu0 0
        %6196 = vmatpush2.bf16.msra.mxu0 0
        %6197 = vmatprep.subr.bf16.mxu0 0
        %6198 = vmatpush2.bf16.msra.mxu0 0
        %6199 = vmatprep.subr.bf16.mxu0 0
        %6200 = vmatpush2.bf16.msra.mxu0 0
        %6201 = vmatprep.subr.bf16.mxu0 0
        %6202 = vmatpush2.bf16.msra.mxu0 0
        %6203 = vmatprep.subr.bf16.mxu0 0
        %6204 = vmatpush2.bf16.msra.mxu0 0
        %6205 = vmatprep.subr.bf16.mxu0 0
        %6206 = vmatpush2.bf16.msra.mxu0 0
        %6207 = vmatprep.subr.bf16.mxu0 0
        %6208 = vmatpush2.bf16.msra.mxu0 0
        %6209 = vmatprep.subr.bf16.mxu0 0
        %6210 = vmatpush2.bf16.msra.mxu0 0
        %6211 = vmatprep.mubr.bf16.mxu0 0
        %6212 = vmatmul.mubr.bf16.gmra.mxu0 %v4662
        %v6213 = vpop.f32.mrf.mxu0
        %v6214 = vadd.f32 %v4787, %v6213
        %v6215 = vpop.f32.mrf.mxu0
        %v6216 = vadd.f32 %v4791, %v6215
        %v6217 = vpop.f32.mrf.mxu0
        %v6218 = vadd.f32 %v4787, %v6217
        %v6219 = vpop.f32.mrf.mxu0
        %v6220 = vadd.f32 %v4791, %v6219
        %6221 = vmatprep.mubr.bf16.mxu0 0
        %6222 = vmatmul.mubr.bf16.gmra.mxu0 %v4663
        %v6223 = vpop.f32.mrf.mxu0
        %v6224 = vadd.f32 %v4787, %v6223
        %v6225 = vpop.f32.mrf.mxu0
        %v6226 = vadd.f32 %v4791, %v6225
        %v6227 = vpop.f32.mrf.mxu0
        %v6228 = vadd.f32 %v4787, %v6227
        %v6229 = vpop.f32.mrf.mxu0
        %v6230 = vadd.f32 %v4791, %v6229
        %6231 = vmatprep.mubr.bf16.mxu0 0
        %6232 = vmatmul.mubr.bf16.gmra.mxu0 %v4664
        %v6233 = vpop.f32.mrf.mxu0
        %v6234 = vadd.f32 %v4787, %v6233
        %v6235 = vpop.f32.mrf.mxu0
        %v6236 = vadd.f32 %v4791, %v6235
        %v6237 = vpop.f32.mrf.mxu0
        %v6238 = vadd.f32 %v4787, %v6237
        %v6239 = vpop.f32.mrf.mxu0
        %v6240 = vadd.f32 %v4791, %v6239
        %6241 = vmatprep.mubr.bf16.mxu0 0
        %6242 = vmatmul.mubr.bf16.gmra.mxu0 %v4665
        %v6243 = vpop.f32.mrf.mxu0
        %v6244 = vadd.f32 %v4787, %v6243
        %v6245 = vpop.f32.mrf.mxu0
        %v6246 = vadd.f32 %v4791, %v6245
        %v6247 = vpop.f32.mrf.mxu0
        %v6248 = vadd.f32 %v4787, %v6247
        %v6249 = vpop.f32.mrf.mxu0
        %v6250 = vadd.f32 %v4791, %v6249
        %6251 = vmatprep.mubr.bf16.mxu0 0
        %6252 = vmatmul.mubr.bf16.gmra.mxu0 %v4666
        %v6253 = vpop.f32.mrf.mxu0
        %v6254 = vadd.f32 %v4787, %v6253
        %v6255 = vpop.f32.mrf.mxu0
        %v6256 = vadd.f32 %v4791, %v6255
        %v6257 = vpop.f32.mrf.mxu0
        %v6258 = vadd.f32 %v4787, %v6257
        %v6259 = vpop.f32.mrf.mxu0
        %v6260 = vadd.f32 %v4791, %v6259
        %6261 = vmatprep.mubr.bf16.mxu0 0
        %6262 = vmatmul.mubr.bf16.gmra.mxu0 %v4667
        %v6263 = vpop.f32.mrf.mxu0
        %v6264 = vadd.f32 %v4787, %v6263
        %v6265 = vpop.f32.mrf.mxu0
        %v6266 = vadd.f32 %v4791, %v6265
        %v6267 = vpop.f32.mrf.mxu0
        %v6268 = vadd.f32 %v4787, %v6267
        %v6269 = vpop.f32.mrf.mxu0
        %v6270 = vadd.f32 %v4791, %v6269
        %6271 = vmatprep.mubr.bf16.mxu0 0
        %6272 = vmatmul.mubr.bf16.gmra.mxu0 %v4668
        %v6273 = vpop.f32.mrf.mxu0
        %v6274 = vadd.f32 %v4787, %v6273
        %v6275 = vpop.f32.mrf.mxu0
        %v6276 = vadd.f32 %v4791, %v6275
        %v6277 = vpop.f32.mrf.mxu0
        %v6278 = vadd.f32 %v4787, %v6277
        %v6279 = vpop.f32.mrf.mxu0
        %v6280 = vadd.f32 %v4791, %v6279
        %6281 = vmatprep.mubr.bf16.mxu0 0
        %6282 = vmatmul.mubr.bf16.gmra.mxu0 %v4669
        %v6283 = vpop.f32.mrf.mxu0
        %v6284 = vadd.f32 %v4787, %v6283
        %v6285 = vpop.f32.mrf.mxu0
        %v6286 = vadd.f32 %v4791, %v6285
        %v6287 = vpop.f32.mrf.mxu0
        %v6288 = vadd.f32 %v4787, %v6287
        %v6289 = vpop.f32.mrf.mxu0
        %v6290 = vadd.f32 %v4791, %v6289
        %6291 = vmatprep.mubr.bf16.mxu0 0
        %6292 = vmatmul.mubr.bf16.gmra.mxu0 %v4670
        %v6293 = vpop.f32.mrf.mxu0
        %v6294 = vadd.f32 %v4787, %v6293
        %v6295 = vpop.f32.mrf.mxu0
        %v6296 = vadd.f32 %v4791, %v6295
        %v6297 = vpop.f32.mrf.mxu0
        %v6298 = vadd.f32 %v4787, %v6297
        %v6299 = vpop.f32.mrf.mxu0
        %v6300 = vadd.f32 %v4791, %v6299
        %6301 = vmatprep.mubr.bf16.mxu0 0
        %6302 = vmatmul.mubr.bf16.gmra.mxu0 %v4671
        %v6303 = vpop.f32.mrf.mxu0
        %v6304 = vadd.f32 %v4787, %v6303
        %v6305 = vpop.f32.mrf.mxu0
        %v6306 = vadd.f32 %v4791, %v6305
        %v6307 = vpop.f32.mrf.mxu0
        %v6308 = vadd.f32 %v4787, %v6307
        %v6309 = vpop.f32.mrf.mxu0
        %v6310 = vadd.f32 %v4791, %v6309
        %6311 = vmatprep.mubr.bf16.mxu0 0
        %6312 = vmatmul.mubr.bf16.gmra.mxu0 %v4672
        %v6313 = vpop.f32.mrf.mxu0
        %v6314 = vadd.f32 %v4787, %v6313
        %v6315 = vpop.f32.mrf.mxu0
        %v6316 = vadd.f32 %v4791, %v6315
        %v6317 = vpop.f32.mrf.mxu0
        %v6318 = vadd.f32 %v4787, %v6317
        %v6319 = vpop.f32.mrf.mxu0
        %v6320 = vadd.f32 %v4791, %v6319
        %6321 = vmatprep.mubr.bf16.mxu0 0
        %6322 = vmatmul.mubr.bf16.gmra.mxu0 %v4673
        %v6323 = vpop.f32.mrf.mxu0
        %v6324 = vadd.f32 %v4787, %v6323
        %v6325 = vpop.f32.mrf.mxu0
        %v6326 = vadd.f32 %v4791, %v6325
        %v6327 = vpop.f32.mrf.mxu0
        %v6328 = vadd.f32 %v4787, %v6327
        %v6329 = vpop.f32.mrf.mxu0
        %v6330 = vadd.f32 %v4791, %v6329
        %6331 = vmatprep.mubr.bf16.mxu0 0
        %6332 = vmatmul.mubr.bf16.gmra.mxu0 %v4674
        %v6333 = vpop.f32.mrf.mxu0
        %v6334 = vadd.f32 %v4787, %v6333
        %v6335 = vpop.f32.mrf.mxu0
        %v6336 = vadd.f32 %v4791, %v6335
        %v6337 = vpop.f32.mrf.mxu0
        %v6338 = vadd.f32 %v4787, %v6337
        %v6339 = vpop.f32.mrf.mxu0
        %v6340 = vadd.f32 %v4791, %v6339
        %6341 = vmatprep.mubr.bf16.mxu0 0
        %6342 = vmatmul.mubr.bf16.gmra.mxu0 %v4675
        %v6343 = vpop.f32.mrf.mxu0
        %v6344 = vadd.f32 %v4787, %v6343
        %v6345 = vpop.f32.mrf.mxu0
        %v6346 = vadd.f32 %v4791, %v6345
        %v6347 = vpop.f32.mrf.mxu0
        %v6348 = vadd.f32 %v4787, %v6347
        %v6349 = vpop.f32.mrf.mxu0
        %v6350 = vadd.f32 %v4791, %v6349
        %6351 = vmatprep.mubr.bf16.mxu0 0
        %6352 = vmatmul.mubr.bf16.gmra.mxu0 %v4676
        %v6353 = vpop.f32.mrf.mxu0
        %v6354 = vadd.f32 %v4787, %v6353
        %v6355 = vpop.f32.mrf.mxu0
        %v6356 = vadd.f32 %v4791, %v6355
        %v6357 = vpop.f32.mrf.mxu0
        %v6358 = vadd.f32 %v4787, %v6357
        %v6359 = vpop.f32.mrf.mxu0
        %v6360 = vadd.f32 %v4791, %v6359
        %6361 = vmatprep.mubr.bf16.mxu0 0
        %6362 = vmatmul.mubr.bf16.gmra.mxu0 %v4677
        %v6363 = vpop.f32.mrf.mxu0
        %v6364 = vadd.f32 %v4787, %v6363
        %v6365 = vpop.f32.mrf.mxu0
        %v6366 = vadd.f32 %v4791, %v6365
        %v6367 = vpop.f32.mrf.mxu0
        %v6368 = vadd.f32 %v4787, %v6367
        %v6369 = vpop.f32.mrf.mxu0
        %v6370 = vadd.f32 %v4791, %v6369
        %6371 = vmatprep.mubr.bf16.mxu0 0
        %6372 = vmatmul.mubr.bf16.gmra.mxu0 %v4678
        %v6373 = vpop.f32.mrf.mxu0
        %v6374 = vadd.f32 %v4787, %v6373
        %v6375 = vpop.f32.mrf.mxu0
        %v6376 = vadd.f32 %v4791, %v6375
        %v6377 = vpop.f32.mrf.mxu0
        %v6378 = vadd.f32 %v4787, %v6377
        %v6379 = vpop.f32.mrf.mxu0
        %v6380 = vadd.f32 %v4791, %v6379
        %6381 = vmatprep.mubr.bf16.mxu0 0
        %6382 = vmatmul.mubr.bf16.gmra.mxu0 %v4679
        %v6383 = vpop.f32.mrf.mxu0
        %v6384 = vadd.f32 %v4787, %v6383
        %v6385 = vpop.f32.mrf.mxu0
        %v6386 = vadd.f32 %v4791, %v6385
        %v6387 = vpop.f32.mrf.mxu0
        %v6388 = vadd.f32 %v4787, %v6387
        %v6389 = vpop.f32.mrf.mxu0
        %v6390 = vadd.f32 %v4791, %v6389
        %6391 = vmatprep.mubr.bf16.mxu0 0
        %6392 = vmatmul.mubr.bf16.gmra.mxu0 %v4680
        %v6393 = vpop.f32.mrf.mxu0
        %v6394 = vadd.f32 %v4787, %v6393
        %v6395 = vpop.f32.mrf.mxu0
        %v6396 = vadd.f32 %v4791, %v6395
        %v6397 = vpop.f32.mrf.mxu0
        %v6398 = vadd.f32 %v4787, %v6397
        %v6399 = vpop.f32.mrf.mxu0
        %v6400 = vadd.f32 %v4791, %v6399
        %6401 = vmatprep.mubr.bf16.mxu0 0
        %6402 = vmatmul.mubr.bf16.gmra.mxu0 %v4681
        %v6403 = vpop.f32.mrf.mxu0
        %v6404 = vadd.f32 %v4787, %v6403
        %v6405 = vpop.f32.mrf.mxu0
        %v6406 = vadd.f32 %v4791, %v6405
        %v6407 = vpop.f32.mrf.mxu0
        %v6408 = vadd.f32 %v4787, %v6407
        %v6409 = vpop.f32.mrf.mxu0
        %v6410 = vadd.f32 %v4791, %v6409
        %6411 = vmatprep.mubr.bf16.mxu0 0
        %6412 = vmatmul.mubr.bf16.gmra.mxu0 %v4682
        %v6413 = vpop.f32.mrf.mxu0
        %v6414 = vadd.f32 %v4787, %v6413
        %v6415 = vpop.f32.mrf.mxu0
        %v6416 = vadd.f32 %v4791, %v6415
        %v6417 = vpop.f32.mrf.mxu0
        %v6418 = vadd.f32 %v4787, %v6417
        %v6419 = vpop.f32.mrf.mxu0
        %v6420 = vadd.f32 %v4791, %v6419
        %6421 = vmatprep.mubr.bf16.mxu0 0
        %6422 = vmatmul.mubr.bf16.gmra.mxu0 %v4683
        %v6423 = vpop.f32.mrf.mxu0
        %v6424 = vadd.f32 %v4787, %v6423
        %v6425 = vpop.f32.mrf.mxu0
        %v6426 = vadd.f32 %v4791, %v6425
        %v6427 = vpop.f32.mrf.mxu0
        %v6428 = vadd.f32 %v4787, %v6427
        %v6429 = vpop.f32.mrf.mxu0
        %v6430 = vadd.f32 %v4791, %v6429
        %6431 = vmatprep.mubr.bf16.mxu0 0
        %6432 = vmatmul.mubr.bf16.gmra.mxu0 %v4684
        %v6433 = vpop.f32.mrf.mxu0
        %v6434 = vadd.f32 %v4787, %v6433
        %v6435 = vpop.f32.mrf.mxu0
        %v6436 = vadd.f32 %v4791, %v6435
        %v6437 = vpop.f32.mrf.mxu0
        %v6438 = vadd.f32 %v4787, %v6437
        %v6439 = vpop.f32.mrf.mxu0
        %v6440 = vadd.f32 %v4791, %v6439
        %6441 = vmatprep.mubr.bf16.mxu0 0
        %6442 = vmatmul.mubr.bf16.gmra.mxu0 %v4685
        %v6443 = vpop.f32.mrf.mxu0
        %v6444 = vadd.f32 %v4787, %v6443
        %v6445 = vpop.f32.mrf.mxu0
        %v6446 = vadd.f32 %v4791, %v6445
        %v6447 = vpop.f32.mrf.mxu0
        %v6448 = vadd.f32 %v4787, %v6447
        %v6449 = vpop.f32.mrf.mxu0
        %v6450 = vadd.f32 %v4791, %v6449
        %6451 = vmatprep.mubr.bf16.mxu0 0
        %6452 = vmatmul.mubr.bf16.gmra.mxu0 %v4686
        %v6453 = vpop.f32.mrf.mxu0
        %v6454 = vadd.f32 %v4787, %v6453
        %v6455 = vpop.f32.mrf.mxu0
        %v6456 = vadd.f32 %v4791, %v6455
        %v6457 = vpop.f32.mrf.mxu0
        %v6458 = vadd.f32 %v4787, %v6457
        %v6459 = vpop.f32.mrf.mxu0
        %v6460 = vadd.f32 %v4791, %v6459
        %6461 = vmatprep.mubr.bf16.mxu0 0
        %6462 = vmatmul.mubr.bf16.gmra.mxu0 %v4687
        %v6463 = vpop.f32.mrf.mxu0
        %v6464 = vadd.f32 %v4787, %v6463
        %v6465 = vpop.f32.mrf.mxu0
        %v6466 = vadd.f32 %v4791, %v6465
        %v6467 = vpop.f32.mrf.mxu0
        %v6468 = vadd.f32 %v4787, %v6467
        %v6469 = vpop.f32.mrf.mxu0
        %v6470 = vadd.f32 %v4791, %v6469
        %6471 = vmatprep.mubr.bf16.mxu0 0
        %6472 = vmatmul.mubr.bf16.gmra.mxu0 %v4688
        %v6473 = vpop.f32.mrf.mxu0
        %v6474 = vadd.f32 %v4787, %v6473
        %v6475 = vpop.f32.mrf.mxu0
        %v6476 = vadd.f32 %v4791, %v6475
        %v6477 = vpop.f32.mrf.mxu0
        %v6478 = vadd.f32 %v4787, %v6477
        %v6479 = vpop.f32.mrf.mxu0
        %v6480 = vadd.f32 %v4791, %v6479
        %6481 = vmatprep.mubr.bf16.mxu0 0
        %6482 = vmatmul.mubr.bf16.gmra.mxu0 %v4689
        %v6483 = vpop.f32.mrf.mxu0
        %v6484 = vadd.f32 %v4787, %v6483
        %v6485 = vpop.f32.mrf.mxu0
        %v6486 = vadd.f32 %v4791, %v6485
        %v6487 = vpop.f32.mrf.mxu0
        %v6488 = vadd.f32 %v4787, %v6487
        %v6489 = vpop.f32.mrf.mxu0
        %v6490 = vadd.f32 %v4791, %v6489
        %6491 = vmatprep.mubr.bf16.mxu0 0
        %6492 = vmatmul.mubr.bf16.gmra.mxu0 %v4690
        %v6493 = vpop.f32.mrf.mxu0
        %v6494 = vadd.f32 %v4787, %v6493
        %v6495 = vpop.f32.mrf.mxu0
        %v6496 = vadd.f32 %v4791, %v6495
        %v6497 = vpop.f32.mrf.mxu0
        %v6498 = vadd.f32 %v4787, %v6497
        %v6499 = vpop.f32.mrf.mxu0
        %v6500 = vadd.f32 %v4791, %v6499
        %6501 = vmatprep.mubr.bf16.mxu0 0
        %6502 = vmatmul.mubr.bf16.gmra.mxu0 %v4691
        %v6503 = vpop.f32.mrf.mxu0
        %v6504 = vadd.f32 %v4787, %v6503
        %v6505 = vpop.f32.mrf.mxu0
        %v6506 = vadd.f32 %v4791, %v6505
        %v6507 = vpop.f32.mrf.mxu0
        %v6508 = vadd.f32 %v4787, %v6507
        %v6509 = vpop.f32.mrf.mxu0
        %v6510 = vadd.f32 %v4791, %v6509
        %6511 = vmatprep.mubr.bf16.mxu0 0
        %6512 = vmatmul.mubr.bf16.gmra.mxu0 %v4692
        %v6513 = vpop.f32.mrf.mxu0
        %v6514 = vadd.f32 %v4787, %v6513
        %v6515 = vpop.f32.mrf.mxu0
        %v6516 = vadd.f32 %v4791, %v6515
        %v6517 = vpop.f32.mrf.mxu0
        %v6518 = vadd.f32 %v4787, %v6517
        %v6519 = vpop.f32.mrf.mxu0
        %v6520 = vadd.f32 %v4791, %v6519
        %6521 = vmatprep.mubr.bf16.mxu0 0
        %6522 = vmatmul.mubr.bf16.gmra.mxu0 %v4693
        %v6523 = vpop.f32.mrf.mxu0
        %v6524 = vadd.f32 %v4787, %v6523
        %v6525 = vpop.f32.mrf.mxu0
        %v6526 = vadd.f32 %v4791, %v6525
        %v6527 = vpop.f32.mrf.mxu0
        %v6528 = vadd.f32 %v4787, %v6527
        %v6529 = vpop.f32.mrf.mxu0
        %v6530 = vadd.f32 %v4791, %v6529
        %6531 = vdwg.mxu0
        %v6532 = vmax.f32 %v5155, 0.0
        %v6533 = vmax.f32 %v5157, 0.0
        %v6534 = vmax.f32 %v5508, 0.0
        %v6535 = vmax.f32 %v5510, 0.0
        %v6536 = vmax.f32 %v5861, 0.0
        %v6537 = vmax.f32 %v5863, 0.0
        %v6538 = vmax.f32 %v6214, 0.0
        %v6539 = vmax.f32 %v6216, 0.0
        %v6540 = vmax.f32 %v5159, 0.0
        %v6541 = vmax.f32 %v5161, 0.0
        %v6542 = vmax.f32 %v5512, 0.0
        %v6543 = vmax.f32 %v5514, 0.0
        %v6544 = vmax.f32 %v5865, 0.0
        %v6545 = vmax.f32 %v5867, 0.0
        %v6546 = vmax.f32 %v6218, 0.0
        %v6547 = vmax.f32 %v6220, 0.0
        %v6548 = vmax.f32 %v5165, 0.0
        %v6549 = vmax.f32 %v5167, 0.0
        %v6550 = vmax.f32 %v5518, 0.0
        %v6551 = vmax.f32 %v5520, 0.0
        %v6552 = vmax.f32 %v5871, 0.0
        %v6553 = vmax.f32 %v5873, 0.0
        %v6554 = vmax.f32 %v6224, 0.0
        %v6555 = vmax.f32 %v6226, 0.0
        %v6556 = vmax.f32 %v5169, 0.0
        %v6557 = vmax.f32 %v5171, 0.0
        %v6558 = vmax.f32 %v5522, 0.0
        %v6559 = vmax.f32 %v5524, 0.0
        %v6560 = vmax.f32 %v5875, 0.0
        %v6561 = vmax.f32 %v5877, 0.0
        %v6562 = vmax.f32 %v6228, 0.0
        %v6563 = vmax.f32 %v6230, 0.0
        %v6564 = vmax.f32 %v5175, 0.0
        %v6565 = vmax.f32 %v5177, 0.0
        %v6566 = vmax.f32 %v5528, 0.0
        %v6567 = vmax.f32 %v5530, 0.0
        %v6568 = vmax.f32 %v5881, 0.0
        %v6569 = vmax.f32 %v5883, 0.0
        %v6570 = vmax.f32 %v6234, 0.0
        %v6571 = vmax.f32 %v6236, 0.0
        %v6572 = vmax.f32 %v5179, 0.0
        %v6573 = vmax.f32 %v5181, 0.0
        %v6574 = vmax.f32 %v5532, 0.0
        %v6575 = vmax.f32 %v5534, 0.0
        %v6576 = vmax.f32 %v5885, 0.0
        %v6577 = vmax.f32 %v5887, 0.0
        %v6578 = vmax.f32 %v6238, 0.0
        %v6579 = vmax.f32 %v6240, 0.0
        %v6580 = vmax.f32 %v5185, 0.0
        %v6581 = vmax.f32 %v5187, 0.0
        %v6582 = vmax.f32 %v5538, 0.0
        %v6583 = vmax.f32 %v5540, 0.0
        %v6584 = vmax.f32 %v5891, 0.0
        %v6585 = vmax.f32 %v5893, 0.0
        %v6586 = vmax.f32 %v6244, 0.0
        %v6587 = vmax.f32 %v6246, 0.0
        %v6588 = vmax.f32 %v5189, 0.0
        %v6589 = vmax.f32 %v5191, 0.0
        %v6590 = vmax.f32 %v5542, 0.0
        %v6591 = vmax.f32 %v5544, 0.0
        %v6592 = vmax.f32 %v5895, 0.0
        %v6593 = vmax.f32 %v5897, 0.0
        %v6594 = vmax.f32 %v6248, 0.0
        %v6595 = vmax.f32 %v6250, 0.0
        %v6596 = vmax.f32 %v5195, 0.0
        %v6597 = vmax.f32 %v5197, 0.0
        %v6598 = vmax.f32 %v5548, 0.0
        %v6599 = vmax.f32 %v5550, 0.0
        %v6600 = vmax.f32 %v5901, 0.0
        %v6601 = vmax.f32 %v5903, 0.0
        %v6602 = vmax.f32 %v6254, 0.0
        %v6603 = vmax.f32 %v6256, 0.0
        %v6604 = vmax.f32 %v5199, 0.0
        %v6605 = vmax.f32 %v5201, 0.0
        %v6606 = vmax.f32 %v5552, 0.0
        %v6607 = vmax.f32 %v5554, 0.0
        %v6608 = vmax.f32 %v5905, 0.0
        %v6609 = vmax.f32 %v5907, 0.0
        %v6610 = vmax.f32 %v6258, 0.0
        %v6611 = vmax.f32 %v6260, 0.0
        %v6612 = vmax.f32 %v5205, 0.0
        %v6613 = vmax.f32 %v5207, 0.0
        %v6614 = vmax.f32 %v5558, 0.0
        %v6615 = vmax.f32 %v5560, 0.0
        %v6616 = vmax.f32 %v5911, 0.0
        %v6617 = vmax.f32 %v5913, 0.0
        %v6618 = vmax.f32 %v6264, 0.0
        %v6619 = vmax.f32 %v6266, 0.0
        %v6620 = vmax.f32 %v5209, 0.0
        %v6621 = vmax.f32 %v5211, 0.0
        %v6622 = vmax.f32 %v5562, 0.0
        %v6623 = vmax.f32 %v5564, 0.0
        %v6624 = vmax.f32 %v5915, 0.0
        %v6625 = vmax.f32 %v5917, 0.0
        %v6626 = vmax.f32 %v6268, 0.0
        %v6627 = vmax.f32 %v6270, 0.0
        %v6628 = vmax.f32 %v5215, 0.0
        %v6629 = vmax.f32 %v5217, 0.0
        %v6630 = vmax.f32 %v5568, 0.0
        %v6631 = vmax.f32 %v5570, 0.0
        %v6632 = vmax.f32 %v5921, 0.0
        %v6633 = vmax.f32 %v5923, 0.0
        %v6634 = vmax.f32 %v6274, 0.0
        %v6635 = vmax.f32 %v6276, 0.0
        %v6636 = vmax.f32 %v5219, 0.0
        %v6637 = vmax.f32 %v5221, 0.0
        %v6638 = vmax.f32 %v5572, 0.0
        %v6639 = vmax.f32 %v5574, 0.0
        %v6640 = vmax.f32 %v5925, 0.0
        %v6641 = vmax.f32 %v5927, 0.0
        %v6642 = vmax.f32 %v6278, 0.0
        %v6643 = vmax.f32 %v6280, 0.0
        %v6644 = vmax.f32 %v5225, 0.0
        %v6645 = vmax.f32 %v5227, 0.0
        %v6646 = vmax.f32 %v5578, 0.0
        %v6647 = vmax.f32 %v5580, 0.0
        %v6648 = vmax.f32 %v5931, 0.0
        %v6649 = vmax.f32 %v5933, 0.0
        %v6650 = vmax.f32 %v6284, 0.0
        %v6651 = vmax.f32 %v6286, 0.0
        %v6652 = vmax.f32 %v5229, 0.0
        %v6653 = vmax.f32 %v5231, 0.0
        %v6654 = vmax.f32 %v5582, 0.0
        %v6655 = vmax.f32 %v5584, 0.0
        %v6656 = vmax.f32 %v5935, 0.0
        %v6657 = vmax.f32 %v5937, 0.0
        %v6658 = vmax.f32 %v6288, 0.0
        %v6659 = vmax.f32 %v6290, 0.0
        %v6660 = vmax.f32 %v5235, 0.0
        %v6661 = vmax.f32 %v5237, 0.0
        %v6662 = vmax.f32 %v5588, 0.0
        %v6663 = vmax.f32 %v5590, 0.0
        %v6664 = vmax.f32 %v5941, 0.0
        %v6665 = vmax.f32 %v5943, 0.0
        %v6666 = vmax.f32 %v6294, 0.0
        %v6667 = vmax.f32 %v6296, 0.0
        %v6668 = vmax.f32 %v5239, 0.0
        %v6669 = vmax.f32 %v5241, 0.0
        %v6670 = vmax.f32 %v5592, 0.0
        %v6671 = vmax.f32 %v5594, 0.0
        %v6672 = vmax.f32 %v5945, 0.0
        %v6673 = vmax.f32 %v5947, 0.0
        %v6674 = vmax.f32 %v6298, 0.0
        %v6675 = vmax.f32 %v6300, 0.0
        %v6676 = vmax.f32 %v5245, 0.0
        %v6677 = vmax.f32 %v5247, 0.0
        %v6678 = vmax.f32 %v5598, 0.0
        %v6679 = vmax.f32 %v5600, 0.0
        %v6680 = vmax.f32 %v5951, 0.0
        %v6681 = vmax.f32 %v5953, 0.0
        %v6682 = vmax.f32 %v6304, 0.0
        %v6683 = vmax.f32 %v6306, 0.0
        %v6684 = vmax.f32 %v5249, 0.0
        %v6685 = vmax.f32 %v5251, 0.0
        %v6686 = vmax.f32 %v5602, 0.0
        %v6687 = vmax.f32 %v5604, 0.0
        %v6688 = vmax.f32 %v5955, 0.0
        %v6689 = vmax.f32 %v5957, 0.0
        %v6690 = vmax.f32 %v6308, 0.0
        %v6691 = vmax.f32 %v6310, 0.0
        %v6692 = vmax.f32 %v5255, 0.0
        %v6693 = vmax.f32 %v5257, 0.0
        %v6694 = vmax.f32 %v5608, 0.0
        %v6695 = vmax.f32 %v5610, 0.0
        %v6696 = vmax.f32 %v5961, 0.0
        %v6697 = vmax.f32 %v5963, 0.0
        %v6698 = vmax.f32 %v6314, 0.0
        %v6699 = vmax.f32 %v6316, 0.0
        %v6700 = vmax.f32 %v5259, 0.0
        %v6701 = vmax.f32 %v5261, 0.0
        %v6702 = vmax.f32 %v5612, 0.0
        %v6703 = vmax.f32 %v5614, 0.0
        %v6704 = vmax.f32 %v5965, 0.0
        %v6705 = vmax.f32 %v5967, 0.0
        %v6706 = vmax.f32 %v6318, 0.0
        %v6707 = vmax.f32 %v6320, 0.0
        %v6708 = vmax.f32 %v5265, 0.0
        %v6709 = vmax.f32 %v5267, 0.0
        %v6710 = vmax.f32 %v5618, 0.0
        %v6711 = vmax.f32 %v5620, 0.0
        %v6712 = vmax.f32 %v5971, 0.0
        %v6713 = vmax.f32 %v5973, 0.0
        %v6714 = vmax.f32 %v6324, 0.0
        %v6715 = vmax.f32 %v6326, 0.0
        %v6716 = vmax.f32 %v5269, 0.0
        %v6717 = vmax.f32 %v5271, 0.0
        %v6718 = vmax.f32 %v5622, 0.0
        %v6719 = vmax.f32 %v5624, 0.0
        %v6720 = vmax.f32 %v5975, 0.0
        %v6721 = vmax.f32 %v5977, 0.0
        %v6722 = vmax.f32 %v6328, 0.0
        %v6723 = vmax.f32 %v6330, 0.0
        %v6724 = vmax.f32 %v5275, 0.0
        %v6725 = vmax.f32 %v5277, 0.0
        %v6726 = vmax.f32 %v5628, 0.0
        %v6727 = vmax.f32 %v5630, 0.0
        %v6728 = vmax.f32 %v5981, 0.0
        %v6729 = vmax.f32 %v5983, 0.0
        %v6730 = vmax.f32 %v6334, 0.0
        %v6731 = vmax.f32 %v6336, 0.0
        %v6732 = vmax.f32 %v5279, 0.0
        %v6733 = vmax.f32 %v5281, 0.0
        %v6734 = vmax.f32 %v5632, 0.0
        %v6735 = vmax.f32 %v5634, 0.0
        %v6736 = vmax.f32 %v5985, 0.0
        %v6737 = vmax.f32 %v5987, 0.0
        %v6738 = vmax.f32 %v6338, 0.0
        %v6739 = vmax.f32 %v6340, 0.0
        %v6740 = vmax.f32 %v5285, 0.0
        %v6741 = vmax.f32 %v5287, 0.0
        %v6742 = vmax.f32 %v5638, 0.0
        %v6743 = vmax.f32 %v5640, 0.0
        %v6744 = vmax.f32 %v5991, 0.0
        %v6745 = vmax.f32 %v5993, 0.0
        %v6746 = vmax.f32 %v6344, 0.0
        %v6747 = vmax.f32 %v6346, 0.0
        %v6748 = vmax.f32 %v5289, 0.0
        %v6749 = vmax.f32 %v5291, 0.0
        %v6750 = vmax.f32 %v5642, 0.0
        %v6751 = vmax.f32 %v5644, 0.0
        %v6752 = vmax.f32 %v5995, 0.0
        %v6753 = vmax.f32 %v5997, 0.0
        %v6754 = vmax.f32 %v6348, 0.0
        %v6755 = vmax.f32 %v6350, 0.0
        %v6756 = vmax.f32 %v5295, 0.0
        %v6757 = vmax.f32 %v5297, 0.0
        %v6758 = vmax.f32 %v5648, 0.0
        %v6759 = vmax.f32 %v5650, 0.0
        %v6760 = vmax.f32 %v6001, 0.0
        %v6761 = vmax.f32 %v6003, 0.0
        %v6762 = vmax.f32 %v6354, 0.0
        %v6763 = vmax.f32 %v6356, 0.0
        %v6764 = vmax.f32 %v5299, 0.0
        %v6765 = vmax.f32 %v5301, 0.0
        %v6766 = vmax.f32 %v5652, 0.0
        %v6767 = vmax.f32 %v5654, 0.0
        %v6768 = vmax.f32 %v6005, 0.0
        %v6769 = vmax.f32 %v6007, 0.0
        %v6770 = vmax.f32 %v6358, 0.0
        %v6771 = vmax.f32 %v6360, 0.0
        %v6772 = vmax.f32 %v5305, 0.0
        %v6773 = vmax.f32 %v5307, 0.0
        %v6774 = vmax.f32 %v5658, 0.0
        %v6775 = vmax.f32 %v5660, 0.0
        %v6776 = vmax.f32 %v6011, 0.0
        %v6777 = vmax.f32 %v6013, 0.0
        %v6778 = vmax.f32 %v6364, 0.0
        %v6779 = vmax.f32 %v6366, 0.0
        %v6780 = vmax.f32 %v5309, 0.0
        %v6781 = vmax.f32 %v5311, 0.0
        %v6782 = vmax.f32 %v5662, 0.0
        %v6783 = vmax.f32 %v5664, 0.0
        %v6784 = vmax.f32 %v6015, 0.0
        %v6785 = vmax.f32 %v6017, 0.0
        %v6786 = vmax.f32 %v6368, 0.0
        %v6787 = vmax.f32 %v6370, 0.0
        %v6788 = vmax.f32 %v5315, 0.0
        %v6789 = vmax.f32 %v5317, 0.0
        %v6790 = vmax.f32 %v5668, 0.0
        %v6791 = vmax.f32 %v5670, 0.0
        %v6792 = vmax.f32 %v6021, 0.0
        %v6793 = vmax.f32 %v6023, 0.0
        %v6794 = vmax.f32 %v6374, 0.0
        %v6795 = vmax.f32 %v6376, 0.0
        %v6796 = vmax.f32 %v5319, 0.0
        %v6797 = vmax.f32 %v5321, 0.0
        %v6798 = vmax.f32 %v5672, 0.0
        %v6799 = vmax.f32 %v5674, 0.0
        %v6800 = vmax.f32 %v6025, 0.0
        %v6801 = vmax.f32 %v6027, 0.0
        %v6802 = vmax.f32 %v6378, 0.0
        %v6803 = vmax.f32 %v6380, 0.0
        %v6804 = vmax.f32 %v5325, 0.0
        %v6805 = vmax.f32 %v5327, 0.0
        %v6806 = vmax.f32 %v5678, 0.0
        %v6807 = vmax.f32 %v5680, 0.0
        %v6808 = vmax.f32 %v6031, 0.0
        %v6809 = vmax.f32 %v6033, 0.0
        %v6810 = vmax.f32 %v6384, 0.0
        %v6811 = vmax.f32 %v6386, 0.0
        %v6812 = vmax.f32 %v5329, 0.0
        %v6813 = vmax.f32 %v5331, 0.0
        %v6814 = vmax.f32 %v5682, 0.0
        %v6815 = vmax.f32 %v5684, 0.0
        %v6816 = vmax.f32 %v6035, 0.0
        %v6817 = vmax.f32 %v6037, 0.0
        %v6818 = vmax.f32 %v6388, 0.0
        %v6819 = vmax.f32 %v6390, 0.0
        %v6820 = vmax.f32 %v5335, 0.0
        %v6821 = vmax.f32 %v5337, 0.0
        %v6822 = vmax.f32 %v5688, 0.0
        %v6823 = vmax.f32 %v5690, 0.0
        %v6824 = vmax.f32 %v6041, 0.0
        %v6825 = vmax.f32 %v6043, 0.0
        %v6826 = vmax.f32 %v6394, 0.0
        %v6827 = vmax.f32 %v6396, 0.0
        %v6828 = vmax.f32 %v5339, 0.0
        %v6829 = vmax.f32 %v5341, 0.0
        %v6830 = vmax.f32 %v5692, 0.0
        %v6831 = vmax.f32 %v5694, 0.0
        %v6832 = vmax.f32 %v6045, 0.0
        %v6833 = vmax.f32 %v6047, 0.0
        %v6834 = vmax.f32 %v6398, 0.0
        %v6835 = vmax.f32 %v6400, 0.0
        %v6836 = vmax.f32 %v5345, 0.0
        %v6837 = vmax.f32 %v5347, 0.0
        %v6838 = vmax.f32 %v5698, 0.0
        %v6839 = vmax.f32 %v5700, 0.0
        %v6840 = vmax.f32 %v6051, 0.0
        %v6841 = vmax.f32 %v6053, 0.0
        %v6842 = vmax.f32 %v6404, 0.0
        %v6843 = vmax.f32 %v6406, 0.0
        %v6844 = vmax.f32 %v5349, 0.0
        %v6845 = vmax.f32 %v5351, 0.0
        %v6846 = vmax.f32 %v5702, 0.0
        %v6847 = vmax.f32 %v5704, 0.0
        %v6848 = vmax.f32 %v6055, 0.0
        %v6849 = vmax.f32 %v6057, 0.0
        %v6850 = vmax.f32 %v6408, 0.0
        %v6851 = vmax.f32 %v6410, 0.0
        %v6852 = vmax.f32 %v5355, 0.0
        %v6853 = vmax.f32 %v5357, 0.0
        %v6854 = vmax.f32 %v5708, 0.0
        %v6855 = vmax.f32 %v5710, 0.0
        %v6856 = vmax.f32 %v6061, 0.0
        %v6857 = vmax.f32 %v6063, 0.0
        %v6858 = vmax.f32 %v6414, 0.0
        %v6859 = vmax.f32 %v6416, 0.0
        %v6860 = vmax.f32 %v5359, 0.0
        %v6861 = vmax.f32 %v5361, 0.0
        %v6862 = vmax.f32 %v5712, 0.0
        %v6863 = vmax.f32 %v5714, 0.0
        %v6864 = vmax.f32 %v6065, 0.0
        %v6865 = vmax.f32 %v6067, 0.0
        %v6866 = vmax.f32 %v6418, 0.0
        %v6867 = vmax.f32 %v6420, 0.0
        %v6868 = vmax.f32 %v5365, 0.0
        %v6869 = vmax.f32 %v5367, 0.0
        %v6870 = vmax.f32 %v5718, 0.0
        %v6871 = vmax.f32 %v5720, 0.0
        %v6872 = vmax.f32 %v6071, 0.0
        %v6873 = vmax.f32 %v6073, 0.0
        %v6874 = vmax.f32 %v6424, 0.0
        %v6875 = vmax.f32 %v6426, 0.0
        %v6876 = vmax.f32 %v5369, 0.0
        %v6877 = vmax.f32 %v5371, 0.0
        %v6878 = vmax.f32 %v5722, 0.0
        %v6879 = vmax.f32 %v5724, 0.0
        %v6880 = vmax.f32 %v6075, 0.0
        %v6881 = vmax.f32 %v6077, 0.0
        %v6882 = vmax.f32 %v6428, 0.0
        %v6883 = vmax.f32 %v6430, 0.0
        %v6884 = vmax.f32 %v5375, 0.0
        %v6885 = vmax.f32 %v5377, 0.0
        %v6886 = vmax.f32 %v5728, 0.0
        %v6887 = vmax.f32 %v5730, 0.0
        %v6888 = vmax.f32 %v6081, 0.0
        %v6889 = vmax.f32 %v6083, 0.0
        %v6890 = vmax.f32 %v6434, 0.0
        %v6891 = vmax.f32 %v6436, 0.0
        %v6892 = vmax.f32 %v5379, 0.0
        %v6893 = vmax.f32 %v5381, 0.0
        %v6894 = vmax.f32 %v5732, 0.0
        %v6895 = vmax.f32 %v5734, 0.0
        %v6896 = vmax.f32 %v6085, 0.0
        %v6897 = vmax.f32 %v6087, 0.0
        %v6898 = vmax.f32 %v6438, 0.0
        %v6899 = vmax.f32 %v6440, 0.0
        %v6900 = vmax.f32 %v5385, 0.0
        %v6901 = vmax.f32 %v5387, 0.0
        %v6902 = vmax.f32 %v5738, 0.0
        %v6903 = vmax.f32 %v5740, 0.0
        %v6904 = vmax.f32 %v6091, 0.0
        %v6905 = vmax.f32 %v6093, 0.0
        %v6906 = vmax.f32 %v6444, 0.0
        %v6907 = vmax.f32 %v6446, 0.0
        %v6908 = vmax.f32 %v5389, 0.0
        %v6909 = vmax.f32 %v5391, 0.0
        %v6910 = vmax.f32 %v5742, 0.0
        %v6911 = vmax.f32 %v5744, 0.0
        %v6912 = vmax.f32 %v6095, 0.0
        %v6913 = vmax.f32 %v6097, 0.0
        %v6914 = vmax.f32 %v6448, 0.0
        %v6915 = vmax.f32 %v6450, 0.0
        %v6916 = vmax.f32 %v5395, 0.0
        %v6917 = vmax.f32 %v5397, 0.0
        %v6918 = vmax.f32 %v5748, 0.0
        %v6919 = vmax.f32 %v5750, 0.0
        %v6920 = vmax.f32 %v6101, 0.0
        %v6921 = vmax.f32 %v6103, 0.0
        %v6922 = vmax.f32 %v6454, 0.0
        %v6923 = vmax.f32 %v6456, 0.0
        %v6924 = vmax.f32 %v5399, 0.0
        %v6925 = vmax.f32 %v5401, 0.0
        %v6926 = vmax.f32 %v5752, 0.0
        %v6927 = vmax.f32 %v5754, 0.0
        %v6928 = vmax.f32 %v6105, 0.0
        %v6929 = vmax.f32 %v6107, 0.0
        %v6930 = vmax.f32 %v6458, 0.0
        %v6931 = vmax.f32 %v6460, 0.0
        %v6932 = vmax.f32 %v5405, 0.0
        %v6933 = vmax.f32 %v5407, 0.0
        %v6934 = vmax.f32 %v5758, 0.0
        %v6935 = vmax.f32 %v5760, 0.0
        %v6936 = vmax.f32 %v6111, 0.0
        %v6937 = vmax.f32 %v6113, 0.0
        %v6938 = vmax.f32 %v6464, 0.0
        %v6939 = vmax.f32 %v6466, 0.0
        %v6940 = vmax.f32 %v5409, 0.0
        %v6941 = vmax.f32 %v5411, 0.0
        %v6942 = vmax.f32 %v5762, 0.0
        %v6943 = vmax.f32 %v5764, 0.0
        %v6944 = vmax.f32 %v6115, 0.0
        %v6945 = vmax.f32 %v6117, 0.0
        %v6946 = vmax.f32 %v6468, 0.0
        %v6947 = vmax.f32 %v6470, 0.0
        %v6948 = vmax.f32 %v5415, 0.0
        %v6949 = vmax.f32 %v5417, 0.0
        %v6950 = vmax.f32 %v5768, 0.0
        %v6951 = vmax.f32 %v5770, 0.0
        %v6952 = vmax.f32 %v6121, 0.0
        %v6953 = vmax.f32 %v6123, 0.0
        %v6954 = vmax.f32 %v6474, 0.0
        %v6955 = vmax.f32 %v6476, 0.0
        %v6956 = vmax.f32 %v5419, 0.0
        %v6957 = vmax.f32 %v5421, 0.0
        %v6958 = vmax.f32 %v5772, 0.0
        %v6959 = vmax.f32 %v5774, 0.0
        %v6960 = vmax.f32 %v6125, 0.0
        %v6961 = vmax.f32 %v6127, 0.0
        %v6962 = vmax.f32 %v6478, 0.0
        %v6963 = vmax.f32 %v6480, 0.0
        %v6964 = vmax.f32 %v5425, 0.0
        %v6965 = vmax.f32 %v5427, 0.0
        %v6966 = vmax.f32 %v5778, 0.0
        %v6967 = vmax.f32 %v5780, 0.0
        %v6968 = vmax.f32 %v6131, 0.0
        %v6969 = vmax.f32 %v6133, 0.0
        %v6970 = vmax.f32 %v6484, 0.0
        %v6971 = vmax.f32 %v6486, 0.0
        %v6972 = vmax.f32 %v5429, 0.0
        %v6973 = vmax.f32 %v5431, 0.0
        %v6974 = vmax.f32 %v5782, 0.0
        %v6975 = vmax.f32 %v5784, 0.0
        %v6976 = vmax.f32 %v6135, 0.0
        %v6977 = vmax.f32 %v6137, 0.0
        %v6978 = vmax.f32 %v6488, 0.0
        %v6979 = vmax.f32 %v6490, 0.0
        %v6980 = vmax.f32 %v5435, 0.0
        %v6981 = vmax.f32 %v5437, 0.0
        %v6982 = vmax.f32 %v5788, 0.0
        %v6983 = vmax.f32 %v5790, 0.0
        %v6984 = vmax.f32 %v6141, 0.0
        %v6985 = vmax.f32 %v6143, 0.0
        %v6986 = vmax.f32 %v6494, 0.0
        %v6987 = vmax.f32 %v6496, 0.0
        %v6988 = vmax.f32 %v5439, 0.0
        %v6989 = vmax.f32 %v5441, 0.0
        %v6990 = vmax.f32 %v5792, 0.0
        %v6991 = vmax.f32 %v5794, 0.0
        %v6992 = vmax.f32 %v6145, 0.0
        %v6993 = vmax.f32 %v6147, 0.0
        %v6994 = vmax.f32 %v6498, 0.0
        %v6995 = vmax.f32 %v6500, 0.0
        %v6996 = vmax.f32 %v5445, 0.0
        %v6997 = vmax.f32 %v5447, 0.0
        %v6998 = vmax.f32 %v5798, 0.0
        %v6999 = vmax.f32 %v5800, 0.0
        %v7000 = vmax.f32 %v6151, 0.0
        %v7001 = vmax.f32 %v6153, 0.0
        %v7002 = vmax.f32 %v6504, 0.0
        %v7003 = vmax.f32 %v6506, 0.0
        %v7004 = vmax.f32 %v5449, 0.0
        %v7005 = vmax.f32 %v5451, 0.0
        %v7006 = vmax.f32 %v5802, 0.0
        %v7007 = vmax.f32 %v5804, 0.0
        %v7008 = vmax.f32 %v6155, 0.0
        %v7009 = vmax.f32 %v6157, 0.0
        %v7010 = vmax.f32 %v6508, 0.0
        %v7011 = vmax.f32 %v6510, 0.0
        %v7012 = vmax.f32 %v5455, 0.0
        %v7013 = vmax.f32 %v5457, 0.0
        %v7014 = vmax.f32 %v5808, 0.0
        %v7015 = vmax.f32 %v5810, 0.0
        %v7016 = vmax.f32 %v6161, 0.0
        %v7017 = vmax.f32 %v6163, 0.0
        %v7018 = vmax.f32 %v6514, 0.0
        %v7019 = vmax.f32 %v6516, 0.0
        %v7020 = vmax.f32 %v5459, 0.0
        %v7021 = vmax.f32 %v5461, 0.0
        %v7022 = vmax.f32 %v5812, 0.0
        %v7023 = vmax.f32 %v5814, 0.0
        %v7024 = vmax.f32 %v6165, 0.0
        %v7025 = vmax.f32 %v6167, 0.0
        %v7026 = vmax.f32 %v6518, 0.0
        %v7027 = vmax.f32 %v6520, 0.0
        %v7028 = vmax.f32 %v5465, 0.0
        %v7029 = vmax.f32 %v5467, 0.0
        %v7030 = vmax.f32 %v5818, 0.0
        %v7031 = vmax.f32 %v5820, 0.0
        %v7032 = vmax.f32 %v6171, 0.0
        %v7033 = vmax.f32 %v6173, 0.0
        %v7034 = vmax.f32 %v6524, 0.0
        %v7035 = vmax.f32 %v6526, 0.0
        %v7036 = vmax.f32 %v5469, 0.0
        %v7037 = vmax.f32 %v5471, 0.0
        %v7038 = vmax.f32 %v5822, 0.0
        %v7039 = vmax.f32 %v5824, 0.0
        %v7040 = vmax.f32 %v6175, 0.0
        %v7041 = vmax.f32 %v6177, 0.0
        %v7042 = vmax.f32 %v6528, 0.0
        %v7043 = vmax.f32 %v6530, 0.0
        %v7044 = vld [vmem:[#allocation2] sm:$0xff]
        %v7045 = vmax.f32 %v6532, %v6540
        %v7046 = vmax.f32 %v7045, %v6548
        %v7047 = vmax.f32 %v7046, %v6556
        %v7048 = vmax.f32 %v7047, %v6564
        %v7049 = vmax.f32 %v7048, %v6572
        %v7050 = vmax.f32 %v7049, %v6580
        %v7051 = vmax.f32 %v7050, %v6588
        %v7052 = vmax.f32 %v7051, %v6596
        %v7053 = vmax.f32 %v7052, %v6604
        %v7054 = vmax.f32 %v7053, %v6612
        %v7055 = vmax.f32 %v7054, %v6620
        %v7056 = vmax.f32 %v7055, %v6628
        %v7057 = vmax.f32 %v7056, %v6636
        %v7058 = vmax.f32 %v7057, %v6644
        %v7059 = vmax.f32 %v7058, %v6652
        %v7060 = vmax.f32 %v7059, %v6660
        %v7061 = vmax.f32 %v7060, %v6668
        %v7062 = vmax.f32 %v7061, %v6676
        %v7063 = vmax.f32 %v7062, %v6684
        %v7064 = vmax.f32 %v7063, %v6692
        %v7065 = vmax.f32 %v7064, %v6700
        %v7066 = vmax.f32 %v7065, %v6708
        %v7067 = vmax.f32 %v7066, %v6716
        %v7068 = vmax.f32 %v7067, %v6724
        %v7069 = vmax.f32 %v7068, %v6732
        %v7070 = vmax.f32 %v7069, %v6740
        %v7071 = vmax.f32 %v7070, %v6748
        %v7072 = vmax.f32 %v7071, %v6756
        %v7073 = vmax.f32 %v7072, %v6764
        %v7074 = vmax.f32 %v7073, %v6772
        %v7075 = vmax.f32 %v7074, %v6780
        %v7076 = vmax.f32 %v7075, %v6788
        %v7077 = vmax.f32 %v7076, %v6796
        %v7078 = vmax.f32 %v7077, %v6804
        %v7079 = vmax.f32 %v7078, %v6812
        %v7080 = vmax.f32 %v7079, %v6820
        %v7081 = vmax.f32 %v7080, %v6828
        %v7082 = vmax.f32 %v7081, %v6836
        %v7083 = vmax.f32 %v7082, %v6844
        %v7084 = vmax.f32 %v7083, %v6852
        %v7085 = vmax.f32 %v7084, %v6860
        %v7086 = vmax.f32 %v7085, %v6868
        %v7087 = vmax.f32 %v7086, %v6876
        %v7088 = vmax.f32 %v7087, %v6884
        %v7089 = vmax.f32 %v7088, %v6892
        %v7090 = vmax.f32 %v7089, %v6900
        %v7091 = vmax.f32 %v7090, %v6908
        %v7092 = vmax.f32 %v7091, %v6916
        %v7093 = vmax.f32 %v7092, %v6924
        %v7094 = vmax.f32 %v7093, %v6932
        %v7095 = vmax.f32 %v7094, %v6940
        %v7096 = vmax.f32 %v7095, %v6948
        %v7097 = vmax.f32 %v7096, %v6956
        %v7098 = vmax.f32 %v7097, %v6964
        %v7099 = vmax.f32 %v7098, %v6972
        %v7100 = vmax.f32 %v7099, %v6980
        %v7101 = vmax.f32 %v7100, %v6988
        %v7102 = vmax.f32 %v7101, %v6996
        %v7103 = vmax.f32 %v7102, %v7004
        %v7104 = vmax.f32 %v7103, %v7012
        %v7105 = vmax.f32 %v7104, %v7020
        %v7106 = vmax.f32 %v7105, %v7028
        %v7107 = vmax.f32 %v7106, %v7036
        %v7108 = vrot.slane %v7107, 4
        %v7109 = vmax.f32 %v7107, %v7108
        %v7110 = vrot.slane %v7109, 2
        %v7111 = vmax.f32 %v7109, %v7110
        %v7112 = vrot.slane %v7111, 1
        %v7113 = vmax.f32 %v7111, %v7112
        %v7114 = vmax.f32 %v6533, %v6541
        %v7115 = vmax.f32 %v7114, %v6549
        %v7116 = vmax.f32 %v7115, %v6557
        %v7117 = vmax.f32 %v7116, %v6565
        %v7118 = vmax.f32 %v7117, %v6573
        %v7119 = vmax.f32 %v7118, %v6581
        %v7120 = vmax.f32 %v7119, %v6589
        %v7121 = vmax.f32 %v7120, %v6597
        %v7122 = vmax.f32 %v7121, %v6605
        %v7123 = vmax.f32 %v7122, %v6613
        %v7124 = vmax.f32 %v7123, %v6621
        %v7125 = vmax.f32 %v7124, %v6629
        %v7126 = vmax.f32 %v7125, %v6637
        %v7127 = vmax.f32 %v7126, %v6645
        %v7128 = vmax.f32 %v7127, %v6653
        %v7129 = vmax.f32 %v7128, %v6661
        %v7130 = vmax.f32 %v7129, %v6669
        %v7131 = vmax.f32 %v7130, %v6677
        %v7132 = vmax.f32 %v7131, %v6685
        %v7133 = vmax.f32 %v7132, %v6693
        %v7134 = vmax.f32 %v7133, %v6701
        %v7135 = vmax.f32 %v7134, %v6709
        %v7136 = vmax.f32 %v7135, %v6717
        %v7137 = vmax.f32 %v7136, %v6725
        %v7138 = vmax.f32 %v7137, %v6733
        %v7139 = vmax.f32 %v7138, %v6741
        %v7140 = vmax.f32 %v7139, %v6749
        %v7141 = vmax.f32 %v7140, %v6757
        %v7142 = vmax.f32 %v7141, %v6765
        %v7143 = vmax.f32 %v7142, %v6773
        %v7144 = vmax.f32 %v7143, %v6781
        %v7145 = vmax.f32 %v7144, %v6789
        %v7146 = vmax.f32 %v7145, %v6797
        %v7147 = vmax.f32 %v7146, %v6805
        %v7148 = vmax.f32 %v7147, %v6813
        %v7149 = vmax.f32 %v7148, %v6821
        %v7150 = vmax.f32 %v7149, %v6829
        %v7151 = vmax.f32 %v7150, %v6837
        %v7152 = vmax.f32 %v7151, %v6845
        %v7153 = vmax.f32 %v7152, %v6853
        %v7154 = vmax.f32 %v7153, %v6861
        %v7155 = vmax.f32 %v7154, %v6869
        %v7156 = vmax.f32 %v7155, %v6877
        %v7157 = vmax.f32 %v7156, %v6885
        %v7158 = vmax.f32 %v7157, %v6893
        %v7159 = vmax.f32 %v7158, %v6901
        %v7160 = vmax.f32 %v7159, %v6909
        %v7161 = vmax.f32 %v7160, %v6917
        %v7162 = vmax.f32 %v7161, %v6925
        %v7163 = vmax.f32 %v7162, %v6933
        %v7164 = vmax.f32 %v7163, %v6941
        %v7165 = vmax.f32 %v7164, %v6949
        %v7166 = vmax.f32 %v7165, %v6957
        %v7167 = vmax.f32 %v7166, %v6965
        %v7168 = vmax.f32 %v7167, %v6973
        %v7169 = vmax.f32 %v7168, %v6981
        %v7170 = vmax.f32 %v7169, %v6989
        %v7171 = vmax.f32 %v7170, %v6997
        %v7172 = vmax.f32 %v7171, %v7005
        %v7173 = vmax.f32 %v7172, %v7013
        %v7174 = vmax.f32 %v7173, %v7021
        %v7175 = vmax.f32 %v7174, %v7029
        %v7176 = vmax.f32 %v7175, %v7037
        %v7177 = vrot.slane %v7176, 4
        %v7178 = vmax.f32 %v7176, %v7177
        %v7179 = vrot.slane %v7178, 2
        %v7180 = vmax.f32 %v7178, %v7179
        %v7181 = vrot.slane %v7180, 1
        %v7182 = vmax.f32 %v7180, %v7181
        %v7183 = vmax.f32 %v6534, %v6542
        %v7184 = vmax.f32 %v7183, %v6550
        %v7185 = vmax.f32 %v7184, %v6558
        %v7186 = vmax.f32 %v7185, %v6566
        %v7187 = vmax.f32 %v7186, %v6574
        %v7188 = vmax.f32 %v7187, %v6582
        %v7189 = vmax.f32 %v7188, %v6590
        %v7190 = vmax.f32 %v7189, %v6598
        %v7191 = vmax.f32 %v7190, %v6606
        %v7192 = vmax.f32 %v7191, %v6614
        %v7193 = vmax.f32 %v7192, %v6622
        %v7194 = vmax.f32 %v7193, %v6630
        %v7195 = vmax.f32 %v7194, %v6638
        %v7196 = vmax.f32 %v7195, %v6646
        %v7197 = vmax.f32 %v7196, %v6654
        %v7198 = vmax.f32 %v7197, %v6662
        %v7199 = vmax.f32 %v7198, %v6670
        %v7200 = vmax.f32 %v7199, %v6678
        %v7201 = vmax.f32 %v7200, %v6686
        %v7202 = vmax.f32 %v7201, %v6694
        %v7203 = vmax.f32 %v7202, %v6702
        %v7204 = vmax.f32 %v7203, %v6710
        %v7205 = vmax.f32 %v7204, %v6718
        %v7206 = vmax.f32 %v7205, %v6726
        %v7207 = vmax.f32 %v7206, %v6734
        %v7208 = vmax.f32 %v7207, %v6742
        %v7209 = vmax.f32 %v7208, %v6750
        %v7210 = vmax.f32 %v7209, %v6758
        %v7211 = vmax.f32 %v7210, %v6766
        %v7212 = vmax.f32 %v7211, %v6774
        %v7213 = vmax.f32 %v7212, %v6782
        %v7214 = vmax.f32 %v7213, %v6790
        %v7215 = vmax.f32 %v7214, %v6798
        %v7216 = vmax.f32 %v7215, %v6806
        %v7217 = vmax.f32 %v7216, %v6814
        %v7218 = vmax.f32 %v7217, %v6822
        %v7219 = vmax.f32 %v7218, %v6830
        %v7220 = vmax.f32 %v7219, %v6838
        %v7221 = vmax.f32 %v7220, %v6846
        %v7222 = vmax.f32 %v7221, %v6854
        %v7223 = vmax.f32 %v7222, %v6862
        %v7224 = vmax.f32 %v7223, %v6870
        %v7225 = vmax.f32 %v7224, %v6878
        %v7226 = vmax.f32 %v7225, %v6886
        %v7227 = vmax.f32 %v7226, %v6894
        %v7228 = vmax.f32 %v7227, %v6902
        %v7229 = vmax.f32 %v7228, %v6910
        %v7230 = vmax.f32 %v7229, %v6918
        %v7231 = vmax.f32 %v7230, %v6926
        %v7232 = vmax.f32 %v7231, %v6934
        %v7233 = vmax.f32 %v7232, %v6942
        %v7234 = vmax.f32 %v7233, %v6950
        %v7235 = vmax.f32 %v7234, %v6958
        %v7236 = vmax.f32 %v7235, %v6966
        %v7237 = vmax.f32 %v7236, %v6974
        %v7238 = vmax.f32 %v7237, %v6982
        %v7239 = vmax.f32 %v7238, %v6990
        %v7240 = vmax.f32 %v7239, %v6998
        %v7241 = vmax.f32 %v7240, %v7006
        %v7242 = vmax.f32 %v7241, %v7014
        %v7243 = vmax.f32 %v7242, %v7022
        %v7244 = vmax.f32 %v7243, %v7030
        %v7245 = vmax.f32 %v7244, %v7038
        %v7246 = vrot.slane %v7245, 4
        %v7247 = vmax.f32 %v7245, %v7246
        %v7248 = vrot.slane %v7247, 2
        %v7249 = vmax.f32 %v7247, %v7248
        %v7250 = vrot.slane %v7249, 1
        %v7251 = vmax.f32 %v7249, %v7250
        %v7252 = vmax.f32 %v6535, %v6543
        %v7253 = vmax.f32 %v7252, %v6551
        %v7254 = vmax.f32 %v7253, %v6559
        %v7255 = vmax.f32 %v7254, %v6567
        %v7256 = vmax.f32 %v7255, %v6575
        %v7257 = vmax.f32 %v7256, %v6583
        %v7258 = vmax.f32 %v7257, %v6591
        %v7259 = vmax.f32 %v7258, %v6599
        %v7260 = vmax.f32 %v7259, %v6607
        %v7261 = vmax.f32 %v7260, %v6615
        %v7262 = vmax.f32 %v7261, %v6623
        %v7263 = vmax.f32 %v7262, %v6631
        %v7264 = vmax.f32 %v7263, %v6639
        %v7265 = vmax.f32 %v7264, %v6647
        %v7266 = vmax.f32 %v7265, %v6655
        %v7267 = vmax.f32 %v7266, %v6663
        %v7268 = vmax.f32 %v7267, %v6671
        %v7269 = vmax.f32 %v7268, %v6679
        %v7270 = vmax.f32 %v7269, %v6687
        %v7271 = vmax.f32 %v7270, %v6695
        %v7272 = vmax.f32 %v7271, %v6703
        %v7273 = vmax.f32 %v7272, %v6711
        %v7274 = vmax.f32 %v7273, %v6719
        %v7275 = vmax.f32 %v7274, %v6727
        %v7276 = vmax.f32 %v7275, %v6735
        %v7277 = vmax.f32 %v7276, %v6743
        %v7278 = vmax.f32 %v7277, %v6751
        %v7279 = vmax.f32 %v7278, %v6759
        %v7280 = vmax.f32 %v7279, %v6767
        %v7281 = vmax.f32 %v7280, %v6775
        %v7282 = vmax.f32 %v7281, %v6783
        %v7283 = vmax.f32 %v7282, %v6791
        %v7284 = vmax.f32 %v7283, %v6799
        %v7285 = vmax.f32 %v7284, %v6807
        %v7286 = vmax.f32 %v7285, %v6815
        %v7287 = vmax.f32 %v7286, %v6823
        %v7288 = vmax.f32 %v7287, %v6831
        %v7289 = vmax.f32 %v7288, %v6839
        %v7290 = vmax.f32 %v7289, %v6847
        %v7291 = vmax.f32 %v7290, %v6855
        %v7292 = vmax.f32 %v7291, %v6863
        %v7293 = vmax.f32 %v7292, %v6871
        %v7294 = vmax.f32 %v7293, %v6879
        %v7295 = vmax.f32 %v7294, %v6887
        %v7296 = vmax.f32 %v7295, %v6895
        %v7297 = vmax.f32 %v7296, %v6903
        %v7298 = vmax.f32 %v7297, %v6911
        %v7299 = vmax.f32 %v7298, %v6919
        %v7300 = vmax.f32 %v7299, %v6927
        %v7301 = vmax.f32 %v7300, %v6935
        %v7302 = vmax.f32 %v7301, %v6943
        %v7303 = vmax.f32 %v7302, %v6951
        %v7304 = vmax.f32 %v7303, %v6959
        %v7305 = vmax.f32 %v7304, %v6967
        %v7306 = vmax.f32 %v7305, %v6975
        %v7307 = vmax.f32 %v7306, %v6983
        %v7308 = vmax.f32 %v7307, %v6991
        %v7309 = vmax.f32 %v7308, %v6999
        %v7310 = vmax.f32 %v7309, %v7007
        %v7311 = vmax.f32 %v7310, %v7015
        %v7312 = vmax.f32 %v7311, %v7023
        %v7313 = vmax.f32 %v7312, %v7031
        %v7314 = vmax.f32 %v7313, %v7039
        %v7315 = vrot.slane %v7314, 4
        %v7316 = vmax.f32 %v7314, %v7315
        %v7317 = vrot.slane %v7316, 2
        %v7318 = vmax.f32 %v7316, %v7317
        %v7319 = vrot.slane %v7318, 1
        %v7320 = vmax.f32 %v7318, %v7319
        %v7321 = vmax.f32 %v6536, %v6544
        %v7322 = vmax.f32 %v7321, %v6552
        %v7323 = vmax.f32 %v7322, %v6560
        %v7324 = vmax.f32 %v7323, %v6568
        %v7325 = vmax.f32 %v7324, %v6576
        %v7326 = vmax.f32 %v7325, %v6584
        %v7327 = vmax.f32 %v7326, %v6592
        %v7328 = vmax.f32 %v7327, %v6600
        %v7329 = vmax.f32 %v7328, %v6608
        %v7330 = vmax.f32 %v7329, %v6616
        %v7331 = vmax.f32 %v7330, %v6624
        %v7332 = vmax.f32 %v7331, %v6632
        %v7333 = vmax.f32 %v7332, %v6640
        %v7334 = vmax.f32 %v7333, %v6648
        %v7335 = vmax.f32 %v7334, %v6656
        %v7336 = vmax.f32 %v7335, %v6664
        %v7337 = vmax.f32 %v7336, %v6672
        %v7338 = vmax.f32 %v7337, %v6680
        %v7339 = vmax.f32 %v7338, %v6688
        %v7340 = vmax.f32 %v7339, %v6696
        %v7341 = vmax.f32 %v7340, %v6704
        %v7342 = vmax.f32 %v7341, %v6712
        %v7343 = vmax.f32 %v7342, %v6720
        %v7344 = vmax.f32 %v7343, %v6728
        %v7345 = vmax.f32 %v7344, %v6736
        %v7346 = vmax.f32 %v7345, %v6744
        %v7347 = vmax.f32 %v7346, %v6752
        %v7348 = vmax.f32 %v7347, %v6760
        %v7349 = vmax.f32 %v7348, %v6768
        %v7350 = vmax.f32 %v7349, %v6776
        %v7351 = vmax.f32 %v7350, %v6784
        %v7352 = vmax.f32 %v7351, %v6792
        %v7353 = vmax.f32 %v7352, %v6800
        %v7354 = vmax.f32 %v7353, %v6808
        %v7355 = vmax.f32 %v7354, %v6816
        %v7356 = vmax.f32 %v7355, %v6824
        %v7357 = vmax.f32 %v7356, %v6832
        %v7358 = vmax.f32 %v7357, %v6840
        %v7359 = vmax.f32 %v7358, %v6848
        %v7360 = vmax.f32 %v7359, %v6856
        %v7361 = vmax.f32 %v7360, %v6864
        %v7362 = vmax.f32 %v7361, %v6872
        %v7363 = vmax.f32 %v7362, %v6880
        %v7364 = vmax.f32 %v7363, %v6888
        %v7365 = vmax.f32 %v7364, %v6896
        %v7366 = vmax.f32 %v7365, %v6904
        %v7367 = vmax.f32 %v7366, %v6912
        %v7368 = vmax.f32 %v7367, %v6920
        %v7369 = vmax.f32 %v7368, %v6928
        %v7370 = vmax.f32 %v7369, %v6936
        %v7371 = vmax.f32 %v7370, %v6944
        %v7372 = vmax.f32 %v7371, %v6952
        %v7373 = vmax.f32 %v7372, %v6960
        %v7374 = vmax.f32 %v7373, %v6968
        %v7375 = vmax.f32 %v7374, %v6976
        %v7376 = vmax.f32 %v7375, %v6984
        %v7377 = vmax.f32 %v7376, %v6992
        %v7378 = vmax.f32 %v7377, %v7000
        %v7379 = vmax.f32 %v7378, %v7008
        %v7380 = vmax.f32 %v7379, %v7016
        %v7381 = vmax.f32 %v7380, %v7024
        %v7382 = vmax.f32 %v7381, %v7032
        %v7383 = vmax.f32 %v7382, %v7040
        %v7384 = vrot.slane %v7383, 4
        %v7385 = vmax.f32 %v7383, %v7384
        %v7386 = vrot.slane %v7385, 2
        %v7387 = vmax.f32 %v7385, %v7386
        %v7388 = vrot.slane %v7387, 1
        %v7389 = vmax.f32 %v7387, %v7388
        %v7390 = vmax.f32 %v6537, %v6545
        %v7391 = vmax.f32 %v7390, %v6553
        %v7392 = vmax.f32 %v7391, %v6561
        %v7393 = vmax.f32 %v7392, %v6569
        %v7394 = vmax.f32 %v7393, %v6577
        %v7395 = vmax.f32 %v7394, %v6585
        %v7396 = vmax.f32 %v7395, %v6593
        %v7397 = vmax.f32 %v7396, %v6601
        %v7398 = vmax.f32 %v7397, %v6609
        %v7399 = vmax.f32 %v7398, %v6617
        %v7400 = vmax.f32 %v7399, %v6625
        %v7401 = vmax.f32 %v7400, %v6633
        %v7402 = vmax.f32 %v7401, %v6641
        %v7403 = vmax.f32 %v7402, %v6649
        %v7404 = vmax.f32 %v7403, %v6657
        %v7405 = vmax.f32 %v7404, %v6665
        %v7406 = vmax.f32 %v7405, %v6673
        %v7407 = vmax.f32 %v7406, %v6681
        %v7408 = vmax.f32 %v7407, %v6689
        %v7409 = vmax.f32 %v7408, %v6697
        %v7410 = vmax.f32 %v7409, %v6705
        %v7411 = vmax.f32 %v7410, %v6713
        %v7412 = vmax.f32 %v7411, %v6721
        %v7413 = vmax.f32 %v7412, %v6729
        %v7414 = vmax.f32 %v7413, %v6737
        %v7415 = vmax.f32 %v7414, %v6745
        %v7416 = vmax.f32 %v7415, %v6753
        %v7417 = vmax.f32 %v7416, %v6761
        %v7418 = vmax.f32 %v7417, %v6769
        %v7419 = vmax.f32 %v7418, %v6777
        %v7420 = vmax.f32 %v7419, %v6785
        %v7421 = vmax.f32 %v7420, %v6793
        %v7422 = vmax.f32 %v7421, %v6801
        %v7423 = vmax.f32 %v7422, %v6809
        %v7424 = vmax.f32 %v7423, %v6817
        %v7425 = vmax.f32 %v7424, %v6825
        %v7426 = vmax.f32 %v7425, %v6833
        %v7427 = vmax.f32 %v7426, %v6841
        %v7428 = vmax.f32 %v7427, %v6849
        %v7429 = vmax.f32 %v7428, %v6857
        %v7430 = vmax.f32 %v7429, %v6865
        %v7431 = vmax.f32 %v7430, %v6873
        %v7432 = vmax.f32 %v7431, %v6881
        %v7433 = vmax.f32 %v7432, %v6889
        %v7434 = vmax.f32 %v7433, %v6897
        %v7435 = vmax.f32 %v7434, %v6905
        %v7436 = vmax.f32 %v7435, %v6913
        %v7437 = vmax.f32 %v7436, %v6921
        %v7438 = vmax.f32 %v7437, %v6929
        %v7439 = vmax.f32 %v7438, %v6937
        %v7440 = vmax.f32 %v7439, %v6945
        %v7441 = vmax.f32 %v7440, %v6953
        %v7442 = vmax.f32 %v7441, %v6961
        %v7443 = vmax.f32 %v7442, %v6969
        %v7444 = vmax.f32 %v7443, %v6977
        %v7445 = vmax.f32 %v7444, %v6985
        %v7446 = vmax.f32 %v7445, %v6993
        %v7447 = vmax.f32 %v7446, %v7001
        %v7448 = vmax.f32 %v7447, %v7009
        %v7449 = vmax.f32 %v7448, %v7017
        %v7450 = vmax.f32 %v7449, %v7025
        %v7451 = vmax.f32 %v7450, %v7033
        %v7452 = vmax.f32 %v7451, %v7041
        %v7453 = vrot.slane %v7452, 4
        %v7454 = vmax.f32 %v7452, %v7453
        %v7455 = vrot.slane %v7454, 2
        %v7456 = vmax.f32 %v7454, %v7455
        %v7457 = vrot.slane %v7456, 1
        %v7458 = vmax.f32 %v7456, %v7457
        %v7459 = vmax.f32 %v6538, %v6546
        %v7460 = vmax.f32 %v7459, %v6554
        %v7461 = vmax.f32 %v7460, %v6562
        %v7462 = vmax.f32 %v7461, %v6570
        %v7463 = vmax.f32 %v7462, %v6578
        %v7464 = vmax.f32 %v7463, %v6586
        %v7465 = vmax.f32 %v7464, %v6594
        %v7466 = vmax.f32 %v7465, %v6602
        %v7467 = vmax.f32 %v7466, %v6610
        %v7468 = vmax.f32 %v7467, %v6618
        %v7469 = vmax.f32 %v7468, %v6626
        %v7470 = vmax.f32 %v7469, %v6634
        %v7471 = vmax.f32 %v7470, %v6642
        %v7472 = vmax.f32 %v7471, %v6650
        %v7473 = vmax.f32 %v7472, %v6658
        %v7474 = vmax.f32 %v7473, %v6666
        %v7475 = vmax.f32 %v7474, %v6674
        %v7476 = vmax.f32 %v7475, %v6682
        %v7477 = vmax.f32 %v7476, %v6690
        %v7478 = vmax.f32 %v7477, %v6698
        %v7479 = vmax.f32 %v7478, %v6706
        %v7480 = vmax.f32 %v7479, %v6714
        %v7481 = vmax.f32 %v7480, %v6722
        %v7482 = vmax.f32 %v7481, %v6730
        %v7483 = vmax.f32 %v7482, %v6738
        %v7484 = vmax.f32 %v7483, %v6746
        %v7485 = vmax.f32 %v7484, %v6754
        %v7486 = vmax.f32 %v7485, %v6762
        %v7487 = vmax.f32 %v7486, %v6770
        %v7488 = vmax.f32 %v7487, %v6778
        %v7489 = vmax.f32 %v7488, %v6786
        %v7490 = vmax.f32 %v7489, %v6794
        %v7491 = vmax.f32 %v7490, %v6802
        %v7492 = vmax.f32 %v7491, %v6810
        %v7493 = vmax.f32 %v7492, %v6818
        %v7494 = vmax.f32 %v7493, %v6826
        %v7495 = vmax.f32 %v7494, %v6834
        %v7496 = vmax.f32 %v7495, %v6842
        %v7497 = vmax.f32 %v7496, %v6850
        %v7498 = vmax.f32 %v7497, %v6858
        %v7499 = vmax.f32 %v7498, %v6866
        %v7500 = vmax.f32 %v7499, %v6874
        %v7501 = vmax.f32 %v7500, %v6882
        %v7502 = vmax.f32 %v7501, %v6890
        %v7503 = vmax.f32 %v7502, %v6898
        %v7504 = vmax.f32 %v7503, %v6906
        %v7505 = vmax.f32 %v7504, %v6914
        %v7506 = vmax.f32 %v7505, %v6922
        %v7507 = vmax.f32 %v7506, %v6930
        %v7508 = vmax.f32 %v7507, %v6938
        %v7509 = vmax.f32 %v7508, %v6946
        %v7510 = vmax.f32 %v7509, %v6954
        %v7511 = vmax.f32 %v7510, %v6962
        %v7512 = vmax.f32 %v7511, %v6970
        %v7513 = vmax.f32 %v7512, %v6978
        %v7514 = vmax.f32 %v7513, %v6986
        %v7515 = vmax.f32 %v7514, %v6994
        %v7516 = vmax.f32 %v7515, %v7002
        %v7517 = vmax.f32 %v7516, %v7010
        %v7518 = vmax.f32 %v7517, %v7018
        %v7519 = vmax.f32 %v7518, %v7026
        %v7520 = vmax.f32 %v7519, %v7034
        %v7521 = vmax.f32 %v7520, %v7042
        %v7522 = vrot.slane %v7521, 4
        %v7523 = vmax.f32 %v7521, %v7522
        %v7524 = vrot.slane %v7523, 2
        %v7525 = vmax.f32 %v7523, %v7524
        %v7526 = vrot.slane %v7525, 1
        %v7527 = vmax.f32 %v7525, %v7526
        %v7528 = vmax.f32 %v6539, %v6547
        %v7529 = vmax.f32 %v7528, %v6555
        %v7530 = vmax.f32 %v7529, %v6563
        %v7531 = vmax.f32 %v7530, %v6571
        %v7532 = vmax.f32 %v7531, %v6579
        %v7533 = vmax.f32 %v7532, %v6587
        %v7534 = vmax.f32 %v7533, %v6595
        %v7535 = vmax.f32 %v7534, %v6603
        %v7536 = vmax.f32 %v7535, %v6611
        %v7537 = vmax.f32 %v7536, %v6619
        %v7538 = vmax.f32 %v7537, %v6627
        %v7539 = vmax.f32 %v7538, %v6635
        %v7540 = vmax.f32 %v7539, %v6643
        %v7541 = vmax.f32 %v7540, %v6651
        %v7542 = vmax.f32 %v7541, %v6659
        %v7543 = vmax.f32 %v7542, %v6667
        %v7544 = vmax.f32 %v7543, %v6675
        %v7545 = vmax.f32 %v7544, %v6683
        %v7546 = vmax.f32 %v7545, %v6691
        %v7547 = vmax.f32 %v7546, %v6699
        %v7548 = vmax.f32 %v7547, %v6707
        %v7549 = vmax.f32 %v7548, %v6715
        %v7550 = vmax.f32 %v7549, %v6723
        %v7551 = vmax.f32 %v7550, %v6731
        %v7552 = vmax.f32 %v7551, %v6739
        %v7553 = vmax.f32 %v7552, %v6747
        %v7554 = vmax.f32 %v7553, %v6755
        %v7555 = vmax.f32 %v7554, %v6763
        %v7556 = vmax.f32 %v7555, %v6771
        %v7557 = vmax.f32 %v7556, %v6779
        %v7558 = vmax.f32 %v7557, %v6787
        %v7559 = vmax.f32 %v7558, %v6795
        %v7560 = vmax.f32 %v7559, %v6803
        %v7561 = vmax.f32 %v7560, %v6811
        %v7562 = vmax.f32 %v7561, %v6819
        %v7563 = vmax.f32 %v7562, %v6827
        %v7564 = vmax.f32 %v7563, %v6835
        %v7565 = vmax.f32 %v7564, %v6843
        %v7566 = vmax.f32 %v7565, %v6851
        %v7567 = vmax.f32 %v7566, %v6859
        %v7568 = vmax.f32 %v7567, %v6867
        %v7569 = vmax.f32 %v7568, %v6875
        %v7570 = vmax.f32 %v7569, %v6883
        %v7571 = vmax.f32 %v7570, %v6891
        %v7572 = vmax.f32 %v7571, %v6899
        %v7573 = vmax.f32 %v7572, %v6907
        %v7574 = vmax.f32 %v7573, %v6915
        %v7575 = vmax.f32 %v7574, %v6923
        %v7576 = vmax.f32 %v7575, %v6931
        %v7577 = vmax.f32 %v7576, %v6939
        %v7578 = vmax.f32 %v7577, %v6947
        %v7579 = vmax.f32 %v7578, %v6955
        %v7580 = vmax.f32 %v7579, %v6963
        %v7581 = vmax.f32 %v7580, %v6971
        %v7582 = vmax.f32 %v7581, %v6979
        %v7583 = vmax.f32 %v7582, %v6987
        %v7584 = vmax.f32 %v7583, %v6995
        %v7585 = vmax.f32 %v7584, %v7003
        %v7586 = vmax.f32 %v7585, %v7011
        %v7587 = vmax.f32 %v7586, %v7019
        %v7588 = vmax.f32 %v7587, %v7027
        %v7589 = vmax.f32 %v7588, %v7035
        %v7590 = vmax.f32 %v7589, %v7043
        %v7591 = vrot.slane %v7590, 4
        %v7592 = vmax.f32 %v7590, %v7591
        %v7593 = vrot.slane %v7592, 2
        %v7594 = vmax.f32 %v7592, %v7593
        %v7595 = vrot.slane %v7594, 1
        %v7596 = vmax.f32 %v7594, %v7595
        %v7605 = vcombine.low %v7113, %v7182
        %v7606 = vcombine.low %v7251, %v7320
        %v7607 = vcombine.low %v7389, %v7458
        %v7608 = vcombine.low %v7527, %v7596
        %v7610 = vunpack.c.l.s4 1966171168
        %v7611 = vunpack.c.0.s8 %v7610
        %v7612 = vlaneseq
        %v7613 = vshrl.u32 %v7612, 7
        %v7614 = vsub.s32 %v7611, %v7613
        %v7615 = vrot.slane %v7605, %v7614
        %v7617 = vunpack.c.l.s4 1966171168
        %v7618 = vunpack.c.0.s8 %v7617
        %v7619 = vlaneseq
        %v7620 = vshrl.u32 %v7619, 7
        %v7621 = vsub.s32 %v7618, %v7620
        %v7622 = vrot.slane %v7606, %v7621
        %v7624 = vunpack.c.l.s4 1966171168
        %v7625 = vunpack.c.0.s8 %v7624
        %v7626 = vlaneseq
        %v7627 = vshrl.u32 %v7626, 7
        %v7628 = vsub.s32 %v7625, %v7627
        %v7629 = vrot.slane %v7607, %v7628
        %v7631 = vunpack.c.l.s4 1966171168
        %v7632 = vunpack.c.0.s8 %v7631
        %v7633 = vlaneseq
        %v7634 = vshrl.u32 %v7633, 7
        %v7635 = vsub.s32 %v7632, %v7634
        %v7636 = vrot.slane %v7608, %v7635
        %v7637 = vcombine.low %v7615, %v7622
        %v7638 = vcombine.low %v7629, %v7636
        %v7640 = vunpack.c.l.s4 1966171168
        %v7641 = vunpack.c.0.s8 %v7640
        %v7642 = vlaneseq
        %v7643 = vshrl.u32 %v7642, 7
        %v7644 = vsub.s32 %v7641, %v7643
        %v7645 = vrot.slane %v7637, %v7644
        %v7647 = vunpack.c.l.s4 1966171168
        %v7648 = vunpack.c.0.s8 %v7647
        %v7649 = vlaneseq
        %v7650 = vshrl.u32 %v7649, 7
        %v7651 = vsub.s32 %v7648, %v7650
        %v7652 = vrot.slane %v7638, %v7651
        %v7653 = vcombine.low %v7645, %v7652
        %v7655 = vmax.f32 %v7044, %v7653
        %7656 = vst [vmem:[#allocation2] sm:$0xff] %v7655
        // Predicated region
        $region77: #{tpu_custom_call.1} parent=59 // pred_check
          %p7657 = pneg %p433
        $region78: #{tpu_custom_call.1} parent=59 // pred_check_branch
          %7659 = sbr.rel (%p7657) target = $region80
        $region79: #{tpu_custom_call.1} parent=59 // pred_region
          %v7660 = vld [vmem:[#allocation2] sm:$0xff]
          %v7662 = vlaneseq
          %v7663 = vshrl.u32 %v7662, 7
          %v7664 = vsub.s32 0, %v7663
          %v7665 = vrot.slane %v7660, %v7664
          %v7666 = vlaneseq
          %v7667 = vshrl.u32 %v7666, 7
          %v7668 = vsub.s32 1, %v7667
          %v7669 = vrot.slane %v7660, %v7668
          %v7670 = vlaneseq
          %v7671 = vshrl.u32 %v7670, 7
          %v7672 = vsub.s32 2, %v7671
          %v7673 = vrot.slane %v7660, %v7672
          %v7674 = vlaneseq
          %v7675 = vshrl.u32 %v7674, 7
          %v7676 = vsub.s32 3, %v7675
          %v7677 = vrot.slane %v7660, %v7676
          %v7678 = vlaneseq
          %v7679 = vshrl.u32 %v7678, 7
          %v7680 = vsub.s32 4, %v7679
          %v7681 = vrot.slane %v7660, %v7680
          %v7682 = vlaneseq
          %v7683 = vshrl.u32 %v7682, 7
          %v7684 = vsub.s32 5, %v7683
          %v7685 = vrot.slane %v7660, %v7684
          %v7686 = vlaneseq
          %v7687 = vshrl.u32 %v7686, 7
          %v7688 = vsub.s32 6, %v7687
          %v7689 = vrot.slane %v7660, %v7688
          %v7690 = vlaneseq
          %v7691 = vshrl.u32 %v7690, 7
          %v7692 = vsub.s32 7, %v7691
          %v7693 = vrot.slane %v7660, %v7692
          %v7702 = vpack.c.bf16 %v7665, %v7665
          %v7703 = vpack.c.bf16 %v7669, %v7669
          %v7704 = vpack.c.bf16 %v7673, %v7673
          %v7705 = vpack.c.bf16 %v7677, %v7677
          %v7706 = vpack.c.bf16 %v7681, %v7681
          %v7707 = vpack.c.bf16 %v7685, %v7685
          %v7708 = vpack.c.bf16 %v7689, %v7689
          %v7709 = vpack.c.bf16 %v7693, %v7693
          %v7710 = vld [vmem:[%s6] sm:$0xff]
          %v7711 = vld [vmem:[%s6 + $0x8] sm:$0xff]
          %v7712 = vld [vmem:[%s6 + $0x10] sm:$0xff]
          %v7713 = vld [vmem:[%s6 + $0x18] sm:$0xff]
          %v7714 = vld [vmem:[%s6 + $0x20] sm:$0xff]
          %v7715 = vld [vmem:[%s6 + $0x28] sm:$0xff]
          %v7716 = vld [vmem:[%s6 + $0x30] sm:$0xff]
          %v7717 = vld [vmem:[%s6 + $0x38] sm:$0xff]
          %v7718 = vld [vmem:[%s6 + $0x40] sm:$0xff]
          %v7719 = vld [vmem:[%s6 + $0x48] sm:$0xff]
          %v7720 = vld [vmem:[%s6 + $0x50] sm:$0xff]
          %v7721 = vld [vmem:[%s6 + $0x58] sm:$0xff]
          %v7722 = vld [vmem:[%s6 + $0x60] sm:$0xff]
          %v7723 = vld [vmem:[%s6 + $0x68] sm:$0xff]
          %v7724 = vld [vmem:[%s6 + $0x70] sm:$0xff]
          %v7725 = vld [vmem:[%s6 + $0x78] sm:$0xff]
          %v7726 = vld [vmem:[%s6 + $0x80] sm:$0xff]
          %v7727 = vld [vmem:[%s6 + $0x88] sm:$0xff]
          %v7728 = vld [vmem:[%s6 + $0x90] sm:$0xff]
          %v7729 = vld [vmem:[%s6 + $0x98] sm:$0xff]
          %v7730 = vld [vmem:[%s6 + $0xa0] sm:$0xff]
          %v7731 = vld [vmem:[%s6 + $0xa8] sm:$0xff]
          %v7732 = vld [vmem:[%s6 + $0xb0] sm:$0xff]
          %v7733 = vld [vmem:[%s6 + $0xb8] sm:$0xff]
          %v7734 = vld [vmem:[%s6 + $0xc0] sm:$0xff]
          %v7735 = vld [vmem:[%s6 + $0xc8] sm:$0xff]
          %v7736 = vld [vmem:[%s6 + $0xd0] sm:$0xff]
          %v7737 = vld [vmem:[%s6 + $0xd8] sm:$0xff]
          %v7738 = vld [vmem:[%s6 + $0xe0] sm:$0xff]
          %v7739 = vld [vmem:[%s6 + $0xe8] sm:$0xff]
          %v7740 = vld [vmem:[%s6 + $0xf0] sm:$0xff]
          %v7741 = vld [vmem:[%s6 + $0xf8] sm:$0xff]
          %v7742 = vld [vmem:[%s6 + $0x100] sm:$0xff]
          %v7743 = vld [vmem:[%s6 + $0x108] sm:$0xff]
          %v7744 = vld [vmem:[%s6 + $0x110] sm:$0xff]
          %v7745 = vld [vmem:[%s6 + $0x118] sm:$0xff]
          %v7746 = vld [vmem:[%s6 + $0x120] sm:$0xff]
          %v7747 = vld [vmem:[%s6 + $0x128] sm:$0xff]
          %v7748 = vld [vmem:[%s6 + $0x130] sm:$0xff]
          %v7749 = vld [vmem:[%s6 + $0x138] sm:$0xff]
          %v7750 = vld [vmem:[%s6 + $0x140] sm:$0xff]
          %v7751 = vld [vmem:[%s6 + $0x148] sm:$0xff]
          %v7752 = vld [vmem:[%s6 + $0x150] sm:$0xff]
          %v7753 = vld [vmem:[%s6 + $0x158] sm:$0xff]
          %v7754 = vld [vmem:[%s6 + $0x160] sm:$0xff]
          %v7755 = vld [vmem:[%s6 + $0x168] sm:$0xff]
          %v7756 = vld [vmem:[%s6 + $0x170] sm:$0xff]
          %v7757 = vld [vmem:[%s6 + $0x178] sm:$0xff]
          %v7758 = vld [vmem:[%s6 + $0x180] sm:$0xff]
          %v7759 = vld [vmem:[%s6 + $0x188] sm:$0xff]
          %v7760 = vld [vmem:[%s6 + $0x190] sm:$0xff]
          %v7761 = vld [vmem:[%s6 + $0x198] sm:$0xff]
          %v7762 = vld [vmem:[%s6 + $0x1a0] sm:$0xff]
          %v7763 = vld [vmem:[%s6 + $0x1a8] sm:$0xff]
          %v7764 = vld [vmem:[%s6 + $0x1b0] sm:$0xff]
          %v7765 = vld [vmem:[%s6 + $0x1b8] sm:$0xff]
          %v7766 = vld [vmem:[%s6 + $0x1c0] sm:$0xff]
          %v7767 = vld [vmem:[%s6 + $0x1c8] sm:$0xff]
          %v7768 = vld [vmem:[%s6 + $0x1d0] sm:$0xff]
          %v7769 = vld [vmem:[%s6 + $0x1d8] sm:$0xff]
          %v7770 = vld [vmem:[%s6 + $0x1e0] sm:$0xff]
          %v7771 = vld [vmem:[%s6 + $0x1e8] sm:$0xff]
          %v7772 = vld [vmem:[%s6 + $0x1f0] sm:$0xff]
          %v7773 = vld [vmem:[%s6 + $0x1f8] sm:$0xff]
          %v7774 = vld [vmem:[%s6 + $0x200] sm:$0xff]
          %v7775 = vld [vmem:[%s6 + $0x208] sm:$0xff]
          %v7776 = vld [vmem:[%s6 + $0x210] sm:$0xff]
          %v7777 = vld [vmem:[%s6 + $0x218] sm:$0xff]
          %v7778 = vld [vmem:[%s6 + $0x220] sm:$0xff]
          %v7779 = vld [vmem:[%s6 + $0x228] sm:$0xff]
          %v7780 = vld [vmem:[%s6 + $0x230] sm:$0xff]
          %v7781 = vld [vmem:[%s6 + $0x238] sm:$0xff]
          %v7782 = vld [vmem:[%s6 + $0x240] sm:$0xff]
          %v7783 = vld [vmem:[%s6 + $0x248] sm:$0xff]
          %v7784 = vld [vmem:[%s6 + $0x250] sm:$0xff]
          %v7785 = vld [vmem:[%s6 + $0x258] sm:$0xff]
          %v7786 = vld [vmem:[%s6 + $0x260] sm:$0xff]
          %v7787 = vld [vmem:[%s6 + $0x268] sm:$0xff]
          %v7788 = vld [vmem:[%s6 + $0x270] sm:$0xff]
          %v7789 = vld [vmem:[%s6 + $0x278] sm:$0xff]
          %v7790 = vld [vmem:[%s6 + $0x280] sm:$0xff]
          %v7791 = vld [vmem:[%s6 + $0x288] sm:$0xff]
          %v7792 = vld [vmem:[%s6 + $0x290] sm:$0xff]
          %v7793 = vld [vmem:[%s6 + $0x298] sm:$0xff]
          %v7794 = vld [vmem:[%s6 + $0x2a0] sm:$0xff]
          %v7795 = vld [vmem:[%s6 + $0x2a8] sm:$0xff]
          %v7796 = vld [vmem:[%s6 + $0x2b0] sm:$0xff]
          %v7797 = vld [vmem:[%s6 + $0x2b8] sm:$0xff]
          %v7798 = vld [vmem:[%s6 + $0x2c0] sm:$0xff]
          %v7799 = vld [vmem:[%s6 + $0x2c8] sm:$0xff]
          %v7800 = vld [vmem:[%s6 + $0x2d0] sm:$0xff]
          %v7801 = vld [vmem:[%s6 + $0x2d8] sm:$0xff]
          %v7802 = vld [vmem:[%s6 + $0x2e0] sm:$0xff]
          %v7803 = vld [vmem:[%s6 + $0x2e8] sm:$0xff]
          %v7804 = vld [vmem:[%s6 + $0x2f0] sm:$0xff]
          %v7805 = vld [vmem:[%s6 + $0x2f8] sm:$0xff]
          %v7806 = vld [vmem:[%s6 + $0x300] sm:$0xff]
          %v7807 = vld [vmem:[%s6 + $0x308] sm:$0xff]
          %v7808 = vld [vmem:[%s6 + $0x310] sm:$0xff]
          %v7809 = vld [vmem:[%s6 + $0x318] sm:$0xff]
          %v7810 = vld [vmem:[%s6 + $0x320] sm:$0xff]
          %v7811 = vld [vmem:[%s6 + $0x328] sm:$0xff]
          %v7812 = vld [vmem:[%s6 + $0x330] sm:$0xff]
          %v7813 = vld [vmem:[%s6 + $0x338] sm:$0xff]
          %v7814 = vld [vmem:[%s6 + $0x340] sm:$0xff]
          %v7815 = vld [vmem:[%s6 + $0x348] sm:$0xff]
          %v7816 = vld [vmem:[%s6 + $0x350] sm:$0xff]
          %v7817 = vld [vmem:[%s6 + $0x358] sm:$0xff]
          %v7818 = vld [vmem:[%s6 + $0x360] sm:$0xff]
          %v7819 = vld [vmem:[%s6 + $0x368] sm:$0xff]
          %v7820 = vld [vmem:[%s6 + $0x370] sm:$0xff]
          %v7821 = vld [vmem:[%s6 + $0x378] sm:$0xff]
          %v7822 = vld [vmem:[%s6 + $0x380] sm:$0xff]
          %v7823 = vld [vmem:[%s6 + $0x388] sm:$0xff]
          %v7824 = vld [vmem:[%s6 + $0x390] sm:$0xff]
          %v7825 = vld [vmem:[%s6 + $0x398] sm:$0xff]
          %v7826 = vld [vmem:[%s6 + $0x3a0] sm:$0xff]
          %v7827 = vld [vmem:[%s6 + $0x3a8] sm:$0xff]
          %v7828 = vld [vmem:[%s6 + $0x3b0] sm:$0xff]
          %v7829 = vld [vmem:[%s6 + $0x3b8] sm:$0xff]
          %v7830 = vld [vmem:[%s6 + $0x3c0] sm:$0xff]
          %v7831 = vld [vmem:[%s6 + $0x3c8] sm:$0xff]
          %v7832 = vld [vmem:[%s6 + $0x3d0] sm:$0xff]
          %v7833 = vld [vmem:[%s6 + $0x3d8] sm:$0xff]
          %v7834 = vld [vmem:[%s6 + $0x3e0] sm:$0xff]
          %v7835 = vld [vmem:[%s6 + $0x3e8] sm:$0xff]
          %v7836 = vld [vmem:[%s6 + $0x3f0] sm:$0xff]
          %v7837 = vld [vmem:[%s6 + $0x3f8] sm:$0xff]
          %v7838 = vld [vmem:[%s7] sm:$0x3]
          %v7967 = vunpack.c.l.b16 %v7710
          %v7968 = vunpack.c.h.b16 %v7710
          %v7969 = vunpack.c.l.b16 %v7711
          %v7970 = vunpack.c.h.b16 %v7711
          %v7971 = vunpack.c.l.b16 %v7712
          %v7972 = vunpack.c.h.b16 %v7712
          %v7973 = vunpack.c.l.b16 %v7713
          %v7974 = vunpack.c.h.b16 %v7713
          %v7975 = vunpack.c.l.b16 %v7714
          %v7976 = vunpack.c.h.b16 %v7714
          %v7977 = vunpack.c.l.b16 %v7715
          %v7978 = vunpack.c.h.b16 %v7715
          %v7979 = vunpack.c.l.b16 %v7716
          %v7980 = vunpack.c.h.b16 %v7716
          %v7981 = vunpack.c.l.b16 %v7717
          %v7982 = vunpack.c.h.b16 %v7717
          %v7983 = vunpack.c.l.b16 %v7718
          %v7984 = vunpack.c.h.b16 %v7718
          %v7985 = vunpack.c.l.b16 %v7719
          %v7986 = vunpack.c.h.b16 %v7719
          %v7987 = vunpack.c.l.b16 %v7720
          %v7988 = vunpack.c.h.b16 %v7720
          %v7989 = vunpack.c.l.b16 %v7721
          %v7990 = vunpack.c.h.b16 %v7721
          %v7991 = vunpack.c.l.b16 %v7722
          %v7992 = vunpack.c.h.b16 %v7722
          %v7993 = vunpack.c.l.b16 %v7723
          %v7994 = vunpack.c.h.b16 %v7723
          %v7995 = vunpack.c.l.b16 %v7724
          %v7996 = vunpack.c.h.b16 %v7724
          %v7997 = vunpack.c.l.b16 %v7725
          %v7998 = vunpack.c.h.b16 %v7725
          %v7999 = vunpack.c.l.b16 %v7726
          %v8000 = vunpack.c.h.b16 %v7726
          %v8001 = vunpack.c.l.b16 %v7727
          %v8002 = vunpack.c.h.b16 %v7727
          %v8003 = vunpack.c.l.b16 %v7728
          %v8004 = vunpack.c.h.b16 %v7728
          %v8005 = vunpack.c.l.b16 %v7729
          %v8006 = vunpack.c.h.b16 %v7729
          %v8007 = vunpack.c.l.b16 %v7730
          %v8008 = vunpack.c.h.b16 %v7730
          %v8009 = vunpack.c.l.b16 %v7731
          %v8010 = vunpack.c.h.b16 %v7731
          %v8011 = vunpack.c.l.b16 %v7732
          %v8012 = vunpack.c.h.b16 %v7732
          %v8013 = vunpack.c.l.b16 %v7733
          %v8014 = vunpack.c.h.b16 %v7733
          %v8015 = vunpack.c.l.b16 %v7734
          %v8016 = vunpack.c.h.b16 %v7734
          %v8017 = vunpack.c.l.b16 %v7735
          %v8018 = vunpack.c.h.b16 %v7735
          %v8019 = vunpack.c.l.b16 %v7736
          %v8020 = vunpack.c.h.b16 %v7736
          %v8021 = vunpack.c.l.b16 %v7737
          %v8022 = vunpack.c.h.b16 %v7737
          %v8023 = vunpack.c.l.b16 %v7738
          %v8024 = vunpack.c.h.b16 %v7738
          %v8025 = vunpack.c.l.b16 %v7739
          %v8026 = vunpack.c.h.b16 %v7739
          %v8027 = vunpack.c.l.b16 %v7740
          %v8028 = vunpack.c.h.b16 %v7740
          %v8029 = vunpack.c.l.b16 %v7741
          %v8030 = vunpack.c.h.b16 %v7741
          %v8031 = vunpack.c.l.b16 %v7742
          %v8032 = vunpack.c.h.b16 %v7742
          %v8033 = vunpack.c.l.b16 %v7743
          %v8034 = vunpack.c.h.b16 %v7743
          %v8035 = vunpack.c.l.b16 %v7744
          %v8036 = vunpack.c.h.b16 %v7744
          %v8037 = vunpack.c.l.b16 %v7745
          %v8038 = vunpack.c.h.b16 %v7745
          %v8039 = vunpack.c.l.b16 %v7746
          %v8040 = vunpack.c.h.b16 %v7746
          %v8041 = vunpack.c.l.b16 %v7747
          %v8042 = vunpack.c.h.b16 %v7747
          %v8043 = vunpack.c.l.b16 %v7748
          %v8044 = vunpack.c.h.b16 %v7748
          %v8045 = vunpack.c.l.b16 %v7749
          %v8046 = vunpack.c.h.b16 %v7749
          %v8047 = vunpack.c.l.b16 %v7750
          %v8048 = vunpack.c.h.b16 %v7750
          %v8049 = vunpack.c.l.b16 %v7751
          %v8050 = vunpack.c.h.b16 %v7751
          %v8051 = vunpack.c.l.b16 %v7752
          %v8052 = vunpack.c.h.b16 %v7752
          %v8053 = vunpack.c.l.b16 %v7753
          %v8054 = vunpack.c.h.b16 %v7753
          %v8055 = vunpack.c.l.b16 %v7754
          %v8056 = vunpack.c.h.b16 %v7754
          %v8057 = vunpack.c.l.b16 %v7755
          %v8058 = vunpack.c.h.b16 %v7755
          %v8059 = vunpack.c.l.b16 %v7756
          %v8060 = vunpack.c.h.b16 %v7756
          %v8061 = vunpack.c.l.b16 %v7757
          %v8062 = vunpack.c.h.b16 %v7757
          %v8063 = vunpack.c.l.b16 %v7758
          %v8064 = vunpack.c.h.b16 %v7758
          %v8065 = vunpack.c.l.b16 %v7759
          %v8066 = vunpack.c.h.b16 %v7759
          %v8067 = vunpack.c.l.b16 %v7760
          %v8068 = vunpack.c.h.b16 %v7760
          %v8069 = vunpack.c.l.b16 %v7761
          %v8070 = vunpack.c.h.b16 %v7761
          %v8071 = vunpack.c.l.b16 %v7762
          %v8072 = vunpack.c.h.b16 %v7762
          %v8073 = vunpack.c.l.b16 %v7763
          %v8074 = vunpack.c.h.b16 %v7763
          %v8075 = vunpack.c.l.b16 %v7764
          %v8076 = vunpack.c.h.b16 %v7764
          %v8077 = vunpack.c.l.b16 %v7765
          %v8078 = vunpack.c.h.b16 %v7765
          %v8079 = vunpack.c.l.b16 %v7766
          %v8080 = vunpack.c.h.b16 %v7766
          %v8081 = vunpack.c.l.b16 %v7767
          %v8082 = vunpack.c.h.b16 %v7767
          %v8083 = vunpack.c.l.b16 %v7768
          %v8084 = vunpack.c.h.b16 %v7768
          %v8085 = vunpack.c.l.b16 %v7769
          %v8086 = vunpack.c.h.b16 %v7769
          %v8087 = vunpack.c.l.b16 %v7770
          %v8088 = vunpack.c.h.b16 %v7770
          %v8089 = vunpack.c.l.b16 %v7771
          %v8090 = vunpack.c.h.b16 %v7771
          %v8091 = vunpack.c.l.b16 %v7772
          %v8092 = vunpack.c.h.b16 %v7772
          %v8093 = vunpack.c.l.b16 %v7773
          %v8094 = vunpack.c.h.b16 %v7773
          %v8095 = vunpack.c.l.b16 %v7774
          %v8096 = vunpack.c.h.b16 %v7774
          %v8097 = vunpack.c.l.b16 %v7775
          %v8098 = vunpack.c.h.b16 %v7775
          %v8099 = vunpack.c.l.b16 %v7776
          %v8100 = vunpack.c.h.b16 %v7776
          %v8101 = vunpack.c.l.b16 %v7777
          %v8102 = vunpack.c.h.b16 %v7777
          %v8103 = vunpack.c.l.b16 %v7778
          %v8104 = vunpack.c.h.b16 %v7778
          %v8105 = vunpack.c.l.b16 %v7779
          %v8106 = vunpack.c.h.b16 %v7779
          %v8107 = vunpack.c.l.b16 %v7780
          %v8108 = vunpack.c.h.b16 %v7780
          %v8109 = vunpack.c.l.b16 %v7781
          %v8110 = vunpack.c.h.b16 %v7781
          %v8111 = vunpack.c.l.b16 %v7782
          %v8112 = vunpack.c.h.b16 %v7782
          %v8113 = vunpack.c.l.b16 %v7783
          %v8114 = vunpack.c.h.b16 %v7783
          %v8115 = vunpack.c.l.b16 %v7784
          %v8116 = vunpack.c.h.b16 %v7784
          %v8117 = vunpack.c.l.b16 %v7785
          %v8118 = vunpack.c.h.b16 %v7785
          %v8119 = vunpack.c.l.b16 %v7786
          %v8120 = vunpack.c.h.b16 %v7786
          %v8121 = vunpack.c.l.b16 %v7787
          %v8122 = vunpack.c.h.b16 %v7787
          %v8123 = vunpack.c.l.b16 %v7788
          %v8124 = vunpack.c.h.b16 %v7788
          %v8125 = vunpack.c.l.b16 %v7789
          %v8126 = vunpack.c.h.b16 %v7789
          %v8127 = vunpack.c.l.b16 %v7790
          %v8128 = vunpack.c.h.b16 %v7790
          %v8129 = vunpack.c.l.b16 %v7791
          %v8130 = vunpack.c.h.b16 %v7791
          %v8131 = vunpack.c.l.b16 %v7792
          %v8132 = vunpack.c.h.b16 %v7792
          %v8133 = vunpack.c.l.b16 %v7793
          %v8134 = vunpack.c.h.b16 %v7793
          %v8135 = vunpack.c.l.b16 %v7794
          %v8136 = vunpack.c.h.b16 %v7794
          %v8137 = vunpack.c.l.b16 %v7795
          %v8138 = vunpack.c.h.b16 %v7795
          %v8139 = vunpack.c.l.b16 %v7796
          %v8140 = vunpack.c.h.b16 %v7796
          %v8141 = vunpack.c.l.b16 %v7797
          %v8142 = vunpack.c.h.b16 %v7797
          %v8143 = vunpack.c.l.b16 %v7798
          %v8144 = vunpack.c.h.b16 %v7798
          %v8145 = vunpack.c.l.b16 %v7799
          %v8146 = vunpack.c.h.b16 %v7799
          %v8147 = vunpack.c.l.b16 %v7800
          %v8148 = vunpack.c.h.b16 %v7800
          %v8149 = vunpack.c.l.b16 %v7801
          %v8150 = vunpack.c.h.b16 %v7801
          %v8151 = vunpack.c.l.b16 %v7802
          %v8152 = vunpack.c.h.b16 %v7802
          %v8153 = vunpack.c.l.b16 %v7803
          %v8154 = vunpack.c.h.b16 %v7803
          %v8155 = vunpack.c.l.b16 %v7804
          %v8156 = vunpack.c.h.b16 %v7804
          %v8157 = vunpack.c.l.b16 %v7805
          %v8158 = vunpack.c.h.b16 %v7805
          %v8159 = vunpack.c.l.b16 %v7806
          %v8160 = vunpack.c.h.b16 %v7806
          %v8161 = vunpack.c.l.b16 %v7807
          %v8162 = vunpack.c.h.b16 %v7807
          %v8163 = vunpack.c.l.b16 %v7808
          %v8164 = vunpack.c.h.b16 %v7808
          %v8165 = vunpack.c.l.b16 %v7809
          %v8166 = vunpack.c.h.b16 %v7809
          %v8167 = vunpack.c.l.b16 %v7810
          %v8168 = vunpack.c.h.b16 %v7810
          %v8169 = vunpack.c.l.b16 %v7811
          %v8170 = vunpack.c.h.b16 %v7811
          %v8171 = vunpack.c.l.b16 %v7812
          %v8172 = vunpack.c.h.b16 %v7812
          %v8173 = vunpack.c.l.b16 %v7813
          %v8174 = vunpack.c.h.b16 %v7813
          %v8175 = vunpack.c.l.b16 %v7814
          %v8176 = vunpack.c.h.b16 %v7814
          %v8177 = vunpack.c.l.b16 %v7815
          %v8178 = vunpack.c.h.b16 %v7815
          %v8179 = vunpack.c.l.b16 %v7816
          %v8180 = vunpack.c.h.b16 %v7816
          %v8181 = vunpack.c.l.b16 %v7817
          %v8182 = vunpack.c.h.b16 %v7817
          %v8183 = vunpack.c.l.b16 %v7818
          %v8184 = vunpack.c.h.b16 %v7818
          %v8185 = vunpack.c.l.b16 %v7819
          %v8186 = vunpack.c.h.b16 %v7819
          %v8187 = vunpack.c.l.b16 %v7820
          %v8188 = vunpack.c.h.b16 %v7820
          %v8189 = vunpack.c.l.b16 %v7821
          %v8190 = vunpack.c.h.b16 %v7821
          %v8191 = vunpack.c.l.b16 %v7822
          %v8192 = vunpack.c.h.b16 %v7822
          %v8193 = vunpack.c.l.b16 %v7823
          %v8194 = vunpack.c.h.b16 %v7823
          %v8195 = vunpack.c.l.b16 %v7824
          %v8196 = vunpack.c.h.b16 %v7824
          %v8197 = vunpack.c.l.b16 %v7825
          %v8198 = vunpack.c.h.b16 %v7825
          %v8199 = vunpack.c.l.b16 %v7826
          %v8200 = vunpack.c.h.b16 %v7826
          %v8201 = vunpack.c.l.b16 %v7827
          %v8202 = vunpack.c.h.b16 %v7827
          %v8203 = vunpack.c.l.b16 %v7828
          %v8204 = vunpack.c.h.b16 %v7828
          %v8205 = vunpack.c.l.b16 %v7829
          %v8206 = vunpack.c.h.b16 %v7829
          %v8207 = vunpack.c.l.b16 %v7830
          %v8208 = vunpack.c.h.b16 %v7830
          %v8209 = vunpack.c.l.b16 %v7831
          %v8210 = vunpack.c.h.b16 %v7831
          %v8211 = vunpack.c.l.b16 %v7832
          %v8212 = vunpack.c.h.b16 %v7832
          %v8213 = vunpack.c.l.b16 %v7833
          %v8214 = vunpack.c.h.b16 %v7833
          %v8215 = vunpack.c.l.b16 %v7834
          %v8216 = vunpack.c.h.b16 %v7834
          %v8217 = vunpack.c.l.b16 %v7835
          %v8218 = vunpack.c.h.b16 %v7835
          %v8219 = vunpack.c.l.b16 %v7836
          %v8220 = vunpack.c.h.b16 %v7836
          %v8221 = vunpack.c.l.b16 %v7837
          %v8222 = vunpack.c.h.b16 %v7837
          %v8223 = vpack.c.b16 %v7969, %v7967
          %v8224 = vpack.c.b16 %v7970, %v7968
          %v8225 = vpack.c.b16 %v7973, %v7971
          %v8226 = vpack.c.b16 %v7974, %v7972
          %v8227 = vpack.c.b16 %v7977, %v7975
          %v8228 = vpack.c.b16 %v7978, %v7976
          %v8229 = vpack.c.b16 %v7981, %v7979
          %v8230 = vpack.c.b16 %v7982, %v7980
          %v8231 = vpack.c.b16 %v7985, %v7983
          %v8232 = vpack.c.b16 %v7986, %v7984
          %v8233 = vpack.c.b16 %v7989, %v7987
          %v8234 = vpack.c.b16 %v7990, %v7988
          %v8235 = vpack.c.b16 %v7993, %v7991
          %v8236 = vpack.c.b16 %v7994, %v7992
          %v8237 = vpack.c.b16 %v7997, %v7995
          %v8238 = vpack.c.b16 %v7998, %v7996
          %v8239 = vpack.c.b16 %v8001, %v7999
          %v8240 = vpack.c.b16 %v8002, %v8000
          %v8241 = vpack.c.b16 %v8005, %v8003
          %v8242 = vpack.c.b16 %v8006, %v8004
          %v8243 = vpack.c.b16 %v8009, %v8007
          %v8244 = vpack.c.b16 %v8010, %v8008
          %v8245 = vpack.c.b16 %v8013, %v8011
          %v8246 = vpack.c.b16 %v8014, %v8012
          %v8247 = vpack.c.b16 %v8017, %v8015
          %v8248 = vpack.c.b16 %v8018, %v8016
          %v8249 = vpack.c.b16 %v8021, %v8019
          %v8250 = vpack.c.b16 %v8022, %v8020
          %v8251 = vpack.c.b16 %v8025, %v8023
          %v8252 = vpack.c.b16 %v8026, %v8024
          %v8253 = vpack.c.b16 %v8029, %v8027
          %v8254 = vpack.c.b16 %v8030, %v8028
          %v8255 = vpack.c.b16 %v8033, %v8031
          %v8256 = vpack.c.b16 %v8034, %v8032
          %v8257 = vpack.c.b16 %v8037, %v8035
          %v8258 = vpack.c.b16 %v8038, %v8036
          %v8259 = vpack.c.b16 %v8041, %v8039
          %v8260 = vpack.c.b16 %v8042, %v8040
          %v8261 = vpack.c.b16 %v8045, %v8043
          %v8262 = vpack.c.b16 %v8046, %v8044
          %v8263 = vpack.c.b16 %v8049, %v8047
          %v8264 = vpack.c.b16 %v8050, %v8048
          %v8265 = vpack.c.b16 %v8053, %v8051
          %v8266 = vpack.c.b16 %v8054, %v8052
          %v8267 = vpack.c.b16 %v8057, %v8055
          %v8268 = vpack.c.b16 %v8058, %v8056
          %v8269 = vpack.c.b16 %v8061, %v8059
          %v8270 = vpack.c.b16 %v8062, %v8060
          %v8271 = vpack.c.b16 %v8065, %v8063
          %v8272 = vpack.c.b16 %v8066, %v8064
          %v8273 = vpack.c.b16 %v8069, %v8067
          %v8274 = vpack.c.b16 %v8070, %v8068
          %v8275 = vpack.c.b16 %v8073, %v8071
          %v8276 = vpack.c.b16 %v8074, %v8072
          %v8277 = vpack.c.b16 %v8077, %v8075
          %v8278 = vpack.c.b16 %v8078, %v8076
          %v8279 = vpack.c.b16 %v8081, %v8079
          %v8280 = vpack.c.b16 %v8082, %v8080
          %v8281 = vpack.c.b16 %v8085, %v8083
          %v8282 = vpack.c.b16 %v8086, %v8084
          %v8283 = vpack.c.b16 %v8089, %v8087
          %v8284 = vpack.c.b16 %v8090, %v8088
          %v8285 = vpack.c.b16 %v8093, %v8091
          %v8286 = vpack.c.b16 %v8094, %v8092
          %v8287 = vpack.c.b16 %v8097, %v8095
          %v8288 = vpack.c.b16 %v8098, %v8096
          %v8289 = vpack.c.b16 %v8101, %v8099
          %v8290 = vpack.c.b16 %v8102, %v8100
          %v8291 = vpack.c.b16 %v8105, %v8103
          %v8292 = vpack.c.b16 %v8106, %v8104
          %v8293 = vpack.c.b16 %v8109, %v8107
          %v8294 = vpack.c.b16 %v8110, %v8108
          %v8295 = vpack.c.b16 %v8113, %v8111
          %v8296 = vpack.c.b16 %v8114, %v8112
          %v8297 = vpack.c.b16 %v8117, %v8115
          %v8298 = vpack.c.b16 %v8118, %v8116
          %v8299 = vpack.c.b16 %v8121, %v8119
          %v8300 = vpack.c.b16 %v8122, %v8120
          %v8301 = vpack.c.b16 %v8125, %v8123
          %v8302 = vpack.c.b16 %v8126, %v8124
          %v8303 = vpack.c.b16 %v8129, %v8127
          %v8304 = vpack.c.b16 %v8130, %v8128
          %v8305 = vpack.c.b16 %v8133, %v8131
          %v8306 = vpack.c.b16 %v8134, %v8132
          %v8307 = vpack.c.b16 %v8137, %v8135
          %v8308 = vpack.c.b16 %v8138, %v8136
          %v8309 = vpack.c.b16 %v8141, %v8139
          %v8310 = vpack.c.b16 %v8142, %v8140
          %v8311 = vpack.c.b16 %v8145, %v8143
          %v8312 = vpack.c.b16 %v8146, %v8144
          %v8313 = vpack.c.b16 %v8149, %v8147
          %v8314 = vpack.c.b16 %v8150, %v8148
          %v8315 = vpack.c.b16 %v8153, %v8151
          %v8316 = vpack.c.b16 %v8154, %v8152
          %v8317 = vpack.c.b16 %v8157, %v8155
          %v8318 = vpack.c.b16 %v8158, %v8156
          %v8319 = vpack.c.b16 %v8161, %v8159
          %v8320 = vpack.c.b16 %v8162, %v8160
          %v8321 = vpack.c.b16 %v8165, %v8163
          %v8322 = vpack.c.b16 %v8166, %v8164
          %v8323 = vpack.c.b16 %v8169, %v8167
          %v8324 = vpack.c.b16 %v8170, %v8168
          %v8325 = vpack.c.b16 %v8173, %v8171
          %v8326 = vpack.c.b16 %v8174, %v8172
          %v8327 = vpack.c.b16 %v8177, %v8175
          %v8328 = vpack.c.b16 %v8178, %v8176
          %v8329 = vpack.c.b16 %v8181, %v8179
          %v8330 = vpack.c.b16 %v8182, %v8180
          %v8331 = vpack.c.b16 %v8185, %v8183
          %v8332 = vpack.c.b16 %v8186, %v8184
          %v8333 = vpack.c.b16 %v8189, %v8187
          %v8334 = vpack.c.b16 %v8190, %v8188
          %v8335 = vpack.c.b16 %v8193, %v8191
          %v8336 = vpack.c.b16 %v8194, %v8192
          %v8337 = vpack.c.b16 %v8197, %v8195
          %v8338 = vpack.c.b16 %v8198, %v8196
          %v8339 = vpack.c.b16 %v8201, %v8199
          %v8340 = vpack.c.b16 %v8202, %v8200
          %v8341 = vpack.c.b16 %v8205, %v8203
          %v8342 = vpack.c.b16 %v8206, %v8204
          %v8343 = vpack.c.b16 %v8209, %v8207
          %v8344 = vpack.c.b16 %v8210, %v8208
          %v8345 = vpack.c.b16 %v8213, %v8211
          %v8346 = vpack.c.b16 %v8214, %v8212
          %v8347 = vpack.c.b16 %v8217, %v8215
          %v8348 = vpack.c.b16 %v8218, %v8216
          %v8349 = vpack.c.b16 %v8221, %v8219
          %v8350 = vpack.c.b16 %v8222, %v8220
          %v8480 = vlaneseq
          %v8481 = vshrl.u32 %v8480, 7
          %v8482 = vsub.s32 0, %v8481
          %v8483 = vrot.slane %v7838, %v8482
          %v8484 = vlaneseq
          %v8485 = vshrl.u32 %v8484, 7
          %v8486 = vsub.s32 1, %v8485
          %v8487 = vrot.slane %v7838, %v8486
          %8490 = vmatprep.subr.bf16.mxu0 %v8238
          %8491 = vmatpush1.bf16.msra.mxu0 %v8237
          %8492 = vmatprep.subr.bf16.mxu0 %v8236
          %8493 = vmatpush1.bf16.msra.mxu0 %v8235
          %8494 = vmatprep.subr.bf16.mxu0 %v8234
          %8495 = vmatpush1.bf16.msra.mxu0 %v8233
          %8496 = vmatprep.subr.bf16.mxu0 %v8232
          %8497 = vmatpush1.bf16.msra.mxu0 %v8231
          %8498 = vmatprep.subr.bf16.mxu0 %v8230
          %8499 = vmatpush1.bf16.msra.mxu0 %v8229
          %8500 = vmatprep.subr.bf16.mxu0 %v8228
          %8501 = vmatpush1.bf16.msra.mxu0 %v8227
          %8502 = vmatprep.subr.bf16.mxu0 %v8226
          %8503 = vmatpush1.bf16.msra.mxu0 %v8225
          %8504 = vmatprep.subr.bf16.mxu0 %v8224
          %8505 = vmatpush1.bf16.msra.mxu0 %v8223
          %8506 = vmatprep.subr.bf16.mxu0 %v8254
          %8507 = vmatpush2.bf16.msra.mxu0 %v8253
          %8508 = vmatprep.subr.bf16.mxu0 %v8252
          %8509 = vmatpush2.bf16.msra.mxu0 %v8251
          %8510 = vmatprep.subr.bf16.mxu0 %v8250
          %8511 = vmatpush2.bf16.msra.mxu0 %v8249
          %8512 = vmatprep.subr.bf16.mxu0 %v8248
          %8513 = vmatpush2.bf16.msra.mxu0 %v8247
          %8514 = vmatprep.subr.bf16.mxu0 %v8246
          %8515 = vmatpush2.bf16.msra.mxu0 %v8245
          %8516 = vmatprep.subr.bf16.mxu0 %v8244
          %8517 = vmatpush2.bf16.msra.mxu0 %v8243
          %8518 = vmatprep.subr.bf16.mxu0 %v8242
          %8519 = vmatpush2.bf16.msra.mxu0 %v8241
          %8520 = vmatprep.subr.bf16.mxu0 %v8240
          %8521 = vmatpush2.bf16.msra.mxu0 %v8239
          %8522 = vmatprep.mubr.bf16.mxu0 %v7703
          %8523 = vmatmul.mubr.bf16.gmra.mxu0 %v7702
          %v8524 = vpop.f32.mrf.mxu0
          %v8525 = vadd.f32 %v8483, %v8524
          %v8526 = vpop.f32.mrf.mxu0
          %v8527 = vadd.f32 %v8487, %v8526
          %v8528 = vpop.f32.mrf.mxu0
          %v8529 = vpop.f32.mrf.mxu0
          %8530 = vdwg.mxu0
          %8531 = vmatprep.subr.bf16.mxu0 %v8270
          %8532 = vmatpush1.bf16.msra.mxu0 %v8269
          %8533 = vmatprep.subr.bf16.mxu0 %v8268
          %8534 = vmatpush1.bf16.msra.mxu0 %v8267
          %8535 = vmatprep.subr.bf16.mxu0 %v8266
          %8536 = vmatpush1.bf16.msra.mxu0 %v8265
          %8537 = vmatprep.subr.bf16.mxu0 %v8264
          %8538 = vmatpush1.bf16.msra.mxu0 %v8263
          %8539 = vmatprep.subr.bf16.mxu0 %v8262
          %8540 = vmatpush1.bf16.msra.mxu0 %v8261
          %8541 = vmatprep.subr.bf16.mxu0 %v8260
          %8542 = vmatpush1.bf16.msra.mxu0 %v8259
          %8543 = vmatprep.subr.bf16.mxu0 %v8258
          %8544 = vmatpush1.bf16.msra.mxu0 %v8257
          %8545 = vmatprep.subr.bf16.mxu0 %v8256
          %8546 = vmatpush1.bf16.msra.mxu0 %v8255
          %8547 = vmatprep.subr.bf16.mxu0 %v8286
          %8548 = vmatpush2.bf16.msra.mxu0 %v8285
          %8549 = vmatprep.subr.bf16.mxu0 %v8284
          %8550 = vmatpush2.bf16.msra.mxu0 %v8283
          %8551 = vmatprep.subr.bf16.mxu0 %v8282
          %8552 = vmatpush2.bf16.msra.mxu0 %v8281
          %8553 = vmatprep.subr.bf16.mxu0 %v8280
          %8554 = vmatpush2.bf16.msra.mxu0 %v8279
          %8555 = vmatprep.subr.bf16.mxu0 %v8278
          %8556 = vmatpush2.bf16.msra.mxu0 %v8277
          %8557 = vmatprep.subr.bf16.mxu0 %v8276
          %8558 = vmatpush2.bf16.msra.mxu0 %v8275
          %8559 = vmatprep.subr.bf16.mxu0 %v8274
          %8560 = vmatpush2.bf16.msra.mxu0 %v8273
          %8561 = vmatprep.subr.bf16.mxu0 %v8272
          %8562 = vmatpush2.bf16.msra.mxu0 %v8271
          %8563 = vmatprep.mubr.bf16.mxu0 %v7705
          %8564 = vmatmul.mubr.bf16.gmra.mxu0 %v7704
          %v8565 = vpop.f32.mrf.mxu0
          %v8566 = vadd.f32 %v8525, %v8565
          %v8567 = vpop.f32.mrf.mxu0
          %v8568 = vadd.f32 %v8527, %v8567
          %v8569 = vpop.f32.mrf.mxu0
          %v8570 = vpop.f32.mrf.mxu0
          %8571 = vdwg.mxu0
          %8572 = vmatprep.subr.bf16.mxu0 %v8302
          %8573 = vmatpush1.bf16.msra.mxu0 %v8301
          %8574 = vmatprep.subr.bf16.mxu0 %v8300
          %8575 = vmatpush1.bf16.msra.mxu0 %v8299
          %8576 = vmatprep.subr.bf16.mxu0 %v8298
          %8577 = vmatpush1.bf16.msra.mxu0 %v8297
          %8578 = vmatprep.subr.bf16.mxu0 %v8296
          %8579 = vmatpush1.bf16.msra.mxu0 %v8295
          %8580 = vmatprep.subr.bf16.mxu0 %v8294
          %8581 = vmatpush1.bf16.msra.mxu0 %v8293
          %8582 = vmatprep.subr.bf16.mxu0 %v8292
          %8583 = vmatpush1.bf16.msra.mxu0 %v8291
          %8584 = vmatprep.subr.bf16.mxu0 %v8290
          %8585 = vmatpush1.bf16.msra.mxu0 %v8289
          %8586 = vmatprep.subr.bf16.mxu0 %v8288
          %8587 = vmatpush1.bf16.msra.mxu0 %v8287
          %8588 = vmatprep.subr.bf16.mxu0 %v8318
          %8589 = vmatpush2.bf16.msra.mxu0 %v8317
          %8590 = vmatprep.subr.bf16.mxu0 %v8316
          %8591 = vmatpush2.bf16.msra.mxu0 %v8315
          %8592 = vmatprep.subr.bf16.mxu0 %v8314
          %8593 = vmatpush2.bf16.msra.mxu0 %v8313
          %8594 = vmatprep.subr.bf16.mxu0 %v8312
          %8595 = vmatpush2.bf16.msra.mxu0 %v8311
          %8596 = vmatprep.subr.bf16.mxu0 %v8310
          %8597 = vmatpush2.bf16.msra.mxu0 %v8309
          %8598 = vmatprep.subr.bf16.mxu0 %v8308
          %8599 = vmatpush2.bf16.msra.mxu0 %v8307
          %8600 = vmatprep.subr.bf16.mxu0 %v8306
          %8601 = vmatpush2.bf16.msra.mxu0 %v8305
          %8602 = vmatprep.subr.bf16.mxu0 %v8304
          %8603 = vmatpush2.bf16.msra.mxu0 %v8303
          %8604 = vmatprep.mubr.bf16.mxu0 %v7707
          %8605 = vmatmul.mubr.bf16.gmra.mxu0 %v7706
          %v8606 = vpop.f32.mrf.mxu0
          %v8607 = vadd.f32 %v8566, %v8606
          %v8608 = vpop.f32.mrf.mxu0
          %v8609 = vadd.f32 %v8568, %v8608
          %v8610 = vpop.f32.mrf.mxu0
          %v8611 = vpop.f32.mrf.mxu0
          %8612 = vdwg.mxu0
          %8613 = vmatprep.subr.bf16.mxu0 %v8334
          %8614 = vmatpush1.bf16.msra.mxu0 %v8333
          %8615 = vmatprep.subr.bf16.mxu0 %v8332
          %8616 = vmatpush1.bf16.msra.mxu0 %v8331
          %8617 = vmatprep.subr.bf16.mxu0 %v8330
          %8618 = vmatpush1.bf16.msra.mxu0 %v8329
          %8619 = vmatprep.subr.bf16.mxu0 %v8328
          %8620 = vmatpush1.bf16.msra.mxu0 %v8327
          %8621 = vmatprep.subr.bf16.mxu0 %v8326
          %8622 = vmatpush1.bf16.msra.mxu0 %v8325
          %8623 = vmatprep.subr.bf16.mxu0 %v8324
          %8624 = vmatpush1.bf16.msra.mxu0 %v8323
          %8625 = vmatprep.subr.bf16.mxu0 %v8322
          %8626 = vmatpush1.bf16.msra.mxu0 %v8321
          %8627 = vmatprep.subr.bf16.mxu0 %v8320
          %8628 = vmatpush1.bf16.msra.mxu0 %v8319
          %8629 = vmatprep.subr.bf16.mxu0 %v8350
          %8630 = vmatpush2.bf16.msra.mxu0 %v8349
          %8631 = vmatprep.subr.bf16.mxu0 %v8348
          %8632 = vmatpush2.bf16.msra.mxu0 %v8347
          %8633 = vmatprep.subr.bf16.mxu0 %v8346
          %8634 = vmatpush2.bf16.msra.mxu0 %v8345
          %8635 = vmatprep.subr.bf16.mxu0 %v8344
          %8636 = vmatpush2.bf16.msra.mxu0 %v8343
          %8637 = vmatprep.subr.bf16.mxu0 %v8342
          %8638 = vmatpush2.bf16.msra.mxu0 %v8341
          %8639 = vmatprep.subr.bf16.mxu0 %v8340
          %8640 = vmatpush2.bf16.msra.mxu0 %v8339
          %8641 = vmatprep.subr.bf16.mxu0 %v8338
          %8642 = vmatpush2.bf16.msra.mxu0 %v8337
          %8643 = vmatprep.subr.bf16.mxu0 %v8336
          %8644 = vmatpush2.bf16.msra.mxu0 %v8335
          %8645 = vmatprep.mubr.bf16.mxu0 %v7709
          %8646 = vmatmul.mubr.bf16.gmra.mxu0 %v7708
          %v8647 = vpop.f32.mrf.mxu0
          %v8648 = vadd.f32 %v8607, %v8647
          %v8649 = vpop.f32.mrf.mxu0
          %v8650 = vadd.f32 %v8609, %v8649
          %v8651 = vpop.f32.mrf.mxu0
          %v8652 = vpop.f32.mrf.mxu0
          %8653 = vdwg.mxu0
          %v8654 = vmax.f32 %v8648, 0.0
          %v8655 = vmax.f32 %v8650, 0.0
          %v8656 = vpack.c.bf16 %v8654, %v8654
          %v8657 = vpack.c.bf16 %v8655, %v8655
          %v8658 = vld [vmem:[#allocation7] sm:$0xff]
          %v8659 = vld [vmem:[#allocation7 + $0x8] sm:$0xff]
          %v8660 = vld [vmem:[#allocation7 + $0x10] sm:$0xff]
          %v8661 = vld [vmem:[#allocation7 + $0x18] sm:$0xff]
          %v8662 = vld [vmem:[#allocation7 + $0x20] sm:$0xff]
          %v8663 = vld [vmem:[#allocation7 + $0x28] sm:$0xff]
          %v8664 = vld [vmem:[#allocation7 + $0x30] sm:$0xff]
          %v8665 = vld [vmem:[#allocation7 + $0x38] sm:$0xff]
          %v8666 = vld [vmem:[#allocation7 + $0x40] sm:$0xff]
          %v8667 = vld [vmem:[#allocation7 + $0x48] sm:$0xff]
          %v8668 = vld [vmem:[#allocation7 + $0x50] sm:$0xff]
          %v8669 = vld [vmem:[#allocation7 + $0x58] sm:$0xff]
          %v8670 = vld [vmem:[#allocation7 + $0x60] sm:$0xff]
          %v8671 = vld [vmem:[#allocation7 + $0x68] sm:$0xff]
          %v8672 = vld [vmem:[#allocation7 + $0x70] sm:$0xff]
          %v8673 = vld [vmem:[#allocation7 + $0x78] sm:$0xff]
          %v8674 = vld [vmem:[#allocation7 + $0x80] sm:$0xff]
          %v8675 = vld [vmem:[#allocation7 + $0x88] sm:$0xff]
          %v8676 = vld [vmem:[#allocation7 + $0x90] sm:$0xff]
          %v8677 = vld [vmem:[#allocation7 + $0x98] sm:$0xff]
          %v8678 = vld [vmem:[#allocation7 + $0xa0] sm:$0xff]
          %v8679 = vld [vmem:[#allocation7 + $0xa8] sm:$0xff]
          %v8680 = vld [vmem:[#allocation7 + $0xb0] sm:$0xff]
          %v8681 = vld [vmem:[#allocation7 + $0xb8] sm:$0xff]
          %v8682 = vld [vmem:[#allocation7 + $0xc0] sm:$0xff]
          %v8683 = vld [vmem:[#allocation7 + $0xc8] sm:$0xff]
          %v8684 = vld [vmem:[#allocation7 + $0xd0] sm:$0xff]
          %v8685 = vld [vmem:[#allocation7 + $0xd8] sm:$0xff]
          %v8686 = vld [vmem:[#allocation7 + $0xe0] sm:$0xff]
          %v8687 = vld [vmem:[#allocation7 + $0xe8] sm:$0xff]
          %v8688 = vld [vmem:[#allocation7 + $0xf0] sm:$0xff]
          %v8689 = vld [vmem:[#allocation7 + $0xf8] sm:$0xff]
          %v8690 = vld [vmem:[%s9] sm:$0x3]
          %v8723 = vunpack.c.l.b16 %v8658
          %v8724 = vunpack.c.h.b16 %v8658
          %v8725 = vunpack.c.l.b16 %v8659
          %v8726 = vunpack.c.h.b16 %v8659
          %v8727 = vunpack.c.l.b16 %v8660
          %v8728 = vunpack.c.h.b16 %v8660
          %v8729 = vunpack.c.l.b16 %v8661
          %v8730 = vunpack.c.h.b16 %v8661
          %v8731 = vunpack.c.l.b16 %v8662
          %v8732 = vunpack.c.h.b16 %v8662
          %v8733 = vunpack.c.l.b16 %v8663
          %v8734 = vunpack.c.h.b16 %v8663
          %v8735 = vunpack.c.l.b16 %v8664
          %v8736 = vunpack.c.h.b16 %v8664
          %v8737 = vunpack.c.l.b16 %v8665
          %v8738 = vunpack.c.h.b16 %v8665
          %v8739 = vunpack.c.l.b16 %v8666
          %v8740 = vunpack.c.h.b16 %v8666
          %v8741 = vunpack.c.l.b16 %v8667
          %v8742 = vunpack.c.h.b16 %v8667
          %v8743 = vunpack.c.l.b16 %v8668
          %v8744 = vunpack.c.h.b16 %v8668
          %v8745 = vunpack.c.l.b16 %v8669
          %v8746 = vunpack.c.h.b16 %v8669
          %v8747 = vunpack.c.l.b16 %v8670
          %v8748 = vunpack.c.h.b16 %v8670
          %v8749 = vunpack.c.l.b16 %v8671
          %v8750 = vunpack.c.h.b16 %v8671
          %v8751 = vunpack.c.l.b16 %v8672
          %v8752 = vunpack.c.h.b16 %v8672
          %v8753 = vunpack.c.l.b16 %v8673
          %v8754 = vunpack.c.h.b16 %v8673
          %v8755 = vunpack.c.l.b16 %v8674
          %v8756 = vunpack.c.h.b16 %v8674
          %v8757 = vunpack.c.l.b16 %v8675
          %v8758 = vunpack.c.h.b16 %v8675
          %v8759 = vunpack.c.l.b16 %v8676
          %v8760 = vunpack.c.h.b16 %v8676
          %v8761 = vunpack.c.l.b16 %v8677
          %v8762 = vunpack.c.h.b16 %v8677
          %v8763 = vunpack.c.l.b16 %v8678
          %v8764 = vunpack.c.h.b16 %v8678
          %v8765 = vunpack.c.l.b16 %v8679
          %v8766 = vunpack.c.h.b16 %v8679
          %v8767 = vunpack.c.l.b16 %v8680
          %v8768 = vunpack.c.h.b16 %v8680
          %v8769 = vunpack.c.l.b16 %v8681
          %v8770 = vunpack.c.h.b16 %v8681
          %v8771 = vunpack.c.l.b16 %v8682
          %v8772 = vunpack.c.h.b16 %v8682
          %v8773 = vunpack.c.l.b16 %v8683
          %v8774 = vunpack.c.h.b16 %v8683
          %v8775 = vunpack.c.l.b16 %v8684
          %v8776 = vunpack.c.h.b16 %v8684
          %v8777 = vunpack.c.l.b16 %v8685
          %v8778 = vunpack.c.h.b16 %v8685
          %v8779 = vunpack.c.l.b16 %v8686
          %v8780 = vunpack.c.h.b16 %v8686
          %v8781 = vunpack.c.l.b16 %v8687
          %v8782 = vunpack.c.h.b16 %v8687
          %v8783 = vunpack.c.l.b16 %v8688
          %v8784 = vunpack.c.h.b16 %v8688
          %v8785 = vunpack.c.l.b16 %v8689
          %v8786 = vunpack.c.h.b16 %v8689
          %v8787 = vpack.c.b16 %v8725, %v8723
          %v8788 = vpack.c.b16 %v8726, %v8724
          %v8789 = vpack.c.b16 %v8729, %v8727
          %v8790 = vpack.c.b16 %v8730, %v8728
          %v8791 = vpack.c.b16 %v8733, %v8731
          %v8792 = vpack.c.b16 %v8734, %v8732
          %v8793 = vpack.c.b16 %v8737, %v8735
          %v8794 = vpack.c.b16 %v8738, %v8736
          %v8795 = vpack.c.b16 %v8741, %v8739
          %v8796 = vpack.c.b16 %v8742, %v8740
          %v8797 = vpack.c.b16 %v8745, %v8743
          %v8798 = vpack.c.b16 %v8746, %v8744
          %v8799 = vpack.c.b16 %v8749, %v8747
          %v8800 = vpack.c.b16 %v8750, %v8748
          %v8801 = vpack.c.b16 %v8753, %v8751
          %v8802 = vpack.c.b16 %v8754, %v8752
          %v8803 = vpack.c.b16 %v8757, %v8755
          %v8804 = vpack.c.b16 %v8758, %v8756
          %v8805 = vpack.c.b16 %v8761, %v8759
          %v8806 = vpack.c.b16 %v8762, %v8760
          %v8807 = vpack.c.b16 %v8765, %v8763
          %v8808 = vpack.c.b16 %v8766, %v8764
          %v8809 = vpack.c.b16 %v8769, %v8767
          %v8810 = vpack.c.b16 %v8770, %v8768
          %v8811 = vpack.c.b16 %v8773, %v8771
          %v8812 = vpack.c.b16 %v8774, %v8772
          %v8813 = vpack.c.b16 %v8777, %v8775
          %v8814 = vpack.c.b16 %v8778, %v8776
          %v8815 = vpack.c.b16 %v8781, %v8779
          %v8816 = vpack.c.b16 %v8782, %v8780
          %v8817 = vpack.c.b16 %v8785, %v8783
          %v8818 = vpack.c.b16 %v8786, %v8784
          %v8852 = vlaneseq
          %v8853 = vshrl.u32 %v8852, 7
          %v8854 = vsub.s32 0, %v8853
          %v8855 = vrot.slane %v8690, %v8854
          %v8856 = vlaneseq
          %v8857 = vshrl.u32 %v8856, 7
          %v8858 = vsub.s32 1, %v8857
          %v8859 = vrot.slane %v8690, %v8858
          %8862 = vmatprep.subr.bf16.mxu0 %v8802
          %8863 = vmatpush1.bf16.msra.mxu0 %v8801
          %8864 = vmatprep.subr.bf16.mxu0 %v8800
          %8865 = vmatpush1.bf16.msra.mxu0 %v8799
          %8866 = vmatprep.subr.bf16.mxu0 %v8798
          %8867 = vmatpush1.bf16.msra.mxu0 %v8797
          %8868 = vmatprep.subr.bf16.mxu0 %v8796
          %8869 = vmatpush1.bf16.msra.mxu0 %v8795
          %8870 = vmatprep.subr.bf16.mxu0 %v8794
          %8871 = vmatpush1.bf16.msra.mxu0 %v8793
          %8872 = vmatprep.subr.bf16.mxu0 %v8792
          %8873 = vmatpush1.bf16.msra.mxu0 %v8791
          %8874 = vmatprep.subr.bf16.mxu0 %v8790
          %8875 = vmatpush1.bf16.msra.mxu0 %v8789
          %8876 = vmatprep.subr.bf16.mxu0 %v8788
          %8877 = vmatpush1.bf16.msra.mxu0 %v8787
          %8878 = vmatprep.subr.bf16.mxu0 %v8818
          %8879 = vmatpush2.bf16.msra.mxu0 %v8817
          %8880 = vmatprep.subr.bf16.mxu0 %v8816
          %8881 = vmatpush2.bf16.msra.mxu0 %v8815
          %8882 = vmatprep.subr.bf16.mxu0 %v8814
          %8883 = vmatpush2.bf16.msra.mxu0 %v8813
          %8884 = vmatprep.subr.bf16.mxu0 %v8812
          %8885 = vmatpush2.bf16.msra.mxu0 %v8811
          %8886 = vmatprep.subr.bf16.mxu0 %v8810
          %8887 = vmatpush2.bf16.msra.mxu0 %v8809
          %8888 = vmatprep.subr.bf16.mxu0 %v8808
          %8889 = vmatpush2.bf16.msra.mxu0 %v8807
          %8890 = vmatprep.subr.bf16.mxu0 %v8806
          %8891 = vmatpush2.bf16.msra.mxu0 %v8805
          %8892 = vmatprep.subr.bf16.mxu0 %v8804
          %8893 = vmatpush2.bf16.msra.mxu0 %v8803
          %8894 = vmatprep.mubr.bf16.mxu0 %v8657
          %8895 = vmatmul.mubr.bf16.gmra.mxu0 %v8656
          %v8896 = vpop.f32.mrf.mxu0
          %v8897 = vadd.f32 %v8855, %v8896
          %v8898 = vpop.f32.mrf.mxu0
          %v8899 = vadd.f32 %v8859, %v8898
          %v8900 = vpop.f32.mrf.mxu0
          %v8901 = vpop.f32.mrf.mxu0
          %8902 = vdwg.mxu0
          %v8903 = vmax.f32 %v8897, 0.0
          %v8904 = vmax.f32 %v8899, 0.0
          %8905 = vxpose.xlu0.b32.start [1/16] %v8903, 128
          %8906 = vxpose.xlu0.b32.cont [2/16] 0.0, 128
          %8907 = vxpose.xlu0.b32.cont [3/16] 0.0, 128
          %8908 = vxpose.xlu0.b32.cont [4/16] 0.0, 128
          %8909 = vxpose.xlu0.b32.cont [5/16] 0.0, 128
          %8910 = vxpose.xlu0.b32.cont [6/16] 0.0, 128
          %8911 = vxpose.xlu0.b32.cont [7/16] 0.0, 128
          %8912 = vxpose.xlu0.b32.cont [8/16] 0.0, 128
          %8913 = vxpose.xlu0.b32.cont [9/16] 0.0, 128
          %8914 = vxpose.xlu0.b32.cont [10/16] 0.0, 128
          %8915 = vxpose.xlu0.b32.cont [11/16] 0.0, 128
          %8916 = vxpose.xlu0.b32.cont [12/16] 0.0, 128
          %8917 = vxpose.xlu0.b32.cont [13/16] 0.0, 128
          %8918 = vxpose.xlu0.b32.cont [14/16] 0.0, 128
          %8919 = vxpose.xlu0.b32.cont [15/16] 0.0, 128
          %8920 = vxpose.xlu0.b32.end [16/16] 0.0, 128
          %v8921 = vpop.trf.xlu0
          %v8922 = vpop.trf.xlu0
          %v8923 = vpop.trf.xlu0
          %v8924 = vpop.trf.xlu0
          %v8925 = vpop.trf.xlu0
          %v8926 = vpop.trf.xlu0
          %v8927 = vpop.trf.xlu0
          %v8928 = vpop.trf.xlu0
          %v8929 = vpop.trf.xlu0
          %v8930 = vpop.trf.xlu0
          %v8931 = vpop.trf.xlu0
          %v8932 = vpop.trf.xlu0
          %v8933 = vpop.trf.xlu0
          %v8934 = vpop.trf.xlu0
          %v8935 = vpop.trf.xlu0
          %v8936 = vpop.trf.xlu0
          %8937 = vxpose.xlu0.b32.start [1/16] %v8904, 128
          %8938 = vxpose.xlu0.b32.cont [2/16] 0.0, 128
          %8939 = vxpose.xlu0.b32.cont [3/16] 0.0, 128
          %8940 = vxpose.xlu0.b32.cont [4/16] 0.0, 128
          %8941 = vxpose.xlu0.b32.cont [5/16] 0.0, 128
          %8942 = vxpose.xlu0.b32.cont [6/16] 0.0, 128
          %8943 = vxpose.xlu0.b32.cont [7/16] 0.0, 128
          %8944 = vxpose.xlu0.b32.cont [8/16] 0.0, 128
          %8945 = vxpose.xlu0.b32.cont [9/16] 0.0, 128
          %8946 = vxpose.xlu0.b32.cont [10/16] 0.0, 128
          %8947 = vxpose.xlu0.b32.cont [11/16] 0.0, 128
          %8948 = vxpose.xlu0.b32.cont [12/16] 0.0, 128
          %8949 = vxpose.xlu0.b32.cont [13/16] 0.0, 128
          %8950 = vxpose.xlu0.b32.cont [14/16] 0.0, 128
          %8951 = vxpose.xlu0.b32.cont [15/16] 0.0, 128
          %8952 = vxpose.xlu0.b32.end [16/16] 0.0, 128
          %v8953 = vpop.trf.xlu0
          %v8954 = vpop.trf.xlu0
          %v8955 = vpop.trf.xlu0
          %v8956 = vpop.trf.xlu0
          %v8957 = vpop.trf.xlu0
          %v8958 = vpop.trf.xlu0
          %v8959 = vpop.trf.xlu0
          %v8960 = vpop.trf.xlu0
          %v8961 = vpop.trf.xlu0
          %v8962 = vpop.trf.xlu0
          %v8963 = vpop.trf.xlu0
          %v8964 = vpop.trf.xlu0
          %v8965 = vpop.trf.xlu0
          %v8966 = vpop.trf.xlu0
          %v8967 = vpop.trf.xlu0
          %v8968 = vpop.trf.xlu0
          %vm8969 = vcmask 7168
          %8970 = vst.msk [vmem:[%s431] sm:$0xff] %vm8969, %v8921
          %8971 = vst.msk [vmem:[%s431 + $0x8] sm:$0xff] %vm8969, %v8922
          %8972 = vst.msk [vmem:[%s431 + $0x10] sm:$0xff] %vm8969, %v8923
          %8973 = vst.msk [vmem:[%s431 + $0x18] sm:$0xff] %vm8969, %v8924
          %8974 = vst.msk [vmem:[%s431 + $0x20] sm:$0xff] %vm8969, %v8925
          %8975 = vst.msk [vmem:[%s431 + $0x28] sm:$0xff] %vm8969, %v8926
          %8976 = vst.msk [vmem:[%s431 + $0x30] sm:$0xff] %vm8969, %v8927
          %8977 = vst.msk [vmem:[%s431 + $0x38] sm:$0xff] %vm8969, %v8928
          %8978 = vst.msk [vmem:[%s431 + $0x40] sm:$0xff] %vm8969, %v8929
          %8979 = vst.msk [vmem:[%s431 + $0x48] sm:$0xff] %vm8969, %v8930
          %8980 = vst.msk [vmem:[%s431 + $0x50] sm:$0xff] %vm8969, %v8931
          %8981 = vst.msk [vmem:[%s431 + $0x58] sm:$0xff] %vm8969, %v8932
          %8982 = vst.msk [vmem:[%s431 + $0x60] sm:$0xff] %vm8969, %v8933
          %8983 = vst.msk [vmem:[%s431 + $0x68] sm:$0xff] %vm8969, %v8934
          %8984 = vst.msk [vmem:[%s431 + $0x70] sm:$0xff] %vm8969, %v8935
          %8985 = vst.msk [vmem:[%s431 + $0x78] sm:$0xff] %vm8969, %v8936
          %8986 = vst.msk [vmem:[%s431 + $0x80] sm:$0xff] %vm8969, %v8953
          %8987 = vst.msk [vmem:[%s431 + $0x88] sm:$0xff] %vm8969, %v8954
          %8988 = vst.msk [vmem:[%s431 + $0x90] sm:$0xff] %vm8969, %v8955
          %8989 = vst.msk [vmem:[%s431 + $0x98] sm:$0xff] %vm8969, %v8956
          %8990 = vst.msk [vmem:[%s431 + $0xa0] sm:$0xff] %vm8969, %v8957
          %8991 = vst.msk [vmem:[%s431 + $0xa8] sm:$0xff] %vm8969, %v8958
          %8992 = vst.msk [vmem:[%s431 + $0xb0] sm:$0xff] %vm8969, %v8959
          %8993 = vst.msk [vmem:[%s431 + $0xb8] sm:$0xff] %vm8969, %v8960
          %8994 = vst.msk [vmem:[%s431 + $0xc0] sm:$0xff] %vm8969, %v8961
          %8995 = vst.msk [vmem:[%s431 + $0xc8] sm:$0xff] %vm8969, %v8962
          %8996 = vst.msk [vmem:[%s431 + $0xd0] sm:$0xff] %vm8969, %v8963
          %8997 = vst.msk [vmem:[%s431 + $0xd8] sm:$0xff] %vm8969, %v8964
          %8998 = vst.msk [vmem:[%s431 + $0xe0] sm:$0xff] %vm8969, %v8965
          %8999 = vst.msk [vmem:[%s431 + $0xe8] sm:$0xff] %vm8969, %v8966
          %9000 = vst.msk [vmem:[%s431 + $0xf0] sm:$0xff] %vm8969, %v8967
          %9001 = vst.msk [vmem:[%s431 + $0xf8] sm:$0xff] %vm8969, %v8968
        $region80: #{tpu_custom_call.1} parent=59 // pred_fallthru
          _
        %p9002 = scmp.lt.s32.totalorder %s27, 1
        %s9003 = scalar_select %p9002, %s27, 1
        %s9004 = smul.addr %s9003, 32
        %s9005 = smul.addr %s9004, 8
        %s9006 = scalar_lea.vmem %s10, %s9005
        // Predicated region
        $region81: #{tpu_custom_call.1} parent=59 // pred_check
          %p9007 = pneg %p270
        $region82: #{tpu_custom_call.1} parent=59 // pred_check_branch
          %9009 = sbr.rel (%p9007) target = $region84
        $region83: #{tpu_custom_call.1} parent=59 // pred_region
          _
        $region84: #{tpu_custom_call.1} parent=59 // pred_fallthru
          _
      $region60: #{tpu_custom_call.1} parent=5 // pred_fallthru
        _
      %p9010 = scmp.le.s32.totalorder 2, %s18
      // Predicated region
      $region85: #{tpu_custom_call.1} parent=5 // pred_check
        %p9011 = pneg %p9010
      $region86: #{tpu_custom_call.1} parent=5 // pred_check_branch
        %9013 = sbr.rel (%p9011) target = $region88
      $region87: #{tpu_custom_call.1} parent=5 // pred_region
        %s9014 = ssub.s32 %s18, 2
        // Predicated region
        $region89: #{tpu_custom_call.1} parent=87 // pred_check
          %p9015 = pneg %p276
        $region90: #{tpu_custom_call.1} parent=87 // pred_check_branch
          %9017 = sbr.rel (%p9015) target = $region92
        $region91: #{tpu_custom_call.1} parent=87 // pred_region
          %p9018 = scmp.lt.s32.totalorder %s29, 1
          %s9019 = scalar_select %p9018, %s29, 1
          %s9020 = smul.addr %s9019, 32
          %s9021 = smul.addr %s9020, 8
          %s9022 = scalar_lea.vmem %s10, %s9021
        $region92: #{tpu_custom_call.1} parent=87 // pred_fallthru
          _
      $region88: #{tpu_custom_call.1} parent=5 // pred_fallthru
        _
    $region6: #{tpu_custom_call.1} parent=1 // loop_footer
      %s22 = sadd.s32 1, %s18
    $region7: #{tpu_custom_call.1} parent=1 // loop_footer_branch
      %17 = sbr.rel target = $region3
    $region8: #{tpu_custom_call.1} parent=1 // loop_exit
      _
    %9023 = vsyncpa [#allocation4], 1
    %s9024 = scalar_lea.sflag [#allocation4], 1
    %9025 = vsyncpa %s9024, 1
    %9026 = vsyncpa [#allocation6], 1

</llo_original>
